<compile_context>
chip_gen: v5e
topology: v5e:2x2
jax: 0.10.0
libtpu: 0.0.40
codegen_flags: <defaults>
</compile_context>

<pallas_src>
import functools

import numpy as np
import jax
import jax.numpy as jnp
from jax import lax
from jax.experimental import pallas as pl
from jax.experimental.pallas import tpu as pltpu


def _round_up(x, m):
    return (x + m - 1) // m * m


# ------------------------------ tiled fused matmul kernel ------------------------------

def _matmul_kernel(*refs, has_scale, has_shift, has_mix, activation):
    a_ref, b_ref = refs[0], refs[1]
    idx = 2
    s_ref = t_ref = mix_ref = None
    if has_scale:
        s_ref = refs[idx]; idx += 1
    if has_shift:
        t_ref = refs[idx]; idx += 1
    if has_mix:
        mix_ref = refs[idx]; idx += 1
    o_ref, acc_ref = refs[idx], refs[idx + 1]

    k = pl.program_id(2)

    @pl.when(k == 0)
    def _():
        acc_ref[...] = jnp.zeros_like(acc_ref)

    acc_ref[...] += jnp.dot(a_ref[...], b_ref[...], preferred_element_type=jnp.float32)

    @pl.when(k == pl.num_programs(2) - 1)
    def _():
        y = acc_ref[...]
        if has_scale:
            y = y * s_ref[...]
        if has_shift:
            y = y + t_ref[...]
        if activation == "tanh":
            y = jnp.tanh(y)
        elif activation == "relu":
            y = jnp.maximum(y, 0.0)
        if has_mix:
            y = y * mix_ref[...]
        o_ref[...] = y


def matmul_fused(a, b, *, scale=None, shift=None, mix=None, activation=None,
                 tm=256, tn=256, tk=512):
    """o = act((a @ b) * scale + shift) * mix.  Tiled/pipelined, bf16 operands, f32 epilogue."""
    M, K = a.shape
    K2, N = b.shape
    assert K == K2
    Mp = _round_up(M, 8)
    Kp = _round_up(K, 128)
    Np = _round_up(N, 128)
    bm, bn, bk = min(tm, Mp), min(tn, Np), min(tk, Kp)
    Mp, Np, Kp = _round_up(Mp, bm), _round_up(Np, bn), _round_up(Kp, bk)

    a_p = jnp.pad(a.astype(jnp.bfloat16), ((0, Mp - M), (0, Kp - K)))
    b_p = jnp.pad(b.astype(jnp.bfloat16), ((0, Kp - K), (0, Np - N)))

    operands = [a_p, b_p]
    in_specs = [pl.BlockSpec((bm, bk), lambda i, j, k: (i, k)),
                pl.BlockSpec((bk, bn), lambda i, j, k: (k, j))]
    if scale is not None:
        operands.append(jnp.pad(scale.reshape(1, N).astype(jnp.float32),
                                ((0, 0), (0, Np - N))))
        in_specs.append(pl.BlockSpec((1, bn), lambda i, j, k: (0, j)))
    if shift is not None:
        operands.append(jnp.pad(shift.reshape(1, N).astype(jnp.float32),
                                ((0, 0), (0, Np - N))))
        in_specs.append(pl.BlockSpec((1, bn), lambda i, j, k: (0, j)))
    if mix is not None:
        # bf16 mask: halves the resident VMEM footprint of the (bm, bn) block that sits
        # in VMEM for the whole K loop (only consumed at k == last).
        operands.append(jnp.pad(mix.astype(jnp.bfloat16), ((0, Mp - M), (0, Np - N))))
        in_specs.append(pl.BlockSpec((bm, bn), lambda i, j, k: (i, j)))

    cost = pl.CostEstimate(
        flops=2 * Mp * Np * Kp,
        transcendentals=Mp * Np if activation == "tanh" else 0,
        bytes_accessed=(Mp * Kp + Kp * Np) * 2 + Mp * Np * 4
        + (Mp * Np * 2 if mix is not None else 0))

    out = pl.pallas_call(
        functools.partial(_matmul_kernel,
                          has_scale=scale is not None, has_shift=shift is not None,
                          has_mix=mix is not None, activation=activation),
        out_shape=jax.ShapeDtypeStruct((Mp, Np), jnp.float32),
        grid=(Mp // bm, Np // bn, Kp // bk),
        in_specs=in_specs,
        out_specs=pl.BlockSpec((bm, bn), lambda i, j, k: (i, j)),
        scratch_shapes=[pltpu.VMEM((bm, bn), jnp.float32)],
        compiler_params=pltpu.CompilerParams(
            dimension_semantics=("parallel", "parallel", "arbitrary")),
        cost_estimate=cost,
    )(*operands)
    return out[:M, :N]


# ------------------------------ STFT magnitude kernel ------------------------------

def _stft_mag_kernel(fr_ref, cos_ref, sin_ref, o_ref):
    fr = fr_ref[...]
    re = jnp.dot(fr, cos_ref[...], preferred_element_type=jnp.float32)
    im = jnp.dot(fr, sin_ref[...], preferred_element_type=jnp.float32)
    o_ref[...] = jnp.sqrt(re * re + im * im)


def stft_magnitude(frames, cos_m, sin_m, nbins, *, tm=256, tn=512):
    """Windowed real-DFT + magnitude (power=1).  Tiled over frames (M) and frequency (N)."""
    M, NF = frames.shape
    NB = cos_m.shape[1]
    Mp = _round_up(M, 8)
    bm = min(tm, Mp)
    Mp = _round_up(Mp, bm)
    Np = _round_up(NB, 128)
    bn = min(tn, Np)
    Np = _round_up(Np, bn)

    fr = jnp.pad(frames.astype(jnp.bfloat16), ((0, Mp - M), (0, 0)))
    cz = jnp.pad(cos_m.astype(jnp.bfloat16), ((0, 0), (0, Np - NB)))
    sz = jnp.pad(sin_m.astype(jnp.bfloat16), ((0, 0), (0, Np - NB)))

    out = pl.pallas_call(
        _stft_mag_kernel,
        out_shape=jax.ShapeDtypeStruct((Mp, Np), jnp.float32),
        grid=(Mp // bm, Np // bn),
        in_specs=[pl.BlockSpec((bm, NF), lambda i, j: (i, 0)),
                  pl.BlockSpec((NF, bn), lambda i, j: (0, j)),
                  pl.BlockSpec((NF, bn), lambda i, j: (0, j))],
        out_specs=pl.BlockSpec((bm, bn), lambda i, j: (i, j)),
        compiler_params=pltpu.CompilerParams(
            dimension_semantics=("parallel", "parallel")),
        cost_estimate=pl.CostEstimate(
            flops=4 * Mp * Np * NF, transcendentals=Mp * Np,
            bytes_accessed=Mp * NF * 2 * (Np // bn) + 2 * NF * Np * 2 + Mp * Np * 4),
    )(fr, cz, sz)
    return out[:M, :nbins]


# ------------------------------ bidirectional LSTM recurrence kernel ------------------------------

def _sigmoid(x):
    return 1.0 / (1.0 + jnp.exp(-x))


def _lstm_rec_kernel(p_ref, whh_ref, o_ref, h_st, c_st, *, hidden, tt):
    d = pl.program_id(0)          # direction: 0 = forward, 1 = (time-reversed) backward
    g = pl.program_id(1)          # time block

    @pl.when(g == 0)
    def _():
        h_st[d] = jnp.zeros(h_st.shape[1:], h_st.dtype)
        c_st[d] = jnp.zeros(c_st.shape[1:], c_st.dtype)

    whh = whh_ref[0]              # (hidden, 4*hidden) bf16, resident in VMEM

    def step(s, carry):
        h, c = carry
        gates = p_ref[0, s] + jnp.dot(h.astype(jnp.bfloat16), whh,
                                      preferred_element_type=jnp.float32)
        i = _sigmoid(gates[:, :hidden])                 # PyTorch gate order: i, f, g, o
        f = _sigmoid(gates[:, hidden:2 * hidden])
        gg = jnp.tanh(gates[:, 2 * hidden:3 * hidden])
        o = _sigmoid(gates[:, 3 * hidden:])
        c = f * c + i * gg
        h = o * jnp.tanh(c)
        o_ref[0, s] = h
        return h, c

    h, c = lax.fori_loop(0, tt, step, (h_st[d], c_st[d]), unroll=True)
    h_st[d] = h
    c_st[d] = c


def _pick_time_block(T):
    for cand in (16, 32, 24, 12, 8, 6, 4, 3, 2):
        if T % cand == 0:
            return cand
    return 1


def lstm_bidir_layer(pf, pb, w_hh_stack, hidden):
    """One bidirectional LSTM layer recurrence.  pf/pb: (T, B, 4H) projected inputs (f32).
    w_hh_stack: (2, H, 4H) bf16 (forward, backward), already transposed."""
    T, B, G = pf.shape
    tt = _pick_time_block(T)
    ng = T // tt
    # Stack the two directions; the backward stream is pre-reversed in time so both
    # directions run "forward" over their own grid axis (leading axis -> 2-TC parallel).
    p_stack = jnp.stack([pf, pb[::-1]], axis=0)                  # (2, T, B, 4H)

    out = pl.pallas_call(
        functools.partial(_lstm_rec_kernel, hidden=hidden, tt=tt),
        out_shape=jax.ShapeDtypeStruct((2, T, B, hidden), jnp.float32),
        grid=(2, ng),
        in_specs=[pl.BlockSpec((1, tt, B, G), lambda d, g: (d, g, 0, 0)),
                  pl.BlockSpec((1, hidden, G), lambda d, g: (d, 0, 0))],
        out_specs=pl.BlockSpec((1, tt, B, hidden), lambda d, g: (d, g, 0, 0)),
        scratch_shapes=[pltpu.VMEM((2, B, hidden), jnp.float32),
                        pltpu.VMEM((2, B, hidden), jnp.float32)],
        compiler_params=pltpu.CompilerParams(
            dimension_semantics=("parallel", "arbitrary")),
    )(p_stack, w_hh_stack)
    return out[0], out[1][::-1]


def lstm_forward(x, layers, hidden):
    """3-layer bidirectional LSTM.  Input projections run in the tiled matmul kernel
    (bias-only epilogue); the time recurrence runs in a Pallas kernel with h/c in VMEM."""
    T, B, _ = x.shape
    out = x
    for p in layers:
        proj = matmul_fused(out.reshape(T * B, -1), p["w_ih_cat"], shift=p["b_cat"])
        proj = proj.reshape(T, B, 8 * hidden)
        of, ob = lstm_bidir_layer(proj[..., :4 * hidden], proj[..., 4 * hidden:],
                                  p["w_hh_stack"], hidden)
        out = jnp.concatenate([of, ob], axis=-1)
    return out


# ------------------------------ parameters ------------------------------

def bn_fold(p, name, eps=1e-5):
    s = p[name + "_gamma"] / jnp.sqrt(p[name + "_var"] + eps)
    t = p[name + "_beta"] - p[name + "_mean"] * s
    return s, t


def init_params(key, *, n_fft, nb_channels, hidden_size, nb_layers, n_mels=40):
    nb_output_bins = n_fft // 2 + 1
    nb_bins = nb_output_bins
    lstm_hidden = hidden_size // 2
    keys = iter(jax.random.split(key, 64))

    def rnd(shape, scale=0.1):
        return scale * jax.random.normal(next(keys), shape, jnp.float32)

    p = {}
    # synthetic (deterministic) mel filterbank buffer, shape (n_freqs, n_mels)
    p["fb"] = jnp.abs(rnd((nb_output_bins, n_mels), 0.5)).astype(jnp.bfloat16)
    # static fc weights: pre-transposed + pre-cast to bf16 once (no per-forward cast traffic)
    p["fc1_wT"] = rnd((hidden_size, nb_bins * nb_channels)).T.astype(jnp.bfloat16)
    p["fc2_wT"] = rnd((hidden_size, hidden_size * 3)).T.astype(jnp.bfloat16)
    p["fc3_wT"] = rnd((nb_output_bins * nb_channels, hidden_size)).T.astype(jnp.bfloat16)
    for name, n in (("bn1", hidden_size), ("bn2", hidden_size),
                    ("bn3", nb_output_bins * nb_channels)):
        p[name + "_gamma"] = 1.0 + rnd((n,))
        p[name + "_beta"] = rnd((n,))
        p[name + "_mean"] = jnp.zeros((n,), jnp.float32)   # fresh-module running stats
        p[name + "_var"] = jnp.ones((n,), jnp.float32)
    # exactly as in __init__ (no input_mean / input_scale supplied)
    p["input_mean"] = jnp.zeros((nb_bins,), jnp.float32)
    p["input_scale"] = jnp.ones((nb_bins,), jnp.float32)
    p["output_scale"] = jnp.ones((nb_output_bins,), jnp.float32)
    p["output_mean"] = jnp.ones((nb_output_bins,), jnp.float32)

    layers = []
    for l in range(nb_layers):
        in_l = hidden_size if l == 0 else 2 * lstm_hidden
        w_ih_f = rnd((4 * lstm_hidden, in_l)); w_ih_b = rnd((4 * lstm_hidden, in_l))
        w_hh_f = rnd((4 * lstm_hidden, lstm_hidden)); w_hh_b = rnd((4 * lstm_hidden, lstm_hidden))
        b_ih_f = rnd((4 * lstm_hidden,)); b_ih_b = rnd((4 * lstm_hidden,))
        b_hh_f = rnd((4 * lstm_hidden,)); b_hh_b = rnd((4 * lstm_hidden,))
        layers.append({
            # (in, 8H) bf16: both directions' input projections in one matmul
            "w_ih_cat": jnp.concatenate([w_ih_f.T, w_ih_b.T], axis=1).astype(jnp.bfloat16),
            "b_cat": jnp.concatenate([b_ih_f + b_hh_f, b_ih_b + b_hh_b]),       # f32 (8H,)
            # (2, H, 4H) bf16, transposed for the in-kernel recurrence dot
            "w_hh_stack": jnp.stack([w_hh_f.T, w_hh_b.T]).astype(jnp.bfloat16),
        })
    p["lstm"] = layers
    return p


# ------------------------------ OpenUnmix forward ------------------------------

def open_unmix_forward(x, p, *, n_fft, n_hop, hidden_size, nb_layers, n_mels=40):
    S, C, T = x.shape
    nbins = n_fft // 2 + 1
    nb_bins = nbins
    lstm_hidden = hidden_size // 2
    F = 1 + (T - n_fft) // n_hop                       # center=False frame count
    assert n_mels <= F <= nbins                        # required by the reference mel path

    # --- hann window folded into the real-DFT matrices (built with numpy -> baked constants)
    n = np.arange(n_fft, dtype=np.float64)
    win = 0.5 * (1.0 - np.cos(2.0 * np.pi * n / n_fft))          # torch.hann_window (periodic)
    kf = np.arange(nbins, dtype=np.float64)
    ang = 2.0 * np.pi * np.outer(n, kf) / n_fft
    cos_m = jnp.asarray((win[:, None] * np.cos(ang)).astype(np.float32))    # (n_fft, nbins)
    sin_m = jnp.asarray((win[:, None] * -np.sin(ang)).astype(np.float32))   # (n_fft, nbins)

    # TODO(synk): fold the overlapping frame extraction into the STFT kernel via manual
    # strided DMA / element-offset index_maps to avoid materializing the n_fft/n_hop-times
    # larger frames tensor in HBM (kept in XLA for now, in bf16 to halve the traffic).
    x2d = x.reshape(S * C, T)
    idx = jnp.arange(F)[:, None] * n_hop + jnp.arange(n_fft)[None, :]
    frames = x2d.astype(jnp.bfloat16)[:, idx].reshape(S * C * F, n_fft)
    mag = stft_magnitude(frames, cos_m, sin_m, nbins)            # (S*C*F, nbins)

    x1 = jnp.transpose(mag.reshape(S, C, F, nbins), (2, 0, 1, 3))   # (F, S, C, nbins)
    mix = x1                                                        # mix = x1.detach().clone()

    # --- MelSpectrogram branch (reference contracts over the *frame* axis with fb[:F, :n_mels]):
    #     mel_head[m, s, c, b] = sum_f fb[f, m] * x1[f, s, c, b]     (only the n_mels real rows)
    mel_head = matmul_fused(p["fb"][:F, :n_mels].T, x1.reshape(F, S * C * nbins))

    bn1_s, bn1_t = bn_fold(p, "bn1")
    bn2_s, bn2_t = bn_fold(p, "bn2")
    bn3_s, bn3_t = bn_fold(p, "bn3")

    # --- fc1 for both branches fused in one tiled matmul (same weight / bn1 / tanh) ---
    x1b = (x1[..., :nb_bins] + p["input_mean"]) * p["input_scale"]
    rows = jnp.concatenate([x1b.reshape(F * S, C * nb_bins),
                            mel_head.reshape(n_mels * S, C * nb_bins)], axis=0)
    h12 = matmul_fused(rows, p["fc1_wT"], scale=bn1_s, shift=bn1_t, activation="tanh",
                       tm=512)
    x1h = h12[:F * S].reshape(F, S, hidden_size)
    x2h_head = h12[F * S:].reshape(n_mels, S, hidden_size)
    if F > n_mels:
        # zero-padded mel frames -> fc1(0) (no bias) -> bn1 -> tanh == constant tanh(bn1_t) row
        x2h_tail = jnp.broadcast_to(jnp.tanh(bn1_t)[None, None, :],
                                    (F - n_mels, S, hidden_size))
        x2h = jnp.concatenate([x2h_head, x2h_tail], axis=0)
    else:
        x2h = x2h_head

    # --- LSTM: both streams batched along the batch axis (identical weights, zero init state) ---
    xl = jnp.concatenate([x1h, x2h], axis=1)                     # (F, 2S, hidden)
    lout = lstm_forward(xl, p["lstm"], lstm_hidden)              # (F, 2S, hidden)
    lstm_out1 = lout[:, :S]
    lstm_out2 = lout[:, S:]

    # --- fc2 + bn2 + relu ---
    cat = jnp.concatenate([x1h, lstm_out1, lstm_out2], axis=-1)  # (F, S, 3*hidden)
    h = matmul_fused(cat.reshape(F * S, 3 * hidden_size), p["fc2_wT"],
                     scale=bn2_s, shift=bn2_t, activation="relu")

    # --- fc3 + bn3 + output scale/mean + relu + * mix, fused in one tiled kernel ---
    out_scale = jnp.tile(p["output_scale"], C)                   # column j = (chan, bin)
    out_mean = jnp.tile(p["output_mean"], C)
    s3 = bn3_s * out_scale
    t3 = bn3_t * out_scale + out_mean
    out = matmul_fused(h, p["fc3_wT"], scale=s3, shift=t3, activation="relu",
                       mix=mix.reshape(F * S, C * nbins), tm=512)
    return out.reshape(F, S, C, nbins)


# ------------------------------ demo ------------------------------

if __name__ == "__main__":
    # small configuration consistent with the module
    n_fft, n_hop = 128, 32          # nb_output_bins = 65
    nb_channels = 2
    hidden_size = 32                # lstm hidden = 16, bidirectional, 3 layers
    nb_layers = 3
    nb_samples = 2
    nb_frames = 48                  # must satisfy 40 <= nb_frames <= n_fft//2+1 (mel path)
    nb_timesteps = n_fft + (nb_frames - 1) * n_hop   # -> exactly 48 STFT frames

    key = jax.random.PRNGKey(0)
    kx, kp = jax.random.split(key)
    x = jax.random.normal(kx, (nb_samples, nb_channels, nb_timesteps), jnp.float32)
    params = init_params(kp, n_fft=n_fft, nb_channels=nb_channels,
                         hidden_size=hidden_size, nb_layers=nb_layers)

    fwd = jax.jit(functools.partial(open_unmix_forward, n_fft=n_fft, n_hop=n_hop,
                                    hidden_size=hidden_size, nb_layers=nb_layers))
    y = fwd(x, params)
    jax.block_until_ready(y)
    assert y.shape == (nb_frames, nb_samples, nb_channels, n_fft // 2 + 1)
    assert bool(jnp.all(jnp.isfinite(y)))
    print("KERNEL_OK")
</pallas_src>

<mosaic_0001>
module attributes {stable_mosaic.version = 11 : i64} {
  func.func @_stft_mag_kernel(%arg0: i32, %arg1: i32, %arg2: memref<192x128xbf16, #tpu.memory_space<vmem>>, %arg3: memref<128x128xbf16, #tpu.memory_space<vmem>>, %arg4: memref<128x128xbf16, #tpu.memory_space<vmem>>, %arg5: memref<192x128xf32, #tpu.memory_space<vmem>>) attributes {dimension_semantics = [#tpu.dimension_semantics<parallel>, #tpu.dimension_semantics<parallel>], iteration_bounds = array<i64: 1, 1>, scalar_prefetch = 0 : i64, scratch_operands = 0 : i64, tpu.core_type = #tpu.core_type<tc>, window_params = [{transform_indices = @transform_0, window_bounds = array<i64: 192, 128>}, {transform_indices = @transform_1, window_bounds = array<i64: 128, 128>}, {transform_indices = @transform_2, window_bounds = array<i64: 128, 128>}, {transform_indices = @transform_3, window_bounds = array<i64: 192, 128>}]} {
    %c0 = arith.constant 0 : index
    %c0_0 = arith.constant 0 : index
    %0 = vector.load %arg2[%c0, %c0_0] : memref<192x128xbf16, #tpu.memory_space<vmem>>, vector<192x128xbf16>
    %c0_1 = arith.constant 0 : index
    %c0_2 = arith.constant 0 : index
    %1 = vector.load %arg3[%c0_1, %c0_2] : memref<128x128xbf16, #tpu.memory_space<vmem>>, vector<128x128xbf16>
    %cst = arith.constant dense<0.000000e+00> : vector<192x128xf32>
    %2 = tpu.matmul %0, %1, %cst {dimension_numbers = #tpu.dot_dimension_numbers<[1], [0], [0], [1], [0, 0, 1, 1], [], []>} : vector<192x128xbf16>, vector<128x128xbf16>, vector<192x128xf32> -> vector<192x128xf32>
    %c0_3 = arith.constant 0 : index
    %c0_4 = arith.constant 0 : index
    %3 = vector.load %arg4[%c0_3, %c0_4] : memref<128x128xbf16, #tpu.memory_space<vmem>>, vector<128x128xbf16>
    %cst_5 = arith.constant dense<0.000000e+00> : vector<192x128xf32>
    %4 = tpu.matmul %0, %3, %cst_5 {dimension_numbers = #tpu.dot_dimension_numbers<[1], [0], [0], [1], [0, 0, 1, 1], [], []>} : vector<192x128xbf16>, vector<128x128xbf16>, vector<192x128xf32> -> vector<192x128xf32>
    %5 = arith.mulf %2, %2 : vector<192x128xf32>
    %6 = arith.mulf %4, %4 : vector<192x128xf32>
    %7 = arith.addf %5, %6 : vector<192x128xf32>
    %8 = math.sqrt %7 : vector<192x128xf32>
    %c0_6 = arith.constant 0 : index
    %c0_7 = arith.constant 0 : index
    %9 = vector.load %arg5[%c0_6, %c0_7] : memref<192x128xf32, #tpu.memory_space<vmem>>, vector<192x128xf32>
    tpu.vector_store %arg5[%c0_6, %c0_7], %8 {strides = array<i32>} : memref<192x128xf32, #tpu.memory_space<vmem>>, vector<192x128xf32>,
    return
  }
  func.func @transform_0(%arg0: i32, %arg1: i32) -> (i32, i32) {
    %c0_i32 = arith.constant 0 : i32
    %c0_i32_0 = arith.constant 0 : i32
    return %arg0, %c0_i32 : i32, i32
  }
  func.func @transform_1(%arg0: i32, %arg1: i32) -> (i32, i32) {
    %c0_i32 = arith.constant 0 : i32
    %c0_i32_0 = arith.constant 0 : i32
    return %c0_i32, %arg1 : i32, i32
  }
  func.func @transform_2(%arg0: i32, %arg1: i32) -> (i32, i32) {
    %c0_i32 = arith.constant 0 : i32
    %c0_i32_0 = arith.constant 0 : i32
    return %c0_i32, %arg1 : i32, i32
  }
  func.func @transform_3(%arg0: i32, %arg1: i32) -> (i32, i32) {
    %c0_i32 = arith.constant 0 : i32
    return %arg0, %arg1 : i32, i32
  }
}

module attributes {stable_mosaic.version = 11 : i64} {
  func.func @_matmul_kernel(%arg0: i32, %arg1: i32, %arg2: i32, %arg3: memref<40x128xbf16, #tpu.memory_space<vmem>>, %arg4: memref<128x256xbf16, #tpu.memory_space<vmem>>, %arg5: memref<40x256xf32, #tpu.memory_space<vmem>>, %arg6: memref<40x256xf32, #tpu.memory_space<vmem>>) attributes {dimension_semantics = [#tpu.dimension_semantics<parallel>, #tpu.dimension_semantics<parallel>, #tpu.dimension_semantics<arbitrary>], iteration_bounds = array<i64: 1, 2, 1>, scalar_prefetch = 0 : i64, scratch_operands = 1 : i64, tpu.core_type = #tpu.core_type<tc>, window_params = [{transform_indices = @transform_0, window_bounds = array<i64: 40, 128>}, {transform_indices = @transform_1, window_bounds = array<i64: 128, 256>}, {transform_indices = @transform_2, window_bounds = array<i64: 40, 256>}]} {
    %c0_i32 = arith.constant 0 : i32
    %0 = arith.cmpi eq, %arg2, %c0_i32 : i32
    %1 = arith.extui %0 : i1 to i32
    %c0_i32_0 = arith.constant 0 : i32
    %2 = arith.cmpi ne, %1, %c0_i32_0 : i32
    scf.if %2 {
      %cst_10 = arith.constant 0.000000e+00 : f32
      %12 = vector.broadcast %cst_10 : f32 to vector<40x256xf32>
      %c0_11 = arith.constant 0 : index
      %c0_12 = arith.constant 0 : index
      %13 = vector.load %arg6[%c0_11, %c0_12] : memref<40x256xf32, #tpu.memory_space<vmem>>, vector<40x256xf32>
      tpu.vector_store %arg6[%c0_11, %c0_12], %12 {strides = array<i32>} : memref<40x256xf32, #tpu.memory_space<vmem>>, vector<40x256xf32>,
    } else {
    }
    %c0 = arith.constant 0 : index
    %c0_1 = arith.constant 0 : index
    %3 = vector.load %arg6[%c0, %c0_1] : memref<40x256xf32, #tpu.memory_space<vmem>>, vector<40x256xf32>
    %c0_2 = arith.constant 0 : index
    %c0_3 = arith.constant 0 : index
    %4 = vector.load %arg3[%c0_2, %c0_3] : memref<40x128xbf16, #tpu.memory_space<vmem>>, vector<40x128xbf16>
    %c0_4 = arith.constant 0 : index
    %c0_5 = arith.constant 0 : index
    %5 = vector.load %arg4[%c0_4, %c0_5] : memref<128x256xbf16, #tpu.memory_space<vmem>>, vector<128x256xbf16>
    %cst = arith.constant dense<0.000000e+00> : vector<40x256xf32>
    %6 = tpu.matmul %4, %5, %cst {dimension_numbers = #tpu.dot_dimension_numbers<[1], [0], [0], [1], [0, 0, 1, 1], [], []>} : vector<40x128xbf16>, vector<128x256xbf16>, vector<40x256xf32> -> vector<40x256xf32>
    %7 = arith.addf %3, %6 : vector<40x256xf32>
    %c0_6 = arith.constant 0 : index
    %c0_7 = arith.constant 0 : index
    %8 = vector.load %arg6[%c0_6, %c0_7] : memref<40x256xf32, #tpu.memory_space<vmem>>, vector<40x256xf32>
    tpu.vector_store %arg6[%c0_6, %c0_7], %7 {strides = array<i32>} : memref<40x256xf32, #tpu.memory_space<vmem>>, vector<40x256xf32>,
    %c0_i32_8 = arith.constant 0 : i32
    %9 = arith.cmpi eq, %arg2, %c0_i32_8 : i32
    %10 = arith.extui %9 : i1 to i32
    %c0_i32_9 = arith.constant 0 : i32
    %11 = arith.cmpi ne, %10, %c0_i32_9 : i32
    scf.if %11 {
      %c0_10 = arith.constant 0 : index
      %c0_11 = arith.constant 0 : index
      %12 = vector.load %arg6[%c0_10, %c0_11] : memref<40x256xf32, #tpu.memory_space<vmem>>, vector<40x256xf32>
      %c0_12 = arith.constant 0 : index
      %c0_13 = arith.constant 0 : index
      %13 = vector.load %arg5[%c0_12, %c0_13] : memref<40x256xf32, #tpu.memory_space<vmem>>, vector<40x256xf32>
      tpu.vector_store %arg5[%c0_12, %c0_13], %12 {strides = array<i32>} : memref<40x256xf32, #tpu.memory_space<vmem>>, vector<40x256xf32>,
    } else {
    }
    return
  }
  func.func @transform_0(%arg0: i32, %arg1: i32, %arg2: i32) -> (i32, i32) {
    %c0_i32 = arith.constant 0 : i32
    return %arg0, %arg2 : i32, i32
  }
  func.func @transform_1(%arg0: i32, %arg1: i32, %arg2: i32) -> (i32, i32) {
    %c0_i32 = arith.constant 0 : i32
    return %arg2, %arg1 : i32, i32
  }
  func.func @transform_2(%arg0: i32, %arg1: i32, %arg2: i32) -> (i32, i32) {
    %c0_i32 = arith.constant 0 : i32
    return %arg0, %arg1 : i32, i32
  }
}

module attributes {stable_mosaic.version = 11 : i64} {
  func.func @_matmul_kernel(%arg0: i32, %arg1: i32, %arg2: i32, %arg3: memref<176x256xbf16, #tpu.memory_space<vmem>>, %arg4: memref<256x128xbf16, #tpu.memory_space<vmem>>, %arg5: memref<1x128xf32, #tpu.memory_space<vmem>>, %arg6: memref<1x128xf32, #tpu.memory_space<vmem>>, %arg7: memref<176x128xf32, #tpu.memory_space<vmem>>, %arg8: memref<176x128xf32, #tpu.memory_space<vmem>>) attributes {dimension_semantics = [#tpu.dimension_semantics<parallel>, #tpu.dimension_semantics<parallel>, #tpu.dimension_semantics<arbitrary>], iteration_bounds = array<i64: 1, 1, 1>, scalar_prefetch = 0 : i64, scratch_operands = 1 : i64, tpu.core_type = #tpu.core_type<tc>, window_params = [{transform_indices = @transform_0, window_bounds = array<i64: 176, 256>}, {transform_indices = @transform_1, window_bounds = array<i64: 256, 128>}, {transform_indices = @transform_2, window_bounds = array<i64: 1, 128>}, {transform_indices = @transform_3, window_bounds = array<i64: 1, 128>}, {transform_indices = @transform_4, window_bounds = array<i64: 176, 128>}]} {
    %c0_i32 = arith.constant 0 : i32
    %0 = arith.cmpi eq, %arg2, %c0_i32 : i32
    %1 = arith.extui %0 : i1 to i32
    %c0_i32_0 = arith.constant 0 : i32
    %2 = arith.cmpi ne, %1, %c0_i32_0 : i32
    scf.if %2 {
      %cst_10 = arith.constant 0.000000e+00 : f32
      %12 = vector.broadcast %cst_10 : f32 to vector<176x128xf32>
      %c0_11 = arith.constant 0 : index
      %c0_12 = arith.constant 0 : index
      %13 = vector.load %arg8[%c0_11, %c0_12] : memref<176x128xf32, #tpu.memory_space<vmem>>, vector<176x128xf32>
      tpu.vector_store %arg8[%c0_11, %c0_12], %12 {strides = array<i32>} : memref<176x128xf32, #tpu.memory_space<vmem>>, vector<176x128xf32>,
    } else {
    }
    %c0 = arith.constant 0 : index
    %c0_1 = arith.constant 0 : index
    %3 = vector.load %arg8[%c0, %c0_1] : memref<176x128xf32, #tpu.memory_space<vmem>>, vector<176x128xf32>
    %c0_2 = arith.constant 0 : index
    %c0_3 = arith.constant 0 : index
    %4 = vector.load %arg3[%c0_2, %c0_3] : memref<176x256xbf16, #tpu.memory_space<vmem>>, vector<176x256xbf16>
    %c0_4 = arith.constant 0 : index
    %c0_5 = arith.constant 0 : index
    %5 = vector.load %arg4[%c0_4, %c0_5] : memref<256x128xbf16, #tpu.memory_space<vmem>>, vector<256x128xbf16>
    %cst = arith.constant dense<0.000000e+00> : vector<176x128xf32>
    %6 = tpu.matmul %4, %5, %cst {dimension_numbers = #tpu.dot_dimension_numbers<[1], [0], [0], [1], [0, 0, 1, 1], [], []>} : vector<176x256xbf16>, vector<256x128xbf16>, vector<176x128xf32> -> vector<176x128xf32>
    %7 = arith.addf %3, %6 : vector<176x128xf32>
    %c0_6 = arith.constant 0 : index
    %c0_7 = arith.constant 0 : index
    %8 = vector.load %arg8[%c0_6, %c0_7] : memref<176x128xf32, #tpu.memory_space<vmem>>, vector<176x128xf32>
    tpu.vector_store %arg8[%c0_6, %c0_7], %7 {strides = array<i32>} : memref<176x128xf32, #tpu.memory_space<vmem>>, vector<176x128xf32>,
    %c0_i32_8 = arith.constant 0 : i32
    %9 = arith.cmpi eq, %arg2, %c0_i32_8 : i32
    %10 = arith.extui %9 : i1 to i32
    %c0_i32_9 = arith.constant 0 : i32
    %11 = arith.cmpi ne, %10, %c0_i32_9 : i32
    scf.if %11 {
      %c0_10 = arith.constant 0 : index
      %c0_11 = arith.constant 0 : index
      %12 = vector.load %arg8[%c0_10, %c0_11] : memref<176x128xf32, #tpu.memory_space<vmem>>, vector<176x128xf32>
      %c0_12 = arith.constant 0 : index
      %c0_13 = arith.constant 0 : index
      %13 = vector.load %arg5[%c0_12, %c0_13] : memref<1x128xf32, #tpu.memory_space<vmem>>, vector<1x128xf32>
      %14 = vector.broadcast %13 : vector<1x128xf32> to vector<176x128xf32>
      %15 = arith.mulf %12, %14 : vector<176x128xf32>
      %c0_14 = arith.constant 0 : index
      %c0_15 = arith.constant 0 : index
      %16 = vector.load %arg6[%c0_14, %c0_15] : memref<1x128xf32, #tpu.memory_space<vmem>>, vector<1x128xf32>
      %17 = vector.broadcast %16 : vector<1x128xf32> to vector<176x128xf32>
      %18 = arith.addf %15, %17 : vector<176x128xf32>
      %19 = math.tanh %18 : vector<176x128xf32>
      %c0_16 = arith.constant 0 : index
      %c0_17 = arith.constant 0 : index
      %20 = vector.load %arg7[%c0_16, %c0_17] : memref<176x128xf32, #tpu.memory_space<vmem>>, vector<176x128xf32>
      tpu.vector_store %arg7[%c0_16, %c0_17], %19 {strides = array<i32>} : memref<176x128xf32, #tpu.memory_space<vmem>>, vector<176x128xf32>,
    } else {
    }
    return
  }
  func.func @transform_0(%arg0: i32, %arg1: i32, %arg2: i32) -> (i32, i32) {
    %c0_i32 = arith.constant 0 : i32
    return %arg0, %arg2 : i32, i32
  }
  func.func @transform_1(%arg0: i32, %arg1: i32, %arg2: i32) -> (i32, i32) {
    %c0_i32 = arith.constant 0 : i32
    return %arg2, %arg1 : i32, i32
  }
  func.func @transform_2(%arg0: i32, %arg1: i32, %arg2: i32) -> (i32, i32) {
    %c0_i32 = arith.constant 0 : i32
    %c0_i32_0 = arith.constant 0 : i32
    return %c0_i32, %arg1 : i32, i32
  }
  func.func @transform_3(%arg0: i32, %arg1: i32, %arg2: i32) -> (i32, i32) {
    %c0_i32 = arith.constant 0 : i32
    %c0_i32_0 = arith.constant 0 : i32
    return %c0_i32, %arg1 : i32, i32
  }
  func.func @transform_4(%arg0: i32, %arg1: i32, %arg2: i32) -> (i32, i32) {
    %c0_i32 = arith.constant 0 : i32
    return %arg0, %arg1 : i32, i32
  }
}

module attributes {stable_mosaic.version = 11 : i64} {
  func.func @_matmul_kernel(%arg0: i32, %arg1: i32, %arg2: i32, %arg3: memref<192x128xbf16, #tpu.memory_space<vmem>>, %arg4: memref<128x128xbf16, #tpu.memory_space<vmem>>, %arg5: memref<1x128xf32, #tpu.memory_space<vmem>>, %arg6: memref<192x128xf32, #tpu.memory_space<vmem>>, %arg7: memref<192x128xf32, #tpu.memory_space<vmem>>) attributes {dimension_semantics = [#tpu.dimension_semantics<parallel>, #tpu.dimension_semantics<parallel>, #tpu.dimension_semantics<arbitrary>], iteration_bounds = array<i64: 1, 1, 1>, scalar_prefetch = 0 : i64, scratch_operands = 1 : i64, tpu.core_type = #tpu.core_type<tc>, window_params = [{transform_indices = @transform_0, window_bounds = array<i64: 192, 128>}, {transform_indices = @transform_1, window_bounds = array<i64: 128, 128>}, {transform_indices = @transform_2, window_bounds = array<i64: 1, 128>}, {transform_indices = @transform_3, window_bounds = array<i64: 192, 128>}]} {
    %c0_i32 = arith.constant 0 : i32
    %0 = arith.cmpi eq, %arg2, %c0_i32 : i32
    %1 = arith.extui %0 : i1 to i32
    %c0_i32_0 = arith.constant 0 : i32
    %2 = arith.cmpi ne, %1, %c0_i32_0 : i32
    scf.if %2 {
      %cst_10 = arith.constant 0.000000e+00 : f32
      %12 = vector.broadcast %cst_10 : f32 to vector<192x128xf32>
      %c0_11 = arith.constant 0 : index
      %c0_12 = arith.constant 0 : index
      %13 = vector.load %arg7[%c0_11, %c0_12] : memref<192x128xf32, #tpu.memory_space<vmem>>, vector<192x128xf32>
      tpu.vector_store %arg7[%c0_11, %c0_12], %12 {strides = array<i32>} : memref<192x128xf32, #tpu.memory_space<vmem>>, vector<192x128xf32>,
    } else {
    }
    %c0 = arith.constant 0 : index
    %c0_1 = arith.constant 0 : index
    %3 = vector.load %arg7[%c0, %c0_1] : memref<192x128xf32, #tpu.memory_space<vmem>>, vector<192x128xf32>
    %c0_2 = arith.constant 0 : index
    %c0_3 = arith.constant 0 : index
    %4 = vector.load %arg3[%c0_2, %c0_3] : memref<192x128xbf16, #tpu.memory_space<vmem>>, vector<192x128xbf16>
    %c0_4 = arith.constant 0 : index
    %c0_5 = arith.constant 0 : index
    %5 = vector.load %arg4[%c0_4, %c0_5] : memref<128x128xbf16, #tpu.memory_space<vmem>>, vector<128x128xbf16>
    %cst = arith.constant dense<0.000000e+00> : vector<192x128xf32>
    %6 = tpu.matmul %4, %5, %cst {dimension_numbers = #tpu.dot_dimension_numbers<[1], [0], [0], [1], [0, 0, 1, 1], [], []>} : vector<192x128xbf16>, vector<128x128xbf16>, vector<192x128xf32> -> vector<192x128xf32>
    %7 = arith.addf %3, %6 : vector<192x128xf32>
    %c0_6 = arith.constant 0 : index
    %c0_7 = arith.constant 0 : index
    %8 = vector.load %arg7[%c0_6, %c0_7] : memref<192x128xf32, #tpu.memory_space<vmem>>, vector<192x128xf32>
    tpu.vector_store %arg7[%c0_6, %c0_7], %7 {strides = array<i32>} : memref<192x128xf32, #tpu.memory_space<vmem>>, vector<192x128xf32>,
    %c0_i32_8 = arith.constant 0 : i32
    %9 = arith.cmpi eq, %arg2, %c0_i32_8 : i32
    %10 = arith.extui %9 : i1 to i32
    %c0_i32_9 = arith.constant 0 : i32
    %11 = arith.cmpi ne, %10, %c0_i32_9 : i32
    scf.if %11 {
      %c0_10 = arith.constant 0 : index
      %c0_11 = arith.constant 0 : index
      %12 = vector.load %arg7[%c0_10, %c0_11] : memref<192x128xf32, #tpu.memory_space<vmem>>, vector<192x128xf32>
      %c0_12 = arith.constant 0 : index
      %c0_13 = arith.constant 0 : index
      %13 = vector.load %arg5[%c0_12, %c0_13] : memref<1x128xf32, #tpu.memory_space<vmem>>, vector<1x128xf32>
      %14 = vector.broadcast %13 : vector<1x128xf32> to vector<192x128xf32>
      %15 = arith.addf %12, %14 : vector<192x128xf32>
      %c0_14 = arith.constant 0 : index
      %c0_15 = arith.constant 0 : index
      %16 = vector.load %arg6[%c0_14, %c0_15] : memref<192x128xf32, #tpu.memory_space<vmem>>, vector<192x128xf32>
      tpu.vector_store %arg6[%c0_14, %c0_15], %15 {strides = array<i32>} : memref<192x128xf32, #tpu.memory_space<vmem>>, vector<192x128xf32>,
    } else {
    }
    return
  }
  func.func @transform_0(%arg0: i32, %arg1: i32, %arg2: i32) -> (i32, i32) {
    %c0_i32 = arith.constant 0 : i32
    return %arg0, %arg2 : i32, i32
  }
  func.func @transform_1(%arg0: i32, %arg1: i32, %arg2: i32) -> (i32, i32) {
    %c0_i32 = arith.constant 0 : i32
    return %arg2, %arg1 : i32, i32
  }
  func.func @transform_2(%arg0: i32, %arg1: i32, %arg2: i32) -> (i32, i32) {
    %c0_i32 = arith.constant 0 : i32
    %c0_i32_0 = arith.constant 0 : i32
    return %c0_i32, %arg1 : i32, i32
  }
  func.func @transform_3(%arg0: i32, %arg1: i32, %arg2: i32) -> (i32, i32) {
    %c0_i32 = arith.constant 0 : i32
    return %arg0, %arg1 : i32, i32
  }
}

module attributes {stable_mosaic.version = 11 : i64} {
  func.func @_lstm_rec_kernel(%arg0: i32, %arg1: i32, %arg2: memref<1x16x4x64xf32, #tpu.memory_space<vmem>>, %arg3: memref<1x16x64xbf16, #tpu.memory_space<vmem>>, %arg4: memref<1x16x4x16xf32, #tpu.memory_space<vmem>>, %arg5: memref<2x4x16xf32, #tpu.memory_space<vmem>>, %arg6: memref<2x4x16xf32, #tpu.memory_space<vmem>>) attributes {dimension_semantics = [#tpu.dimension_semantics<parallel>, #tpu.dimension_semantics<arbitrary>], iteration_bounds = array<i64: 2, 3>, scalar_prefetch = 0 : i64, scratch_operands = 2 : i64, tpu.core_type = #tpu.core_type<tc>, window_params = [{transform_indices = @transform_0, window_bounds = array<i64: 1, 16, 4, 64>}, {transform_indices = @transform_1, window_bounds = array<i64: 1, 16, 64>}, {transform_indices = @transform_2, window_bounds = array<i64: 1, 16, 4, 16>}]} {
    %c0_i32 = arith.constant 0 : i32
    %0 = arith.cmpi eq, %arg1, %c0_i32 : i32
    %1 = arith.extui %0 : i1 to i32
    %c0_i32_0 = arith.constant 0 : i32
    %2 = arith.cmpi ne, %1, %c0_i32_0 : i32
    scf.if %2 {
      %cst_267 = arith.constant 0.000000e+00 : f32
      %675 = vector.broadcast %cst_267 : f32 to vector<4x16xf32>
      %676 = arith.index_cast %arg0 : i32 to index
      %c0_268 = arith.constant 0 : index
      %c0_269 = arith.constant 0 : index
      %677 = vector.load %arg5[%676, %c0_268, %c0_269] : memref<2x4x16xf32, #tpu.memory_space<vmem>>, vector<1x4x16xf32>
      %678 = vector.shape_cast %677 : vector<1x4x16xf32> to vector<4x16xf32>
      %679 = vector.shape_cast %675 : vector<4x16xf32> to vector<1x4x16xf32>
      tpu.vector_store %arg5[%676, %c0_268, %c0_269], %679 {strides = array<i32>} : memref<2x4x16xf32, #tpu.memory_space<vmem>>, vector<1x4x16xf32>,
      %cst_270 = arith.constant 0.000000e+00 : f32
      %680 = vector.broadcast %cst_270 : f32 to vector<4x16xf32>
      %681 = arith.index_cast %arg0 : i32 to index
      %c0_271 = arith.constant 0 : index
      %c0_272 = arith.constant 0 : index
      %682 = vector.load %arg6[%681, %c0_271, %c0_272] : memref<2x4x16xf32, #tpu.memory_space<vmem>>, vector<1x4x16xf32>
      %683 = vector.shape_cast %682 : vector<1x4x16xf32> to vector<4x16xf32>
      %684 = vector.shape_cast %680 : vector<4x16xf32> to vector<1x4x16xf32>
      tpu.vector_store %arg6[%681, %c0_271, %c0_272], %684 {strides = array<i32>} : memref<2x4x16xf32, #tpu.memory_space<vmem>>, vector<1x4x16xf32>,
    } else {
    }
    %c0 = arith.constant 0 : index
    %c0_1 = arith.constant 0 : index
    %c0_2 = arith.constant 0 : index
    %3 = vector.load %arg3[%c0, %c0_1, %c0_2] : memref<1x16x64xbf16, #tpu.memory_space<vmem>>, vector<1x16x64xbf16>
    %4 = vector.shape_cast %3 : vector<1x16x64xbf16> to vector<16x64xbf16>
    %5 = arith.index_cast %arg0 : i32 to index
    %c0_3 = arith.constant 0 : index
    %c0_4 = arith.constant 0 : index
    %6 = vector.load %arg5[%5, %c0_3, %c0_4] : memref<2x4x16xf32, #tpu.memory_space<vmem>>, vector<1x4x16xf32>
    %7 = vector.shape_cast %6 : vector<1x4x16xf32> to vector<4x16xf32>
    %8 = arith.index_cast %arg0 : i32 to index
    %c0_5 = arith.constant 0 : index
    %c0_6 = arith.constant 0 : index
    %9 = vector.load %arg6[%8, %c0_5, %c0_6] : memref<2x4x16xf32, #tpu.memory_space<vmem>>, vector<1x4x16xf32>
    %10 = vector.shape_cast %9 : vector<1x4x16xf32> to vector<4x16xf32>
    %c0_i32_7 = arith.constant 0 : i32
    %c0_8 = arith.constant 0 : index
    %11 = arith.index_cast %c0_i32_7 : i32 to index
    %c0_9 = arith.constant 0 : index
    %c0_10 = arith.constant 0 : index
    %12 = vector.load %arg2[%c0_8, %11, %c0_9, %c0_10] : memref<1x16x4x64xf32, #tpu.memory_space<vmem>>, vector<1x1x4x64xf32>
    %13 = vector.shape_cast %12 : vector<1x1x4x64xf32> to vector<4x64xf32>
    %14 = arith.truncf %7 : vector<4x16xf32> to vector<4x16xbf16>
    %cst = arith.constant dense<0.000000e+00> : vector<4x64xf32>
    %15 = tpu.matmul %14, %4, %cst {dimension_numbers = #tpu.dot_dimension_numbers<[1], [0], [0], [1], [0, 0, 1, 1], [], []>} : vector<4x16xbf16>, vector<16x64xbf16>, vector<4x64xf32> -> vector<4x64xf32>
    %16 = arith.addf %13, %15 : vector<4x64xf32>
    %17 = vector.extract_strided_slice %16 {offsets = [0, 0], sizes = [4, 16], strides = [1, 1]} : vector<4x64xf32> to vector<4x16xf32>
    %cst_11 = arith.constant 0.000000e+00 : f32
    %18 = vector.broadcast %cst_11 : f32 to vector<4x16xf32>
    %19 = arith.subf %18, %17 : vector<4x16xf32>
    %20 = math.exp %19 : vector<4x16xf32>
    %cst_12 = arith.constant 1.000000e+00 : f32
    %21 = vector.broadcast %cst_12 : f32 to vector<4x16xf32>
    %22 = arith.addf %21, %20 : vector<4x16xf32>
    %cst_13 = arith.constant 1.000000e+00 : f32
    %23 = vector.broadcast %cst_13 : f32 to vector<4x16xf32>
    %24 = arith.divf %23, %22 : vector<4x16xf32>
    %25 = vector.extract_strided_slice %16 {offsets = [0, 16], sizes = [4, 16], strides = [1, 1]} : vector<4x64xf32> to vector<4x16xf32>
    %cst_14 = arith.constant 0.000000e+00 : f32
    %26 = vector.broadcast %cst_14 : f32 to vector<4x16xf32>
    %27 = arith.subf %26, %25 : vector<4x16xf32>
    %28 = math.exp %27 : vector<4x16xf32>
    %cst_15 = arith.constant 1.000000e+00 : f32
    %29 = vector.broadcast %cst_15 : f32 to vector<4x16xf32>
    %30 = arith.addf %29, %28 : vector<4x16xf32>
    %cst_16 = arith.constant 1.000000e+00 : f32
    %31 = vector.broadcast %cst_16 : f32 to vector<4x16xf32>
    %32 = arith.divf %31, %30 : vector<4x16xf32>
    %33 = vector.extract_strided_slice %16 {offsets = [0, 32], sizes = [4, 16], strides = [1, 1]} : vector<4x64xf32> to vector<4x16xf32>
    %34 = math.tanh %33 : vector<4x16xf32>
    %35 = vector.extract_strided_slice %16 {offsets = [0, 48], sizes = [4, 16], strides = [1, 1]} : vector<4x64xf32> to vector<4x16xf32>
    %cst_17 = arith.constant 0.000000e+00 : f32
    %36 = vector.broadcast %cst_17 : f32 to vector<4x16xf32>
    %37 = arith.subf %36, %35 : vector<4x16xf32>
    %38 = math.exp %37 : vector<4x16xf32>
    %cst_18 = arith.constant 1.000000e+00 : f32
    %39 = vector.broadcast %cst_18 : f32 to vector<4x16xf32>
    %40 = arith.addf %39, %38 : vector<4x16xf32>
    %cst_19 = arith.constant 1.000000e+00 : f32
    %41 = vector.broadcast %cst_19 : f32 to vector<4x16xf32>
    %42 = arith.divf %41, %40 : vector<4x16xf32>
    %43 = arith.mulf %32, %10 : vector<4x16xf32>
    %44 = arith.mulf %24, %34 : vector<4x16xf32>
    %45 = arith.addf %43, %44 : vector<4x16xf32>
    %46 = math.tanh %45 : vector<4x16xf32>
    %47 = arith.mulf %42, %46 : vector<4x16xf32>
    %c0_20 = arith.constant 0 : index
    %48 = arith.index_cast %c0_i32_7 : i32 to index
    %c0_21 = arith.constant 0 : index
    %c0_22 = arith.constant 0 : index
    %49 = vector.load %arg4[%c0_20, %48, %c0_21, %c0_22] : memref<1x16x4x16xf32, #tpu.memory_space<vmem>>, vector<1x1x4x16xf32>
    %50 = vector.shape_cast %49 : vector<1x1x4x16xf32> to vector<4x16xf32>
    %51 = vector.shape_cast %47 : vector<4x16xf32> to vector<1x1x4x16xf32>
    tpu.vector_store %arg4[%c0_20, %48, %c0_21, %c0_22], %51 {strides = array<i32>} : memref<1x16x4x16xf32, #tpu.memory_space<vmem>>, vector<1x1x4x16xf32>,
    %c1_i32 = arith.constant 1 : i32
    %c0_23 = arith.constant 0 : index
    %52 = arith.index_cast %c1_i32 : i32 to index
    %c0_24 = arith.constant 0 : index
    %c0_25 = arith.constant 0 : index
    %53 = vector.load %arg2[%c0_23, %52, %c0_24, %c0_25] : memref<1x16x4x64xf32, #tpu.memory_space<vmem>>, vector<1x1x4x64xf32>
    %54 = vector.shape_cast %53 : vector<1x1x4x64xf32> to vector<4x64xf32>
    %55 = arith.truncf %47 : vector<4x16xf32> to vector<4x16xbf16>
    %cst_26 = arith.constant dense<0.000000e+00> : vector<4x64xf32>
    %56 = tpu.matmul %55, %4, %cst_26 {dimension_numbers = #tpu.dot_dimension_numbers<[1], [0], [0], [1], [0, 0, 1, 1], [], []>} : vector<4x16xbf16>, vector<16x64xbf16>, vector<4x64xf32> -> vector<4x64xf32>
    %57 = arith.addf %54, %56 : vector<4x64xf32>
    %58 = vector.extract_strided_slice %57 {offsets = [0, 0], sizes = [4, 16], strides = [1, 1]} : vector<4x64xf32> to vector<4x16xf32>
    %cst_27 = arith.constant 0.000000e+00 : f32
    %59 = vector.broadcast %cst_27 : f32 to vector<4x16xf32>
    %60 = arith.subf %59, %58 : vector<4x16xf32>
    %61 = math.exp %60 : vector<4x16xf32>
    %cst_28 = arith.constant 1.000000e+00 : f32
    %62 = vector.broadcast %cst_28 : f32 to vector<4x16xf32>
    %63 = arith.addf %62, %61 : vector<4x16xf32>
    %cst_29 = arith.constant 1.000000e+00 : f32
    %64 = vector.broadcast %cst_29 : f32 to vector<4x16xf32>
    %65 = arith.divf %64, %63 : vector<4x16xf32>
    %66 = vector.extract_strided_slice %57 {offsets = [0, 16], sizes = [4, 16], strides = [1, 1]} : vector<4x64xf32> to vector<4x16xf32>
    %cst_30 = arith.constant 0.000000e+00 : f32
    %67 = vector.broadcast %cst_30 : f32 to vector<4x16xf32>
    %68 = arith.subf %67, %66 : vector<4x16xf32>
    %69 = math.exp %68 : vector<4x16xf32>
    %cst_31 = arith.constant 1.000000e+00 : f32
    %70 = vector.broadcast %cst_31 : f32 to vector<4x16xf32>
    %71 = arith.addf %70, %69 : vector<4x16xf32>
    %cst_32 = arith.constant 1.000000e+00 : f32
    %72 = vector.broadcast %cst_32 : f32 to vector<4x16xf32>
    %73 = arith.divf %72, %71 : vector<4x16xf32>
    %74 = vector.extract_strided_slice %57 {offsets = [0, 32], sizes = [4, 16], strides = [1, 1]} : vector<4x64xf32> to vector<4x16xf32>
    %75 = math.tanh %74 : vector<4x16xf32>
    %76 = vector.extract_strided_slice %57 {offsets = [0, 48], sizes = [4, 16], strides = [1, 1]} : vector<4x64xf32> to vector<4x16xf32>
    %cst_33 = arith.constant 0.000000e+00 : f32
    %77 = vector.broadcast %cst_33 : f32 to vector<4x16xf32>
    %78 = arith.subf %77, %76 : vector<4x16xf32>
    %79 = math.exp %78 : vector<4x16xf32>
    %cst_34 = arith.constant 1.000000e+00 : f32
    %80 = vector.broadcast %cst_34 : f32 to vector<4x16xf32>
    %81 = arith.addf %80, %79 : vector<4x16xf32>
    %cst_35 = arith.constant 1.000000e+00 : f32
    %82 = vector.broadcast %cst_35 : f32 to vector<4x16xf32>
    %83 = arith.divf %82, %81 : vector<4x16xf32>
    %84 = arith.mulf %73, %45 : vector<4x16xf32>
    %85 = arith.mulf %65, %75 : vector<4x16xf32>
    %86 = arith.addf %84, %85 : vector<4x16xf32>
    %87 = math.tanh %86 : vector<4x16xf32>
    %88 = arith.mulf %83, %87 : vector<4x16xf32>
    %c0_36 = arith.constant 0 : index
    %89 = arith.index_cast %c1_i32 : i32 to index
    %c0_37 = arith.constant 0 : index
    %c0_38 = arith.constant 0 : index
    %90 = vector.load %arg4[%c0_36, %89, %c0_37, %c0_38] : memref<1x16x4x16xf32, #tpu.memory_space<vmem>>, vector<1x1x4x16xf32>
    %91 = vector.shape_cast %90 : vector<1x1x4x16xf32> to vector<4x16xf32>
    %92 = vector.shape_cast %88 : vector<4x16xf32> to vector<1x1x4x16xf32>
    tpu.vector_store %arg4[%c0_36, %89, %c0_37, %c0_38], %92 {strides = array<i32>} : memref<1x16x4x16xf32, #tpu.memory_space<vmem>>, vector<1x1x4x16xf32>,
    %c2_i32 = arith.constant 2 : i32
    %c0_39 = arith.constant 0 : index
    %93 = arith.index_cast %c2_i32 : i32 to index
    %c0_40 = arith.constant 0 : index
    %c0_41 = arith.constant 0 : index
    %94 = vector.load %arg2[%c0_39, %93, %c0_40, %c0_41] : memref<1x16x4x64xf32, #tpu.memory_space<vmem>>, vector<1x1x4x64xf32>
    %95 = vector.shape_cast %94 : vector<1x1x4x64xf32> to vector<4x64xf32>
    %96 = arith.truncf %88 : vector<4x16xf32> to vector<4x16xbf16>
    %cst_42 = arith.constant dense<0.000000e+00> : vector<4x64xf32>
    %97 = tpu.matmul %96, %4, %cst_42 {dimension_numbers = #tpu.dot_dimension_numbers<[1], [0], [0], [1], [0, 0, 1, 1], [], []>} : vector<4x16xbf16>, vector<16x64xbf16>, vector<4x64xf32> -> vector<4x64xf32>
    %98 = arith.addf %95, %97 : vector<4x64xf32>
    %99 = vector.extract_strided_slice %98 {offsets = [0, 0], sizes = [4, 16], strides = [1, 1]} : vector<4x64xf32> to vector<4x16xf32>
    %cst_43 = arith.constant 0.000000e+00 : f32
    %100 = vector.broadcast %cst_43 : f32 to vector<4x16xf32>
    %101 = arith.subf %100, %99 : vector<4x16xf32>
    %102 = math.exp %101 : vector<4x16xf32>
    %cst_44 = arith.constant 1.000000e+00 : f32
    %103 = vector.broadcast %cst_44 : f32 to vector<4x16xf32>
    %104 = arith.addf %103, %102 : vector<4x16xf32>
    %cst_45 = arith.constant 1.000000e+00 : f32
    %105 = vector.broadcast %cst_45 : f32 to vector<4x16xf32>
    %106 = arith.divf %105, %104 : vector<4x16xf32>
    %107 = vector.extract_strided_slice %98 {offsets = [0, 16], sizes = [4, 16], strides = [1, 1]} : vector<4x64xf32> to vector<4x16xf32>
    %cst_46 = arith.constant 0.000000e+00 : f32
    %108 = vector.broadcast %cst_46 : f32 to vector<4x16xf32>
    %109 = arith.subf %108, %107 : vector<4x16xf32>
    %110 = math.exp %109 : vector<4x16xf32>
    %cst_47 = arith.constant 1.000000e+00 : f32
    %111 = vector.broadcast %cst_47 : f32 to vector<4x16xf32>
    %112 = arith.addf %111, %110 : vector<4x16xf32>
    %cst_48 = arith.constant 1.000000e+00 : f32
    %113 = vector.broadcast %cst_48 : f32 to vector<4x16xf32>
    %114 = arith.divf %113, %112 : vector<4x16xf32>
    %115 = vector.extract_strided_slice %98 {offsets = [0, 32], sizes = [4, 16], strides = [1, 1]} : vector<4x64xf32> to vector<4x16xf32>
    %116 = math.tanh %115 : vector<4x16xf32>
    %117 = vector.extract_strided_slice %98 {offsets = [0, 48], sizes = [4, 16], strides = [1, 1]} : vector<4x64xf32> to vector<4x16xf32>
    %cst_49 = arith.constant 0.000000e+00 : f32
    %118 = vector.broadcast %cst_49 : f32 to vector<4x16xf32>
    %119 = arith.subf %118, %117 : vector<4x16xf32>
    %120 = math.exp %119 : vector<4x16xf32>
    %cst_50 = arith.constant 1.000000e+00 : f32
    %121 = vector.broadcast %cst_50 : f32 to vector<4x16xf32>
    %122 = arith.addf %121, %120 : vector<4x16xf32>
    %cst_51 = arith.constant 1.000000e+00 : f32
    %123 = vector.broadcast %cst_51 : f32 to vector<4x16xf32>
    %124 = arith.divf %123, %122 : vector<4x16xf32>
    %125 = arith.mulf %114, %86 : vector<4x16xf32>
    %126 = arith.mulf %106, %116 : vector<4x16xf32>
    %127 = arith.addf %125, %126 : vector<4x16xf32>
    %128 = math.tanh %127 : vector<4x16xf32>
    %129 = arith.mulf %124, %128 : vector<4x16xf32>
    %c0_52 = arith.constant 0 : index
    %130 = arith.index_cast %c2_i32 : i32 to index
    %c0_53 = arith.constant 0 : index
    %c0_54 = arith.constant 0 : index
    %131 = vector.load %arg4[%c0_52, %130, %c0_53, %c0_54] : memref<1x16x4x16xf32, #tpu.memory_space<vmem>>, vector<1x1x4x16xf32>
    %132 = vector.shape_cast %131 : vector<1x1x4x16xf32> to vector<4x16xf32>
    %133 = vector.shape_cast %129 : vector<4x16xf32> to vector<1x1x4x16xf32>
    tpu.vector_store %arg4[%c0_52, %130, %c0_53, %c0_54], %133 {strides = array<i32>} : memref<1x16x4x16xf32, #tpu.memory_space<vmem>>, vector<1x1x4x16xf32>,
    %c3_i32 = arith.constant 3 : i32
    %c0_55 = arith.constant 0 : index
    %134 = arith.index_cast %c3_i32 : i32 to index
    %c0_56 = arith.constant 0 : index
    %c0_57 = arith.constant 0 : index
    %135 = vector.load %arg2[%c0_55, %134, %c0_56, %c0_57] : memref<1x16x4x64xf32, #tpu.memory_space<vmem>>, vector<1x1x4x64xf32>
    %136 = vector.shape_cast %135 : vector<1x1x4x64xf32> to vector<4x64xf32>
    %137 = arith.truncf %129 : vector<4x16xf32> to vector<4x16xbf16>
    %cst_58 = arith.constant dense<0.000000e+00> : vector<4x64xf32>
    %138 = tpu.matmul %137, %4, %cst_58 {dimension_numbers = #tpu.dot_dimension_numbers<[1], [0], [0], [1], [0, 0, 1, 1], [], []>} : vector<4x16xbf16>, vector<16x64xbf16>, vector<4x64xf32> -> vector<4x64xf32>
    %139 = arith.addf %136, %138 : vector<4x64xf32>
    %140 = vector.extract_strided_slice %139 {offsets = [0, 0], sizes = [4, 16], strides = [1, 1]} : vector<4x64xf32> to vector<4x16xf32>
    %cst_59 = arith.constant 0.000000e+00 : f32
    %141 = vector.broadcast %cst_59 : f32 to vector<4x16xf32>
    %142 = arith.subf %141, %140 : vector<4x16xf32>
    %143 = math.exp %142 : vector<4x16xf32>
    %cst_60 = arith.constant 1.000000e+00 : f32
    %144 = vector.broadcast %cst_60 : f32 to vector<4x16xf32>
    %145 = arith.addf %144, %143 : vector<4x16xf32>
    %cst_61 = arith.constant 1.000000e+00 : f32
    %146 = vector.broadcast %cst_61 : f32 to vector<4x16xf32>
    %147 = arith.divf %146, %145 : vector<4x16xf32>
    %148 = vector.extract_strided_slice %139 {offsets = [0, 16], sizes = [4, 16], strides = [1, 1]} : vector<4x64xf32> to vector<4x16xf32>
    %cst_62 = arith.constant 0.000000e+00 : f32
    %149 = vector.broadcast %cst_62 : f32 to vector<4x16xf32>
    %150 = arith.subf %149, %148 : vector<4x16xf32>
    %151 = math.exp %150 : vector<4x16xf32>
    %cst_63 = arith.constant 1.000000e+00 : f32
    %152 = vector.broadcast %cst_63 : f32 to vector<4x16xf32>
    %153 = arith.addf %152, %151 : vector<4x16xf32>
    %cst_64 = arith.constant 1.000000e+00 : f32
    %154 = vector.broadcast %cst_64 : f32 to vector<4x16xf32>
    %155 = arith.divf %154, %153 : vector<4x16xf32>
    %156 = vector.extract_strided_slice %139 {offsets = [0, 32], sizes = [4, 16], strides = [1, 1]} : vector<4x64xf32> to vector<4x16xf32>
    %157 = math.tanh %156 : vector<4x16xf32>
    %158 = vector.extract_strided_slice %139 {offsets = [0, 48], sizes = [4, 16], strides = [1, 1]} : vector<4x64xf32> to vector<4x16xf32>
    %cst_65 = arith.constant 0.000000e+00 : f32
    %159 = vector.broadcast %cst_65 : f32 to vector<4x16xf32>
    %160 = arith.subf %159, %158 : vector<4x16xf32>
    %161 = math.exp %160 : vector<4x16xf32>
    %cst_66 = arith.constant 1.000000e+00 : f32
    %162 = vector.broadcast %cst_66 : f32 to vector<4x16xf32>
    %163 = arith.addf %162, %161 : vector<4x16xf32>
    %cst_67 = arith.constant 1.000000e+00 : f32
    %164 = vector.broadcast %cst_67 : f32 to vector<4x16xf32>
    %165 = arith.divf %164, %163 : vector<4x16xf32>
    %166 = arith.mulf %155, %127 : vector<4x16xf32>
    %167 = arith.mulf %147, %157 : vector<4x16xf32>
    %168 = arith.addf %166, %167 : vector<4x16xf32>
    %169 = math.tanh %168 : vector<4x16xf32>
    %170 = arith.mulf %165, %169 : vector<4x16xf32>
    %c0_68 = arith.constant 0 : index
    %171 = arith.index_cast %c3_i32 : i32 to index
    %c0_69 = arith.constant 0 : index
    %c0_70 = arith.constant 0 : index
    %172 = vector.load %arg4[%c0_68, %171, %c0_69, %c0_70] : memref<1x16x4x16xf32, #tpu.memory_space<vmem>>, vector<1x1x4x16xf32>
    %173 = vector.shape_cast %172 : vector<1x1x4x16xf32> to vector<4x16xf32>
    %174 = vector.shape_cast %170 : vector<4x16xf32> to vector<1x1x4x16xf32>
    tpu.vector_store %arg4[%c0_68, %171, %c0_69, %c0_70], %174 {strides = array<i32>} : memref<1x16x4x16xf32, #tpu.memory_space<vmem>>, vector<1x1x4x16xf32>,
    %c4_i32 = arith.constant 4 : i32
    %c0_71 = arith.constant 0 : index
    %175 = arith.index_cast %c4_i32 : i32 to index
    %c0_72 = arith.constant 0 : index
    %c0_73 = arith.constant 0 : index
    %176 = vector.load %arg2[%c0_71, %175, %c0_72, %c0_73] : memref<1x16x4x64xf32, #tpu.memory_space<vmem>>, vector<1x1x4x64xf32>
    %177 = vector.shape_cast %176 : vector<1x1x4x64xf32> to vector<4x64xf32>
    %178 = arith.truncf %170 : vector<4x16xf32> to vector<4x16xbf16>
    %cst_74 = arith.constant dense<0.000000e+00> : vector<4x64xf32>
    %179 = tpu.matmul %178, %4, %cst_74 {dimension_numbers = #tpu.dot_dimension_numbers<[1], [0], [0], [1], [0, 0, 1, 1], [], []>} : vector<4x16xbf16>, vector<16x64xbf16>, vector<4x64xf32> -> vector<4x64xf32>
    %180 = arith.addf %177, %179 : vector<4x64xf32>
    %181 = vector.extract_strided_slice %180 {offsets = [0, 0], sizes = [4, 16], strides = [1, 1]} : vector<4x64xf32> to vector<4x16xf32>
    %cst_75 = arith.constant 0.000000e+00 : f32
    %182 = vector.broadcast %cst_75 : f32 to vector<4x16xf32>
    %183 = arith.subf %182, %181 : vector<4x16xf32>
    %184 = math.exp %183 : vector<4x16xf32>
    %cst_76 = arith.constant 1.000000e+00 : f32
    %185 = vector.broadcast %cst_76 : f32 to vector<4x16xf32>
    %186 = arith.addf %185, %184 : vector<4x16xf32>
    %cst_77 = arith.constant 1.000000e+00 : f32
    %187 = vector.broadcast %cst_77 : f32 to vector<4x16xf32>
    %188 = arith.divf %187, %186 : vector<4x16xf32>
    %189 = vector.extract_strided_slice %180 {offsets = [0, 16], sizes = [4, 16], strides = [1, 1]} : vector<4x64xf32> to vector<4x16xf32>
    %cst_78 = arith.constant 0.000000e+00 : f32
    %190 = vector.broadcast %cst_78 : f32 to vector<4x16xf32>
    %191 = arith.subf %190, %189 : vector<4x16xf32>
    %192 = math.exp %191 : vector<4x16xf32>
    %cst_79 = arith.constant 1.000000e+00 : f32
    %193 = vector.broadcast %cst_79 : f32 to vector<4x16xf32>
    %194 = arith.addf %193, %192 : vector<4x16xf32>
    %cst_80 = arith.constant 1.000000e+00 : f32
    %195 = vector.broadcast %cst_80 : f32 to vector<4x16xf32>
    %196 = arith.divf %195, %194 : vector<4x16xf32>
    %197 = vector.extract_strided_slice %180 {offsets = [0, 32], sizes = [4, 16], strides = [1, 1]} : vector<4x64xf32> to vector<4x16xf32>
    %198 = math.tanh %197 : vector<4x16xf32>
    %199 = vector.extract_strided_slice %180 {offsets = [0, 48], sizes = [4, 16], strides = [1, 1]} : vector<4x64xf32> to vector<4x16xf32>
    %cst_81 = arith.constant 0.000000e+00 : f32
    %200 = vector.broadcast %cst_81 : f32 to vector<4x16xf32>
    %201 = arith.subf %200, %199 : vector<4x16xf32>
    %202 = math.exp %201 : vector<4x16xf32>
    %cst_82 = arith.constant 1.000000e+00 : f32
    %203 = vector.broadcast %cst_82 : f32 to vector<4x16xf32>
    %204 = arith.addf %203, %202 : vector<4x16xf32>
    %cst_83 = arith.constant 1.000000e+00 : f32
    %205 = vector.broadcast %cst_83 : f32 to vector<4x16xf32>
    %206 = arith.divf %205, %204 : vector<4x16xf32>
    %207 = arith.mulf %196, %168 : vector<4x16xf32>
    %208 = arith.mulf %188, %198 : vector<4x16xf32>
    %209 = arith.addf %207, %208 : vector<4x16xf32>
    %210 = math.tanh %209 : vector<4x16xf32>
    %211 = arith.mulf %206, %210 : vector<4x16xf32>
    %c0_84 = arith.constant 0 : index
    %212 = arith.index_cast %c4_i32 : i32 to index
    %c0_85 = arith.constant 0 : index
    %c0_86 = arith.constant 0 : index
    %213 = vector.load %arg4[%c0_84, %212, %c0_85, %c0_86] : memref<1x16x4x16xf32, #tpu.memory_space<vmem>>, vector<1x1x4x16xf32>
    %214 = vector.shape_cast %213 : vector<1x1x4x16xf32> to vector<4x16xf32>
    %215 = vector.shape_cast %211 : vector<4x16xf32> to vector<1x1x4x16xf32>
    tpu.vector_store %arg4[%c0_84, %212, %c0_85, %c0_86], %215 {strides = array<i32>} : memref<1x16x4x16xf32, #tpu.memory_space<vmem>>, vector<1x1x4x16xf32>,
    %c5_i32 = arith.constant 5 : i32
    %c0_87 = arith.constant 0 : index
    %216 = arith.index_cast %c5_i32 : i32 to index
    %c0_88 = arith.constant 0 : index
    %c0_89 = arith.constant 0 : index
    %217 = vector.load %arg2[%c0_87, %216, %c0_88, %c0_89] : memref<1x16x4x64xf32, #tpu.memory_space<vmem>>, vector<1x1x4x64xf32>
    %218 = vector.shape_cast %217 : vector<1x1x4x64xf32> to vector<4x64xf32>
    %219 = arith.truncf %211 : vector<4x16xf32> to vector<4x16xbf16>
    %cst_90 = arith.constant dense<0.000000e+00> : vector<4x64xf32>
    %220 = tpu.matmul %219, %4, %cst_90 {dimension_numbers = #tpu.dot_dimension_numbers<[1], [0], [0], [1], [0, 0, 1, 1], [], []>} : vector<4x16xbf16>, vector<16x64xbf16>, vector<4x64xf32> -> vector<4x64xf32>
    %221 = arith.addf %218, %220 : vector<4x64xf32>
    %222 = vector.extract_strided_slice %221 {offsets = [0, 0], sizes = [4, 16], strides = [1, 1]} : vector<4x64xf32> to vector<4x16xf32>
    %cst_91 = arith.constant 0.000000e+00 : f32
    %223 = vector.broadcast %cst_91 : f32 to vector<4x16xf32>
    %224 = arith.subf %223, %222 : vector<4x16xf32>
    %225 = math.exp %224 : vector<4x16xf32>
    %cst_92 = arith.constant 1.000000e+00 : f32
    %226 = vector.broadcast %cst_92 : f32 to vector<4x16xf32>
    %227 = arith.addf %226, %225 : vector<4x16xf32>
    %cst_93 = arith.constant 1.000000e+00 : f32
    %228 = vector.broadcast %cst_93 : f32 to vector<4x16xf32>
    %229 = arith.divf %228, %227 : vector<4x16xf32>
    %230 = vector.extract_strided_slice %221 {offsets = [0, 16], sizes = [4, 16], strides = [1, 1]} : vector<4x64xf32> to vector<4x16xf32>
    %cst_94 = arith.constant 0.000000e+00 : f32
    %231 = vector.broadcast %cst_94 : f32 to vector<4x16xf32>
    %232 = arith.subf %231, %230 : vector<4x16xf32>
    %233 = math.exp %232 : vector<4x16xf32>
    %cst_95 = arith.constant 1.000000e+00 : f32
    %234 = vector.broadcast %cst_95 : f32 to vector<4x16xf32>
    %235 = arith.addf %234, %233 : vector<4x16xf32>
    %cst_96 = arith.constant 1.000000e+00 : f32
    %236 = vector.broadcast %cst_96 : f32 to vector<4x16xf32>
    %237 = arith.divf %236, %235 : vector<4x16xf32>
    %238 = vector.extract_strided_slice %221 {offsets = [0, 32], sizes = [4, 16], strides = [1, 1]} : vector<4x64xf32> to vector<4x16xf32>
    %239 = math.tanh %238 : vector<4x16xf32>
    %240 = vector.extract_strided_slice %221 {offsets = [0, 48], sizes = [4, 16], strides = [1, 1]} : vector<4x64xf32> to vector<4x16xf32>
    %cst_97 = arith.constant 0.000000e+00 : f32
    %241 = vector.broadcast %cst_97 : f32 to vector<4x16xf32>
    %242 = arith.subf %241, %240 : vector<4x16xf32>
    %243 = math.exp %242 : vector<4x16xf32>
    %cst_98 = arith.constant 1.000000e+00 : f32
    %244 = vector.broadcast %cst_98 : f32 to vector<4x16xf32>
    %245 = arith.addf %244, %243 : vector<4x16xf32>
    %cst_99 = arith.constant 1.000000e+00 : f32
    %246 = vector.broadcast %cst_99 : f32 to vector<4x16xf32>
    %247 = arith.divf %246, %245 : vector<4x16xf32>
    %248 = arith.mulf %237, %209 : vector<4x16xf32>
    %249 = arith.mulf %229, %239 : vector<4x16xf32>
    %250 = arith.addf %248, %249 : vector<4x16xf32>
    %251 = math.tanh %250 : vector<4x16xf32>
    %252 = arith.mulf %247, %251 : vector<4x16xf32>
    %c0_100 = arith.constant 0 : index
    %253 = arith.index_cast %c5_i32 : i32 to index
    %c0_101 = arith.constant 0 : index
    %c0_102 = arith.constant 0 : index
    %254 = vector.load %arg4[%c0_100, %253, %c0_101, %c0_102] : memref<1x16x4x16xf32, #tpu.memory_space<vmem>>, vector<1x1x4x16xf32>
    %255 = vector.shape_cast %254 : vector<1x1x4x16xf32> to vector<4x16xf32>
    %256 = vector.shape_cast %252 : vector<4x16xf32> to vector<1x1x4x16xf32>
    tpu.vector_store %arg4[%c0_100, %253, %c0_101, %c0_102], %256 {strides = array<i32>} : memref<1x16x4x16xf32, #tpu.memory_space<vmem>>, vector<1x1x4x16xf32>,
    %c6_i32 = arith.constant 6 : i32
    %c0_103 = arith.constant 0 : index
    %257 = arith.index_cast %c6_i32 : i32 to index
    %c0_104 = arith.constant 0 : index
    %c0_105 = arith.constant 0 : index
    %258 = vector.load %arg2[%c0_103, %257, %c0_104, %c0_105] : memref<1x16x4x64xf32, #tpu.memory_space<vmem>>, vector<1x1x4x64xf32>
    %259 = vector.shape_cast %258 : vector<1x1x4x64xf32> to vector<4x64xf32>
    %260 = arith.truncf %252 : vector<4x16xf32> to vector<4x16xbf16>
    %cst_106 = arith.constant dense<0.000000e+00> : vector<4x64xf32>
    %261 = tpu.matmul %260, %4, %cst_106 {dimension_numbers = #tpu.dot_dimension_numbers<[1], [0], [0], [1], [0, 0, 1, 1], [], []>} : vector<4x16xbf16>, vector<16x64xbf16>, vector<4x64xf32> -> vector<4x64xf32>
    %262 = arith.addf %259, %261 : vector<4x64xf32>
    %263 = vector.extract_strided_slice %262 {offsets = [0, 0], sizes = [4, 16], strides = [1, 1]} : vector<4x64xf32> to vector<4x16xf32>
    %cst_107 = arith.constant 0.000000e+00 : f32
    %264 = vector.broadcast %cst_107 : f32 to vector<4x16xf32>
    %265 = arith.subf %264, %263 : vector<4x16xf32>
    %266 = math.exp %265 : vector<4x16xf32>
    %cst_108 = arith.constant 1.000000e+00 : f32
    %267 = vector.broadcast %cst_108 : f32 to vector<4x16xf32>
    %268 = arith.addf %267, %266 : vector<4x16xf32>
    %cst_109 = arith.constant 1.000000e+00 : f32
    %269 = vector.broadcast %cst_109 : f32 to vector<4x16xf32>
    %270 = arith.divf %269, %268 : vector<4x16xf32>
    %271 = vector.extract_strided_slice %262 {offsets = [0, 16], sizes = [4, 16], strides = [1, 1]} : vector<4x64xf32> to vector<4x16xf32>
    %cst_110 = arith.constant 0.000000e+00 : f32
    %272 = vector.broadcast %cst_110 : f32 to vector<4x16xf32>
    %273 = arith.subf %272, %271 : vector<4x16xf32>
    %274 = math.exp %273 : vector<4x16xf32>
    %cst_111 = arith.constant 1.000000e+00 : f32
    %275 = vector.broadcast %cst_111 : f32 to vector<4x16xf32>
    %276 = arith.addf %275, %274 : vector<4x16xf32>
    %cst_112 = arith.constant 1.000000e+00 : f32
    %277 = vector.broadcast %cst_112 : f32 to vector<4x16xf32>
    %278 = arith.divf %277, %276 : vector<4x16xf32>
    %279 = vector.extract_strided_slice %262 {offsets = [0, 32], sizes = [4, 16], strides = [1, 1]} : vector<4x64xf32> to vector<4x16xf32>
    %280 = math.tanh %279 : vector<4x16xf32>
    %281 = vector.extract_strided_slice %262 {offsets = [0, 48], sizes = [4, 16], strides = [1, 1]} : vector<4x64xf32> to vector<4x16xf32>
    %cst_113 = arith.constant 0.000000e+00 : f32
    %282 = vector.broadcast %cst_113 : f32 to vector<4x16xf32>
    %283 = arith.subf %282, %281 : vector<4x16xf32>
    %284 = math.exp %283 : vector<4x16xf32>
    %cst_114 = arith.constant 1.000000e+00 : f32
    %285 = vector.broadcast %cst_114 : f32 to vector<4x16xf32>
    %286 = arith.addf %285, %284 : vector<4x16xf32>
    %cst_115 = arith.constant 1.000000e+00 : f32
    %287 = vector.broadcast %cst_115 : f32 to vector<4x16xf32>
    %288 = arith.divf %287, %286 : vector<4x16xf32>
    %289 = arith.mulf %278, %250 : vector<4x16xf32>
    %290 = arith.mulf %270, %280 : vector<4x16xf32>
    %291 = arith.addf %289, %290 : vector<4x16xf32>
    %292 = math.tanh %291 : vector<4x16xf32>
    %293 = arith.mulf %288, %292 : vector<4x16xf32>
    %c0_116 = arith.constant 0 : index
    %294 = arith.index_cast %c6_i32 : i32 to index
    %c0_117 = arith.constant 0 : index
    %c0_118 = arith.constant 0 : index
    %295 = vector.load %arg4[%c0_116, %294, %c0_117, %c0_118] : memref<1x16x4x16xf32, #tpu.memory_space<vmem>>, vector<1x1x4x16xf32>
    %296 = vector.shape_cast %295 : vector<1x1x4x16xf32> to vector<4x16xf32>
    %297 = vector.shape_cast %293 : vector<4x16xf32> to vector<1x1x4x16xf32>
    tpu.vector_store %arg4[%c0_116, %294, %c0_117, %c0_118], %297 {strides = array<i32>} : memref<1x16x4x16xf32, #tpu.memory_space<vmem>>, vector<1x1x4x16xf32>,
    %c7_i32 = arith.constant 7 : i32
    %c0_119 = arith.constant 0 : index
    %298 = arith.index_cast %c7_i32 : i32 to index
    %c0_120 = arith.constant 0 : index
    %c0_121 = arith.constant 0 : index
    %299 = vector.load %arg2[%c0_119, %298, %c0_120, %c0_121] : memref<1x16x4x64xf32, #tpu.memory_space<vmem>>, vector<1x1x4x64xf32>
    %300 = vector.shape_cast %299 : vector<1x1x4x64xf32> to vector<4x64xf32>
    %301 = arith.truncf %293 : vector<4x16xf32> to vector<4x16xbf16>
    %cst_122 = arith.constant dense<0.000000e+00> : vector<4x64xf32>
    %302 = tpu.matmul %301, %4, %cst_122 {dimension_numbers = #tpu.dot_dimension_numbers<[1], [0], [0], [1], [0, 0, 1, 1], [], []>} : vector<4x16xbf16>, vector<16x64xbf16>, vector<4x64xf32> -> vector<4x64xf32>
    %303 = arith.addf %300, %302 : vector<4x64xf32>
    %304 = vector.extract_strided_slice %303 {offsets = [0, 0], sizes = [4, 16], strides = [1, 1]} : vector<4x64xf32> to vector<4x16xf32>
    %cst_123 = arith.constant 0.000000e+00 : f32
    %305 = vector.broadcast %cst_123 : f32 to vector<4x16xf32>
    %306 = arith.subf %305, %304 : vector<4x16xf32>
    %307 = math.exp %306 : vector<4x16xf32>
    %cst_124 = arith.constant 1.000000e+00 : f32
    %308 = vector.broadcast %cst_124 : f32 to vector<4x16xf32>
    %309 = arith.addf %308, %307 : vector<4x16xf32>
    %cst_125 = arith.constant 1.000000e+00 : f32
    %310 = vector.broadcast %cst_125 : f32 to vector<4x16xf32>
    %311 = arith.divf %310, %309 : vector<4x16xf32>
    %312 = vector.extract_strided_slice %303 {offsets = [0, 16], sizes = [4, 16], strides = [1, 1]} : vector<4x64xf32> to vector<4x16xf32>
    %cst_126 = arith.constant 0.000000e+00 : f32
    %313 = vector.broadcast %cst_126 : f32 to vector<4x16xf32>
    %314 = arith.subf %313, %312 : vector<4x16xf32>
    %315 = math.exp %314 : vector<4x16xf32>
    %cst_127 = arith.constant 1.000000e+00 : f32
    %316 = vector.broadcast %cst_127 : f32 to vector<4x16xf32>
    %317 = arith.addf %316, %315 : vector<4x16xf32>
    %cst_128 = arith.constant 1.000000e+00 : f32
    %318 = vector.broadcast %cst_128 : f32 to vector<4x16xf32>
    %319 = arith.divf %318, %317 : vector<4x16xf32>
    %320 = vector.extract_strided_slice %303 {offsets = [0, 32], sizes = [4, 16], strides = [1, 1]} : vector<4x64xf32> to vector<4x16xf32>
    %321 = math.tanh %320 : vector<4x16xf32>
    %322 = vector.extract_strided_slice %303 {offsets = [0, 48], sizes = [4, 16], strides = [1, 1]} : vector<4x64xf32> to vector<4x16xf32>
    %cst_129 = arith.constant 0.000000e+00 : f32
    %323 = vector.broadcast %cst_129 : f32 to vector<4x16xf32>
    %324 = arith.subf %323, %322 : vector<4x16xf32>
    %325 = math.exp %324 : vector<4x16xf32>
    %cst_130 = arith.constant 1.000000e+00 : f32
    %326 = vector.broadcast %cst_130 : f32 to vector<4x16xf32>
    %327 = arith.addf %326, %325 : vector<4x16xf32>
    %cst_131 = arith.constant 1.000000e+00 : f32
    %328 = vector.broadcast %cst_131 : f32 to vector<4x16xf32>
    %329 = arith.divf %328, %327 : vector<4x16xf32>
    %330 = arith.mulf %319, %291 : vector<4x16xf32>
    %331 = arith.mulf %311, %321 : vector<4x16xf32>
    %332 = arith.addf %330, %331 : vector<4x16xf32>
    %333 = math.tanh %332 : vector<4x16xf32>
    %334 = arith.mulf %329, %333 : vector<4x16xf32>
    %c0_132 = arith.constant 0 : index
    %335 = arith.index_cast %c7_i32 : i32 to index
    %c0_133 = arith.constant 0 : index
    %c0_134 = arith.constant 0 : index
    %336 = vector.load %arg4[%c0_132, %335, %c0_133, %c0_134] : memref<1x16x4x16xf32, #tpu.memory_space<vmem>>, vector<1x1x4x16xf32>
    %337 = vector.shape_cast %336 : vector<1x1x4x16xf32> to vector<4x16xf32>
    %338 = vector.shape_cast %334 : vector<4x16xf32> to vector<1x1x4x16xf32>
    tpu.vector_store %arg4[%c0_132, %335, %c0_133, %c0_134], %338 {strides = array<i32>} : memref<1x16x4x16xf32, #tpu.memory_space<vmem>>, vector<1x1x4x16xf32>,
    %c8_i32 = arith.constant 8 : i32
    %c0_135 = arith.constant 0 : index
    %339 = arith.index_cast %c8_i32 : i32 to index
    %c0_136 = arith.constant 0 : index
    %c0_137 = arith.constant 0 : index
    %340 = vector.load %arg2[%c0_135, %339, %c0_136, %c0_137] : memref<1x16x4x64xf32, #tpu.memory_space<vmem>>, vector<1x1x4x64xf32>
    %341 = vector.shape_cast %340 : vector<1x1x4x64xf32> to vector<4x64xf32>
    %342 = arith.truncf %334 : vector<4x16xf32> to vector<4x16xbf16>
    %cst_138 = arith.constant dense<0.000000e+00> : vector<4x64xf32>
    %343 = tpu.matmul %342, %4, %cst_138 {dimension_numbers = #tpu.dot_dimension_numbers<[1], [0], [0], [1], [0, 0, 1, 1], [], []>} : vector<4x16xbf16>, vector<16x64xbf16>, vector<4x64xf32> -> vector<4x64xf32>
    %344 = arith.addf %341, %343 : vector<4x64xf32>
    %345 = vector.extract_strided_slice %344 {offsets = [0, 0], sizes = [4, 16], strides = [1, 1]} : vector<4x64xf32> to vector<4x16xf32>
    %cst_139 = arith.constant 0.000000e+00 : f32
    %346 = vector.broadcast %cst_139 : f32 to vector<4x16xf32>
    %347 = arith.subf %346, %345 : vector<4x16xf32>
    %348 = math.exp %347 : vector<4x16xf32>
    %cst_140 = arith.constant 1.000000e+00 : f32
    %349 = vector.broadcast %cst_140 : f32 to vector<4x16xf32>
    %350 = arith.addf %349, %348 : vector<4x16xf32>
    %cst_141 = arith.constant 1.000000e+00 : f32
    %351 = vector.broadcast %cst_141 : f32 to vector<4x16xf32>
    %352 = arith.divf %351, %350 : vector<4x16xf32>
    %353 = vector.extract_strided_slice %344 {offsets = [0, 16], sizes = [4, 16], strides = [1, 1]} : vector<4x64xf32> to vector<4x16xf32>
    %cst_142 = arith.constant 0.000000e+00 : f32
    %354 = vector.broadcast %cst_142 : f32 to vector<4x16xf32>
    %355 = arith.subf %354, %353 : vector<4x16xf32>
    %356 = math.exp %355 : vector<4x16xf32>
    %cst_143 = arith.constant 1.000000e+00 : f32
    %357 = vector.broadcast %cst_143 : f32 to vector<4x16xf32>
    %358 = arith.addf %357, %356 : vector<4x16xf32>
    %cst_144 = arith.constant 1.000000e+00 : f32
    %359 = vector.broadcast %cst_144 : f32 to vector<4x16xf32>
    %360 = arith.divf %359, %358 : vector<4x16xf32>
    %361 = vector.extract_strided_slice %344 {offsets = [0, 32], sizes = [4, 16], strides = [1, 1]} : vector<4x64xf32> to vector<4x16xf32>
    %362 = math.tanh %361 : vector<4x16xf32>
    %363 = vector.extract_strided_slice %344 {offsets = [0, 48], sizes = [4, 16], strides = [1, 1]} : vector<4x64xf32> to vector<4x16xf32>
    %cst_145 = arith.constant 0.000000e+00 : f32
    %364 = vector.broadcast %cst_145 : f32 to vector<4x16xf32>
    %365 = arith.subf %364, %363 : vector<4x16xf32>
    %366 = math.exp %365 : vector<4x16xf32>
    %cst_146 = arith.constant 1.000000e+00 : f32
    %367 = vector.broadcast %cst_146 : f32 to vector<4x16xf32>
    %368 = arith.addf %367, %366 : vector<4x16xf32>
    %cst_147 = arith.constant 1.000000e+00 : f32
    %369 = vector.broadcast %cst_147 : f32 to vector<4x16xf32>
    %370 = arith.divf %369, %368 : vector<4x16xf32>
    %371 = arith.mulf %360, %332 : vector<4x16xf32>
    %372 = arith.mulf %352, %362 : vector<4x16xf32>
    %373 = arith.addf %371, %372 : vector<4x16xf32>
    %374 = math.tanh %373 : vector<4x16xf32>
    %375 = arith.mulf %370, %374 : vector<4x16xf32>
    %c0_148 = arith.constant 0 : index
    %376 = arith.index_cast %c8_i32 : i32 to index
    %c0_149 = arith.constant 0 : index
    %c0_150 = arith.constant 0 : index
    %377 = vector.load %arg4[%c0_148, %376, %c0_149, %c0_150] : memref<1x16x4x16xf32, #tpu.memory_space<vmem>>, vector<1x1x4x16xf32>
    %378 = vector.shape_cast %377 : vector<1x1x4x16xf32> to vector<4x16xf32>
    %379 = vector.shape_cast %375 : vector<4x16xf32> to vector<1x1x4x16xf32>
    tpu.vector_store %arg4[%c0_148, %376, %c0_149, %c0_150], %379 {strides = array<i32>} : memref<1x16x4x16xf32, #tpu.memory_space<vmem>>, vector<1x1x4x16xf32>,
    %c9_i32 = arith.constant 9 : i32
    %c0_151 = arith.constant 0 : index
    %380 = arith.index_cast %c9_i32 : i32 to index
    %c0_152 = arith.constant 0 : index
    %c0_153 = arith.constant 0 : index
    %381 = vector.load %arg2[%c0_151, %380, %c0_152, %c0_153] : memref<1x16x4x64xf32, #tpu.memory_space<vmem>>, vector<1x1x4x64xf32>
    %382 = vector.shape_cast %381 : vector<1x1x4x64xf32> to vector<4x64xf32>
    %383 = arith.truncf %375 : vector<4x16xf32> to vector<4x16xbf16>
    %cst_154 = arith.constant dense<0.000000e+00> : vector<4x64xf32>
    %384 = tpu.matmul %383, %4, %cst_154 {dimension_numbers = #tpu.dot_dimension_numbers<[1], [0], [0], [1], [0, 0, 1, 1], [], []>} : vector<4x16xbf16>, vector<16x64xbf16>, vector<4x64xf32> -> vector<4x64xf32>
    %385 = arith.addf %382, %384 : vector<4x64xf32>
    %386 = vector.extract_strided_slice %385 {offsets = [0, 0], sizes = [4, 16], strides = [1, 1]} : vector<4x64xf32> to vector<4x16xf32>
    %cst_155 = arith.constant 0.000000e+00 : f32
    %387 = vector.broadcast %cst_155 : f32 to vector<4x16xf32>
    %388 = arith.subf %387, %386 : vector<4x16xf32>
    %389 = math.exp %388 : vector<4x16xf32>
    %cst_156 = arith.constant 1.000000e+00 : f32
    %390 = vector.broadcast %cst_156 : f32 to vector<4x16xf32>
    %391 = arith.addf %390, %389 : vector<4x16xf32>
    %cst_157 = arith.constant 1.000000e+00 : f32
    %392 = vector.broadcast %cst_157 : f32 to vector<4x16xf32>
    %393 = arith.divf %392, %391 : vector<4x16xf32>
    %394 = vector.extract_strided_slice %385 {offsets = [0, 16], sizes = [4, 16], strides = [1, 1]} : vector<4x64xf32> to vector<4x16xf32>
    %cst_158 = arith.constant 0.000000e+00 : f32
    %395 = vector.broadcast %cst_158 : f32 to vector<4x16xf32>
    %396 = arith.subf %395, %394 : vector<4x16xf32>
    %397 = math.exp %396 : vector<4x16xf32>
    %cst_159 = arith.constant 1.000000e+00 : f32
    %398 = vector.broadcast %cst_159 : f32 to vector<4x16xf32>
    %399 = arith.addf %398, %397 : vector<4x16xf32>
    %cst_160 = arith.constant 1.000000e+00 : f32
    %400 = vector.broadcast %cst_160 : f32 to vector<4x16xf32>
    %401 = arith.divf %400, %399 : vector<4x16xf32>
    %402 = vector.extract_strided_slice %385 {offsets = [0, 32], sizes = [4, 16], strides = [1, 1]} : vector<4x64xf32> to vector<4x16xf32>
    %403 = math.tanh %402 : vector<4x16xf32>
    %404 = vector.extract_strided_slice %385 {offsets = [0, 48], sizes = [4, 16], strides = [1, 1]} : vector<4x64xf32> to vector<4x16xf32>
    %cst_161 = arith.constant 0.000000e+00 : f32
    %405 = vector.broadcast %cst_161 : f32 to vector<4x16xf32>
    %406 = arith.subf %405, %404 : vector<4x16xf32>
    %407 = math.exp %406 : vector<4x16xf32>
    %cst_162 = arith.constant 1.000000e+00 : f32
    %408 = vector.broadcast %cst_162 : f32 to vector<4x16xf32>
    %409 = arith.addf %408, %407 : vector<4x16xf32>
    %cst_163 = arith.constant 1.000000e+00 : f32
    %410 = vector.broadcast %cst_163 : f32 to vector<4x16xf32>
    %411 = arith.divf %410, %409 : vector<4x16xf32>
    %412 = arith.mulf %401, %373 : vector<4x16xf32>
    %413 = arith.mulf %393, %403 : vector<4x16xf32>
    %414 = arith.addf %412, %413 : vector<4x16xf32>
    %415 = math.tanh %414 : vector<4x16xf32>
    %416 = arith.mulf %411, %415 : vector<4x16xf32>
    %c0_164 = arith.constant 0 : index
    %417 = arith.index_cast %c9_i32 : i32 to index
    %c0_165 = arith.constant 0 : index
    %c0_166 = arith.constant 0 : index
    %418 = vector.load %arg4[%c0_164, %417, %c0_165, %c0_166] : memref<1x16x4x16xf32, #tpu.memory_space<vmem>>, vector<1x1x4x16xf32>
    %419 = vector.shape_cast %418 : vector<1x1x4x16xf32> to vector<4x16xf32>
    %420 = vector.shape_cast %416 : vector<4x16xf32> to vector<1x1x4x16xf32>
    tpu.vector_store %arg4[%c0_164, %417, %c0_165, %c0_166], %420 {strides = array<i32>} : memref<1x16x4x16xf32, #tpu.memory_space<vmem>>, vector<1x1x4x16xf32>,
    %c10_i32 = arith.constant 10 : i32
    %c0_167 = arith.constant 0 : index
    %421 = arith.index_cast %c10_i32 : i32 to index
    %c0_168 = arith.constant 0 : index
    %c0_169 = arith.constant 0 : index
    %422 = vector.load %arg2[%c0_167, %421, %c0_168, %c0_169] : memref<1x16x4x64xf32, #tpu.memory_space<vmem>>, vector<1x1x4x64xf32>
    %423 = vector.shape_cast %422 : vector<1x1x4x64xf32> to vector<4x64xf32>
    %424 = arith.truncf %416 : vector<4x16xf32> to vector<4x16xbf16>
    %cst_170 = arith.constant dense<0.000000e+00> : vector<4x64xf32>
    %425 = tpu.matmul %424, %4, %cst_170 {dimension_numbers = #tpu.dot_dimension_numbers<[1], [0], [0], [1], [0, 0, 1, 1], [], []>} : vector<4x16xbf16>, vector<16x64xbf16>, vector<4x64xf32> -> vector<4x64xf32>
    %426 = arith.addf %423, %425 : vector<4x64xf32>
    %427 = vector.extract_strided_slice %426 {offsets = [0, 0], sizes = [4, 16], strides = [1, 1]} : vector<4x64xf32> to vector<4x16xf32>
    %cst_171 = arith.constant 0.000000e+00 : f32
    %428 = vector.broadcast %cst_171 : f32 to vector<4x16xf32>
    %429 = arith.subf %428, %427 : vector<4x16xf32>
    %430 = math.exp %429 : vector<4x16xf32>
    %cst_172 = arith.constant 1.000000e+00 : f32
    %431 = vector.broadcast %cst_172 : f32 to vector<4x16xf32>
    %432 = arith.addf %431, %430 : vector<4x16xf32>
    %cst_173 = arith.constant 1.000000e+00 : f32
    %433 = vector.broadcast %cst_173 : f32 to vector<4x16xf32>
    %434 = arith.divf %433, %432 : vector<4x16xf32>
    %435 = vector.extract_strided_slice %426 {offsets = [0, 16], sizes = [4, 16], strides = [1, 1]} : vector<4x64xf32> to vector<4x16xf32>
    %cst_174 = arith.constant 0.000000e+00 : f32
    %436 = vector.broadcast %cst_174 : f32 to vector<4x16xf32>
    %437 = arith.subf %436, %435 : vector<4x16xf32>
    %438 = math.exp %437 : vector<4x16xf32>
    %cst_175 = arith.constant 1.000000e+00 : f32
    %439 = vector.broadcast %cst_175 : f32 to vector<4x16xf32>
    %440 = arith.addf %439, %438 : vector<4x16xf32>
    %cst_176 = arith.constant 1.000000e+00 : f32
    %441 = vector.broadcast %cst_176 : f32 to vector<4x16xf32>
    %442 = arith.divf %441, %440 : vector<4x16xf32>
    %443 = vector.extract_strided_slice %426 {offsets = [0, 32], sizes = [4, 16], strides = [1, 1]} : vector<4x64xf32> to vector<4x16xf32>
    %444 = math.tanh %443 : vector<4x16xf32>
    %445 = vector.extract_strided_slice %426 {offsets = [0, 48], sizes = [4, 16], strides = [1, 1]} : vector<4x64xf32> to vector<4x16xf32>
    %cst_177 = arith.constant 0.000000e+00 : f32
    %446 = vector.broadcast %cst_177 : f32 to vector<4x16xf32>
    %447 = arith.subf %446, %445 : vector<4x16xf32>
    %448 = math.exp %447 : vector<4x16xf32>
    %cst_178 = arith.constant 1.000000e+00 : f32
    %449 = vector.broadcast %cst_178 : f32 to vector<4x16xf32>
    %450 = arith.addf %449, %448 : vector<4x16xf32>
    %cst_179 = arith.constant 1.000000e+00 : f32
    %451 = vector.broadcast %cst_179 : f32 to vector<4x16xf32>
    %452 = arith.divf %451, %450 : vector<4x16xf32>
    %453 = arith.mulf %442, %414 : vector<4x16xf32>
    %454 = arith.mulf %434, %444 : vector<4x16xf32>
    %455 = arith.addf %453, %454 : vector<4x16xf32>
    %456 = math.tanh %455 : vector<4x16xf32>
    %457 = arith.mulf %452, %456 : vector<4x16xf32>
    %c0_180 = arith.constant 0 : index
    %458 = arith.index_cast %c10_i32 : i32 to index
    %c0_181 = arith.constant 0 : index
    %c0_182 = arith.constant 0 : index
    %459 = vector.load %arg4[%c0_180, %458, %c0_181, %c0_182] : memref<1x16x4x16xf32, #tpu.memory_space<vmem>>, vector<1x1x4x16xf32>
    %460 = vector.shape_cast %459 : vector<1x1x4x16xf32> to vector<4x16xf32>
    %461 = vector.shape_cast %457 : vector<4x16xf32> to vector<1x1x4x16xf32>
    tpu.vector_store %arg4[%c0_180, %458, %c0_181, %c0_182], %461 {strides = array<i32>} : memref<1x16x4x16xf32, #tpu.memory_space<vmem>>, vector<1x1x4x16xf32>,
    %c11_i32 = arith.constant 11 : i32
    %c0_183 = arith.constant 0 : index
    %462 = arith.index_cast %c11_i32 : i32 to index
    %c0_184 = arith.constant 0 : index
    %c0_185 = arith.constant 0 : index
    %463 = vector.load %arg2[%c0_183, %462, %c0_184, %c0_185] : memref<1x16x4x64xf32, #tpu.memory_space<vmem>>, vector<1x1x4x64xf32>
    %464 = vector.shape_cast %463 : vector<1x1x4x64xf32> to vector<4x64xf32>
    %465 = arith.truncf %457 : vector<4x16xf32> to vector<4x16xbf16>
    %cst_186 = arith.constant dense<0.000000e+00> : vector<4x64xf32>
    %466 = tpu.matmul %465, %4, %cst_186 {dimension_numbers = #tpu.dot_dimension_numbers<[1], [0], [0], [1], [0, 0, 1, 1], [], []>} : vector<4x16xbf16>, vector<16x64xbf16>, vector<4x64xf32> -> vector<4x64xf32>
    %467 = arith.addf %464, %466 : vector<4x64xf32>
    %468 = vector.extract_strided_slice %467 {offsets = [0, 0], sizes = [4, 16], strides = [1, 1]} : vector<4x64xf32> to vector<4x16xf32>
    %cst_187 = arith.constant 0.000000e+00 : f32
    %469 = vector.broadcast %cst_187 : f32 to vector<4x16xf32>
    %470 = arith.subf %469, %468 : vector<4x16xf32>
    %471 = math.exp %470 : vector<4x16xf32>
    %cst_188 = arith.constant 1.000000e+00 : f32
    %472 = vector.broadcast %cst_188 : f32 to vector<4x16xf32>
    %473 = arith.addf %472, %471 : vector<4x16xf32>
    %cst_189 = arith.constant 1.000000e+00 : f32
    %474 = vector.broadcast %cst_189 : f32 to vector<4x16xf32>
    %475 = arith.divf %474, %473 : vector<4x16xf32>
    %476 = vector.extract_strided_slice %467 {offsets = [0, 16], sizes = [4, 16], strides = [1, 1]} : vector<4x64xf32> to vector<4x16xf32>
    %cst_190 = arith.constant 0.000000e+00 : f32
    %477 = vector.broadcast %cst_190 : f32 to vector<4x16xf32>
    %478 = arith.subf %477, %476 : vector<4x16xf32>
    %479 = math.exp %478 : vector<4x16xf32>
    %cst_191 = arith.constant 1.000000e+00 : f32
    %480 = vector.broadcast %cst_191 : f32 to vector<4x16xf32>
    %481 = arith.addf %480, %479 : vector<4x16xf32>
    %cst_192 = arith.constant 1.000000e+00 : f32
    %482 = vector.broadcast %cst_192 : f32 to vector<4x16xf32>
    %483 = arith.divf %482, %481 : vector<4x16xf32>
    %484 = vector.extract_strided_slice %467 {offsets = [0, 32], sizes = [4, 16], strides = [1, 1]} : vector<4x64xf32> to vector<4x16xf32>
    %485 = math.tanh %484 : vector<4x16xf32>
    %486 = vector.extract_strided_slice %467 {offsets = [0, 48], sizes = [4, 16], strides = [1, 1]} : vector<4x64xf32> to vector<4x16xf32>
    %cst_193 = arith.constant 0.000000e+00 : f32
    %487 = vector.broadcast %cst_193 : f32 to vector<4x16xf32>
    %488 = arith.subf %487, %486 : vector<4x16xf32>
    %489 = math.exp %488 : vector<4x16xf32>
    %cst_194 = arith.constant 1.000000e+00 : f32
    %490 = vector.broadcast %cst_194 : f32 to vector<4x16xf32>
    %491 = arith.addf %490, %489 : vector<4x16xf32>
    %cst_195 = arith.constant 1.000000e+00 : f32
    %492 = vector.broadcast %cst_195 : f32 to vector<4x16xf32>
    %493 = arith.divf %492, %491 : vector<4x16xf32>
    %494 = arith.mulf %483, %455 : vector<4x16xf32>
    %495 = arith.mulf %475, %485 : vector<4x16xf32>
    %496 = arith.addf %494, %495 : vector<4x16xf32>
    %497 = math.tanh %496 : vector<4x16xf32>
    %498 = arith.mulf %493, %497 : vector<4x16xf32>
    %c0_196 = arith.constant 0 : index
    %499 = arith.index_cast %c11_i32 : i32 to index
    %c0_197 = arith.constant 0 : index
    %c0_198 = arith.constant 0 : index
    %500 = vector.load %arg4[%c0_196, %499, %c0_197, %c0_198] : memref<1x16x4x16xf32, #tpu.memory_space<vmem>>, vector<1x1x4x16xf32>
    %501 = vector.shape_cast %500 : vector<1x1x4x16xf32> to vector<4x16xf32>
    %502 = vector.shape_cast %498 : vector<4x16xf32> to vector<1x1x4x16xf32>
    tpu.vector_store %arg4[%c0_196, %499, %c0_197, %c0_198], %502 {strides = array<i32>} : memref<1x16x4x16xf32, #tpu.memory_space<vmem>>, vector<1x1x4x16xf32>,
    %c12_i32 = arith.constant 12 : i32
    %c0_199 = arith.constant 0 : index
    %503 = arith.index_cast %c12_i32 : i32 to index
    %c0_200 = arith.constant 0 : index
    %c0_201 = arith.constant 0 : index
    %504 = vector.load %arg2[%c0_199, %503, %c0_200, %c0_201] : memref<1x16x4x64xf32, #tpu.memory_space<vmem>>, vector<1x1x4x64xf32>
    %505 = vector.shape_cast %504 : vector<1x1x4x64xf32> to vector<4x64xf32>
    %506 = arith.truncf %498 : vector<4x16xf32> to vector<4x16xbf16>
    %cst_202 = arith.constant dense<0.000000e+00> : vector<4x64xf32>
    %507 = tpu.matmul %506, %4, %cst_202 {dimension_numbers = #tpu.dot_dimension_numbers<[1], [0], [0], [1], [0, 0, 1, 1], [], []>} : vector<4x16xbf16>, vector<16x64xbf16>, vector<4x64xf32> -> vector<4x64xf32>
    %508 = arith.addf %505, %507 : vector<4x64xf32>
    %509 = vector.extract_strided_slice %508 {offsets = [0, 0], sizes = [4, 16], strides = [1, 1]} : vector<4x64xf32> to vector<4x16xf32>
    %cst_203 = arith.constant 0.000000e+00 : f32
    %510 = vector.broadcast %cst_203 : f32 to vector<4x16xf32>
    %511 = arith.subf %510, %509 : vector<4x16xf32>
    %512 = math.exp %511 : vector<4x16xf32>
    %cst_204 = arith.constant 1.000000e+00 : f32
    %513 = vector.broadcast %cst_204 : f32 to vector<4x16xf32>
    %514 = arith.addf %513, %512 : vector<4x16xf32>
    %cst_205 = arith.constant 1.000000e+00 : f32
    %515 = vector.broadcast %cst_205 : f32 to vector<4x16xf32>
    %516 = arith.divf %515, %514 : vector<4x16xf32>
    %517 = vector.extract_strided_slice %508 {offsets = [0, 16], sizes = [4, 16], strides = [1, 1]} : vector<4x64xf32> to vector<4x16xf32>
    %cst_206 = arith.constant 0.000000e+00 : f32
    %518 = vector.broadcast %cst_206 : f32 to vector<4x16xf32>
    %519 = arith.subf %518, %517 : vector<4x16xf32>
    %520 = math.exp %519 : vector<4x16xf32>
    %cst_207 = arith.constant 1.000000e+00 : f32
    %521 = vector.broadcast %cst_207 : f32 to vector<4x16xf32>
    %522 = arith.addf %521, %520 : vector<4x16xf32>
    %cst_208 = arith.constant 1.000000e+00 : f32
    %523 = vector.broadcast %cst_208 : f32 to vector<4x16xf32>
    %524 = arith.divf %523, %522 : vector<4x16xf32>
    %525 = vector.extract_strided_slice %508 {offsets = [0, 32], sizes = [4, 16], strides = [1, 1]} : vector<4x64xf32> to vector<4x16xf32>
    %526 = math.tanh %525 : vector<4x16xf32>
    %527 = vector.extract_strided_slice %508 {offsets = [0, 48], sizes = [4, 16], strides = [1, 1]} : vector<4x64xf32> to vector<4x16xf32>
    %cst_209 = arith.constant 0.000000e+00 : f32
    %528 = vector.broadcast %cst_209 : f32 to vector<4x16xf32>
    %529 = arith.subf %528, %527 : vector<4x16xf32>
    %530 = math.exp %529 : vector<4x16xf32>
    %cst_210 = arith.constant 1.000000e+00 : f32
    %531 = vector.broadcast %cst_210 : f32 to vector<4x16xf32>
    %532 = arith.addf %531, %530 : vector<4x16xf32>
    %cst_211 = arith.constant 1.000000e+00 : f32
    %533 = vector.broadcast %cst_211 : f32 to vector<4x16xf32>
    %534 = arith.divf %533, %532 : vector<4x16xf32>
    %535 = arith.mulf %524, %496 : vector<4x16xf32>
    %536 = arith.mulf %516, %526 : vector<4x16xf32>
    %537 = arith.addf %535, %536 : vector<4x16xf32>
    %538 = math.tanh %537 : vector<4x16xf32>
    %539 = arith.mulf %534, %538 : vector<4x16xf32>
    %c0_212 = arith.constant 0 : index
    %540 = arith.index_cast %c12_i32 : i32 to index
    %c0_213 = arith.constant 0 : index
    %c0_214 = arith.constant 0 : index
    %541 = vector.load %arg4[%c0_212, %540, %c0_213, %c0_214] : memref<1x16x4x16xf32, #tpu.memory_space<vmem>>, vector<1x1x4x16xf32>
    %542 = vector.shape_cast %541 : vector<1x1x4x16xf32> to vector<4x16xf32>
    %543 = vector.shape_cast %539 : vector<4x16xf32> to vector<1x1x4x16xf32>
    tpu.vector_store %arg4[%c0_212, %540, %c0_213, %c0_214], %543 {strides = array<i32>} : memref<1x16x4x16xf32, #tpu.memory_space<vmem>>, vector<1x1x4x16xf32>,
    %c13_i32 = arith.constant 13 : i32
    %c0_215 = arith.constant 0 : index
    %544 = arith.index_cast %c13_i32 : i32 to index
    %c0_216 = arith.constant 0 : index
    %c0_217 = arith.constant 0 : index
    %545 = vector.load %arg2[%c0_215, %544, %c0_216, %c0_217] : memref<1x16x4x64xf32, #tpu.memory_space<vmem>>, vector<1x1x4x64xf32>
    %546 = vector.shape_cast %545 : vector<1x1x4x64xf32> to vector<4x64xf32>
    %547 = arith.truncf %539 : vector<4x16xf32> to vector<4x16xbf16>
    %cst_218 = arith.constant dense<0.000000e+00> : vector<4x64xf32>
    %548 = tpu.matmul %547, %4, %cst_218 {dimension_numbers = #tpu.dot_dimension_numbers<[1], [0], [0], [1], [0, 0, 1, 1], [], []>} : vector<4x16xbf16>, vector<16x64xbf16>, vector<4x64xf32> -> vector<4x64xf32>
    %549 = arith.addf %546, %548 : vector<4x64xf32>
    %550 = vector.extract_strided_slice %549 {offsets = [0, 0], sizes = [4, 16], strides = [1, 1]} : vector<4x64xf32> to vector<4x16xf32>
    %cst_219 = arith.constant 0.000000e+00 : f32
    %551 = vector.broadcast %cst_219 : f32 to vector<4x16xf32>
    %552 = arith.subf %551, %550 : vector<4x16xf32>
    %553 = math.exp %552 : vector<4x16xf32>
    %cst_220 = arith.constant 1.000000e+00 : f32
    %554 = vector.broadcast %cst_220 : f32 to vector<4x16xf32>
    %555 = arith.addf %554, %553 : vector<4x16xf32>
    %cst_221 = arith.constant 1.000000e+00 : f32
    %556 = vector.broadcast %cst_221 : f32 to vector<4x16xf32>
    %557 = arith.divf %556, %555 : vector<4x16xf32>
    %558 = vector.extract_strided_slice %549 {offsets = [0, 16], sizes = [4, 16], strides = [1, 1]} : vector<4x64xf32> to vector<4x16xf32>
    %cst_222 = arith.constant 0.000000e+00 : f32
    %559 = vector.broadcast %cst_222 : f32 to vector<4x16xf32>
    %560 = arith.subf %559, %558 : vector<4x16xf32>
    %561 = math.exp %560 : vector<4x16xf32>
    %cst_223 = arith.constant 1.000000e+00 : f32
    %562 = vector.broadcast %cst_223 : f32 to vector<4x16xf32>
    %563 = arith.addf %562, %561 : vector<4x16xf32>
    %cst_224 = arith.constant 1.000000e+00 : f32
    %564 = vector.broadcast %cst_224 : f32 to vector<4x16xf32>
    %565 = arith.divf %564, %563 : vector<4x16xf32>
    %566 = vector.extract_strided_slice %549 {offsets = [0, 32], sizes = [4, 16], strides = [1, 1]} : vector<4x64xf32> to vector<4x16xf32>
    %567 = math.tanh %566 : vector<4x16xf32>
    %568 = vector.extract_strided_slice %549 {offsets = [0, 48], sizes = [4, 16], strides = [1, 1]} : vector<4x64xf32> to vector<4x16xf32>
    %cst_225 = arith.constant 0.000000e+00 : f32
    %569 = vector.broadcast %cst_225 : f32 to vector<4x16xf32>
    %570 = arith.subf %569, %568 : vector<4x16xf32>
    %571 = math.exp %570 : vector<4x16xf32>
    %cst_226 = arith.constant 1.000000e+00 : f32
    %572 = vector.broadcast %cst_226 : f32 to vector<4x16xf32>
    %573 = arith.addf %572, %571 : vector<4x16xf32>
    %cst_227 = arith.constant 1.000000e+00 : f32
    %574 = vector.broadcast %cst_227 : f32 to vector<4x16xf32>
    %575 = arith.divf %574, %573 : vector<4x16xf32>
    %576 = arith.mulf %565, %537 : vector<4x16xf32>
    %577 = arith.mulf %557, %567 : vector<4x16xf32>
    %578 = arith.addf %576, %577 : vector<4x16xf32>
    %579 = math.tanh %578 : vector<4x16xf32>
    %580 = arith.mulf %575, %579 : vector<4x16xf32>
    %c0_228 = arith.constant 0 : index
    %581 = arith.index_cast %c13_i32 : i32 to index
    %c0_229 = arith.constant 0 : index
    %c0_230 = arith.constant 0 : index
    %582 = vector.load %arg4[%c0_228, %581, %c0_229, %c0_230] : memref<1x16x4x16xf32, #tpu.memory_space<vmem>>, vector<1x1x4x16xf32>
    %583 = vector.shape_cast %582 : vector<1x1x4x16xf32> to vector<4x16xf32>
    %584 = vector.shape_cast %580 : vector<4x16xf32> to vector<1x1x4x16xf32>
    tpu.vector_store %arg4[%c0_228, %581, %c0_229, %c0_230], %584 {strides = array<i32>} : memref<1x16x4x16xf32, #tpu.memory_space<vmem>>, vector<1x1x4x16xf32>,
    %c14_i32 = arith.constant 14 : i32
    %c0_231 = arith.constant 0 : index
    %585 = arith.index_cast %c14_i32 : i32 to index
    %c0_232 = arith.constant 0 : index
    %c0_233 = arith.constant 0 : index
    %586 = vector.load %arg2[%c0_231, %585, %c0_232, %c0_233] : memref<1x16x4x64xf32, #tpu.memory_space<vmem>>, vector<1x1x4x64xf32>
    %587 = vector.shape_cast %586 : vector<1x1x4x64xf32> to vector<4x64xf32>
    %588 = arith.truncf %580 : vector<4x16xf32> to vector<4x16xbf16>
    %cst_234 = arith.constant dense<0.000000e+00> : vector<4x64xf32>
    %589 = tpu.matmul %588, %4, %cst_234 {dimension_numbers = #tpu.dot_dimension_numbers<[1], [0], [0], [1], [0, 0, 1, 1], [], []>} : vector<4x16xbf16>, vector<16x64xbf16>, vector<4x64xf32> -> vector<4x64xf32>
    %590 = arith.addf %587, %589 : vector<4x64xf32>
    %591 = vector.extract_strided_slice %590 {offsets = [0, 0], sizes = [4, 16], strides = [1, 1]} : vector<4x64xf32> to vector<4x16xf32>
    %cst_235 = arith.constant 0.000000e+00 : f32
    %592 = vector.broadcast %cst_235 : f32 to vector<4x16xf32>
    %593 = arith.subf %592, %591 : vector<4x16xf32>
    %594 = math.exp %593 : vector<4x16xf32>
    %cst_236 = arith.constant 1.000000e+00 : f32
    %595 = vector.broadcast %cst_236 : f32 to vector<4x16xf32>
    %596 = arith.addf %595, %594 : vector<4x16xf32>
    %cst_237 = arith.constant 1.000000e+00 : f32
    %597 = vector.broadcast %cst_237 : f32 to vector<4x16xf32>
    %598 = arith.divf %597, %596 : vector<4x16xf32>
    %599 = vector.extract_strided_slice %590 {offsets = [0, 16], sizes = [4, 16], strides = [1, 1]} : vector<4x64xf32> to vector<4x16xf32>
    %cst_238 = arith.constant 0.000000e+00 : f32
    %600 = vector.broadcast %cst_238 : f32 to vector<4x16xf32>
    %601 = arith.subf %600, %599 : vector<4x16xf32>
    %602 = math.exp %601 : vector<4x16xf32>
    %cst_239 = arith.constant 1.000000e+00 : f32
    %603 = vector.broadcast %cst_239 : f32 to vector<4x16xf32>
    %604 = arith.addf %603, %602 : vector<4x16xf32>
    %cst_240 = arith.constant 1.000000e+00 : f32
    %605 = vector.broadcast %cst_240 : f32 to vector<4x16xf32>
    %606 = arith.divf %605, %604 : vector<4x16xf32>
    %607 = vector.extract_strided_slice %590 {offsets = [0, 32], sizes = [4, 16], strides = [1, 1]} : vector<4x64xf32> to vector<4x16xf32>
    %608 = math.tanh %607 : vector<4x16xf32>
    %609 = vector.extract_strided_slice %590 {offsets = [0, 48], sizes = [4, 16], strides = [1, 1]} : vector<4x64xf32> to vector<4x16xf32>
    %cst_241 = arith.constant 0.000000e+00 : f32
    %610 = vector.broadcast %cst_241 : f32 to vector<4x16xf32>
    %611 = arith.subf %610, %609 : vector<4x16xf32>
    %612 = math.exp %611 : vector<4x16xf32>
    %cst_242 = arith.constant 1.000000e+00 : f32
    %613 = vector.broadcast %cst_242 : f32 to vector<4x16xf32>
    %614 = arith.addf %613, %612 : vector<4x16xf32>
    %cst_243 = arith.constant 1.000000e+00 : f32
    %615 = vector.broadcast %cst_243 : f32 to vector<4x16xf32>
    %616 = arith.divf %615, %614 : vector<4x16xf32>
    %617 = arith.mulf %606, %578 : vector<4x16xf32>
    %618 = arith.mulf %598, %608 : vector<4x16xf32>
    %619 = arith.addf %617, %618 : vector<4x16xf32>
    %620 = math.tanh %619 : vector<4x16xf32>
    %621 = arith.mulf %616, %620 : vector<4x16xf32>
    %c0_244 = arith.constant 0 : index
    %622 = arith.index_cast %c14_i32 : i32 to index
    %c0_245 = arith.constant 0 : index
    %c0_246 = arith.constant 0 : index
    %623 = vector.load %arg4[%c0_244, %622, %c0_245, %c0_246] : memref<1x16x4x16xf32, #tpu.memory_space<vmem>>, vector<1x1x4x16xf32>
    %624 = vector.shape_cast %623 : vector<1x1x4x16xf32> to vector<4x16xf32>
    %625 = vector.shape_cast %621 : vector<4x16xf32> to vector<1x1x4x16xf32>
    tpu.vector_store %arg4[%c0_244, %622, %c0_245, %c0_246], %625 {strides = array<i32>} : memref<1x16x4x16xf32, #tpu.memory_space<vmem>>, vector<1x1x4x16xf32>,
    %c15_i32 = arith.constant 15 : i32
    %c0_247 = arith.constant 0 : index
    %626 = arith.index_cast %c15_i32 : i32 to index
    %c0_248 = arith.constant 0 : index
    %c0_249 = arith.constant 0 : index
    %627 = vector.load %arg2[%c0_247, %626, %c0_248, %c0_249] : memref<1x16x4x64xf32, #tpu.memory_space<vmem>>, vector<1x1x4x64xf32>
    %628 = vector.shape_cast %627 : vector<1x1x4x64xf32> to vector<4x64xf32>
    %629 = arith.truncf %621 : vector<4x16xf32> to vector<4x16xbf16>
    %cst_250 = arith.constant dense<0.000000e+00> : vector<4x64xf32>
    %630 = tpu.matmul %629, %4, %cst_250 {dimension_numbers = #tpu.dot_dimension_numbers<[1], [0], [0], [1], [0, 0, 1, 1], [], []>} : vector<4x16xbf16>, vector<16x64xbf16>, vector<4x64xf32> -> vector<4x64xf32>
    %631 = arith.addf %628, %630 : vector<4x64xf32>
    %632 = vector.extract_strided_slice %631 {offsets = [0, 0], sizes = [4, 16], strides = [1, 1]} : vector<4x64xf32> to vector<4x16xf32>
    %cst_251 = arith.constant 0.000000e+00 : f32
    %633 = vector.broadcast %cst_251 : f32 to vector<4x16xf32>
    %634 = arith.subf %633, %632 : vector<4x16xf32>
    %635 = math.exp %634 : vector<4x16xf32>
    %cst_252 = arith.constant 1.000000e+00 : f32
    %636 = vector.broadcast %cst_252 : f32 to vector<4x16xf32>
    %637 = arith.addf %636, %635 : vector<4x16xf32>
    %cst_253 = arith.constant 1.000000e+00 : f32
    %638 = vector.broadcast %cst_253 : f32 to vector<4x16xf32>
    %639 = arith.divf %638, %637 : vector<4x16xf32>
    %640 = vector.extract_strided_slice %631 {offsets = [0, 16], sizes = [4, 16], strides = [1, 1]} : vector<4x64xf32> to vector<4x16xf32>
    %cst_254 = arith.constant 0.000000e+00 : f32
    %641 = vector.broadcast %cst_254 : f32 to vector<4x16xf32>
    %642 = arith.subf %641, %640 : vector<4x16xf32>
    %643 = math.exp %642 : vector<4x16xf32>
    %cst_255 = arith.constant 1.000000e+00 : f32
    %644 = vector.broadcast %cst_255 : f32 to vector<4x16xf32>
    %645 = arith.addf %644, %643 : vector<4x16xf32>
    %cst_256 = arith.constant 1.000000e+00 : f32
    %646 = vector.broadcast %cst_256 : f32 to vector<4x16xf32>
    %647 = arith.divf %646, %645 : vector<4x16xf32>
    %648 = vector.extract_strided_slice %631 {offsets = [0, 32], sizes = [4, 16], strides = [1, 1]} : vector<4x64xf32> to vector<4x16xf32>
    %649 = math.tanh %648 : vector<4x16xf32>
    %650 = vector.extract_strided_slice %631 {offsets = [0, 48], sizes = [4, 16], strides = [1, 1]} : vector<4x64xf32> to vector<4x16xf32>
    %cst_257 = arith.constant 0.000000e+00 : f32
    %651 = vector.broadcast %cst_257 : f32 to vector<4x16xf32>
    %652 = arith.subf %651, %650 : vector<4x16xf32>
    %653 = math.exp %652 : vector<4x16xf32>
    %cst_258 = arith.constant 1.000000e+00 : f32
    %654 = vector.broadcast %cst_258 : f32 to vector<4x16xf32>
    %655 = arith.addf %654, %653 : vector<4x16xf32>
    %cst_259 = arith.constant 1.000000e+00 : f32
    %656 = vector.broadcast %cst_259 : f32 to vector<4x16xf32>
    %657 = arith.divf %656, %655 : vector<4x16xf32>
    %658 = arith.mulf %647, %619 : vector<4x16xf32>
    %659 = arith.mulf %639, %649 : vector<4x16xf32>
    %660 = arith.addf %658, %659 : vector<4x16xf32>
    %661 = math.tanh %660 : vector<4x16xf32>
    %662 = arith.mulf %657, %661 : vector<4x16xf32>
    %c0_260 = arith.constant 0 : index
    %663 = arith.index_cast %c15_i32 : i32 to index
    %c0_261 = arith.constant 0 : index
    %c0_262 = arith.constant 0 : index
    %664 = vector.load %arg4[%c0_260, %663, %c0_261, %c0_262] : memref<1x16x4x16xf32, #tpu.memory_space<vmem>>, vector<1x1x4x16xf32>
    %665 = vector.shape_cast %664 : vector<1x1x4x16xf32> to vector<4x16xf32>
    %666 = vector.shape_cast %662 : vector<4x16xf32> to vector<1x1x4x16xf32>
    tpu.vector_store %arg4[%c0_260, %663, %c0_261, %c0_262], %666 {strides = array<i32>} : memref<1x16x4x16xf32, #tpu.memory_space<vmem>>, vector<1x1x4x16xf32>,
    %c16_i32 = arith.constant 16 : i32
    %667 = arith.index_cast %arg0 : i32 to index
    %c0_263 = arith.constant 0 : index
    %c0_264 = arith.constant 0 : index
    %668 = vector.load %arg5[%667, %c0_263, %c0_264] : memref<2x4x16xf32, #tpu.memory_space<vmem>>, vector<1x4x16xf32>
    %669 = vector.shape_cast %668 : vector<1x4x16xf32> to vector<4x16xf32>
    %670 = vector.shape_cast %662 : vector<4x16xf32> to vector<1x4x16xf32>
    tpu.vector_store %arg5[%667, %c0_263, %c0_264], %670 {strides = array<i32>} : memref<2x4x16xf32, #tpu.memory_space<vmem>>, vector<1x4x16xf32>,
    %671 = arith.index_cast %arg0 : i32 to index
    %c0_265 = arith.constant 0 : index
    %c0_266 = arith.constant 0 : index
    %672 = vector.load %arg6[%671, %c0_265, %c0_266] : memref<2x4x16xf32, #tpu.memory_space<vmem>>, vector<1x4x16xf32>
    %673 = vector.shape_cast %672 : vector<1x4x16xf32> to vector<4x16xf32>
    %674 = vector.shape_cast %660 : vector<4x16xf32> to vector<1x4x16xf32>
    tpu.vector_store %arg6[%671, %c0_265, %c0_266], %674 {strides = array<i32>} : memref<2x4x16xf32, #tpu.memory_space<vmem>>, vector<1x4x16xf32>,
    return
  }
  func.func @transform_0(%arg0: i32, %arg1: i32) -> (i32, i32, i32, i32) {
    %c0_i32 = arith.constant 0 : i32
    %c0_i32_0 = arith.constant 0 : i32
    %c0_i32_1 = arith.constant 0 : i32
    return %arg0, %arg1, %c0_i32, %c0_i32_0 : i32, i32, i32, i32
  }
  func.func @transform_1(%arg0: i32, %arg1: i32) -> (i32, i32, i32) {
    %c0_i32 = arith.constant 0 : i32
    %c0_i32_0 = arith.constant 0 : i32
    %c0_i32_1 = arith.constant 0 : i32
    return %arg0, %c0_i32, %c0_i32_0 : i32, i32, i32
  }
  func.func @transform_2(%arg0: i32, %arg1: i32) -> (i32, i32, i32, i32) {
    %c0_i32 = arith.constant 0 : i32
    %c0_i32_0 = arith.constant 0 : i32
    %c0_i32_1 = arith.constant 0 : i32
    return %arg0, %arg1, %c0_i32, %c0_i32_0 : i32, i32, i32, i32
  }
}

module attributes {stable_mosaic.version = 11 : i64} {
  func.func @_matmul_kernel(%arg0: i32, %arg1: i32, %arg2: i32, %arg3: memref<96x128xbf16, #tpu.memory_space<vmem>>, %arg4: memref<128x128xbf16, #tpu.memory_space<vmem>>, %arg5: memref<1x128xf32, #tpu.memory_space<vmem>>, %arg6: memref<1x128xf32, #tpu.memory_space<vmem>>, %arg7: memref<96x128xf32, #tpu.memory_space<vmem>>, %arg8: memref<96x128xf32, #tpu.memory_space<vmem>>) attributes {dimension_semantics = [#tpu.dimension_semantics<parallel>, #tpu.dimension_semantics<parallel>, #tpu.dimension_semantics<arbitrary>], iteration_bounds = array<i64: 1, 1, 1>, scalar_prefetch = 0 : i64, scratch_operands = 1 : i64, tpu.core_type = #tpu.core_type<tc>, window_params = [{transform_indices = @transform_0, window_bounds = array<i64: 96, 128>}, {transform_indices = @transform_1, window_bounds = array<i64: 128, 128>}, {transform_indices = @transform_2, window_bounds = array<i64: 1, 128>}, {transform_indices = @transform_3, window_bounds = array<i64: 1, 128>}, {transform_indices = @transform_4, window_bounds = array<i64: 96, 128>}]} {
    %c0_i32 = arith.constant 0 : i32
    %0 = arith.cmpi eq, %arg2, %c0_i32 : i32
    %1 = arith.extui %0 : i1 to i32
    %c0_i32_0 = arith.constant 0 : i32
    %2 = arith.cmpi ne, %1, %c0_i32_0 : i32
    scf.if %2 {
      %cst_10 = arith.constant 0.000000e+00 : f32
      %12 = vector.broadcast %cst_10 : f32 to vector<96x128xf32>
      %c0_11 = arith.constant 0 : index
      %c0_12 = arith.constant 0 : index
      %13 = vector.load %arg8[%c0_11, %c0_12] : memref<96x128xf32, #tpu.memory_space<vmem>>, vector<96x128xf32>
      tpu.vector_store %arg8[%c0_11, %c0_12], %12 {strides = array<i32>} : memref<96x128xf32, #tpu.memory_space<vmem>>, vector<96x128xf32>,
    } else {
    }
    %c0 = arith.constant 0 : index
    %c0_1 = arith.constant 0 : index
    %3 = vector.load %arg8[%c0, %c0_1] : memref<96x128xf32, #tpu.memory_space<vmem>>, vector<96x128xf32>
    %c0_2 = arith.constant 0 : index
    %c0_3 = arith.constant 0 : index
    %4 = vector.load %arg3[%c0_2, %c0_3] : memref<96x128xbf16, #tpu.memory_space<vmem>>, vector<96x128xbf16>
    %c0_4 = arith.constant 0 : index
    %c0_5 = arith.constant 0 : index
    %5 = vector.load %arg4[%c0_4, %c0_5] : memref<128x128xbf16, #tpu.memory_space<vmem>>, vector<128x128xbf16>
    %cst = arith.constant dense<0.000000e+00> : vector<96x128xf32>
    %6 = tpu.matmul %4, %5, %cst {dimension_numbers = #tpu.dot_dimension_numbers<[1], [0], [0], [1], [0, 0, 1, 1], [], []>} : vector<96x128xbf16>, vector<128x128xbf16>, vector<96x128xf32> -> vector<96x128xf32>
    %7 = arith.addf %3, %6 : vector<96x128xf32>
    %c0_6 = arith.constant 0 : index
    %c0_7 = arith.constant 0 : index
    %8 = vector.load %arg8[%c0_6, %c0_7] : memref<96x128xf32, #tpu.memory_space<vmem>>, vector<96x128xf32>
    tpu.vector_store %arg8[%c0_6, %c0_7], %7 {strides = array<i32>} : memref<96x128xf32, #tpu.memory_space<vmem>>, vector<96x128xf32>,
    %c0_i32_8 = arith.constant 0 : i32
    %9 = arith.cmpi eq, %arg2, %c0_i32_8 : i32
    %10 = arith.extui %9 : i1 to i32
    %c0_i32_9 = arith.constant 0 : i32
    %11 = arith.cmpi ne, %10, %c0_i32_9 : i32
    scf.if %11 {
      %c0_10 = arith.constant 0 : index
      %c0_11 = arith.constant 0 : index
      %12 = vector.load %arg8[%c0_10, %c0_11] : memref<96x128xf32, #tpu.memory_space<vmem>>, vector<96x128xf32>
      %c0_12 = arith.constant 0 : index
      %c0_13 = arith.constant 0 : index
      %13 = vector.load %arg5[%c0_12, %c0_13] : memref<1x128xf32, #tpu.memory_space<vmem>>, vector<1x128xf32>
      %14 = vector.broadcast %13 : vector<1x128xf32> to vector<96x128xf32>
      %15 = arith.mulf %12, %14 : vector<96x128xf32>
      %c0_14 = arith.constant 0 : index
      %c0_15 = arith.constant 0 : index
      %16 = vector.load %arg6[%c0_14, %c0_15] : memref<1x128xf32, #tpu.memory_space<vmem>>, vector<1x128xf32>
      %17 = vector.broadcast %16 : vector<1x128xf32> to vector<96x128xf32>
      %18 = arith.addf %15, %17 : vector<96x128xf32>
      %cst_16 = arith.constant 0.000000e+00 : f32
      %19 = vector.broadcast %cst_16 : f32 to vector<96x128xf32>
      %20 = arith.maximumf %18, %19 : vector<96x128xf32>
      %c0_17 = arith.constant 0 : index
      %c0_18 = arith.constant 0 : index
      %21 = vector.load %arg7[%c0_17, %c0_18] : memref<96x128xf32, #tpu.memory_space<vmem>>, vector<96x128xf32>
      tpu.vector_store %arg7[%c0_17, %c0_18], %20 {strides = array<i32>} : memref<96x128xf32, #tpu.memory_space<vmem>>, vector<96x128xf32>,
    } else {
    }
    return
  }
  func.func @transform_0(%arg0: i32, %arg1: i32, %arg2: i32) -> (i32, i32) {
    %c0_i32 = arith.constant 0 : i32
    return %arg0, %arg2 : i32, i32
  }
  func.func @transform_1(%arg0: i32, %arg1: i32, %arg2: i32) -> (i32, i32) {
    %c0_i32 = arith.constant 0 : i32
    return %arg2, %arg1 : i32, i32
  }
  func.func @transform_2(%arg0: i32, %arg1: i32, %arg2: i32) -> (i32, i32) {
    %c0_i32 = arith.constant 0 : i32
    %c0_i32_0 = arith.constant 0 : i32
    return %c0_i32, %arg1 : i32, i32
  }
  func.func @transform_3(%arg0: i32, %arg1: i32, %arg2: i32) -> (i32, i32) {
    %c0_i32 = arith.constant 0 : i32
    %c0_i32_0 = arith.constant 0 : i32
    return %c0_i32, %arg1 : i32, i32
  }
  func.func @transform_4(%arg0: i32, %arg1: i32, %arg2: i32) -> (i32, i32) {
    %c0_i32 = arith.constant 0 : i32
    return %arg0, %arg1 : i32, i32
  }
}

module attributes {stable_mosaic.version = 11 : i64} {
  func.func @_matmul_kernel(%arg0: i32, %arg1: i32, %arg2: i32, %arg3: memref<96x128xbf16, #tpu.memory_space<vmem>>, %arg4: memref<128x256xbf16, #tpu.memory_space<vmem>>, %arg5: memref<1x256xf32, #tpu.memory_space<vmem>>, %arg6: memref<1x256xf32, #tpu.memory_space<vmem>>, %arg7: memref<96x256xbf16, #tpu.memory_space<vmem>>, %arg8: memref<96x256xf32, #tpu.memory_space<vmem>>, %arg9: memref<96x256xf32, #tpu.memory_space<vmem>>) attributes {dimension_semantics = [#tpu.dimension_semantics<parallel>, #tpu.dimension_semantics<parallel>, #tpu.dimension_semantics<arbitrary>], iteration_bounds = array<i64: 1, 1, 1>, scalar_prefetch = 0 : i64, scratch_operands = 1 : i64, tpu.core_type = #tpu.core_type<tc>, window_params = [{transform_indices = @transform_0, window_bounds = array<i64: 96, 128>}, {transform_indices = @transform_1, window_bounds = array<i64: 128, 256>}, {transform_indices = @transform_2, window_bounds = array<i64: 1, 256>}, {transform_indices = @transform_3, window_bounds = array<i64: 1, 256>}, {transform_indices = @transform_4, window_bounds = array<i64: 96, 256>}, {transform_indices = @transform_5, window_bounds = array<i64: 96, 256>}]} {
    %c0_i32 = arith.constant 0 : i32
    %0 = arith.cmpi eq, %arg2, %c0_i32 : i32
    %1 = arith.extui %0 : i1 to i32
    %c0_i32_0 = arith.constant 0 : i32
    %2 = arith.cmpi ne, %1, %c0_i32_0 : i32
    scf.if %2 {
      %cst_10 = arith.constant 0.000000e+00 : f32
      %12 = vector.broadcast %cst_10 : f32 to vector<96x256xf32>
      %c0_11 = arith.constant 0 : index
      %c0_12 = arith.constant 0 : index
      %13 = vector.load %arg9[%c0_11, %c0_12] : memref<96x256xf32, #tpu.memory_space<vmem>>, vector<96x256xf32>
      tpu.vector_store %arg9[%c0_11, %c0_12], %12 {strides = array<i32>} : memref<96x256xf32, #tpu.memory_space<vmem>>, vector<96x256xf32>,
    } else {
    }
    %c0 = arith.constant 0 : index
    %c0_1 = arith.constant 0 : index
    %3 = vector.load %arg9[%c0, %c0_1] : memref<96x256xf32, #tpu.memory_space<vmem>>, vector<96x256xf32>
    %c0_2 = arith.constant 0 : index
    %c0_3 = arith.constant 0 : index
    %4 = vector.load %arg3[%c0_2, %c0_3] : memref<96x128xbf16, #tpu.memory_space<vmem>>, vector<96x128xbf16>
    %c0_4 = arith.constant 0 : index
    %c0_5 = arith.constant 0 : index
    %5 = vector.load %arg4[%c0_4, %c0_5] : memref<128x256xbf16, #tpu.memory_space<vmem>>, vector<128x256xbf16>
    %cst = arith.constant dense<0.000000e+00> : vector<96x256xf32>
    %6 = tpu.matmul %4, %5, %cst {dimension_numbers = #tpu.dot_dimension_numbers<[1], [0], [0], [1], [0, 0, 1, 1], [], []>} : vector<96x128xbf16>, vector<128x256xbf16>, vector<96x256xf32> -> vector<96x256xf32>
    %7 = arith.addf %3, %6 : vector<96x256xf32>
    %c0_6 = arith.constant 0 : index
    %c0_7 = arith.constant 0 : index
    %8 = vector.load %arg9[%c0_6, %c0_7] : memref<96x256xf32, #tpu.memory_space<vmem>>, vector<96x256xf32>
    tpu.vector_store %arg9[%c0_6, %c0_7], %7 {strides = array<i32>} : memref<96x256xf32, #tpu.memory_space<vmem>>, vector<96x256xf32>,
    %c0_i32_8 = arith.constant 0 : i32
    %9 = arith.cmpi eq, %arg2, %c0_i32_8 : i32
    %10 = arith.extui %9 : i1 to i32
    %c0_i32_9 = arith.constant 0 : i32
    %11 = arith.cmpi ne, %10, %c0_i32_9 : i32
    scf.if %11 {
      %c0_10 = arith.constant 0 : index
      %c0_11 = arith.constant 0 : index
      %12 = vector.load %arg9[%c0_10, %c0_11] : memref<96x256xf32, #tpu.memory_space<vmem>>, vector<96x256xf32>
      %c0_12 = arith.constant 0 : index
      %c0_13 = arith.constant 0 : index
      %13 = vector.load %arg5[%c0_12, %c0_13] : memref<1x256xf32, #tpu.memory_space<vmem>>, vector<1x256xf32>
      %14 = vector.broadcast %13 : vector<1x256xf32> to vector<96x256xf32>
      %15 = arith.mulf %12, %14 : vector<96x256xf32>
      %c0_14 = arith.constant 0 : index
      %c0_15 = arith.constant 0 : index
      %16 = vector.load %arg6[%c0_14, %c0_15] : memref<1x256xf32, #tpu.memory_space<vmem>>, vector<1x256xf32>
      %17 = vector.broadcast %16 : vector<1x256xf32> to vector<96x256xf32>
      %18 = arith.addf %15, %17 : vector<96x256xf32>
      %cst_16 = arith.constant 0.000000e+00 : f32
      %19 = vector.broadcast %cst_16 : f32 to vector<96x256xf32>
      %20 = arith.maximumf %18, %19 : vector<96x256xf32>
      %c0_17 = arith.constant 0 : index
      %c0_18 = arith.constant 0 : index
      %21 = vector.load %arg7[%c0_17, %c0_18] : memref<96x256xbf16, #tpu.memory_space<vmem>>, vector<96x256xbf16>
      %22 = arith.extf %21 : vector<96x256xbf16> to vector<96x256xf32>
      %23 = arith.mulf %20, %22 : vector<96x256xf32>
      %c0_19 = arith.constant 0 : index
      %c0_20 = arith.constant 0 : index
      %24 = vector.load %arg8[%c0_19, %c0_20] : memref<96x256xf32, #tpu.memory_space<vmem>>, vector<96x256xf32>
      tpu.vector_store %arg8[%c0_19, %c0_20], %23 {strides = array<i32>} : memref<96x256xf32, #tpu.memory_space<vmem>>, vector<96x256xf32>,
    } else {
    }
    return
  }
  func.func @transform_0(%arg0: i32, %arg1: i32, %arg2: i32) -> (i32, i32) {
    %c0_i32 = arith.constant 0 : i32
    return %arg0, %arg2 : i32, i32
  }
  func.func @transform_1(%arg0: i32, %arg1: i32, %arg2: i32) -> (i32, i32) {
    %c0_i32 = arith.constant 0 : i32
    return %arg2, %arg1 : i32, i32
  }
  func.func @transform_2(%arg0: i32, %arg1: i32, %arg2: i32) -> (i32, i32) {
    %c0_i32 = arith.constant 0 : i32
    %c0_i32_0 = arith.constant 0 : i32
    return %c0_i32, %arg1 : i32, i32
  }
  func.func @transform_3(%arg0: i32, %arg1: i32, %arg2: i32) -> (i32, i32) {
    %c0_i32 = arith.constant 0 : i32
    %c0_i32_0 = arith.constant 0 : i32
    return %c0_i32, %arg1 : i32, i32
  }
  func.func @transform_4(%arg0: i32, %arg1: i32, %arg2: i32) -> (i32, i32) {
    %c0_i32 = arith.constant 0 : i32
    return %arg0, %arg1 : i32, i32
  }
  func.func @transform_5(%arg0: i32, %arg1: i32, %arg2: i32) -> (i32, i32) {
    %c0_i32 = arith.constant 0 : i32
    return %arg0, %arg1 : i32, i32
  }
}

</mosaic_0001>

<llo_original>
// kernel: open_unmix_forward.11
$region0: #{open_unmix_forward.11}
  #allocation0 [shape = 'u32[]', space=smem, size = 0x4, offset = 0x4, fixed_abs, tag = 'smem constant byte address 0x4 - core index']
  #allocation1 [shape = 'u32[72,128]{1,0:T(1,128)}', space=vmem, size = 0x9000, scoped, tag = 'internal scratch']
  %s0 = inlined_call_operand.vmem [shape: bf16[192,128], index: 0, kind: input, shape index: {}]
  %s1 = inlined_call_operand.vmem [shape: bf16[128,128], index: 1, kind: input, shape index: {}]
  %s2 = inlined_call_operand.vmem [shape: bf16[128,128], index: 2, kind: input, shape index: {}]
  %s3 = inlined_call_operand.vmem [shape: f32[192,128], index: 3, kind: output, shape index: {}]
  %s4 = sld [smem:[#allocation0]]
  $region22: #{open_unmix_forward.11} parent=0
    _
  %s6 = ssub.s32 1, %s4
  %s7 = scalar_select 0, %s6, %s4
  // Predicated region
  $region2: #{open_unmix_forward.11} parent=0 // pred_check
    _
  $region3: #{open_unmix_forward.11} parent=0 // pred_check_branch
    %9 = sbr.rel (0) target = $region5
  $region4: #{open_unmix_forward.11} parent=0 // pred_region
    _
  $region5: #{open_unmix_forward.11} parent=0 // pred_fallthru
    _
  // Predicated region
  $region6: #{open_unmix_forward.11} parent=0 // pred_check
    _
  $region7: #{open_unmix_forward.11} parent=0 // pred_check_branch
    %11 = sbr.rel (0) target = $region9
  $region8: #{open_unmix_forward.11} parent=0 // pred_region
    _
  $region9: #{open_unmix_forward.11} parent=0 // pred_fallthru
    _
  // Predicated region
  $region10: #{open_unmix_forward.11} parent=0 // pred_check
    _
  $region11: #{open_unmix_forward.11} parent=0 // pred_check_branch
    %13 = sbr.rel (0) target = $region13
  $region12: #{open_unmix_forward.11} parent=0 // pred_region
    _
  $region13: #{open_unmix_forward.11} parent=0 // pred_fallthru
    _
  %v14 = vld [vmem:[%s0] sm:$0xf]
  %v15 = vld [vmem:[%s0 + $0x4] sm:$0xf]
  %v16 = vld [vmem:[%s0 + $0x8] sm:$0xf]
  %v17 = vld [vmem:[%s0 + $0xc] sm:$0xf]
  %v18 = vld [vmem:[%s0 + $0x10] sm:$0xf]
  %v19 = vld [vmem:[%s0 + $0x14] sm:$0xf]
  %v20 = vld [vmem:[%s0 + $0x18] sm:$0xf]
  %v21 = vld [vmem:[%s0 + $0x1c] sm:$0xf]
  %v22 = vld [vmem:[%s0 + $0x20] sm:$0xf]
  %v23 = vld [vmem:[%s0 + $0x24] sm:$0xf]
  %v24 = vld [vmem:[%s0 + $0x28] sm:$0xf]
  %v25 = vld [vmem:[%s0 + $0x2c] sm:$0xf]
  %v26 = vld [vmem:[%s0 + $0x30] sm:$0xf]
  %v27 = vld [vmem:[%s0 + $0x34] sm:$0xf]
  %v28 = vld [vmem:[%s0 + $0x38] sm:$0xf]
  %v29 = vld [vmem:[%s0 + $0x3c] sm:$0xf]
  %v30 = vld [vmem:[%s0 + $0x40] sm:$0xf]
  %v31 = vld [vmem:[%s0 + $0x44] sm:$0xf]
  %v32 = vld [vmem:[%s0 + $0x48] sm:$0xf]
  %v33 = vld [vmem:[%s0 + $0x4c] sm:$0xf]
  %v34 = vld [vmem:[%s0 + $0x50] sm:$0xf]
  %v35 = vld [vmem:[%s0 + $0x54] sm:$0xf]
  %v36 = vld [vmem:[%s0 + $0x58] sm:$0xf]
  %v37 = vld [vmem:[%s0 + $0x5c] sm:$0xf]
  %v38 = vld [vmem:[%s1] sm:$0xf]
  %v39 = vld [vmem:[%s1 + $0x4] sm:$0xf]
  %v40 = vld [vmem:[%s1 + $0x8] sm:$0xf]
  %v41 = vld [vmem:[%s1 + $0xc] sm:$0xf]
  %v42 = vld [vmem:[%s1 + $0x10] sm:$0xf]
  %v43 = vld [vmem:[%s1 + $0x14] sm:$0xf]
  %v44 = vld [vmem:[%s1 + $0x18] sm:$0xf]
  %v45 = vld [vmem:[%s1 + $0x1c] sm:$0xf]
  %v46 = vld [vmem:[%s1 + $0x20] sm:$0xf]
  %v47 = vld [vmem:[%s1 + $0x24] sm:$0xf]
  %v48 = vld [vmem:[%s1 + $0x28] sm:$0xf]
  %v49 = vld [vmem:[%s1 + $0x2c] sm:$0xf]
  %v50 = vld [vmem:[%s1 + $0x30] sm:$0xf]
  %v51 = vld [vmem:[%s1 + $0x34] sm:$0xf]
  %v52 = vld [vmem:[%s1 + $0x38] sm:$0xf]
  %v53 = vld [vmem:[%s1 + $0x3c] sm:$0xf]
  %v78 = vunpack.c.l.b16 %v14
  %v79 = vunpack.c.l.b16 %v15
  %v80 = vunpack.c.l.b16 %v16
  %v81 = vunpack.c.l.b16 %v17
  %v82 = vunpack.c.l.b16 %v18
  %v83 = vunpack.c.l.b16 %v19
  %v84 = vunpack.c.l.b16 %v20
  %v85 = vunpack.c.l.b16 %v21
  %v86 = vunpack.c.l.b16 %v22
  %v87 = vunpack.c.l.b16 %v23
  %v88 = vunpack.c.l.b16 %v24
  %v89 = vunpack.c.l.b16 %v25
  %v90 = vunpack.c.l.b16 %v26
  %v91 = vunpack.c.l.b16 %v27
  %v92 = vunpack.c.l.b16 %v28
  %v93 = vunpack.c.l.b16 %v29
  %v94 = vunpack.c.l.b16 %v30
  %v95 = vunpack.c.l.b16 %v31
  %v96 = vunpack.c.l.b16 %v32
  %v97 = vunpack.c.l.b16 %v33
  %v98 = vunpack.c.l.b16 %v34
  %v99 = vunpack.c.l.b16 %v35
  %v100 = vunpack.c.l.b16 %v36
  %v101 = vunpack.c.l.b16 %v37
  %v102 = vpack.c.b16 %v79, %v78
  %v103 = vpack.c.b16 %v81, %v80
  %v104 = vpack.c.b16 %v83, %v82
  %v105 = vpack.c.b16 %v85, %v84
  %v106 = vpack.c.b16 %v87, %v86
  %v107 = vpack.c.b16 %v89, %v88
  %v108 = vpack.c.b16 %v91, %v90
  %v109 = vpack.c.b16 %v93, %v92
  %v110 = vpack.c.b16 %v95, %v94
  %v111 = vpack.c.b16 %v97, %v96
  %v112 = vpack.c.b16 %v99, %v98
  %v113 = vpack.c.b16 %v101, %v100
  %v142 = vunpack.c.l.b16 %v38
  %v143 = vunpack.c.l.b16 %v39
  %v144 = vunpack.c.l.b16 %v40
  %v145 = vunpack.c.l.b16 %v41
  %v146 = vunpack.c.l.b16 %v42
  %v147 = vunpack.c.l.b16 %v43
  %v148 = vunpack.c.l.b16 %v44
  %v149 = vunpack.c.l.b16 %v45
  %v150 = vunpack.c.l.b16 %v46
  %v151 = vunpack.c.l.b16 %v47
  %v152 = vunpack.c.l.b16 %v48
  %v153 = vunpack.c.l.b16 %v49
  %v154 = vunpack.c.l.b16 %v50
  %v155 = vunpack.c.l.b16 %v51
  %v156 = vunpack.c.l.b16 %v52
  %v157 = vunpack.c.l.b16 %v53
  %v158 = vpack.c.b16 %v143, %v142
  %v159 = vpack.c.b16 %v145, %v144
  %v160 = vpack.c.b16 %v147, %v146
  %v161 = vpack.c.b16 %v149, %v148
  %v162 = vpack.c.b16 %v151, %v150
  %v163 = vpack.c.b16 %v153, %v152
  %v164 = vpack.c.b16 %v155, %v154
  %v165 = vpack.c.b16 %v157, %v156
  %174 = vmatpush.bf16.msra.mxu0 %v165
  %175 = vmatpush.bf16.msra.mxu0 %v164
  %176 = vmatpush.bf16.msra.mxu0 %v163
  %177 = vmatpush.bf16.msra.mxu0 %v162
  %178 = vmatpush.bf16.msra.mxu0 %v161
  %179 = vmatpush.bf16.msra.mxu0 %v160
  %180 = vmatpush.bf16.msra.mxu0 %v159
  %181 = vmatpush.bf16.msra.mxu0 %v158
  %182 = vmatmul.bf16.gmra.mxu0 %v102
  %v183 = vpop.f32.mrf.mxu0
  %v184 = vadd.f32 0.0, %v183
  %v185 = vpop.f32.mrf.mxu0
  %v186 = vadd.f32 0.0, %v185
  %187 = vmatmul.bf16.gmra.mxu0 %v103
  %v188 = vpop.f32.mrf.mxu0
  %v189 = vadd.f32 0.0, %v188
  %v190 = vpop.f32.mrf.mxu0
  %v191 = vadd.f32 0.0, %v190
  %192 = vmatmul.bf16.gmra.mxu0 %v104
  %v193 = vpop.f32.mrf.mxu0
  %v194 = vadd.f32 0.0, %v193
  %v195 = vpop.f32.mrf.mxu0
  %v196 = vadd.f32 0.0, %v195
  %197 = vmatmul.bf16.gmra.mxu0 %v105
  %v198 = vpop.f32.mrf.mxu0
  %v199 = vadd.f32 0.0, %v198
  %v200 = vpop.f32.mrf.mxu0
  %v201 = vadd.f32 0.0, %v200
  %202 = vmatmul.bf16.gmra.mxu0 %v106
  %v203 = vpop.f32.mrf.mxu0
  %v204 = vadd.f32 0.0, %v203
  %v205 = vpop.f32.mrf.mxu0
  %v206 = vadd.f32 0.0, %v205
  %207 = vmatmul.bf16.gmra.mxu0 %v107
  %v208 = vpop.f32.mrf.mxu0
  %v209 = vadd.f32 0.0, %v208
  %v210 = vpop.f32.mrf.mxu0
  %v211 = vadd.f32 0.0, %v210
  %212 = vmatmul.bf16.gmra.mxu0 %v108
  %v213 = vpop.f32.mrf.mxu0
  %v214 = vadd.f32 0.0, %v213
  %v215 = vpop.f32.mrf.mxu0
  %v216 = vadd.f32 0.0, %v215
  %217 = vmatmul.bf16.gmra.mxu0 %v109
  %v218 = vpop.f32.mrf.mxu0
  %v219 = vadd.f32 0.0, %v218
  %v220 = vpop.f32.mrf.mxu0
  %v221 = vadd.f32 0.0, %v220
  %222 = vmatmul.bf16.gmra.mxu0 %v110
  %v223 = vpop.f32.mrf.mxu0
  %v224 = vadd.f32 0.0, %v223
  %v225 = vpop.f32.mrf.mxu0
  %v226 = vadd.f32 0.0, %v225
  %227 = vmatmul.bf16.gmra.mxu0 %v111
  %v228 = vpop.f32.mrf.mxu0
  %v229 = vadd.f32 0.0, %v228
  %v230 = vpop.f32.mrf.mxu0
  %v231 = vadd.f32 0.0, %v230
  %232 = vmatmul.bf16.gmra.mxu0 %v112
  %v233 = vpop.f32.mrf.mxu0
  %v234 = vadd.f32 0.0, %v233
  %v235 = vpop.f32.mrf.mxu0
  %v236 = vadd.f32 0.0, %v235
  %237 = vmatmul.bf16.gmra.mxu0 %v113
  %v238 = vpop.f32.mrf.mxu0
  %v239 = vadd.f32 0.0, %v238
  %v240 = vpop.f32.mrf.mxu0
  %v241 = vadd.f32 0.0, %v240
  %242 = vdwg.mxu0
  %v243 = vld [vmem:[%s2] sm:$0xf]
  %v244 = vld [vmem:[%s2 + $0x4] sm:$0xf]
  %v245 = vld [vmem:[%s2 + $0x8] sm:$0xf]
  %v246 = vld [vmem:[%s2 + $0xc] sm:$0xf]
  %v247 = vld [vmem:[%s2 + $0x10] sm:$0xf]
  %v248 = vld [vmem:[%s2 + $0x14] sm:$0xf]
  %v249 = vld [vmem:[%s2 + $0x18] sm:$0xf]
  %v250 = vld [vmem:[%s2 + $0x1c] sm:$0xf]
  %v251 = vld [vmem:[%s2 + $0x20] sm:$0xf]
  %v252 = vld [vmem:[%s2 + $0x24] sm:$0xf]
  %v253 = vld [vmem:[%s2 + $0x28] sm:$0xf]
  %v254 = vld [vmem:[%s2 + $0x2c] sm:$0xf]
  %v255 = vld [vmem:[%s2 + $0x30] sm:$0xf]
  %v256 = vld [vmem:[%s2 + $0x34] sm:$0xf]
  %v257 = vld [vmem:[%s2 + $0x38] sm:$0xf]
  %v258 = vld [vmem:[%s2 + $0x3c] sm:$0xf]
  %v275 = vunpack.c.l.b16 %v243
  %v276 = vunpack.c.l.b16 %v244
  %v277 = vunpack.c.l.b16 %v245
  %v278 = vunpack.c.l.b16 %v246
  %v279 = vunpack.c.l.b16 %v247
  %v280 = vunpack.c.l.b16 %v248
  %v281 = vunpack.c.l.b16 %v249
  %v282 = vunpack.c.l.b16 %v250
  %v283 = vunpack.c.l.b16 %v251
  %v284 = vunpack.c.l.b16 %v252
  %v285 = vunpack.c.l.b16 %v253
  %v286 = vunpack.c.l.b16 %v254
  %v287 = vunpack.c.l.b16 %v255
  %v288 = vunpack.c.l.b16 %v256
  %v289 = vunpack.c.l.b16 %v257
  %v290 = vunpack.c.l.b16 %v258
  %v291 = vpack.c.b16 %v276, %v275
  %v292 = vpack.c.b16 %v278, %v277
  %v293 = vpack.c.b16 %v280, %v279
  %v294 = vpack.c.b16 %v282, %v281
  %v295 = vpack.c.b16 %v284, %v283
  %v296 = vpack.c.b16 %v286, %v285
  %v297 = vpack.c.b16 %v288, %v287
  %v298 = vpack.c.b16 %v290, %v289
  %307 = vmatpush.bf16.msra.mxu0 %v298
  %308 = vmatpush.bf16.msra.mxu0 %v297
  %309 = vmatpush.bf16.msra.mxu0 %v296
  %310 = vmatpush.bf16.msra.mxu0 %v295
  %311 = vmatpush.bf16.msra.mxu0 %v294
  %312 = vmatpush.bf16.msra.mxu0 %v293
  %313 = vmatpush.bf16.msra.mxu0 %v292
  %314 = vmatpush.bf16.msra.mxu0 %v291
  %315 = vmatmul.bf16.gmra.mxu0 %v102
  %v316 = vpop.f32.mrf.mxu0
  %v317 = vadd.f32 0.0, %v316
  %v318 = vpop.f32.mrf.mxu0
  %v319 = vadd.f32 0.0, %v318
  %320 = vmatmul.bf16.gmra.mxu0 %v103
  %v321 = vpop.f32.mrf.mxu0
  %v322 = vadd.f32 0.0, %v321
  %v323 = vpop.f32.mrf.mxu0
  %v324 = vadd.f32 0.0, %v323
  %325 = vmatmul.bf16.gmra.mxu0 %v104
  %v326 = vpop.f32.mrf.mxu0
  %v327 = vadd.f32 0.0, %v326
  %v328 = vpop.f32.mrf.mxu0
  %v329 = vadd.f32 0.0, %v328
  %330 = vmatmul.bf16.gmra.mxu0 %v105
  %v331 = vpop.f32.mrf.mxu0
  %v332 = vadd.f32 0.0, %v331
  %v333 = vpop.f32.mrf.mxu0
  %v334 = vadd.f32 0.0, %v333
  %335 = vmatmul.bf16.gmra.mxu0 %v106
  %v336 = vpop.f32.mrf.mxu0
  %v337 = vadd.f32 0.0, %v336
  %v338 = vpop.f32.mrf.mxu0
  %v339 = vadd.f32 0.0, %v338
  %340 = vmatmul.bf16.gmra.mxu0 %v107
  %v341 = vpop.f32.mrf.mxu0
  %v342 = vadd.f32 0.0, %v341
  %v343 = vpop.f32.mrf.mxu0
  %v344 = vadd.f32 0.0, %v343
  %345 = vmatmul.bf16.gmra.mxu0 %v108
  %v346 = vpop.f32.mrf.mxu0
  %v347 = vadd.f32 0.0, %v346
  %v348 = vpop.f32.mrf.mxu0
  %v349 = vadd.f32 0.0, %v348
  %350 = vmatmul.bf16.gmra.mxu0 %v109
  %v351 = vpop.f32.mrf.mxu0
  %v352 = vadd.f32 0.0, %v351
  %v353 = vpop.f32.mrf.mxu0
  %v354 = vadd.f32 0.0, %v353
  %355 = vmatmul.bf16.gmra.mxu0 %v110
  %v356 = vpop.f32.mrf.mxu0
  %v357 = vadd.f32 0.0, %v356
  %v358 = vpop.f32.mrf.mxu0
  %v359 = vadd.f32 0.0, %v358
  %360 = vmatmul.bf16.gmra.mxu0 %v111
  %v361 = vpop.f32.mrf.mxu0
  %v362 = vadd.f32 0.0, %v361
  %v363 = vpop.f32.mrf.mxu0
  %v364 = vadd.f32 0.0, %v363
  %365 = vmatmul.bf16.gmra.mxu0 %v112
  %v366 = vpop.f32.mrf.mxu0
  %v367 = vadd.f32 0.0, %v366
  %v368 = vpop.f32.mrf.mxu0
  %v369 = vadd.f32 0.0, %v368
  %370 = vmatmul.bf16.gmra.mxu0 %v113
  %v371 = vpop.f32.mrf.mxu0
  %v372 = vadd.f32 0.0, %v371
  %v373 = vpop.f32.mrf.mxu0
  %v374 = vadd.f32 0.0, %v373
  %375 = vdwg.mxu0
  %v376 = vmul.f32 %v184, %v184
  %v377 = vmul.f32 %v186, %v186
  %v378 = vmul.f32 %v189, %v189
  %v379 = vmul.f32 %v191, %v191
  %v380 = vmul.f32 %v194, %v194
  %v381 = vmul.f32 %v196, %v196
  %v382 = vmul.f32 %v199, %v199
  %v383 = vmul.f32 %v201, %v201
  %v384 = vmul.f32 %v204, %v204
  %v385 = vmul.f32 %v206, %v206
  %v386 = vmul.f32 %v209, %v209
  %v387 = vmul.f32 %v211, %v211
  %v388 = vmul.f32 %v214, %v214
  %v389 = vmul.f32 %v216, %v216
  %v390 = vmul.f32 %v219, %v219
  %v391 = vmul.f32 %v221, %v221
  %v392 = vmul.f32 %v224, %v224
  %v393 = vmul.f32 %v226, %v226
  %v394 = vmul.f32 %v229, %v229
  %v395 = vmul.f32 %v231, %v231
  %v396 = vmul.f32 %v234, %v234
  %v397 = vmul.f32 %v236, %v236
  %v398 = vmul.f32 %v239, %v239
  %v399 = vmul.f32 %v241, %v241
  %v400 = vmul.f32 %v317, %v317
  %v401 = vmul.f32 %v319, %v319
  %v402 = vmul.f32 %v322, %v322
  %v403 = vmul.f32 %v324, %v324
  %v404 = vmul.f32 %v327, %v327
  %v405 = vmul.f32 %v329, %v329
  %v406 = vmul.f32 %v332, %v332
  %v407 = vmul.f32 %v334, %v334
  %v408 = vmul.f32 %v337, %v337
  %v409 = vmul.f32 %v339, %v339
  %v410 = vmul.f32 %v342, %v342
  %v411 = vmul.f32 %v344, %v344
  %v412 = vmul.f32 %v347, %v347
  %v413 = vmul.f32 %v349, %v349
  %v414 = vmul.f32 %v352, %v352
  %v415 = vmul.f32 %v354, %v354
  %v416 = vmul.f32 %v357, %v357
  %v417 = vmul.f32 %v359, %v359
  %v418 = vmul.f32 %v362, %v362
  %v419 = vmul.f32 %v364, %v364
  %v420 = vmul.f32 %v367, %v367
  %v421 = vmul.f32 %v369, %v369
  %v422 = vmul.f32 %v372, %v372
  %v423 = vmul.f32 %v374, %v374
  %v424 = vadd.f32 %v376, %v400
  %v425 = vadd.f32 %v377, %v401
  %v426 = vadd.f32 %v378, %v402
  %v427 = vadd.f32 %v379, %v403
  %v428 = vadd.f32 %v380, %v404
  %v429 = vadd.f32 %v381, %v405
  %v430 = vadd.f32 %v382, %v406
  %v431 = vadd.f32 %v383, %v407
  %v432 = vadd.f32 %v384, %v408
  %v433 = vadd.f32 %v385, %v409
  %v434 = vadd.f32 %v386, %v410
  %v435 = vadd.f32 %v387, %v411
  %v436 = vadd.f32 %v388, %v412
  %v437 = vadd.f32 %v389, %v413
  %v438 = vadd.f32 %v390, %v414
  %v439 = vadd.f32 %v391, %v415
  %v440 = vadd.f32 %v392, %v416
  %v441 = vadd.f32 %v393, %v417
  %v442 = vadd.f32 %v394, %v418
  %v443 = vadd.f32 %v395, %v419
  %v444 = vadd.f32 %v396, %v420
  %v445 = vadd.f32 %v397, %v421
  %v446 = vadd.f32 %v398, %v422
  %v447 = vadd.f32 %v399, %v423
  %v448 = vrsqrt.pop %v424
  %v449 = vmul.f32 %v448, %v424
  %v450 = vmul.f32 %v449, %v448
  %v451 = vmul.f32 0.5, %v450
  %v452 = vsub.f32 1.5, %v451
  %v453 = vmul.f32 %v448, %v452
  %v454 = vmul.f32 %v424, %v453
  %vm455 = vcmp.eq.f32.partialorder %v424, inf
  %v456 = vsel %vm455, %v424, %v454
  %vm457 = vcmp.eq.f32.partialorder %v424, 0.0
  %v458 = vand.u32 %v424, 2147483648
  %v459 = vsel %vm457, %v458, %v456
  %v460 = vrsqrt.pop %v425
  %v461 = vmul.f32 %v460, %v425
  %v462 = vmul.f32 %v461, %v460
  %v463 = vmul.f32 0.5, %v462
  %v464 = vsub.f32 1.5, %v463
  %v465 = vmul.f32 %v460, %v464
  %v466 = vmul.f32 %v425, %v465
  %vm467 = vcmp.eq.f32.partialorder %v425, inf
  %v468 = vsel %vm467, %v425, %v466
  %vm469 = vcmp.eq.f32.partialorder %v425, 0.0
  %v470 = vand.u32 %v425, 2147483648
  %v471 = vsel %vm469, %v470, %v468
  %v472 = vrsqrt.pop %v426
  %v473 = vmul.f32 %v472, %v426
  %v474 = vmul.f32 %v473, %v472
  %v475 = vmul.f32 0.5, %v474
  %v476 = vsub.f32 1.5, %v475
  %v477 = vmul.f32 %v472, %v476
  %v478 = vmul.f32 %v426, %v477
  %vm479 = vcmp.eq.f32.partialorder %v426, inf
  %v480 = vsel %vm479, %v426, %v478
  %vm481 = vcmp.eq.f32.partialorder %v426, 0.0
  %v482 = vand.u32 %v426, 2147483648
  %v483 = vsel %vm481, %v482, %v480
  %v484 = vrsqrt.pop %v427
  %v485 = vmul.f32 %v484, %v427
  %v486 = vmul.f32 %v485, %v484
  %v487 = vmul.f32 0.5, %v486
  %v488 = vsub.f32 1.5, %v487
  %v489 = vmul.f32 %v484, %v488
  %v490 = vmul.f32 %v427, %v489
  %vm491 = vcmp.eq.f32.partialorder %v427, inf
  %v492 = vsel %vm491, %v427, %v490
  %vm493 = vcmp.eq.f32.partialorder %v427, 0.0
  %v494 = vand.u32 %v427, 2147483648
  %v495 = vsel %vm493, %v494, %v492
  %v496 = vrsqrt.pop %v428
  %v497 = vmul.f32 %v496, %v428
  %v498 = vmul.f32 %v497, %v496
  %v499 = vmul.f32 0.5, %v498
  %v500 = vsub.f32 1.5, %v499
  %v501 = vmul.f32 %v496, %v500
  %v502 = vmul.f32 %v428, %v501
  %vm503 = vcmp.eq.f32.partialorder %v428, inf
  %v504 = vsel %vm503, %v428, %v502
  %vm505 = vcmp.eq.f32.partialorder %v428, 0.0
  %v506 = vand.u32 %v428, 2147483648
  %v507 = vsel %vm505, %v506, %v504
  %v508 = vrsqrt.pop %v429
  %v509 = vmul.f32 %v508, %v429
  %v510 = vmul.f32 %v509, %v508
  %v511 = vmul.f32 0.5, %v510
  %v512 = vsub.f32 1.5, %v511
  %v513 = vmul.f32 %v508, %v512
  %v514 = vmul.f32 %v429, %v513
  %vm515 = vcmp.eq.f32.partialorder %v429, inf
  %v516 = vsel %vm515, %v429, %v514
  %vm517 = vcmp.eq.f32.partialorder %v429, 0.0
  %v518 = vand.u32 %v429, 2147483648
  %v519 = vsel %vm517, %v518, %v516
  %v520 = vrsqrt.pop %v430
  %v521 = vmul.f32 %v520, %v430
  %v522 = vmul.f32 %v521, %v520
  %v523 = vmul.f32 0.5, %v522
  %v524 = vsub.f32 1.5, %v523
  %v525 = vmul.f32 %v520, %v524
  %v526 = vmul.f32 %v430, %v525
  %vm527 = vcmp.eq.f32.partialorder %v430, inf
  %v528 = vsel %vm527, %v430, %v526
  %vm529 = vcmp.eq.f32.partialorder %v430, 0.0
  %v530 = vand.u32 %v430, 2147483648
  %v531 = vsel %vm529, %v530, %v528
  %v532 = vrsqrt.pop %v431
  %v533 = vmul.f32 %v532, %v431
  %v534 = vmul.f32 %v533, %v532
  %v535 = vmul.f32 0.5, %v534
  %v536 = vsub.f32 1.5, %v535
  %v537 = vmul.f32 %v532, %v536
  %v538 = vmul.f32 %v431, %v537
  %vm539 = vcmp.eq.f32.partialorder %v431, inf
  %v540 = vsel %vm539, %v431, %v538
  %vm541 = vcmp.eq.f32.partialorder %v431, 0.0
  %v542 = vand.u32 %v431, 2147483648
  %v543 = vsel %vm541, %v542, %v540
  %v544 = vrsqrt.pop %v432
  %v545 = vmul.f32 %v544, %v432
  %v546 = vmul.f32 %v545, %v544
  %v547 = vmul.f32 0.5, %v546
  %v548 = vsub.f32 1.5, %v547
  %v549 = vmul.f32 %v544, %v548
  %v550 = vmul.f32 %v432, %v549
  %vm551 = vcmp.eq.f32.partialorder %v432, inf
  %v552 = vsel %vm551, %v432, %v550
  %vm553 = vcmp.eq.f32.partialorder %v432, 0.0
  %v554 = vand.u32 %v432, 2147483648
  %v555 = vsel %vm553, %v554, %v552
  %v556 = vrsqrt.pop %v433
  %v557 = vmul.f32 %v556, %v433
  %v558 = vmul.f32 %v557, %v556
  %v559 = vmul.f32 0.5, %v558
  %v560 = vsub.f32 1.5, %v559
  %v561 = vmul.f32 %v556, %v560
  %v562 = vmul.f32 %v433, %v561
  %vm563 = vcmp.eq.f32.partialorder %v433, inf
  %v564 = vsel %vm563, %v433, %v562
  %vm565 = vcmp.eq.f32.partialorder %v433, 0.0
  %v566 = vand.u32 %v433, 2147483648
  %v567 = vsel %vm565, %v566, %v564
  %v568 = vrsqrt.pop %v434
  %v569 = vmul.f32 %v568, %v434
  %v570 = vmul.f32 %v569, %v568
  %v571 = vmul.f32 0.5, %v570
  %v572 = vsub.f32 1.5, %v571
  %v573 = vmul.f32 %v568, %v572
  %v574 = vmul.f32 %v434, %v573
  %vm575 = vcmp.eq.f32.partialorder %v434, inf
  %v576 = vsel %vm575, %v434, %v574
  %vm577 = vcmp.eq.f32.partialorder %v434, 0.0
  %v578 = vand.u32 %v434, 2147483648
  %v579 = vsel %vm577, %v578, %v576
  %v580 = vrsqrt.pop %v435
  %v581 = vmul.f32 %v580, %v435
  %v582 = vmul.f32 %v581, %v580
  %v583 = vmul.f32 0.5, %v582
  %v584 = vsub.f32 1.5, %v583
  %v585 = vmul.f32 %v580, %v584
  %v586 = vmul.f32 %v435, %v585
  %vm587 = vcmp.eq.f32.partialorder %v435, inf
  %v588 = vsel %vm587, %v435, %v586
  %vm589 = vcmp.eq.f32.partialorder %v435, 0.0
  %v590 = vand.u32 %v435, 2147483648
  %v591 = vsel %vm589, %v590, %v588
  %v592 = vrsqrt.pop %v436
  %v593 = vmul.f32 %v592, %v436
  %v594 = vmul.f32 %v593, %v592
  %v595 = vmul.f32 0.5, %v594
  %v596 = vsub.f32 1.5, %v595
  %v597 = vmul.f32 %v592, %v596
  %v598 = vmul.f32 %v436, %v597
  %vm599 = vcmp.eq.f32.partialorder %v436, inf
  %v600 = vsel %vm599, %v436, %v598
  %vm601 = vcmp.eq.f32.partialorder %v436, 0.0
  %v602 = vand.u32 %v436, 2147483648
  %v603 = vsel %vm601, %v602, %v600
  %v604 = vrsqrt.pop %v437
  %v605 = vmul.f32 %v604, %v437
  %v606 = vmul.f32 %v605, %v604
  %v607 = vmul.f32 0.5, %v606
  %v608 = vsub.f32 1.5, %v607
  %v609 = vmul.f32 %v604, %v608
  %v610 = vmul.f32 %v437, %v609
  %vm611 = vcmp.eq.f32.partialorder %v437, inf
  %v612 = vsel %vm611, %v437, %v610
  %vm613 = vcmp.eq.f32.partialorder %v437, 0.0
  %v614 = vand.u32 %v437, 2147483648
  %v615 = vsel %vm613, %v614, %v612
  %v616 = vrsqrt.pop %v438
  %v617 = vmul.f32 %v616, %v438
  %v618 = vmul.f32 %v617, %v616
  %v619 = vmul.f32 0.5, %v618
  %v620 = vsub.f32 1.5, %v619
  %v621 = vmul.f32 %v616, %v620
  %v622 = vmul.f32 %v438, %v621
  %vm623 = vcmp.eq.f32.partialorder %v438, inf
  %v624 = vsel %vm623, %v438, %v622
  %vm625 = vcmp.eq.f32.partialorder %v438, 0.0
  %v626 = vand.u32 %v438, 2147483648
  %v627 = vsel %vm625, %v626, %v624
  %v628 = vrsqrt.pop %v439
  %v629 = vmul.f32 %v628, %v439
  %v630 = vmul.f32 %v629, %v628
  %v631 = vmul.f32 0.5, %v630
  %v632 = vsub.f32 1.5, %v631
  %v633 = vmul.f32 %v628, %v632
  %v634 = vmul.f32 %v439, %v633
  %vm635 = vcmp.eq.f32.partialorder %v439, inf
  %v636 = vsel %vm635, %v439, %v634
  %vm637 = vcmp.eq.f32.partialorder %v439, 0.0
  %v638 = vand.u32 %v439, 2147483648
  %v639 = vsel %vm637, %v638, %v636
  %v640 = vrsqrt.pop %v440
  %v641 = vmul.f32 %v640, %v440
  %v642 = vmul.f32 %v641, %v640
  %v643 = vmul.f32 0.5, %v642
  %v644 = vsub.f32 1.5, %v643
  %v645 = vmul.f32 %v640, %v644
  %v646 = vmul.f32 %v440, %v645
  %vm647 = vcmp.eq.f32.partialorder %v440, inf
  %v648 = vsel %vm647, %v440, %v646
  %vm649 = vcmp.eq.f32.partialorder %v440, 0.0
  %v650 = vand.u32 %v440, 2147483648
  %v651 = vsel %vm649, %v650, %v648
  %v652 = vrsqrt.pop %v441
  %v653 = vmul.f32 %v652, %v441
  %v654 = vmul.f32 %v653, %v652
  %v655 = vmul.f32 0.5, %v654
  %v656 = vsub.f32 1.5, %v655
  %v657 = vmul.f32 %v652, %v656
  %v658 = vmul.f32 %v441, %v657
  %vm659 = vcmp.eq.f32.partialorder %v441, inf
  %v660 = vsel %vm659, %v441, %v658
  %vm661 = vcmp.eq.f32.partialorder %v441, 0.0
  %v662 = vand.u32 %v441, 2147483648
  %v663 = vsel %vm661, %v662, %v660
  %v664 = vrsqrt.pop %v442
  %v665 = vmul.f32 %v664, %v442
  %v666 = vmul.f32 %v665, %v664
  %v667 = vmul.f32 0.5, %v666
  %v668 = vsub.f32 1.5, %v667
  %v669 = vmul.f32 %v664, %v668
  %v670 = vmul.f32 %v442, %v669
  %vm671 = vcmp.eq.f32.partialorder %v442, inf
  %v672 = vsel %vm671, %v442, %v670
  %vm673 = vcmp.eq.f32.partialorder %v442, 0.0
  %v674 = vand.u32 %v442, 2147483648
  %v675 = vsel %vm673, %v674, %v672
  %v676 = vrsqrt.pop %v443
  %v677 = vmul.f32 %v676, %v443
  %v678 = vmul.f32 %v677, %v676
  %v679 = vmul.f32 0.5, %v678
  %v680 = vsub.f32 1.5, %v679
  %v681 = vmul.f32 %v676, %v680
  %v682 = vmul.f32 %v443, %v681
  %vm683 = vcmp.eq.f32.partialorder %v443, inf
  %v684 = vsel %vm683, %v443, %v682
  %vm685 = vcmp.eq.f32.partialorder %v443, 0.0
  %v686 = vand.u32 %v443, 2147483648
  %v687 = vsel %vm685, %v686, %v684
  %v688 = vrsqrt.pop %v444
  %v689 = vmul.f32 %v688, %v444
  %v690 = vmul.f32 %v689, %v688
  %v691 = vmul.f32 0.5, %v690
  %v692 = vsub.f32 1.5, %v691
  %v693 = vmul.f32 %v688, %v692
  %v694 = vmul.f32 %v444, %v693
  %vm695 = vcmp.eq.f32.partialorder %v444, inf
  %v696 = vsel %vm695, %v444, %v694
  %vm697 = vcmp.eq.f32.partialorder %v444, 0.0
  %v698 = vand.u32 %v444, 2147483648
  %v699 = vsel %vm697, %v698, %v696
  %v700 = vrsqrt.pop %v445
  %v701 = vmul.f32 %v700, %v445
  %v702 = vmul.f32 %v701, %v700
  %v703 = vmul.f32 0.5, %v702
  %v704 = vsub.f32 1.5, %v703
  %v705 = vmul.f32 %v700, %v704
  %v706 = vmul.f32 %v445, %v705
  %vm707 = vcmp.eq.f32.partialorder %v445, inf
  %v708 = vsel %vm707, %v445, %v706
  %vm709 = vcmp.eq.f32.partialorder %v445, 0.0
  %v710 = vand.u32 %v445, 2147483648
  %v711 = vsel %vm709, %v710, %v708
  %v712 = vrsqrt.pop %v446
  %v713 = vmul.f32 %v712, %v446
  %v714 = vmul.f32 %v713, %v712
  %v715 = vmul.f32 0.5, %v714
  %v716 = vsub.f32 1.5, %v715
  %v717 = vmul.f32 %v712, %v716
  %v718 = vmul.f32 %v446, %v717
  %vm719 = vcmp.eq.f32.partialorder %v446, inf
  %v720 = vsel %vm719, %v446, %v718
  %vm721 = vcmp.eq.f32.partialorder %v446, 0.0
  %v722 = vand.u32 %v446, 2147483648
  %v723 = vsel %vm721, %v722, %v720
  %v724 = vrsqrt.pop %v447
  %v725 = vmul.f32 %v724, %v447
  %v726 = vmul.f32 %v725, %v724
  %v727 = vmul.f32 0.5, %v726
  %v728 = vsub.f32 1.5, %v727
  %v729 = vmul.f32 %v724, %v728
  %v730 = vmul.f32 %v447, %v729
  %vm731 = vcmp.eq.f32.partialorder %v447, inf
  %v732 = vsel %vm731, %v447, %v730
  %vm733 = vcmp.eq.f32.partialorder %v447, 0.0
  %v734 = vand.u32 %v447, 2147483648
  %v735 = vsel %vm733, %v734, %v732
  %736 = vst [vmem:[%s3] sm:$0xff] %v459
  %737 = vst [vmem:[%s3 + $0x8] sm:$0xff] %v471
  %738 = vst [vmem:[%s3 + $0x10] sm:$0xff] %v483
  %739 = vst [vmem:[%s3 + $0x18] sm:$0xff] %v495
  %740 = vst [vmem:[%s3 + $0x20] sm:$0xff] %v507
  %741 = vst [vmem:[%s3 + $0x28] sm:$0xff] %v519
  %742 = vst [vmem:[%s3 + $0x30] sm:$0xff] %v531
  %743 = vst [vmem:[%s3 + $0x38] sm:$0xff] %v543
  %744 = vst [vmem:[%s3 + $0x40] sm:$0xff] %v555
  %745 = vst [vmem:[%s3 + $0x48] sm:$0xff] %v567
  %746 = vst [vmem:[%s3 + $0x50] sm:$0xff] %v579
  %747 = vst [vmem:[%s3 + $0x58] sm:$0xff] %v591
  %748 = vst [vmem:[%s3 + $0x60] sm:$0xff] %v603
  %749 = vst [vmem:[%s3 + $0x68] sm:$0xff] %v615
  %750 = vst [vmem:[%s3 + $0x70] sm:$0xff] %v627
  %751 = vst [vmem:[%s3 + $0x78] sm:$0xff] %v639
  %752 = vst [vmem:[%s3 + $0x80] sm:$0xff] %v651
  %753 = vst [vmem:[%s3 + $0x88] sm:$0xff] %v663
  %754 = vst [vmem:[%s3 + $0x90] sm:$0xff] %v675
  %755 = vst [vmem:[%s3 + $0x98] sm:$0xff] %v687
  %756 = vst [vmem:[%s3 + $0xa0] sm:$0xff] %v699
  %757 = vst [vmem:[%s3 + $0xa8] sm:$0xff] %v711
  %758 = vst [vmem:[%s3 + $0xb0] sm:$0xff] %v723
  %759 = vst [vmem:[%s3 + $0xb8] sm:$0xff] %v735
  // Predicated region
  $region14: #{open_unmix_forward.11} parent=0 // pred_check
    _
  $region15: #{open_unmix_forward.11} parent=0 // pred_check_branch
    %761 = sbr.rel (0) target = $region17
  $region16: #{open_unmix_forward.11} parent=0 // pred_region
    _
  $region17: #{open_unmix_forward.11} parent=0 // pred_fallthru
    _
  // Predicated region
  $region18: #{open_unmix_forward.11} parent=0 // pred_check
    _
  $region19: #{open_unmix_forward.11} parent=0 // pred_check_branch
    %763 = sbr.rel (0) target = $region21
  $region20: #{open_unmix_forward.11} parent=0 // pred_region
    _
  $region21: #{open_unmix_forward.11} parent=0 // pred_fallthru
    _

// kernel: open_unmix_forward.12
$region0: #{open_unmix_forward.12}
  #allocation0 [shape = 'u32[]', space=smem, size = 0x4, offset = 0x4, fixed_abs, tag = 'smem constant byte address 0x4 - core index']
  #allocation1 [shape = 'u32[72,128]{1,0:T(1,128)}', space=vmem, size = 0x9000, scoped, tag = 'internal scratch']
  #allocation2 [shape = 'f32[40,256]{1,0:T(8,128)}', space=vmem, size = 0xa000, scoped, tag = 'scratch operand']
  %s0 = inlined_call_operand.vmem [shape: bf16[40,128], index: 0, kind: input, shape index: {}]
  %s1 = inlined_call_operand.vmem [shape: bf16[128,512], index: 1, kind: input, shape index: {}]
  %s2 = inlined_call_operand.vmem [shape: f32[40,512], index: 2, kind: output, shape index: {}]
  %s3 = sld [smem:[#allocation0]]
  $region106: #{open_unmix_forward.12} parent=0
    _
  %s5 = ssub.s32 1, %s3
  %s6 = scalar_select 0, %s5, %s3
  $region1: #{open_unmix_forward.12} parent=0
    #allocation3 [shape = 'u8[131072]{0}', space=vmem, size = 0x20000, scoped, tag = 'input window, operand 1']
    #allocation4 [shape = 'u8[81920]{0}', space=vmem, size = 0x14000, scoped, tag = 'output window, operand 0']
    loop: start=0, step=1, limit=4
    $region2: #{open_unmix_forward.12} parent=1 // loop_pre_header
      _
    $region3: #{open_unmix_forward.12} parent=1 // loop_header
      %s8 = sphi 0, %s12
      %p9 = scmp.ge.s32.totalorder %s8, 4
      %s15 = sphi 0, %s34
      %s16 = sphi 0, %s30
      %s17 = sphi 0, %s26
      %s18 = sphi 0, %s15
      %s19 = sphi 0, %s16
      %s20 = sphi 0, %s17
      %s21 = sphi 0, %s18
      %s22 = sphi 0, %s19
      %s23 = sphi 0, %s20
      %s39 = sphi 0, %s41
      %s42 = sphi 0, %s39
      %s43 = sphi 0, %s42
      %s59 = sphi 0, %s43
      %s67 = sphi 0, %s69
      %s70 = sphi 0, %s67
      %s71 = sphi 0, %s70
      %s87 = sphi 0, %s71
      %s95 = sphi 0, %s97
      %s98 = sphi 0, %s95
      %s99 = sphi 0, %s98
      %s115 = sphi 0, %s99
    $region4: #{open_unmix_forward.12} parent=1 // loop_header_branch
      %11 = sbr.rel (%p9) target = $region8
    $region5: #{open_unmix_forward.12} parent=1 // loop_body
      %s13 = ssub.s32 %s8, 1
      %s14 = ssub.s32 %s8, 2
      %s24 = sadd.s32 1, %s17
      %p25 = scmp.ge.s32.totalorder %s24, 1
      %s26 = scalar_select %p25, 0, %s24
      %s27 = sadd.s32 1, %s16
      %s28 = scalar_select %p25, %s27, %s16
      %p29 = scmp.ge.s32.totalorder %s28, 2
      %s30 = scalar_select %p29, 0, %s28
      %s31 = sadd.s32 1, %s15
      %s32 = scalar_select %p29, %s31, %s15
      %p33 = scmp.ge.s32.totalorder %s32, 1
      %s34 = scalar_select %p33, 0, %s32
      %s35 = ssub.s32 %s15, %s34
      %s36 = ssub.s32 %s17, %s26
      %s37 = sor.u32 %s35, %s36
      %p38 = scmp.eq.s32.totalorder %s37, 0
      %s40 = sadd.s32 %s39, 1
      %s41 = scalar_select %p38, %s39, %s40
      %p44 = pneg %p38
      %p45 = scmp.eq.s32.totalorder %s8, 1
      %p46 = por %p44, %p45
      %p47 = scmp.ne.s32.totalorder %s39, %s42
      %p48 = scmp.eq.s32.totalorder %s8, 0
      %p49 = por %p47, %p48
      %p50 = scmp.ne.s32.totalorder %s39, %s42
      %p51 = scmp.eq.s32.totalorder %s13, 1
      %p52 = por %p50, %p51
      %p53 = scmp.ne.s32.totalorder %s42, %s43
      %p54 = scmp.eq.s32.totalorder %s13, 0
      %p55 = por %p53, %p54
      %p56 = scmp.ne.s32.totalorder %s42, %s43
      %p57 = scmp.eq.s32.totalorder %s14, 1
      %p58 = por %p56, %p57
      %p60 = scmp.ne.s32.totalorder %s43, %s59
      %p61 = scmp.eq.s32.totalorder %s14, 0
      %p62 = por %p60, %p61
      %s63 = ssub.s32 %s17, %s26
      %s64 = ssub.s32 %s16, %s30
      %s65 = sor.u32 %s63, %s64
      %p66 = scmp.eq.s32.totalorder %s65, 0
      %s68 = sadd.s32 %s67, 1
      %s69 = scalar_select %p66, %s67, %s68
      %p72 = pneg %p66
      %p73 = scmp.eq.s32.totalorder %s8, 1
      %p74 = por %p72, %p73
      %p75 = scmp.ne.s32.totalorder %s67, %s70
      %p76 = scmp.eq.s32.totalorder %s8, 0
      %p77 = por %p75, %p76
      %p78 = scmp.ne.s32.totalorder %s67, %s70
      %p79 = scmp.eq.s32.totalorder %s13, 1
      %p80 = por %p78, %p79
      %p81 = scmp.ne.s32.totalorder %s70, %s71
      %p82 = scmp.eq.s32.totalorder %s13, 0
      %p83 = por %p81, %p82
      %p84 = scmp.ne.s32.totalorder %s70, %s71
      %p85 = scmp.eq.s32.totalorder %s14, 1
      %p86 = por %p84, %p85
      %p88 = scmp.ne.s32.totalorder %s71, %s87
      %p89 = scmp.eq.s32.totalorder %s14, 0
      %p90 = por %p88, %p89
      %s91 = ssub.s32 %s15, %s34
      %s92 = ssub.s32 %s16, %s30
      %s93 = sor.u32 %s91, %s92
      %p94 = scmp.eq.s32.totalorder %s93, 0
      %s96 = sadd.s32 %s95, 1
      %s97 = scalar_select %p94, %s95, %s96
      %p100 = pneg %p94
      %p101 = scmp.eq.s32.totalorder %s8, 1
      %p102 = por %p100, %p101
      %p103 = scmp.ne.s32.totalorder %s95, %s98
      %p104 = scmp.eq.s32.totalorder %s8, 0
      %p105 = por %p103, %p104
      %p106 = scmp.ne.s32.totalorder %s95, %s98
      %p107 = scmp.eq.s32.totalorder %s13, 1
      %p108 = por %p106, %p107
      %p109 = scmp.ne.s32.totalorder %s98, %s99
      %p110 = scmp.eq.s32.totalorder %s13, 0
      %p111 = por %p109, %p110
      %p112 = scmp.ne.s32.totalorder %s98, %s99
      %p113 = scmp.eq.s32.totalorder %s14, 1
      %p114 = por %p112, %p113
      %p116 = scmp.ne.s32.totalorder %s99, %s115
      %p117 = scmp.eq.s32.totalorder %s14, 0
      %p118 = por %p116, %p117
      %p119 = scmp.le.s32.totalorder 1, %s8
      %p120 = scmp.lt.s32.totalorder %s8, 3
      %p121 = pnand %p119, %p120
      %p122 = pneg %p121
      // Predicated region
      $region9: #{open_unmix_forward.12} parent=5 // pred_check
        _
      $region10: #{open_unmix_forward.12} parent=5 // pred_check_branch
        %124 = sbr.rel (%p121) target = $region12
      $region11: #{open_unmix_forward.12} parent=5 // pred_region
        %s125 = ssub.s32 %s8, 1
        // Predicated region
        $region13: #{open_unmix_forward.12} parent=11 // pred_check
          %p126 = pneg %p55
        $region14: #{open_unmix_forward.12} parent=11 // pred_check_branch
          %128 = sbr.rel (%p126) target = $region16
        $region15: #{open_unmix_forward.12} parent=11 // pred_region
          %s129 = smul.u32 5, %s18
          %p130 = scmp.lt.s32.totalorder %s129, 4
          %s131 = scalar_select %p130, %s129, 4
          %p132 = scmp.lt.s32.totalorder %s20, 0
          %s133 = scalar_select %p132, %s20, 0
          %s134 = sadd.s32 %s133, %s131
          %s135 = smul.addr %s134, 4
          %s136 = scalar_lea.vmem %s0, %s135
          %s137 = smul.u32 5, %s18
        $region16: #{open_unmix_forward.12} parent=11 // pred_fallthru
          _
      $region12: #{open_unmix_forward.12} parent=5 // pred_fallthru
        _
      %p138 = scmp.lt.s32.totalorder %s8, 2
      // Predicated region
      $region17: #{open_unmix_forward.12} parent=5 // pred_check
        %p139 = pneg %p138
      $region18: #{open_unmix_forward.12} parent=5 // pred_check_branch
        %141 = sbr.rel (%p139) target = $region20
      $region19: #{open_unmix_forward.12} parent=5 // pred_region
        // Predicated region
        $region21: #{open_unmix_forward.12} parent=19 // pred_check
          %p142 = pneg %p77
        $region22: #{open_unmix_forward.12} parent=19 // pred_check_branch
          %144 = sbr.rel (%p142) target = $region24
        $region23: #{open_unmix_forward.12} parent=19 // pred_region
          %s145 = sand.u32 %s67, 1
          %s146 = sand.u32 %s67, 1
          %s147 = smul.addr %s146, 128
          %s148 = scalar_lea.vmem [#allocation3], %s147
          %s149 = smul.u32 16, %s17
          %s150 = smul.u32 2, %s16
          %s151 = smul.addr %s149, 4
          %s152 = sadd.s32 %s150, %s151
          %s153 = smul.addr %s152, 4
          %s154 = scalar_lea.vmem %s1, %s153
          // Predicated region
          $region25: #{open_unmix_forward.12} parent=23 // pred_check
            _
          $region26: #{open_unmix_forward.12} parent=23 // pred_check_branch
            %156 = sbr.rel (0) target = $region28
          $region27: #{open_unmix_forward.12} parent=23 // pred_region
            // Predicated region
            $region29: #{open_unmix_forward.12} parent=27 // pred_check
              _
            $region30: #{open_unmix_forward.12} parent=27 // pred_check_branch
              %158 = sbr.rel (0) target = $region32
            $region31: #{open_unmix_forward.12} parent=27 // pred_region
              // Predicated region
              $region44: #{open_unmix_forward.12} parent=31 // pred_check
                _
              $region45: #{open_unmix_forward.12} parent=31 // pred_check_branch
                %204 = sbr.rel (0) target = $region47
              $region46: #{open_unmix_forward.12} parent=31 // pred_region
                loop: start=0, step=1, limit=1
                $region48: #{open_unmix_forward.12} parent=46 // loop_pre_header
                  _
                $region49: #{open_unmix_forward.12} parent=46 // loop_header
                  %s206 = sphi 0, %s210
                  %p207 = scmp.ge.s32.totalorder %s206, 1
                  %s211 = sphi %s154, %s154
                  %s212 = sphi %s148, %s148
                $region50: #{open_unmix_forward.12} parent=46 // loop_header_branch
                  %209 = sbr.rel (%p207) target = $region54
                $region51: #{open_unmix_forward.12} parent=46 // loop_body
                  %v213 = vld [vmem:[%s211] sm:$0xff]
                  %214 = vst [vmem:[%s212] sm:$0xff] %v213
                  %v215 = vld [vmem:[%s211 + $0x10] sm:$0xff]
                  %216 = vst [vmem:[%s212 + $0x8] sm:$0xff] %v215
                  %v217 = vld [vmem:[%s211 + $0x20] sm:$0xff]
                  %218 = vst [vmem:[%s212 + $0x10] sm:$0xff] %v217
                  %v219 = vld [vmem:[%s211 + $0x30] sm:$0xff]
                  %220 = vst [vmem:[%s212 + $0x18] sm:$0xff] %v219
                  %v221 = vld [vmem:[%s211 + $0x40] sm:$0xff]
                  %222 = vst [vmem:[%s212 + $0x20] sm:$0xff] %v221
                  %v223 = vld [vmem:[%s211 + $0x50] sm:$0xff]
                  %224 = vst [vmem:[%s212 + $0x28] sm:$0xff] %v223
                  %v225 = vld [vmem:[%s211 + $0x60] sm:$0xff]
                  %226 = vst [vmem:[%s212 + $0x30] sm:$0xff] %v225
                  %v227 = vld [vmem:[%s211 + $0x70] sm:$0xff]
                  %228 = vst [vmem:[%s212 + $0x38] sm:$0xff] %v227
                  %v229 = vld [vmem:[%s211 + $0x80] sm:$0xff]
                  %230 = vst [vmem:[%s212 + $0x40] sm:$0xff] %v229
                  %v231 = vld [vmem:[%s211 + $0x90] sm:$0xff]
                  %232 = vst [vmem:[%s212 + $0x48] sm:$0xff] %v231
                  %v233 = vld [vmem:[%s211 + $0xa0] sm:$0xff]
                  %234 = vst [vmem:[%s212 + $0x50] sm:$0xff] %v233
                  %v235 = vld [vmem:[%s211 + $0xb0] sm:$0xff]
                  %236 = vst [vmem:[%s212 + $0x58] sm:$0xff] %v235
                  %v237 = vld [vmem:[%s211 + $0xc0] sm:$0xff]
                  %238 = vst [vmem:[%s212 + $0x60] sm:$0xff] %v237
                  %v239 = vld [vmem:[%s211 + $0xd0] sm:$0xff]
                  %240 = vst [vmem:[%s212 + $0x68] sm:$0xff] %v239
                  %v241 = vld [vmem:[%s211 + $0xe0] sm:$0xff]
                  %242 = vst [vmem:[%s212 + $0x70] sm:$0xff] %v241
                  %v243 = vld [vmem:[%s211 + $0xf0] sm:$0xff]
                  %244 = vst [vmem:[%s212 + $0x78] sm:$0xff] %v243
                $region52: #{open_unmix_forward.12} parent=46 // loop_footer
                  %s210 = sadd.s32 1, %s206
                $region53: #{open_unmix_forward.12} parent=46 // loop_footer_branch
                  %205 = sbr.rel target = $region49
                $region54: #{open_unmix_forward.12} parent=46 // loop_exit
                  _
              $region47: #{open_unmix_forward.12} parent=31 // pred_fallthru
                _
              // Predicated region
              $region55: #{open_unmix_forward.12} parent=31 // pred_check
                _
              $region56: #{open_unmix_forward.12} parent=31 // pred_check_branch
                %246 = sbr.rel target = $region58
              $region57: #{open_unmix_forward.12} parent=31 // pred_region
                _
              $region58: #{open_unmix_forward.12} parent=31 // pred_fallthru
                _
            $region32: #{open_unmix_forward.12} parent=27 // pred_fallthru
              _
            // Predicated region
            $region33: #{open_unmix_forward.12} parent=27 // pred_check
              _
            $region34: #{open_unmix_forward.12} parent=27 // pred_check_branch
              %160 = sbr.rel target = $region36
            $region35: #{open_unmix_forward.12} parent=27 // pred_region
              %s162 = ssub.s32 256, 1
              loop: start=0, step=1, limit=1
              $region37: #{open_unmix_forward.12} parent=35 // loop_pre_header
                _
              $region38: #{open_unmix_forward.12} parent=35 // loop_header
                %s164 = sphi 0, %s168
                %p165 = scmp.ge.s32.totalorder %s164, 1
                %s169 = sphi %s154, %s154
                %s170 = sphi %s148, %s148
              $region39: #{open_unmix_forward.12} parent=35 // loop_header_branch
                %167 = sbr.rel (%p165) target = $region43
              $region40: #{open_unmix_forward.12} parent=35 // loop_body
                %v171 = vld [vmem:[%s169] sm:%s162]
                %172 = vst [vmem:[%s170] sm:%s162] %v171
                %v173 = vld [vmem:[%s169 + $0x10] sm:%s162]
                %174 = vst [vmem:[%s170 + $0x8] sm:%s162] %v173
                %v175 = vld [vmem:[%s169 + $0x20] sm:%s162]
                %176 = vst [vmem:[%s170 + $0x10] sm:%s162] %v175
                %v177 = vld [vmem:[%s169 + $0x30] sm:%s162]
                %178 = vst [vmem:[%s170 + $0x18] sm:%s162] %v177
                %v179 = vld [vmem:[%s169 + $0x40] sm:%s162]
                %180 = vst [vmem:[%s170 + $0x20] sm:%s162] %v179
                %v181 = vld [vmem:[%s169 + $0x50] sm:%s162]
                %182 = vst [vmem:[%s170 + $0x28] sm:%s162] %v181
                %v183 = vld [vmem:[%s169 + $0x60] sm:%s162]
                %184 = vst [vmem:[%s170 + $0x30] sm:%s162] %v183
                %v185 = vld [vmem:[%s169 + $0x70] sm:%s162]
                %186 = vst [vmem:[%s170 + $0x38] sm:%s162] %v185
                %v187 = vld [vmem:[%s169 + $0x80] sm:%s162]
                %188 = vst [vmem:[%s170 + $0x40] sm:%s162] %v187
                %v189 = vld [vmem:[%s169 + $0x90] sm:%s162]
                %190 = vst [vmem:[%s170 + $0x48] sm:%s162] %v189
                %v191 = vld [vmem:[%s169 + $0xa0] sm:%s162]
                %192 = vst [vmem:[%s170 + $0x50] sm:%s162] %v191
                %v193 = vld [vmem:[%s169 + $0xb0] sm:%s162]
                %194 = vst [vmem:[%s170 + $0x58] sm:%s162] %v193
                %v195 = vld [vmem:[%s169 + $0xc0] sm:%s162]
                %196 = vst [vmem:[%s170 + $0x60] sm:%s162] %v195
                %v197 = vld [vmem:[%s169 + $0xd0] sm:%s162]
                %198 = vst [vmem:[%s170 + $0x68] sm:%s162] %v197
                %v199 = vld [vmem:[%s169 + $0xe0] sm:%s162]
                %200 = vst [vmem:[%s170 + $0x70] sm:%s162] %v199
                %v201 = vld [vmem:[%s169 + $0xf0] sm:%s162]
                %202 = vst [vmem:[%s170 + $0x78] sm:%s162] %v201
              $region41: #{open_unmix_forward.12} parent=35 // loop_footer
                %s168 = sadd.s32 1, %s164
              $region42: #{open_unmix_forward.12} parent=35 // loop_footer_branch
                %163 = sbr.rel target = $region38
              $region43: #{open_unmix_forward.12} parent=35 // loop_exit
                _
            $region36: #{open_unmix_forward.12} parent=27 // pred_fallthru
              _
          $region28: #{open_unmix_forward.12} parent=23 // pred_fallthru
            _
          %247 = vnop
        $region24: #{open_unmix_forward.12} parent=19 // pred_fallthru
          _
      $region20: #{open_unmix_forward.12} parent=5 // pred_fallthru
        _
      %p248 = scmp.le.s32.totalorder 1, %s8
      %p249 = scmp.lt.s32.totalorder %s8, 3
      %p250 = pnand %p248, %p249
      %p251 = pneg %p250
      // Predicated region
      $region59: #{open_unmix_forward.12} parent=5 // pred_check
        _
      $region60: #{open_unmix_forward.12} parent=5 // pred_check_branch
        %253 = sbr.rel (%p250) target = $region62
      $region61: #{open_unmix_forward.12} parent=5 // pred_region
        %s254 = ssub.s32 %s8, 1
        %s255 = sand.u32 %s70, 1
        %s256 = sand.u32 %s70, 1
        %s257 = smul.addr %s256, 128
        %s258 = scalar_lea.vmem [#allocation3], %s257
        // Predicated region
        $region63: #{open_unmix_forward.12} parent=61 // pred_check
          %p259 = pneg %p83
        $region64: #{open_unmix_forward.12} parent=61 // pred_check_branch
          %261 = sbr.rel (%p259) target = $region66
        $region65: #{open_unmix_forward.12} parent=61 // pred_region
          _
        $region66: #{open_unmix_forward.12} parent=61 // pred_fallthru
          _
        %s262 = smul.u32 5, %s18
        %p263 = scmp.lt.s32.totalorder %s262, 4
        %s264 = scalar_select %p263, %s262, 4
        %p265 = scmp.lt.s32.totalorder %s20, 0
        %s266 = scalar_select %p265, %s20, 0
        %s267 = sadd.s32 %s266, %s264
        %s268 = smul.addr %s267, 4
        %s269 = scalar_lea.vmem %s0, %s268
        %p270 = pneg %p55
        %p271 = pneg %p52
        %s272 = sand.u32 %s70, 1
        %s273 = sand.u32 %s70, 1
        %s274 = smul.addr %s273, 128
        %s275 = scalar_lea.vmem [#allocation3], %s274
        %p276 = pneg %p83
        %p277 = pneg %p80
        %p278 = pneg %p111
        %p279 = pneg %p108
        %s280 = sand.u32 %s98, 1
        %s281 = sand.u32 %s98, 1
        %s282 = smul.addr %s281, 80
        %s283 = scalar_lea.vmem [#allocation4], %s282
        %s284 = smul.u32 5, %s18
        %p285 = scmp.lt.s32.totalorder %s284, 4
        %s286 = scalar_select %p285, %s284, 4
        %p287 = scmp.lt.s32.totalorder %s20, 0
        %s288 = scalar_select %p287, %s20, 0
        %s289 = sadd.s32 %s288, %s286
        %s290 = smul.addr %s289, 4
        %s291 = scalar_lea.vmem %s0, %s290
        %s292 = smul.u32 5, %s18
        %s293 = smul.u32 16, %s20
        %s294 = smul.u32 2, %s19
        %s295 = smul.u32 5, %s18
        %s296 = smul.u32 2, %s19
        %p297 = scmp.eq.s32.totalorder %s20, 0
        // Predicated region
        $region67: #{open_unmix_forward.12} parent=61 // pred_check
          %p298 = pneg %p297
        $region68: #{open_unmix_forward.12} parent=61 // pred_check_branch
          %300 = sbr.rel (%p298) target = $region70
        $region69: #{open_unmix_forward.12} parent=61 // pred_region
          %301 = vst [vmem:[#allocation2] sm:$0xff] 0.0
          %302 = vst [vmem:[#allocation2 + $0x8] sm:$0xff] 0.0
          %303 = vst [vmem:[#allocation2 + $0x10] sm:$0xff] 0.0
          %304 = vst [vmem:[#allocation2 + $0x18] sm:$0xff] 0.0
          %305 = vst [vmem:[#allocation2 + $0x20] sm:$0xff] 0.0
          %306 = vst [vmem:[#allocation2 + $0x28] sm:$0xff] 0.0
          %307 = vst [vmem:[#allocation2 + $0x30] sm:$0xff] 0.0
          %308 = vst [vmem:[#allocation2 + $0x38] sm:$0xff] 0.0
          %309 = vst [vmem:[#allocation2 + $0x40] sm:$0xff] 0.0
          %310 = vst [vmem:[#allocation2 + $0x48] sm:$0xff] 0.0
        $region70: #{open_unmix_forward.12} parent=61 // pred_fallthru
          _
        %v311 = vld [vmem:[#allocation2] sm:$0xff]
        %v312 = vld [vmem:[#allocation2 + $0x8] sm:$0xff]
        %v313 = vld [vmem:[#allocation2 + $0x10] sm:$0xff]
        %v314 = vld [vmem:[#allocation2 + $0x18] sm:$0xff]
        %v315 = vld [vmem:[#allocation2 + $0x20] sm:$0xff]
        %v316 = vld [vmem:[#allocation2 + $0x28] sm:$0xff]
        %v317 = vld [vmem:[#allocation2 + $0x30] sm:$0xff]
        %v318 = vld [vmem:[#allocation2 + $0x38] sm:$0xff]
        %v319 = vld [vmem:[#allocation2 + $0x40] sm:$0xff]
        %v320 = vld [vmem:[#allocation2 + $0x48] sm:$0xff]
        %v321 = vld [vmem:[%s291] sm:$0xf]
        %v322 = vld [vmem:[%s291 + $0x4] sm:$0xf]
        %v323 = vld [vmem:[%s291 + $0x8] sm:$0xf]
        %v324 = vld [vmem:[%s291 + $0xc] sm:$0xf]
        %v325 = vld [vmem:[%s291 + $0x10] sm:$0xf]
        %v326 = vld [vmem:[%s258] sm:$0xff]
        %v327 = vld [vmem:[%s258 + $0x8] sm:$0xff]
        %v328 = vld [vmem:[%s258 + $0x10] sm:$0xff]
        %v329 = vld [vmem:[%s258 + $0x18] sm:$0xff]
        %v330 = vld [vmem:[%s258 + $0x20] sm:$0xff]
        %v331 = vld [vmem:[%s258 + $0x28] sm:$0xff]
        %v332 = vld [vmem:[%s258 + $0x30] sm:$0xff]
        %v333 = vld [vmem:[%s258 + $0x38] sm:$0xff]
        %v334 = vld [vmem:[%s258 + $0x40] sm:$0xff]
        %v335 = vld [vmem:[%s258 + $0x48] sm:$0xff]
        %v336 = vld [vmem:[%s258 + $0x50] sm:$0xff]
        %v337 = vld [vmem:[%s258 + $0x58] sm:$0xff]
        %v338 = vld [vmem:[%s258 + $0x60] sm:$0xff]
        %v339 = vld [vmem:[%s258 + $0x68] sm:$0xff]
        %v340 = vld [vmem:[%s258 + $0x70] sm:$0xff]
        %v341 = vld [vmem:[%s258 + $0x78] sm:$0xff]
        %v347 = vunpack.c.l.b16 %v321
        %v348 = vunpack.c.l.b16 %v322
        %v349 = vunpack.c.l.b16 %v323
        %v350 = vunpack.c.l.b16 %v324
        %v351 = vunpack.c.l.b16 %v325
        %v352 = vpack.c.b16 %v348, %v347
        %v353 = vpack.c.b16 %v350, %v349
        %v354 = vpack.c.b16 %v351, %v351
        %v374 = vunpack.c.l.b16 %v326
        %v375 = vunpack.c.h.b16 %v326
        %v376 = vunpack.c.l.b16 %v327
        %v377 = vunpack.c.h.b16 %v327
        %v378 = vunpack.c.l.b16 %v328
        %v379 = vunpack.c.h.b16 %v328
        %v380 = vunpack.c.l.b16 %v329
        %v381 = vunpack.c.h.b16 %v329
        %v382 = vunpack.c.l.b16 %v330
        %v383 = vunpack.c.h.b16 %v330
        %v384 = vunpack.c.l.b16 %v331
        %v385 = vunpack.c.h.b16 %v331
        %v386 = vunpack.c.l.b16 %v332
        %v387 = vunpack.c.h.b16 %v332
        %v388 = vunpack.c.l.b16 %v333
        %v389 = vunpack.c.h.b16 %v333
        %v390 = vunpack.c.l.b16 %v334
        %v391 = vunpack.c.h.b16 %v334
        %v392 = vunpack.c.l.b16 %v335
        %v393 = vunpack.c.h.b16 %v335
        %v394 = vunpack.c.l.b16 %v336
        %v395 = vunpack.c.h.b16 %v336
        %v396 = vunpack.c.l.b16 %v337
        %v397 = vunpack.c.h.b16 %v337
        %v398 = vunpack.c.l.b16 %v338
        %v399 = vunpack.c.h.b16 %v338
        %v400 = vunpack.c.l.b16 %v339
        %v401 = vunpack.c.h.b16 %v339
        %v402 = vunpack.c.l.b16 %v340
        %v403 = vunpack.c.h.b16 %v340
        %v404 = vunpack.c.l.b16 %v341
        %v405 = vunpack.c.h.b16 %v341
        %v406 = vpack.c.b16 %v376, %v374
        %v407 = vpack.c.b16 %v377, %v375
        %v408 = vpack.c.b16 %v380, %v378
        %v409 = vpack.c.b16 %v381, %v379
        %v410 = vpack.c.b16 %v384, %v382
        %v411 = vpack.c.b16 %v385, %v383
        %v412 = vpack.c.b16 %v388, %v386
        %v413 = vpack.c.b16 %v389, %v387
        %v414 = vpack.c.b16 %v392, %v390
        %v415 = vpack.c.b16 %v393, %v391
        %v416 = vpack.c.b16 %v396, %v394
        %v417 = vpack.c.b16 %v397, %v395
        %v418 = vpack.c.b16 %v400, %v398
        %v419 = vpack.c.b16 %v401, %v399
        %v420 = vpack.c.b16 %v404, %v402
        %v421 = vpack.c.b16 %v405, %v403
        %438 = vmatpush.bf16.msra.mxu0 %v420
        %439 = vmatpush.bf16.msra.mxu0 %v418
        %440 = vmatpush.bf16.msra.mxu0 %v416
        %441 = vmatpush.bf16.msra.mxu0 %v414
        %442 = vmatpush.bf16.msra.mxu0 %v412
        %443 = vmatpush.bf16.msra.mxu0 %v410
        %444 = vmatpush.bf16.msra.mxu0 %v408
        %445 = vmatpush.bf16.msra.mxu0 %v406
        %446 = vmatmul.bf16.gmra.mxu0 %v352
        %v447 = vpop.f32.mrf.mxu0
        %v448 = vadd.f32 0.0, %v447
        %v449 = vpop.f32.mrf.mxu0
        %v450 = vadd.f32 0.0, %v449
        %451 = vmatmul.bf16.gmra.mxu0 %v353
        %v452 = vpop.f32.mrf.mxu0
        %v453 = vadd.f32 0.0, %v452
        %v454 = vpop.f32.mrf.mxu0
        %v455 = vadd.f32 0.0, %v454
        %456 = vmatmul.bf16.gmra.mxu0 %v354
        %v457 = vpop.f32.mrf.mxu0
        %v458 = vadd.f32 0.0, %v457
        %v459 = vpop.f32.mrf.mxu0
        %460 = vdwg.mxu0
        %461 = vmatpush.bf16.msra.mxu0 %v421
        %462 = vmatpush.bf16.msra.mxu0 %v419
        %463 = vmatpush.bf16.msra.mxu0 %v417
        %464 = vmatpush.bf16.msra.mxu0 %v415
        %465 = vmatpush.bf16.msra.mxu0 %v413
        %466 = vmatpush.bf16.msra.mxu0 %v411
        %467 = vmatpush.bf16.msra.mxu0 %v409
        %468 = vmatpush.bf16.msra.mxu0 %v407
        %469 = vmatmul.bf16.gmra.mxu0 %v352
        %v470 = vpop.f32.mrf.mxu0
        %v471 = vadd.f32 0.0, %v470
        %v472 = vpop.f32.mrf.mxu0
        %v473 = vadd.f32 0.0, %v472
        %474 = vmatmul.bf16.gmra.mxu0 %v353
        %v475 = vpop.f32.mrf.mxu0
        %v476 = vadd.f32 0.0, %v475
        %v477 = vpop.f32.mrf.mxu0
        %v478 = vadd.f32 0.0, %v477
        %479 = vmatmul.bf16.gmra.mxu0 %v354
        %v480 = vpop.f32.mrf.mxu0
        %v481 = vadd.f32 0.0, %v480
        %v482 = vpop.f32.mrf.mxu0
        %483 = vdwg.mxu0
        %v484 = vadd.f32 %v311, %v448
        %v485 = vadd.f32 %v312, %v471
        %v486 = vadd.f32 %v313, %v450
        %v487 = vadd.f32 %v314, %v473
        %v488 = vadd.f32 %v315, %v453
        %v489 = vadd.f32 %v316, %v476
        %v490 = vadd.f32 %v317, %v455
        %v491 = vadd.f32 %v318, %v478
        %v492 = vadd.f32 %v319, %v458
        %v493 = vadd.f32 %v320, %v481
        %494 = vst [vmem:[#allocation2] sm:$0xff] %v484
        %495 = vst [vmem:[#allocation2 + $0x8] sm:$0xff] %v485
        %496 = vst [vmem:[#allocation2 + $0x10] sm:$0xff] %v486
        %497 = vst [vmem:[#allocation2 + $0x18] sm:$0xff] %v487
        %498 = vst [vmem:[#allocation2 + $0x20] sm:$0xff] %v488
        %499 = vst [vmem:[#allocation2 + $0x28] sm:$0xff] %v489
        %500 = vst [vmem:[#allocation2 + $0x30] sm:$0xff] %v490
        %501 = vst [vmem:[#allocation2 + $0x38] sm:$0xff] %v491
        %502 = vst [vmem:[#allocation2 + $0x40] sm:$0xff] %v492
        %503 = vst [vmem:[#allocation2 + $0x48] sm:$0xff] %v493
        // Predicated region
        $region71: #{open_unmix_forward.12} parent=61 // pred_check
          %p504 = pneg %p297
        $region72: #{open_unmix_forward.12} parent=61 // pred_check_branch
          %506 = sbr.rel (%p504) target = $region74
        $region73: #{open_unmix_forward.12} parent=61 // pred_region
          %v507 = vld [vmem:[#allocation2] sm:$0xff]
          %v508 = vld [vmem:[#allocation2 + $0x8] sm:$0xff]
          %v509 = vld [vmem:[#allocation2 + $0x10] sm:$0xff]
          %v510 = vld [vmem:[#allocation2 + $0x18] sm:$0xff]
          %v511 = vld [vmem:[#allocation2 + $0x20] sm:$0xff]
          %v512 = vld [vmem:[#allocation2 + $0x28] sm:$0xff]
          %v513 = vld [vmem:[#allocation2 + $0x30] sm:$0xff]
          %v514 = vld [vmem:[#allocation2 + $0x38] sm:$0xff]
          %v515 = vld [vmem:[#allocation2 + $0x40] sm:$0xff]
          %v516 = vld [vmem:[#allocation2 + $0x48] sm:$0xff]
          %517 = vst [vmem:[%s283] sm:$0xff] %v507
          %518 = vst [vmem:[%s283 + $0x8] sm:$0xff] %v508
          %519 = vst [vmem:[%s283 + $0x10] sm:$0xff] %v509
          %520 = vst [vmem:[%s283 + $0x18] sm:$0xff] %v510
          %521 = vst [vmem:[%s283 + $0x20] sm:$0xff] %v511
          %522 = vst [vmem:[%s283 + $0x28] sm:$0xff] %v512
          %523 = vst [vmem:[%s283 + $0x30] sm:$0xff] %v513
          %524 = vst [vmem:[%s283 + $0x38] sm:$0xff] %v514
          %525 = vst [vmem:[%s283 + $0x40] sm:$0xff] %v515
          %526 = vst [vmem:[%s283 + $0x48] sm:$0xff] %v516
        $region74: #{open_unmix_forward.12} parent=61 // pred_fallthru
          _
        %s527 = sand.u32 %s98, 1
        %s528 = sand.u32 %s98, 1
        %s529 = smul.addr %s528, 80
        %s530 = scalar_lea.vmem [#allocation4], %s529
        // Predicated region
        $region75: #{open_unmix_forward.12} parent=61 // pred_check
          %p531 = pneg %p108
        $region76: #{open_unmix_forward.12} parent=61 // pred_check_branch
          %533 = sbr.rel (%p531) target = $region78
        $region77: #{open_unmix_forward.12} parent=61 // pred_region
          %s534 = smul.u32 5, %s18
          %s535 = smul.u32 2, %s19
          %s536 = smul.addr %s534, 4
          %s537 = sadd.s32 %s535, %s536
          %s538 = smul.addr %s537, 8
          %s539 = scalar_lea.vmem %s2, %s538
          // Predicated region
          $region79: #{open_unmix_forward.12} parent=77 // pred_check
            _
          $region80: #{open_unmix_forward.12} parent=77 // pred_check_branch
            %541 = sbr.rel (0) target = $region82
          $region81: #{open_unmix_forward.12} parent=77 // pred_region
            // Predicated region
            $region83: #{open_unmix_forward.12} parent=81 // pred_check
              _
            $region84: #{open_unmix_forward.12} parent=81 // pred_check_branch
              %543 = sbr.rel (0) target = $region86
            $region85: #{open_unmix_forward.12} parent=81 // pred_region
              loop: start=0, step=1, limit=1
              $region87: #{open_unmix_forward.12} parent=85 // loop_pre_header
                _
              $region88: #{open_unmix_forward.12} parent=85 // loop_header
                %s545 = sphi 0, %s549
                %p546 = scmp.ge.s32.totalorder %s545, 1
                %s550 = sphi %s530, %s530
                %s551 = sphi %s539, %s539
              $region89: #{open_unmix_forward.12} parent=85 // loop_header_branch
                %548 = sbr.rel (%p546) target = $region93
              $region90: #{open_unmix_forward.12} parent=85 // loop_body
                %v552 = vld [vmem:[%s550] sm:$0xff]
                %553 = vst [vmem:[%s551] sm:$0xff] %v552
                %v554 = vld [vmem:[%s550 + $0x8] sm:$0xff]
                %555 = vst [vmem:[%s551 + $0x8] sm:$0xff] %v554
                %v556 = vld [vmem:[%s550 + $0x10] sm:$0xff]
                %557 = vst [vmem:[%s551 + $0x20] sm:$0xff] %v556
                %v558 = vld [vmem:[%s550 + $0x18] sm:$0xff]
                %559 = vst [vmem:[%s551 + $0x28] sm:$0xff] %v558
                %v560 = vld [vmem:[%s550 + $0x20] sm:$0xff]
                %561 = vst [vmem:[%s551 + $0x40] sm:$0xff] %v560
                %v562 = vld [vmem:[%s550 + $0x28] sm:$0xff]
                %563 = vst [vmem:[%s551 + $0x48] sm:$0xff] %v562
                %v564 = vld [vmem:[%s550 + $0x30] sm:$0xff]
                %565 = vst [vmem:[%s551 + $0x60] sm:$0xff] %v564
                %v566 = vld [vmem:[%s550 + $0x38] sm:$0xff]
                %567 = vst [vmem:[%s551 + $0x68] sm:$0xff] %v566
                %v568 = vld [vmem:[%s550 + $0x40] sm:$0xff]
                %569 = vst [vmem:[%s551 + $0x80] sm:$0xff] %v568
                %v570 = vld [vmem:[%s550 + $0x48] sm:$0xff]
                %571 = vst [vmem:[%s551 + $0x88] sm:$0xff] %v570
              $region91: #{open_unmix_forward.12} parent=85 // loop_footer
                %s549 = sadd.s32 1, %s545
              $region92: #{open_unmix_forward.12} parent=85 // loop_footer_branch
                %544 = sbr.rel target = $region88
              $region93: #{open_unmix_forward.12} parent=85 // loop_exit
                _
            $region86: #{open_unmix_forward.12} parent=81 // pred_fallthru
              _
            // Predicated region
            $region94: #{open_unmix_forward.12} parent=81 // pred_check
              _
            $region95: #{open_unmix_forward.12} parent=81 // pred_check_branch
              %573 = sbr.rel target = $region97
            $region96: #{open_unmix_forward.12} parent=81 // pred_region
              _
            $region97: #{open_unmix_forward.12} parent=81 // pred_fallthru
              _
          $region82: #{open_unmix_forward.12} parent=77 // pred_fallthru
            _
          %574 = vnop
        $region78: #{open_unmix_forward.12} parent=61 // pred_fallthru
          _
      $region62: #{open_unmix_forward.12} parent=5 // pred_fallthru
        _
      %p575 = scmp.le.s32.totalorder 2, %s8
      // Predicated region
      $region98: #{open_unmix_forward.12} parent=5 // pred_check
        %p576 = pneg %p575
      $region99: #{open_unmix_forward.12} parent=5 // pred_check_branch
        %578 = sbr.rel (%p576) target = $region101
      $region100: #{open_unmix_forward.12} parent=5 // pred_region
        %s579 = ssub.s32 %s8, 2
        // Predicated region
        $region102: #{open_unmix_forward.12} parent=100 // pred_check
          %p580 = pneg %p114
        $region103: #{open_unmix_forward.12} parent=100 // pred_check_branch
          %582 = sbr.rel (%p580) target = $region105
        $region104: #{open_unmix_forward.12} parent=100 // pred_region
          %s583 = sand.u32 %s99, 1
          %s584 = sand.u32 %s99, 1
          %s585 = smul.addr %s584, 80
          %s586 = scalar_lea.vmem [#allocation4], %s585
        $region105: #{open_unmix_forward.12} parent=100 // pred_fallthru
          _
      $region101: #{open_unmix_forward.12} parent=5 // pred_fallthru
        _
    $region6: #{open_unmix_forward.12} parent=1 // loop_footer
      %s12 = sadd.s32 1, %s8
    $region7: #{open_unmix_forward.12} parent=1 // loop_footer_branch
      %7 = sbr.rel target = $region3
    $region8: #{open_unmix_forward.12} parent=1 // loop_exit
      _

// kernel: open_unmix_forward.13
$region0: #{open_unmix_forward.13}
  #allocation0 [shape = 'u32[]', space=smem, size = 0x4, offset = 0x4, fixed_abs, tag = 'smem constant byte address 0x4 - core index']
  #allocation1 [shape = 'u32[72,128]{1,0:T(1,128)}', space=vmem, size = 0x9000, scoped, tag = 'internal scratch']
  #allocation2 [shape = 'f32[176,128]{1,0:T(8,128)}', space=vmem, size = 0x16000, scoped, tag = 'scratch operand']
  %s0 = inlined_call_operand.vmem [shape: bf16[176,256], index: 0, kind: input, shape index: {}]
  %s1 = inlined_call_operand.vmem [shape: bf16[256,128], index: 1, kind: input, shape index: {}]
  %s2 = inlined_call_operand.vmem [shape: f32[1,128], index: 2, kind: input, shape index: {}]
  %s3 = inlined_call_operand.vmem [shape: f32[1,128], index: 3, kind: input, shape index: {}]
  %s4 = inlined_call_operand.vmem [shape: f32[176,128], index: 4, kind: output, shape index: {}]
  %s5 = sld [smem:[#allocation0]]
  $region34: #{open_unmix_forward.13} parent=0
    _
  %s7 = ssub.s32 1, %s5
  %s8 = scalar_select 0, %s7, %s5
  // Predicated region
  $region2: #{open_unmix_forward.13} parent=0 // pred_check
    _
  $region3: #{open_unmix_forward.13} parent=0 // pred_check_branch
    %10 = sbr.rel (0) target = $region5
  $region4: #{open_unmix_forward.13} parent=0 // pred_region
    _
  $region5: #{open_unmix_forward.13} parent=0 // pred_fallthru
    _
  // Predicated region
  $region6: #{open_unmix_forward.13} parent=0 // pred_check
    _
  $region7: #{open_unmix_forward.13} parent=0 // pred_check_branch
    %12 = sbr.rel (0) target = $region9
  $region8: #{open_unmix_forward.13} parent=0 // pred_region
    _
  $region9: #{open_unmix_forward.13} parent=0 // pred_fallthru
    _
  // Predicated region
  $region10: #{open_unmix_forward.13} parent=0 // pred_check
    _
  $region11: #{open_unmix_forward.13} parent=0 // pred_check_branch
    %14 = sbr.rel (0) target = $region13
  $region12: #{open_unmix_forward.13} parent=0 // pred_region
    _
  $region13: #{open_unmix_forward.13} parent=0 // pred_fallthru
    _
  // Predicated region
  $region14: #{open_unmix_forward.13} parent=0 // pred_check
    _
  $region15: #{open_unmix_forward.13} parent=0 // pred_check_branch
    %16 = sbr.rel (0) target = $region17
  $region16: #{open_unmix_forward.13} parent=0 // pred_region
    _
  $region17: #{open_unmix_forward.13} parent=0 // pred_fallthru
    _
  %p17 = scmp.eq.s32.totalorder 0, 0
  // Predicated region
  $region18: #{open_unmix_forward.13} parent=0 // pred_check
    %p18 = pneg %p17
  $region19: #{open_unmix_forward.13} parent=0 // pred_check_branch
    %20 = sbr.rel (%p18) target = $region21
  $region20: #{open_unmix_forward.13} parent=0 // pred_region
    %21 = vst [vmem:[#allocation2] sm:$0xff] 0.0
    %22 = vst [vmem:[#allocation2 + $0x8] sm:$0xff] 0.0
    %23 = vst [vmem:[#allocation2 + $0x10] sm:$0xff] 0.0
    %24 = vst [vmem:[#allocation2 + $0x18] sm:$0xff] 0.0
    %25 = vst [vmem:[#allocation2 + $0x20] sm:$0xff] 0.0
    %26 = vst [vmem:[#allocation2 + $0x28] sm:$0xff] 0.0
    %27 = vst [vmem:[#allocation2 + $0x30] sm:$0xff] 0.0
    %28 = vst [vmem:[#allocation2 + $0x38] sm:$0xff] 0.0
    %29 = vst [vmem:[#allocation2 + $0x40] sm:$0xff] 0.0
    %30 = vst [vmem:[#allocation2 + $0x48] sm:$0xff] 0.0
    %31 = vst [vmem:[#allocation2 + $0x50] sm:$0xff] 0.0
    %32 = vst [vmem:[#allocation2 + $0x58] sm:$0xff] 0.0
    %33 = vst [vmem:[#allocation2 + $0x60] sm:$0xff] 0.0
    %34 = vst [vmem:[#allocation2 + $0x68] sm:$0xff] 0.0
    %35 = vst [vmem:[#allocation2 + $0x70] sm:$0xff] 0.0
    %36 = vst [vmem:[#allocation2 + $0x78] sm:$0xff] 0.0
    %37 = vst [vmem:[#allocation2 + $0x80] sm:$0xff] 0.0
    %38 = vst [vmem:[#allocation2 + $0x88] sm:$0xff] 0.0
    %39 = vst [vmem:[#allocation2 + $0x90] sm:$0xff] 0.0
    %40 = vst [vmem:[#allocation2 + $0x98] sm:$0xff] 0.0
    %41 = vst [vmem:[#allocation2 + $0xa0] sm:$0xff] 0.0
    %42 = vst [vmem:[#allocation2 + $0xa8] sm:$0xff] 0.0
  $region21: #{open_unmix_forward.13} parent=0 // pred_fallthru
    _
  %v43 = vld [vmem:[#allocation2] sm:$0xff]
  %v44 = vld [vmem:[#allocation2 + $0x8] sm:$0xff]
  %v45 = vld [vmem:[#allocation2 + $0x10] sm:$0xff]
  %v46 = vld [vmem:[#allocation2 + $0x18] sm:$0xff]
  %v47 = vld [vmem:[#allocation2 + $0x20] sm:$0xff]
  %v48 = vld [vmem:[#allocation2 + $0x28] sm:$0xff]
  %v49 = vld [vmem:[#allocation2 + $0x30] sm:$0xff]
  %v50 = vld [vmem:[#allocation2 + $0x38] sm:$0xff]
  %v51 = vld [vmem:[#allocation2 + $0x40] sm:$0xff]
  %v52 = vld [vmem:[#allocation2 + $0x48] sm:$0xff]
  %v53 = vld [vmem:[#allocation2 + $0x50] sm:$0xff]
  %v54 = vld [vmem:[#allocation2 + $0x58] sm:$0xff]
  %v55 = vld [vmem:[#allocation2 + $0x60] sm:$0xff]
  %v56 = vld [vmem:[#allocation2 + $0x68] sm:$0xff]
  %v57 = vld [vmem:[#allocation2 + $0x70] sm:$0xff]
  %v58 = vld [vmem:[#allocation2 + $0x78] sm:$0xff]
  %v59 = vld [vmem:[#allocation2 + $0x80] sm:$0xff]
  %v60 = vld [vmem:[#allocation2 + $0x88] sm:$0xff]
  %v61 = vld [vmem:[#allocation2 + $0x90] sm:$0xff]
  %v62 = vld [vmem:[#allocation2 + $0x98] sm:$0xff]
  %v63 = vld [vmem:[#allocation2 + $0xa0] sm:$0xff]
  %v64 = vld [vmem:[#allocation2 + $0xa8] sm:$0xff]
  %v65 = vld [vmem:[%s0] sm:$0xff]
  %v66 = vld [vmem:[%s0 + $0x8] sm:$0xff]
  %v67 = vld [vmem:[%s0 + $0x10] sm:$0xff]
  %v68 = vld [vmem:[%s0 + $0x18] sm:$0xff]
  %v69 = vld [vmem:[%s0 + $0x20] sm:$0xff]
  %v70 = vld [vmem:[%s0 + $0x28] sm:$0xff]
  %v71 = vld [vmem:[%s0 + $0x30] sm:$0xff]
  %v72 = vld [vmem:[%s0 + $0x38] sm:$0xff]
  %v73 = vld [vmem:[%s0 + $0x40] sm:$0xff]
  %v74 = vld [vmem:[%s0 + $0x48] sm:$0xff]
  %v75 = vld [vmem:[%s0 + $0x50] sm:$0xff]
  %v76 = vld [vmem:[%s0 + $0x58] sm:$0xff]
  %v77 = vld [vmem:[%s0 + $0x60] sm:$0xff]
  %v78 = vld [vmem:[%s0 + $0x68] sm:$0xff]
  %v79 = vld [vmem:[%s0 + $0x70] sm:$0xff]
  %v80 = vld [vmem:[%s0 + $0x78] sm:$0xff]
  %v81 = vld [vmem:[%s0 + $0x80] sm:$0xff]
  %v82 = vld [vmem:[%s0 + $0x88] sm:$0xff]
  %v83 = vld [vmem:[%s0 + $0x90] sm:$0xff]
  %v84 = vld [vmem:[%s0 + $0x98] sm:$0xff]
  %v85 = vld [vmem:[%s0 + $0xa0] sm:$0xff]
  %v86 = vld [vmem:[%s0 + $0xa8] sm:$0xff]
  %v87 = vld [vmem:[%s1] sm:$0xf]
  %v88 = vld [vmem:[%s1 + $0x4] sm:$0xf]
  %v89 = vld [vmem:[%s1 + $0x8] sm:$0xf]
  %v90 = vld [vmem:[%s1 + $0xc] sm:$0xf]
  %v91 = vld [vmem:[%s1 + $0x10] sm:$0xf]
  %v92 = vld [vmem:[%s1 + $0x14] sm:$0xf]
  %v93 = vld [vmem:[%s1 + $0x18] sm:$0xf]
  %v94 = vld [vmem:[%s1 + $0x1c] sm:$0xf]
  %v95 = vld [vmem:[%s1 + $0x20] sm:$0xf]
  %v96 = vld [vmem:[%s1 + $0x24] sm:$0xf]
  %v97 = vld [vmem:[%s1 + $0x28] sm:$0xf]
  %v98 = vld [vmem:[%s1 + $0x2c] sm:$0xf]
  %v99 = vld [vmem:[%s1 + $0x30] sm:$0xf]
  %v100 = vld [vmem:[%s1 + $0x34] sm:$0xf]
  %v101 = vld [vmem:[%s1 + $0x38] sm:$0xf]
  %v102 = vld [vmem:[%s1 + $0x3c] sm:$0xf]
  %v103 = vld [vmem:[%s1 + $0x40] sm:$0xf]
  %v104 = vld [vmem:[%s1 + $0x44] sm:$0xf]
  %v105 = vld [vmem:[%s1 + $0x48] sm:$0xf]
  %v106 = vld [vmem:[%s1 + $0x4c] sm:$0xf]
  %v107 = vld [vmem:[%s1 + $0x50] sm:$0xf]
  %v108 = vld [vmem:[%s1 + $0x54] sm:$0xf]
  %v109 = vld [vmem:[%s1 + $0x58] sm:$0xf]
  %v110 = vld [vmem:[%s1 + $0x5c] sm:$0xf]
  %v111 = vld [vmem:[%s1 + $0x60] sm:$0xf]
  %v112 = vld [vmem:[%s1 + $0x64] sm:$0xf]
  %v113 = vld [vmem:[%s1 + $0x68] sm:$0xf]
  %v114 = vld [vmem:[%s1 + $0x6c] sm:$0xf]
  %v115 = vld [vmem:[%s1 + $0x70] sm:$0xf]
  %v116 = vld [vmem:[%s1 + $0x74] sm:$0xf]
  %v117 = vld [vmem:[%s1 + $0x78] sm:$0xf]
  %v118 = vld [vmem:[%s1 + $0x7c] sm:$0xf]
  %v141 = vunpack.c.l.b16 %v65
  %v142 = vunpack.c.h.b16 %v65
  %v143 = vunpack.c.l.b16 %v66
  %v144 = vunpack.c.h.b16 %v66
  %v145 = vunpack.c.l.b16 %v67
  %v146 = vunpack.c.h.b16 %v67
  %v147 = vunpack.c.l.b16 %v68
  %v148 = vunpack.c.h.b16 %v68
  %v149 = vunpack.c.l.b16 %v69
  %v150 = vunpack.c.h.b16 %v69
  %v151 = vunpack.c.l.b16 %v70
  %v152 = vunpack.c.h.b16 %v70
  %v153 = vunpack.c.l.b16 %v71
  %v154 = vunpack.c.h.b16 %v71
  %v155 = vunpack.c.l.b16 %v72
  %v156 = vunpack.c.h.b16 %v72
  %v157 = vunpack.c.l.b16 %v73
  %v158 = vunpack.c.h.b16 %v73
  %v159 = vunpack.c.l.b16 %v74
  %v160 = vunpack.c.h.b16 %v74
  %v161 = vunpack.c.l.b16 %v75
  %v162 = vunpack.c.h.b16 %v75
  %v163 = vunpack.c.l.b16 %v76
  %v164 = vunpack.c.h.b16 %v76
  %v165 = vunpack.c.l.b16 %v77
  %v166 = vunpack.c.h.b16 %v77
  %v167 = vunpack.c.l.b16 %v78
  %v168 = vunpack.c.h.b16 %v78
  %v169 = vunpack.c.l.b16 %v79
  %v170 = vunpack.c.h.b16 %v79
  %v171 = vunpack.c.l.b16 %v80
  %v172 = vunpack.c.h.b16 %v80
  %v173 = vunpack.c.l.b16 %v81
  %v174 = vunpack.c.h.b16 %v81
  %v175 = vunpack.c.l.b16 %v82
  %v176 = vunpack.c.h.b16 %v82
  %v177 = vunpack.c.l.b16 %v83
  %v178 = vunpack.c.h.b16 %v83
  %v179 = vunpack.c.l.b16 %v84
  %v180 = vunpack.c.h.b16 %v84
  %v181 = vunpack.c.l.b16 %v85
  %v182 = vunpack.c.h.b16 %v85
  %v183 = vunpack.c.l.b16 %v86
  %v184 = vunpack.c.h.b16 %v86
  %v185 = vpack.c.b16 %v143, %v141
  %v186 = vpack.c.b16 %v144, %v142
  %v187 = vpack.c.b16 %v147, %v145
  %v188 = vpack.c.b16 %v148, %v146
  %v189 = vpack.c.b16 %v151, %v149
  %v190 = vpack.c.b16 %v152, %v150
  %v191 = vpack.c.b16 %v155, %v153
  %v192 = vpack.c.b16 %v156, %v154
  %v193 = vpack.c.b16 %v159, %v157
  %v194 = vpack.c.b16 %v160, %v158
  %v195 = vpack.c.b16 %v163, %v161
  %v196 = vpack.c.b16 %v164, %v162
  %v197 = vpack.c.b16 %v167, %v165
  %v198 = vpack.c.b16 %v168, %v166
  %v199 = vpack.c.b16 %v171, %v169
  %v200 = vpack.c.b16 %v172, %v170
  %v201 = vpack.c.b16 %v175, %v173
  %v202 = vpack.c.b16 %v176, %v174
  %v203 = vpack.c.b16 %v179, %v177
  %v204 = vpack.c.b16 %v180, %v178
  %v205 = vpack.c.b16 %v183, %v181
  %v206 = vpack.c.b16 %v184, %v182
  %v261 = vunpack.c.l.b16 %v87
  %v262 = vunpack.c.l.b16 %v88
  %v263 = vunpack.c.l.b16 %v89
  %v264 = vunpack.c.l.b16 %v90
  %v265 = vunpack.c.l.b16 %v91
  %v266 = vunpack.c.l.b16 %v92
  %v267 = vunpack.c.l.b16 %v93
  %v268 = vunpack.c.l.b16 %v94
  %v269 = vunpack.c.l.b16 %v95
  %v270 = vunpack.c.l.b16 %v96
  %v271 = vunpack.c.l.b16 %v97
  %v272 = vunpack.c.l.b16 %v98
  %v273 = vunpack.c.l.b16 %v99
  %v274 = vunpack.c.l.b16 %v100
  %v275 = vunpack.c.l.b16 %v101
  %v276 = vunpack.c.l.b16 %v102
  %v277 = vunpack.c.l.b16 %v103
  %v278 = vunpack.c.l.b16 %v104
  %v279 = vunpack.c.l.b16 %v105
  %v280 = vunpack.c.l.b16 %v106
  %v281 = vunpack.c.l.b16 %v107
  %v282 = vunpack.c.l.b16 %v108
  %v283 = vunpack.c.l.b16 %v109
  %v284 = vunpack.c.l.b16 %v110
  %v285 = vunpack.c.l.b16 %v111
  %v286 = vunpack.c.l.b16 %v112
  %v287 = vunpack.c.l.b16 %v113
  %v288 = vunpack.c.l.b16 %v114
  %v289 = vunpack.c.l.b16 %v115
  %v290 = vunpack.c.l.b16 %v116
  %v291 = vunpack.c.l.b16 %v117
  %v292 = vunpack.c.l.b16 %v118
  %v293 = vpack.c.b16 %v262, %v261
  %v294 = vpack.c.b16 %v264, %v263
  %v295 = vpack.c.b16 %v266, %v265
  %v296 = vpack.c.b16 %v268, %v267
  %v297 = vpack.c.b16 %v270, %v269
  %v298 = vpack.c.b16 %v272, %v271
  %v299 = vpack.c.b16 %v274, %v273
  %v300 = vpack.c.b16 %v276, %v275
  %v301 = vpack.c.b16 %v278, %v277
  %v302 = vpack.c.b16 %v280, %v279
  %v303 = vpack.c.b16 %v282, %v281
  %v304 = vpack.c.b16 %v284, %v283
  %v305 = vpack.c.b16 %v286, %v285
  %v306 = vpack.c.b16 %v288, %v287
  %v307 = vpack.c.b16 %v290, %v289
  %v308 = vpack.c.b16 %v292, %v291
  %325 = vmatpush.bf16.msra.mxu0 %v300
  %326 = vmatpush.bf16.msra.mxu0 %v299
  %327 = vmatpush.bf16.msra.mxu0 %v298
  %328 = vmatpush.bf16.msra.mxu0 %v297
  %329 = vmatpush.bf16.msra.mxu0 %v296
  %330 = vmatpush.bf16.msra.mxu0 %v295
  %331 = vmatpush.bf16.msra.mxu0 %v294
  %332 = vmatpush.bf16.msra.mxu0 %v293
  %333 = vmatmul.bf16.gmra.mxu0 %v185
  %v334 = vpop.f32.mrf.mxu0
  %v335 = vadd.f32 0.0, %v334
  %v336 = vpop.f32.mrf.mxu0
  %v337 = vadd.f32 0.0, %v336
  %338 = vmatmul.bf16.gmra.mxu0 %v187
  %v339 = vpop.f32.mrf.mxu0
  %v340 = vadd.f32 0.0, %v339
  %v341 = vpop.f32.mrf.mxu0
  %v342 = vadd.f32 0.0, %v341
  %343 = vmatmul.bf16.gmra.mxu0 %v189
  %v344 = vpop.f32.mrf.mxu0
  %v345 = vadd.f32 0.0, %v344
  %v346 = vpop.f32.mrf.mxu0
  %v347 = vadd.f32 0.0, %v346
  %348 = vmatmul.bf16.gmra.mxu0 %v191
  %v349 = vpop.f32.mrf.mxu0
  %v350 = vadd.f32 0.0, %v349
  %v351 = vpop.f32.mrf.mxu0
  %v352 = vadd.f32 0.0, %v351
  %353 = vmatmul.bf16.gmra.mxu0 %v193
  %v354 = vpop.f32.mrf.mxu0
  %v355 = vadd.f32 0.0, %v354
  %v356 = vpop.f32.mrf.mxu0
  %v357 = vadd.f32 0.0, %v356
  %358 = vmatmul.bf16.gmra.mxu0 %v195
  %v359 = vpop.f32.mrf.mxu0
  %v360 = vadd.f32 0.0, %v359
  %v361 = vpop.f32.mrf.mxu0
  %v362 = vadd.f32 0.0, %v361
  %363 = vmatmul.bf16.gmra.mxu0 %v197
  %v364 = vpop.f32.mrf.mxu0
  %v365 = vadd.f32 0.0, %v364
  %v366 = vpop.f32.mrf.mxu0
  %v367 = vadd.f32 0.0, %v366
  %368 = vmatmul.bf16.gmra.mxu0 %v199
  %v369 = vpop.f32.mrf.mxu0
  %v370 = vadd.f32 0.0, %v369
  %v371 = vpop.f32.mrf.mxu0
  %v372 = vadd.f32 0.0, %v371
  %373 = vmatmul.bf16.gmra.mxu0 %v201
  %v374 = vpop.f32.mrf.mxu0
  %v375 = vadd.f32 0.0, %v374
  %v376 = vpop.f32.mrf.mxu0
  %v377 = vadd.f32 0.0, %v376
  %378 = vmatmul.bf16.gmra.mxu0 %v203
  %v379 = vpop.f32.mrf.mxu0
  %v380 = vadd.f32 0.0, %v379
  %v381 = vpop.f32.mrf.mxu0
  %v382 = vadd.f32 0.0, %v381
  %383 = vmatmul.bf16.gmra.mxu0 %v205
  %v384 = vpop.f32.mrf.mxu0
  %v385 = vadd.f32 0.0, %v384
  %v386 = vpop.f32.mrf.mxu0
  %v387 = vadd.f32 0.0, %v386
  %388 = vdwg.mxu0
  %389 = vmatpush.bf16.msra.mxu0 %v308
  %390 = vmatpush.bf16.msra.mxu0 %v307
  %391 = vmatpush.bf16.msra.mxu0 %v306
  %392 = vmatpush.bf16.msra.mxu0 %v305
  %393 = vmatpush.bf16.msra.mxu0 %v304
  %394 = vmatpush.bf16.msra.mxu0 %v303
  %395 = vmatpush.bf16.msra.mxu0 %v302
  %396 = vmatpush.bf16.msra.mxu0 %v301
  %397 = vmatmul.bf16.gmra.mxu0 %v186
  %v398 = vpop.f32.mrf.mxu0
  %v399 = vadd.f32 %v335, %v398
  %v400 = vpop.f32.mrf.mxu0
  %v401 = vadd.f32 %v337, %v400
  %402 = vmatmul.bf16.gmra.mxu0 %v188
  %v403 = vpop.f32.mrf.mxu0
  %v404 = vadd.f32 %v340, %v403
  %v405 = vpop.f32.mrf.mxu0
  %v406 = vadd.f32 %v342, %v405
  %407 = vmatmul.bf16.gmra.mxu0 %v190
  %v408 = vpop.f32.mrf.mxu0
  %v409 = vadd.f32 %v345, %v408
  %v410 = vpop.f32.mrf.mxu0
  %v411 = vadd.f32 %v347, %v410
  %412 = vmatmul.bf16.gmra.mxu0 %v192
  %v413 = vpop.f32.mrf.mxu0
  %v414 = vadd.f32 %v350, %v413
  %v415 = vpop.f32.mrf.mxu0
  %v416 = vadd.f32 %v352, %v415
  %417 = vmatmul.bf16.gmra.mxu0 %v194
  %v418 = vpop.f32.mrf.mxu0
  %v419 = vadd.f32 %v355, %v418
  %v420 = vpop.f32.mrf.mxu0
  %v421 = vadd.f32 %v357, %v420
  %422 = vmatmul.bf16.gmra.mxu0 %v196
  %v423 = vpop.f32.mrf.mxu0
  %v424 = vadd.f32 %v360, %v423
  %v425 = vpop.f32.mrf.mxu0
  %v426 = vadd.f32 %v362, %v425
  %427 = vmatmul.bf16.gmra.mxu0 %v198
  %v428 = vpop.f32.mrf.mxu0
  %v429 = vadd.f32 %v365, %v428
  %v430 = vpop.f32.mrf.mxu0
  %v431 = vadd.f32 %v367, %v430
  %432 = vmatmul.bf16.gmra.mxu0 %v200
  %v433 = vpop.f32.mrf.mxu0
  %v434 = vadd.f32 %v370, %v433
  %v435 = vpop.f32.mrf.mxu0
  %v436 = vadd.f32 %v372, %v435
  %437 = vmatmul.bf16.gmra.mxu0 %v202
  %v438 = vpop.f32.mrf.mxu0
  %v439 = vadd.f32 %v375, %v438
  %v440 = vpop.f32.mrf.mxu0
  %v441 = vadd.f32 %v377, %v440
  %442 = vmatmul.bf16.gmra.mxu0 %v204
  %v443 = vpop.f32.mrf.mxu0
  %v444 = vadd.f32 %v380, %v443
  %v445 = vpop.f32.mrf.mxu0
  %v446 = vadd.f32 %v382, %v445
  %447 = vmatmul.bf16.gmra.mxu0 %v206
  %v448 = vpop.f32.mrf.mxu0
  %v449 = vadd.f32 %v385, %v448
  %v450 = vpop.f32.mrf.mxu0
  %v451 = vadd.f32 %v387, %v450
  %452 = vdwg.mxu0
  %v453 = vadd.f32 %v43, %v399
  %v454 = vadd.f32 %v44, %v401
  %v455 = vadd.f32 %v45, %v404
  %v456 = vadd.f32 %v46, %v406
  %v457 = vadd.f32 %v47, %v409
  %v458 = vadd.f32 %v48, %v411
  %v459 = vadd.f32 %v49, %v414
  %v460 = vadd.f32 %v50, %v416
  %v461 = vadd.f32 %v51, %v419
  %v462 = vadd.f32 %v52, %v421
  %v463 = vadd.f32 %v53, %v424
  %v464 = vadd.f32 %v54, %v426
  %v465 = vadd.f32 %v55, %v429
  %v466 = vadd.f32 %v56, %v431
  %v467 = vadd.f32 %v57, %v434
  %v468 = vadd.f32 %v58, %v436
  %v469 = vadd.f32 %v59, %v439
  %v470 = vadd.f32 %v60, %v441
  %v471 = vadd.f32 %v61, %v444
  %v472 = vadd.f32 %v62, %v446
  %v473 = vadd.f32 %v63, %v449
  %v474 = vadd.f32 %v64, %v451
  %475 = vst [vmem:[#allocation2] sm:$0xff] %v453
  %476 = vst [vmem:[#allocation2 + $0x8] sm:$0xff] %v454
  %477 = vst [vmem:[#allocation2 + $0x10] sm:$0xff] %v455
  %478 = vst [vmem:[#allocation2 + $0x18] sm:$0xff] %v456
  %479 = vst [vmem:[#allocation2 + $0x20] sm:$0xff] %v457
  %480 = vst [vmem:[#allocation2 + $0x28] sm:$0xff] %v458
  %481 = vst [vmem:[#allocation2 + $0x30] sm:$0xff] %v459
  %482 = vst [vmem:[#allocation2 + $0x38] sm:$0xff] %v460
  %483 = vst [vmem:[#allocation2 + $0x40] sm:$0xff] %v461
  %484 = vst [vmem:[#allocation2 + $0x48] sm:$0xff] %v462
  %485 = vst [vmem:[#allocation2 + $0x50] sm:$0xff] %v463
  %486 = vst [vmem:[#allocation2 + $0x58] sm:$0xff] %v464
  %487 = vst [vmem:[#allocation2 + $0x60] sm:$0xff] %v465
  %488 = vst [vmem:[#allocation2 + $0x68] sm:$0xff] %v466
  %489 = vst [vmem:[#allocation2 + $0x70] sm:$0xff] %v467
  %490 = vst [vmem:[#allocation2 + $0x78] sm:$0xff] %v468
  %491 = vst [vmem:[#allocation2 + $0x80] sm:$0xff] %v469
  %492 = vst [vmem:[#allocation2 + $0x88] sm:$0xff] %v470
  %493 = vst [vmem:[#allocation2 + $0x90] sm:$0xff] %v471
  %494 = vst [vmem:[#allocation2 + $0x98] sm:$0xff] %v472
  %495 = vst [vmem:[#allocation2 + $0xa0] sm:$0xff] %v473
  %496 = vst [vmem:[#allocation2 + $0xa8] sm:$0xff] %v474
  // Predicated region
  $region22: #{open_unmix_forward.13} parent=0 // pred_check
    %p497 = pneg %p17
  $region23: #{open_unmix_forward.13} parent=0 // pred_check_branch
    %499 = sbr.rel (%p497) target = $region25
  $region24: #{open_unmix_forward.13} parent=0 // pred_region
    %v500 = vld [vmem:[#allocation2] sm:$0xff]
    %v501 = vld [vmem:[#allocation2 + $0x8] sm:$0xff]
    %v502 = vld [vmem:[#allocation2 + $0x10] sm:$0xff]
    %v503 = vld [vmem:[#allocation2 + $0x18] sm:$0xff]
    %v504 = vld [vmem:[#allocation2 + $0x20] sm:$0xff]
    %v505 = vld [vmem:[#allocation2 + $0x28] sm:$0xff]
    %v506 = vld [vmem:[#allocation2 + $0x30] sm:$0xff]
    %v507 = vld [vmem:[#allocation2 + $0x38] sm:$0xff]
    %v508 = vld [vmem:[#allocation2 + $0x40] sm:$0xff]
    %v509 = vld [vmem:[#allocation2 + $0x48] sm:$0xff]
    %v510 = vld [vmem:[#allocation2 + $0x50] sm:$0xff]
    %v511 = vld [vmem:[#allocation2 + $0x58] sm:$0xff]
    %v512 = vld [vmem:[#allocation2 + $0x60] sm:$0xff]
    %v513 = vld [vmem:[#allocation2 + $0x68] sm:$0xff]
    %v514 = vld [vmem:[#allocation2 + $0x70] sm:$0xff]
    %v515 = vld [vmem:[#allocation2 + $0x78] sm:$0xff]
    %v516 = vld [vmem:[#allocation2 + $0x80] sm:$0xff]
    %v517 = vld [vmem:[#allocation2 + $0x88] sm:$0xff]
    %v518 = vld [vmem:[#allocation2 + $0x90] sm:$0xff]
    %v519 = vld [vmem:[#allocation2 + $0x98] sm:$0xff]
    %v520 = vld [vmem:[#allocation2 + $0xa0] sm:$0xff]
    %v521 = vld [vmem:[#allocation2 + $0xa8] sm:$0xff]
    %v522 = vld [vmem:[%s2] sm:$0x1]
    %v524 = vperm.slane %v522, 0
    %v526 = vmul.f32 %v500, %v524
    %v527 = vmul.f32 %v501, %v524
    %v528 = vmul.f32 %v502, %v524
    %v529 = vmul.f32 %v503, %v524
    %v530 = vmul.f32 %v504, %v524
    %v531 = vmul.f32 %v505, %v524
    %v532 = vmul.f32 %v506, %v524
    %v533 = vmul.f32 %v507, %v524
    %v534 = vmul.f32 %v508, %v524
    %v535 = vmul.f32 %v509, %v524
    %v536 = vmul.f32 %v510, %v524
    %v537 = vmul.f32 %v511, %v524
    %v538 = vmul.f32 %v512, %v524
    %v539 = vmul.f32 %v513, %v524
    %v540 = vmul.f32 %v514, %v524
    %v541 = vmul.f32 %v515, %v524
    %v542 = vmul.f32 %v516, %v524
    %v543 = vmul.f32 %v517, %v524
    %v544 = vmul.f32 %v518, %v524
    %v545 = vmul.f32 %v519, %v524
    %v546 = vmul.f32 %v520, %v524
    %v547 = vmul.f32 %v521, %v524
    %v548 = vld [vmem:[%s3] sm:$0x1]
    %v550 = vperm.slane %v548, 0
    %v552 = vadd.f32 %v526, %v550
    %v553 = vadd.f32 %v527, %v550
    %v554 = vadd.f32 %v528, %v550
    %v555 = vadd.f32 %v529, %v550
    %v556 = vadd.f32 %v530, %v550
    %v557 = vadd.f32 %v531, %v550
    %v558 = vadd.f32 %v532, %v550
    %v559 = vadd.f32 %v533, %v550
    %v560 = vadd.f32 %v534, %v550
    %v561 = vadd.f32 %v535, %v550
    %v562 = vadd.f32 %v536, %v550
    %v563 = vadd.f32 %v537, %v550
    %v564 = vadd.f32 %v538, %v550
    %v565 = vadd.f32 %v539, %v550
    %v566 = vadd.f32 %v540, %v550
    %v567 = vadd.f32 %v541, %v550
    %v568 = vadd.f32 %v542, %v550
    %v569 = vadd.f32 %v543, %v550
    %v570 = vadd.f32 %v544, %v550
    %v571 = vadd.f32 %v545, %v550
    %v572 = vadd.f32 %v546, %v550
    %v573 = vadd.f32 %v547, %v550
    %v574 = vtanh.pop %v552
    %v575 = vtanh.pop %v553
    %v576 = vtanh.pop %v554
    %v577 = vtanh.pop %v555
    %v578 = vtanh.pop %v556
    %v579 = vtanh.pop %v557
    %v580 = vtanh.pop %v558
    %v581 = vtanh.pop %v559
    %v582 = vtanh.pop %v560
    %v583 = vtanh.pop %v561
    %v584 = vtanh.pop %v562
    %v585 = vtanh.pop %v563
    %v586 = vtanh.pop %v564
    %v587 = vtanh.pop %v565
    %v588 = vtanh.pop %v566
    %v589 = vtanh.pop %v567
    %v590 = vtanh.pop %v568
    %v591 = vtanh.pop %v569
    %v592 = vtanh.pop %v570
    %v593 = vtanh.pop %v571
    %v594 = vtanh.pop %v572
    %v595 = vtanh.pop %v573
    %596 = vst [vmem:[%s4] sm:$0xff] %v574
    %597 = vst [vmem:[%s4 + $0x8] sm:$0xff] %v575
    %598 = vst [vmem:[%s4 + $0x10] sm:$0xff] %v576
    %599 = vst [vmem:[%s4 + $0x18] sm:$0xff] %v577
    %600 = vst [vmem:[%s4 + $0x20] sm:$0xff] %v578
    %601 = vst [vmem:[%s4 + $0x28] sm:$0xff] %v579
    %602 = vst [vmem:[%s4 + $0x30] sm:$0xff] %v580
    %603 = vst [vmem:[%s4 + $0x38] sm:$0xff] %v581
    %604 = vst [vmem:[%s4 + $0x40] sm:$0xff] %v582
    %605 = vst [vmem:[%s4 + $0x48] sm:$0xff] %v583
    %606 = vst [vmem:[%s4 + $0x50] sm:$0xff] %v584
    %607 = vst [vmem:[%s4 + $0x58] sm:$0xff] %v585
    %608 = vst [vmem:[%s4 + $0x60] sm:$0xff] %v586
    %609 = vst [vmem:[%s4 + $0x68] sm:$0xff] %v587
    %610 = vst [vmem:[%s4 + $0x70] sm:$0xff] %v588
    %611 = vst [vmem:[%s4 + $0x78] sm:$0xff] %v589
    %612 = vst [vmem:[%s4 + $0x80] sm:$0xff] %v590
    %613 = vst [vmem:[%s4 + $0x88] sm:$0xff] %v591
    %614 = vst [vmem:[%s4 + $0x90] sm:$0xff] %v592
    %615 = vst [vmem:[%s4 + $0x98] sm:$0xff] %v593
    %616 = vst [vmem:[%s4 + $0xa0] sm:$0xff] %v594
    %617 = vst [vmem:[%s4 + $0xa8] sm:$0xff] %v595
  $region25: #{open_unmix_forward.13} parent=0 // pred_fallthru
    _
  // Predicated region
  $region26: #{open_unmix_forward.13} parent=0 // pred_check
    _
  $region27: #{open_unmix_forward.13} parent=0 // pred_check_branch
    %619 = sbr.rel (0) target = $region29
  $region28: #{open_unmix_forward.13} parent=0 // pred_region
    _
  $region29: #{open_unmix_forward.13} parent=0 // pred_fallthru
    _
  // Predicated region
  $region30: #{open_unmix_forward.13} parent=0 // pred_check
    _
  $region31: #{open_unmix_forward.13} parent=0 // pred_check_branch
    %621 = sbr.rel (0) target = $region33
  $region32: #{open_unmix_forward.13} parent=0 // pred_region
    _
  $region33: #{open_unmix_forward.13} parent=0 // pred_fallthru
    _

// kernel: open_unmix_forward.14
$region0: #{open_unmix_forward.14}
  #allocation0 [shape = 'u32[]', space=smem, size = 0x4, offset = 0x4, fixed_abs, tag = 'smem constant byte address 0x4 - core index']
  #allocation1 [shape = 'u32[72,128]{1,0:T(1,128)}', space=vmem, size = 0x9000, scoped, tag = 'internal scratch']
  #allocation2 [shape = 'f32[192,128]{1,0:T(8,128)}', space=vmem, size = 0x18000, scoped, tag = 'scratch operand']
  %s0 = inlined_call_operand.vmem [shape: bf16[192,128], index: 0, kind: input, shape index: {}]
  %s1 = inlined_call_operand.vmem [shape: bf16[128,128], index: 1, kind: input, shape index: {}]
  %s2 = inlined_call_operand.vmem [shape: f32[1,128], index: 2, kind: input, shape index: {}]
  %s3 = inlined_call_operand.vmem [shape: f32[192,128], index: 3, kind: output, shape index: {}]
  %s4 = sld [smem:[#allocation0]]
  $region30: #{open_unmix_forward.14} parent=0
    _
  %s6 = ssub.s32 1, %s4
  %s7 = scalar_select 0, %s6, %s4
  // Predicated region
  $region2: #{open_unmix_forward.14} parent=0 // pred_check
    _
  $region3: #{open_unmix_forward.14} parent=0 // pred_check_branch
    %9 = sbr.rel (0) target = $region5
  $region4: #{open_unmix_forward.14} parent=0 // pred_region
    _
  $region5: #{open_unmix_forward.14} parent=0 // pred_fallthru
    _
  // Predicated region
  $region6: #{open_unmix_forward.14} parent=0 // pred_check
    _
  $region7: #{open_unmix_forward.14} parent=0 // pred_check_branch
    %11 = sbr.rel (0) target = $region9
  $region8: #{open_unmix_forward.14} parent=0 // pred_region
    _
  $region9: #{open_unmix_forward.14} parent=0 // pred_fallthru
    _
  // Predicated region
  $region10: #{open_unmix_forward.14} parent=0 // pred_check
    _
  $region11: #{open_unmix_forward.14} parent=0 // pred_check_branch
    %13 = sbr.rel (0) target = $region13
  $region12: #{open_unmix_forward.14} parent=0 // pred_region
    _
  $region13: #{open_unmix_forward.14} parent=0 // pred_fallthru
    _
  %p14 = scmp.eq.s32.totalorder 0, 0
  // Predicated region
  $region14: #{open_unmix_forward.14} parent=0 // pred_check
    %p15 = pneg %p14
  $region15: #{open_unmix_forward.14} parent=0 // pred_check_branch
    %17 = sbr.rel (%p15) target = $region17
  $region16: #{open_unmix_forward.14} parent=0 // pred_region
    %18 = vst [vmem:[#allocation2] sm:$0xff] 0.0
    %19 = vst [vmem:[#allocation2 + $0x8] sm:$0xff] 0.0
    %20 = vst [vmem:[#allocation2 + $0x10] sm:$0xff] 0.0
    %21 = vst [vmem:[#allocation2 + $0x18] sm:$0xff] 0.0
    %22 = vst [vmem:[#allocation2 + $0x20] sm:$0xff] 0.0
    %23 = vst [vmem:[#allocation2 + $0x28] sm:$0xff] 0.0
    %24 = vst [vmem:[#allocation2 + $0x30] sm:$0xff] 0.0
    %25 = vst [vmem:[#allocation2 + $0x38] sm:$0xff] 0.0
    %26 = vst [vmem:[#allocation2 + $0x40] sm:$0xff] 0.0
    %27 = vst [vmem:[#allocation2 + $0x48] sm:$0xff] 0.0
    %28 = vst [vmem:[#allocation2 + $0x50] sm:$0xff] 0.0
    %29 = vst [vmem:[#allocation2 + $0x58] sm:$0xff] 0.0
    %30 = vst [vmem:[#allocation2 + $0x60] sm:$0xff] 0.0
    %31 = vst [vmem:[#allocation2 + $0x68] sm:$0xff] 0.0
    %32 = vst [vmem:[#allocation2 + $0x70] sm:$0xff] 0.0
    %33 = vst [vmem:[#allocation2 + $0x78] sm:$0xff] 0.0
    %34 = vst [vmem:[#allocation2 + $0x80] sm:$0xff] 0.0
    %35 = vst [vmem:[#allocation2 + $0x88] sm:$0xff] 0.0
    %36 = vst [vmem:[#allocation2 + $0x90] sm:$0xff] 0.0
    %37 = vst [vmem:[#allocation2 + $0x98] sm:$0xff] 0.0
    %38 = vst [vmem:[#allocation2 + $0xa0] sm:$0xff] 0.0
    %39 = vst [vmem:[#allocation2 + $0xa8] sm:$0xff] 0.0
    %40 = vst [vmem:[#allocation2 + $0xb0] sm:$0xff] 0.0
    %41 = vst [vmem:[#allocation2 + $0xb8] sm:$0xff] 0.0
  $region17: #{open_unmix_forward.14} parent=0 // pred_fallthru
    _
  %v42 = vld [vmem:[#allocation2] sm:$0xff]
  %v43 = vld [vmem:[#allocation2 + $0x8] sm:$0xff]
  %v44 = vld [vmem:[#allocation2 + $0x10] sm:$0xff]
  %v45 = vld [vmem:[#allocation2 + $0x18] sm:$0xff]
  %v46 = vld [vmem:[#allocation2 + $0x20] sm:$0xff]
  %v47 = vld [vmem:[#allocation2 + $0x28] sm:$0xff]
  %v48 = vld [vmem:[#allocation2 + $0x30] sm:$0xff]
  %v49 = vld [vmem:[#allocation2 + $0x38] sm:$0xff]
  %v50 = vld [vmem:[#allocation2 + $0x40] sm:$0xff]
  %v51 = vld [vmem:[#allocation2 + $0x48] sm:$0xff]
  %v52 = vld [vmem:[#allocation2 + $0x50] sm:$0xff]
  %v53 = vld [vmem:[#allocation2 + $0x58] sm:$0xff]
  %v54 = vld [vmem:[#allocation2 + $0x60] sm:$0xff]
  %v55 = vld [vmem:[#allocation2 + $0x68] sm:$0xff]
  %v56 = vld [vmem:[#allocation2 + $0x70] sm:$0xff]
  %v57 = vld [vmem:[#allocation2 + $0x78] sm:$0xff]
  %v58 = vld [vmem:[#allocation2 + $0x80] sm:$0xff]
  %v59 = vld [vmem:[#allocation2 + $0x88] sm:$0xff]
  %v60 = vld [vmem:[#allocation2 + $0x90] sm:$0xff]
  %v61 = vld [vmem:[#allocation2 + $0x98] sm:$0xff]
  %v62 = vld [vmem:[#allocation2 + $0xa0] sm:$0xff]
  %v63 = vld [vmem:[#allocation2 + $0xa8] sm:$0xff]
  %v64 = vld [vmem:[#allocation2 + $0xb0] sm:$0xff]
  %v65 = vld [vmem:[#allocation2 + $0xb8] sm:$0xff]
  %v66 = vld [vmem:[%s0] sm:$0xf]
  %v67 = vld [vmem:[%s0 + $0x4] sm:$0xf]
  %v68 = vld [vmem:[%s0 + $0x8] sm:$0xf]
  %v69 = vld [vmem:[%s0 + $0xc] sm:$0xf]
  %v70 = vld [vmem:[%s0 + $0x10] sm:$0xf]
  %v71 = vld [vmem:[%s0 + $0x14] sm:$0xf]
  %v72 = vld [vmem:[%s0 + $0x18] sm:$0xf]
  %v73 = vld [vmem:[%s0 + $0x1c] sm:$0xf]
  %v74 = vld [vmem:[%s0 + $0x20] sm:$0xf]
  %v75 = vld [vmem:[%s0 + $0x24] sm:$0xf]
  %v76 = vld [vmem:[%s0 + $0x28] sm:$0xf]
  %v77 = vld [vmem:[%s0 + $0x2c] sm:$0xf]
  %v78 = vld [vmem:[%s0 + $0x30] sm:$0xf]
  %v79 = vld [vmem:[%s0 + $0x34] sm:$0xf]
  %v80 = vld [vmem:[%s0 + $0x38] sm:$0xf]
  %v81 = vld [vmem:[%s0 + $0x3c] sm:$0xf]
  %v82 = vld [vmem:[%s0 + $0x40] sm:$0xf]
  %v83 = vld [vmem:[%s0 + $0x44] sm:$0xf]
  %v84 = vld [vmem:[%s0 + $0x48] sm:$0xf]
  %v85 = vld [vmem:[%s0 + $0x4c] sm:$0xf]
  %v86 = vld [vmem:[%s0 + $0x50] sm:$0xf]
  %v87 = vld [vmem:[%s0 + $0x54] sm:$0xf]
  %v88 = vld [vmem:[%s0 + $0x58] sm:$0xf]
  %v89 = vld [vmem:[%s0 + $0x5c] sm:$0xf]
  %v90 = vld [vmem:[%s1] sm:$0xf]
  %v91 = vld [vmem:[%s1 + $0x4] sm:$0xf]
  %v92 = vld [vmem:[%s1 + $0x8] sm:$0xf]
  %v93 = vld [vmem:[%s1 + $0xc] sm:$0xf]
  %v94 = vld [vmem:[%s1 + $0x10] sm:$0xf]
  %v95 = vld [vmem:[%s1 + $0x14] sm:$0xf]
  %v96 = vld [vmem:[%s1 + $0x18] sm:$0xf]
  %v97 = vld [vmem:[%s1 + $0x1c] sm:$0xf]
  %v98 = vld [vmem:[%s1 + $0x20] sm:$0xf]
  %v99 = vld [vmem:[%s1 + $0x24] sm:$0xf]
  %v100 = vld [vmem:[%s1 + $0x28] sm:$0xf]
  %v101 = vld [vmem:[%s1 + $0x2c] sm:$0xf]
  %v102 = vld [vmem:[%s1 + $0x30] sm:$0xf]
  %v103 = vld [vmem:[%s1 + $0x34] sm:$0xf]
  %v104 = vld [vmem:[%s1 + $0x38] sm:$0xf]
  %v105 = vld [vmem:[%s1 + $0x3c] sm:$0xf]
  %v130 = vunpack.c.l.b16 %v66
  %v131 = vunpack.c.l.b16 %v67
  %v132 = vunpack.c.l.b16 %v68
  %v133 = vunpack.c.l.b16 %v69
  %v134 = vunpack.c.l.b16 %v70
  %v135 = vunpack.c.l.b16 %v71
  %v136 = vunpack.c.l.b16 %v72
  %v137 = vunpack.c.l.b16 %v73
  %v138 = vunpack.c.l.b16 %v74
  %v139 = vunpack.c.l.b16 %v75
  %v140 = vunpack.c.l.b16 %v76
  %v141 = vunpack.c.l.b16 %v77
  %v142 = vunpack.c.l.b16 %v78
  %v143 = vunpack.c.l.b16 %v79
  %v144 = vunpack.c.l.b16 %v80
  %v145 = vunpack.c.l.b16 %v81
  %v146 = vunpack.c.l.b16 %v82
  %v147 = vunpack.c.l.b16 %v83
  %v148 = vunpack.c.l.b16 %v84
  %v149 = vunpack.c.l.b16 %v85
  %v150 = vunpack.c.l.b16 %v86
  %v151 = vunpack.c.l.b16 %v87
  %v152 = vunpack.c.l.b16 %v88
  %v153 = vunpack.c.l.b16 %v89
  %v154 = vpack.c.b16 %v131, %v130
  %v155 = vpack.c.b16 %v133, %v132
  %v156 = vpack.c.b16 %v135, %v134
  %v157 = vpack.c.b16 %v137, %v136
  %v158 = vpack.c.b16 %v139, %v138
  %v159 = vpack.c.b16 %v141, %v140
  %v160 = vpack.c.b16 %v143, %v142
  %v161 = vpack.c.b16 %v145, %v144
  %v162 = vpack.c.b16 %v147, %v146
  %v163 = vpack.c.b16 %v149, %v148
  %v164 = vpack.c.b16 %v151, %v150
  %v165 = vpack.c.b16 %v153, %v152
  %v194 = vunpack.c.l.b16 %v90
  %v195 = vunpack.c.l.b16 %v91
  %v196 = vunpack.c.l.b16 %v92
  %v197 = vunpack.c.l.b16 %v93
  %v198 = vunpack.c.l.b16 %v94
  %v199 = vunpack.c.l.b16 %v95
  %v200 = vunpack.c.l.b16 %v96
  %v201 = vunpack.c.l.b16 %v97
  %v202 = vunpack.c.l.b16 %v98
  %v203 = vunpack.c.l.b16 %v99
  %v204 = vunpack.c.l.b16 %v100
  %v205 = vunpack.c.l.b16 %v101
  %v206 = vunpack.c.l.b16 %v102
  %v207 = vunpack.c.l.b16 %v103
  %v208 = vunpack.c.l.b16 %v104
  %v209 = vunpack.c.l.b16 %v105
  %v210 = vpack.c.b16 %v195, %v194
  %v211 = vpack.c.b16 %v197, %v196
  %v212 = vpack.c.b16 %v199, %v198
  %v213 = vpack.c.b16 %v201, %v200
  %v214 = vpack.c.b16 %v203, %v202
  %v215 = vpack.c.b16 %v205, %v204
  %v216 = vpack.c.b16 %v207, %v206
  %v217 = vpack.c.b16 %v209, %v208
  %226 = vmatpush.bf16.msra.mxu0 %v217
  %227 = vmatpush.bf16.msra.mxu0 %v216
  %228 = vmatpush.bf16.msra.mxu0 %v215
  %229 = vmatpush.bf16.msra.mxu0 %v214
  %230 = vmatpush.bf16.msra.mxu0 %v213
  %231 = vmatpush.bf16.msra.mxu0 %v212
  %232 = vmatpush.bf16.msra.mxu0 %v211
  %233 = vmatpush.bf16.msra.mxu0 %v210
  %234 = vmatmul.bf16.gmra.mxu0 %v154
  %v235 = vpop.f32.mrf.mxu0
  %v236 = vadd.f32 0.0, %v235
  %v237 = vpop.f32.mrf.mxu0
  %v238 = vadd.f32 0.0, %v237
  %239 = vmatmul.bf16.gmra.mxu0 %v155
  %v240 = vpop.f32.mrf.mxu0
  %v241 = vadd.f32 0.0, %v240
  %v242 = vpop.f32.mrf.mxu0
  %v243 = vadd.f32 0.0, %v242
  %244 = vmatmul.bf16.gmra.mxu0 %v156
  %v245 = vpop.f32.mrf.mxu0
  %v246 = vadd.f32 0.0, %v245
  %v247 = vpop.f32.mrf.mxu0
  %v248 = vadd.f32 0.0, %v247
  %249 = vmatmul.bf16.gmra.mxu0 %v157
  %v250 = vpop.f32.mrf.mxu0
  %v251 = vadd.f32 0.0, %v250
  %v252 = vpop.f32.mrf.mxu0
  %v253 = vadd.f32 0.0, %v252
  %254 = vmatmul.bf16.gmra.mxu0 %v158
  %v255 = vpop.f32.mrf.mxu0
  %v256 = vadd.f32 0.0, %v255
  %v257 = vpop.f32.mrf.mxu0
  %v258 = vadd.f32 0.0, %v257
  %259 = vmatmul.bf16.gmra.mxu0 %v159
  %v260 = vpop.f32.mrf.mxu0
  %v261 = vadd.f32 0.0, %v260
  %v262 = vpop.f32.mrf.mxu0
  %v263 = vadd.f32 0.0, %v262
  %264 = vmatmul.bf16.gmra.mxu0 %v160
  %v265 = vpop.f32.mrf.mxu0
  %v266 = vadd.f32 0.0, %v265
  %v267 = vpop.f32.mrf.mxu0
  %v268 = vadd.f32 0.0, %v267
  %269 = vmatmul.bf16.gmra.mxu0 %v161
  %v270 = vpop.f32.mrf.mxu0
  %v271 = vadd.f32 0.0, %v270
  %v272 = vpop.f32.mrf.mxu0
  %v273 = vadd.f32 0.0, %v272
  %274 = vmatmul.bf16.gmra.mxu0 %v162
  %v275 = vpop.f32.mrf.mxu0
  %v276 = vadd.f32 0.0, %v275
  %v277 = vpop.f32.mrf.mxu0
  %v278 = vadd.f32 0.0, %v277
  %279 = vmatmul.bf16.gmra.mxu0 %v163
  %v280 = vpop.f32.mrf.mxu0
  %v281 = vadd.f32 0.0, %v280
  %v282 = vpop.f32.mrf.mxu0
  %v283 = vadd.f32 0.0, %v282
  %284 = vmatmul.bf16.gmra.mxu0 %v164
  %v285 = vpop.f32.mrf.mxu0
  %v286 = vadd.f32 0.0, %v285
  %v287 = vpop.f32.mrf.mxu0
  %v288 = vadd.f32 0.0, %v287
  %289 = vmatmul.bf16.gmra.mxu0 %v165
  %v290 = vpop.f32.mrf.mxu0
  %v291 = vadd.f32 0.0, %v290
  %v292 = vpop.f32.mrf.mxu0
  %v293 = vadd.f32 0.0, %v292
  %294 = vdwg.mxu0
  %v295 = vadd.f32 %v42, %v236
  %v296 = vadd.f32 %v43, %v238
  %v297 = vadd.f32 %v44, %v241
  %v298 = vadd.f32 %v45, %v243
  %v299 = vadd.f32 %v46, %v246
  %v300 = vadd.f32 %v47, %v248
  %v301 = vadd.f32 %v48, %v251
  %v302 = vadd.f32 %v49, %v253
  %v303 = vadd.f32 %v50, %v256
  %v304 = vadd.f32 %v51, %v258
  %v305 = vadd.f32 %v52, %v261
  %v306 = vadd.f32 %v53, %v263
  %v307 = vadd.f32 %v54, %v266
  %v308 = vadd.f32 %v55, %v268
  %v309 = vadd.f32 %v56, %v271
  %v310 = vadd.f32 %v57, %v273
  %v311 = vadd.f32 %v58, %v276
  %v312 = vadd.f32 %v59, %v278
  %v313 = vadd.f32 %v60, %v281
  %v314 = vadd.f32 %v61, %v283
  %v315 = vadd.f32 %v62, %v286
  %v316 = vadd.f32 %v63, %v288
  %v317 = vadd.f32 %v64, %v291
  %v318 = vadd.f32 %v65, %v293
  %319 = vst [vmem:[#allocation2] sm:$0xff] %v295
  %320 = vst [vmem:[#allocation2 + $0x8] sm:$0xff] %v296
  %321 = vst [vmem:[#allocation2 + $0x10] sm:$0xff] %v297
  %322 = vst [vmem:[#allocation2 + $0x18] sm:$0xff] %v298
  %323 = vst [vmem:[#allocation2 + $0x20] sm:$0xff] %v299
  %324 = vst [vmem:[#allocation2 + $0x28] sm:$0xff] %v300
  %325 = vst [vmem:[#allocation2 + $0x30] sm:$0xff] %v301
  %326 = vst [vmem:[#allocation2 + $0x38] sm:$0xff] %v302
  %327 = vst [vmem:[#allocation2 + $0x40] sm:$0xff] %v303
  %328 = vst [vmem:[#allocation2 + $0x48] sm:$0xff] %v304
  %329 = vst [vmem:[#allocation2 + $0x50] sm:$0xff] %v305
  %330 = vst [vmem:[#allocation2 + $0x58] sm:$0xff] %v306
  %331 = vst [vmem:[#allocation2 + $0x60] sm:$0xff] %v307
  %332 = vst [vmem:[#allocation2 + $0x68] sm:$0xff] %v308
  %333 = vst [vmem:[#allocation2 + $0x70] sm:$0xff] %v309
  %334 = vst [vmem:[#allocation2 + $0x78] sm:$0xff] %v310
  %335 = vst [vmem:[#allocation2 + $0x80] sm:$0xff] %v311
  %336 = vst [vmem:[#allocation2 + $0x88] sm:$0xff] %v312
  %337 = vst [vmem:[#allocation2 + $0x90] sm:$0xff] %v313
  %338 = vst [vmem:[#allocation2 + $0x98] sm:$0xff] %v314
  %339 = vst [vmem:[#allocation2 + $0xa0] sm:$0xff] %v315
  %340 = vst [vmem:[#allocation2 + $0xa8] sm:$0xff] %v316
  %341 = vst [vmem:[#allocation2 + $0xb0] sm:$0xff] %v317
  %342 = vst [vmem:[#allocation2 + $0xb8] sm:$0xff] %v318
  // Predicated region
  $region18: #{open_unmix_forward.14} parent=0 // pred_check
    %p343 = pneg %p14
  $region19: #{open_unmix_forward.14} parent=0 // pred_check_branch
    %345 = sbr.rel (%p343) target = $region21
  $region20: #{open_unmix_forward.14} parent=0 // pred_region
    %v346 = vld [vmem:[#allocation2] sm:$0xff]
    %v347 = vld [vmem:[#allocation2 + $0x8] sm:$0xff]
    %v348 = vld [vmem:[#allocation2 + $0x10] sm:$0xff]
    %v349 = vld [vmem:[#allocation2 + $0x18] sm:$0xff]
    %v350 = vld [vmem:[#allocation2 + $0x20] sm:$0xff]
    %v351 = vld [vmem:[#allocation2 + $0x28] sm:$0xff]
    %v352 = vld [vmem:[#allocation2 + $0x30] sm:$0xff]
    %v353 = vld [vmem:[#allocation2 + $0x38] sm:$0xff]
    %v354 = vld [vmem:[#allocation2 + $0x40] sm:$0xff]
    %v355 = vld [vmem:[#allocation2 + $0x48] sm:$0xff]
    %v356 = vld [vmem:[#allocation2 + $0x50] sm:$0xff]
    %v357 = vld [vmem:[#allocation2 + $0x58] sm:$0xff]
    %v358 = vld [vmem:[#allocation2 + $0x60] sm:$0xff]
    %v359 = vld [vmem:[#allocation2 + $0x68] sm:$0xff]
    %v360 = vld [vmem:[#allocation2 + $0x70] sm:$0xff]
    %v361 = vld [vmem:[#allocation2 + $0x78] sm:$0xff]
    %v362 = vld [vmem:[#allocation2 + $0x80] sm:$0xff]
    %v363 = vld [vmem:[#allocation2 + $0x88] sm:$0xff]
    %v364 = vld [vmem:[#allocation2 + $0x90] sm:$0xff]
    %v365 = vld [vmem:[#allocation2 + $0x98] sm:$0xff]
    %v366 = vld [vmem:[#allocation2 + $0xa0] sm:$0xff]
    %v367 = vld [vmem:[#allocation2 + $0xa8] sm:$0xff]
    %v368 = vld [vmem:[#allocation2 + $0xb0] sm:$0xff]
    %v369 = vld [vmem:[#allocation2 + $0xb8] sm:$0xff]
    %v370 = vld [vmem:[%s2] sm:$0x1]
    %v372 = vperm.slane %v370, 0
    %v374 = vadd.f32 %v346, %v372
    %v375 = vadd.f32 %v347, %v372
    %v376 = vadd.f32 %v348, %v372
    %v377 = vadd.f32 %v349, %v372
    %v378 = vadd.f32 %v350, %v372
    %v379 = vadd.f32 %v351, %v372
    %v380 = vadd.f32 %v352, %v372
    %v381 = vadd.f32 %v353, %v372
    %v382 = vadd.f32 %v354, %v372
    %v383 = vadd.f32 %v355, %v372
    %v384 = vadd.f32 %v356, %v372
    %v385 = vadd.f32 %v357, %v372
    %v386 = vadd.f32 %v358, %v372
    %v387 = vadd.f32 %v359, %v372
    %v388 = vadd.f32 %v360, %v372
    %v389 = vadd.f32 %v361, %v372
    %v390 = vadd.f32 %v362, %v372
    %v391 = vadd.f32 %v363, %v372
    %v392 = vadd.f32 %v364, %v372
    %v393 = vadd.f32 %v365, %v372
    %v394 = vadd.f32 %v366, %v372
    %v395 = vadd.f32 %v367, %v372
    %v396 = vadd.f32 %v368, %v372
    %v397 = vadd.f32 %v369, %v372
    %398 = vst [vmem:[%s3] sm:$0xff] %v374
    %399 = vst [vmem:[%s3 + $0x8] sm:$0xff] %v375
    %400 = vst [vmem:[%s3 + $0x10] sm:$0xff] %v376
    %401 = vst [vmem:[%s3 + $0x18] sm:$0xff] %v377
    %402 = vst [vmem:[%s3 + $0x20] sm:$0xff] %v378
    %403 = vst [vmem:[%s3 + $0x28] sm:$0xff] %v379
    %404 = vst [vmem:[%s3 + $0x30] sm:$0xff] %v380
    %405 = vst [vmem:[%s3 + $0x38] sm:$0xff] %v381
    %406 = vst [vmem:[%s3 + $0x40] sm:$0xff] %v382
    %407 = vst [vmem:[%s3 + $0x48] sm:$0xff] %v383
    %408 = vst [vmem:[%s3 + $0x50] sm:$0xff] %v384
    %409 = vst [vmem:[%s3 + $0x58] sm:$0xff] %v385
    %410 = vst [vmem:[%s3 + $0x60] sm:$0xff] %v386
    %411 = vst [vmem:[%s3 + $0x68] sm:$0xff] %v387
    %412 = vst [vmem:[%s3 + $0x70] sm:$0xff] %v388
    %413 = vst [vmem:[%s3 + $0x78] sm:$0xff] %v389
    %414 = vst [vmem:[%s3 + $0x80] sm:$0xff] %v390
    %415 = vst [vmem:[%s3 + $0x88] sm:$0xff] %v391
    %416 = vst [vmem:[%s3 + $0x90] sm:$0xff] %v392
    %417 = vst [vmem:[%s3 + $0x98] sm:$0xff] %v393
    %418 = vst [vmem:[%s3 + $0xa0] sm:$0xff] %v394
    %419 = vst [vmem:[%s3 + $0xa8] sm:$0xff] %v395
    %420 = vst [vmem:[%s3 + $0xb0] sm:$0xff] %v396
    %421 = vst [vmem:[%s3 + $0xb8] sm:$0xff] %v397
  $region21: #{open_unmix_forward.14} parent=0 // pred_fallthru
    _
  // Predicated region
  $region22: #{open_unmix_forward.14} parent=0 // pred_check
    _
  $region23: #{open_unmix_forward.14} parent=0 // pred_check_branch
    %423 = sbr.rel (0) target = $region25
  $region24: #{open_unmix_forward.14} parent=0 // pred_region
    _
  $region25: #{open_unmix_forward.14} parent=0 // pred_fallthru
    _
  // Predicated region
  $region26: #{open_unmix_forward.14} parent=0 // pred_check
    _
  $region27: #{open_unmix_forward.14} parent=0 // pred_check_branch
    %425 = sbr.rel (0) target = $region29
  $region28: #{open_unmix_forward.14} parent=0 // pred_region
    _
  $region29: #{open_unmix_forward.14} parent=0 // pred_fallthru
    _

// kernel: tile.13
$region0: #{tile.13}
  #allocation0 [shape = 's32[1]{0}', space=sflag, size = 0x4, scoped, tag = 'scoped memory for tile.13']
  %s0 = inlined_call_operand.vmem [shape: f32[65], index: 0, kind: input, shape index: {}]
  %s1 = inlined_call_operand.vmem [shape: f32[2,65], index: 1, kind: output, shape index: {}]
  // Predicated region
  $region2: #{tile.13} parent=0 // pred_check
    _
  $region3: #{tile.13} parent=0 // pred_check_branch
    %3 = sbr.rel (0) target = $region5
  $region4: #{tile.13} parent=0 // pred_region
    _
  $region5: #{tile.13} parent=0 // pred_fallthru
    _
  %v4 = vld [vmem:[%s0] ss:$0 sm:$0xff]
  %5 = vst [vmem:[%s1] sm:$0x3] %v4

// kernel: tile.14
$region0: #{tile.14}
  %s0 = inlined_call_operand.vmem [shape: f32[2,65], index: 0, kind: input, shape index: {}]
  %s1 = inlined_call_operand.vmem [shape: f32[130], index: 1, kind: output, shape index: {}]
  $region1: #{tile.14} parent=0
    #allocation0 [shape = 'u8[4096]{0}', space=vmem, size = 0x1000, scoped, tag = 'scoped mem for output reshape']
    #allocation1 [shape = 'u8[4096]{0}', space=vmem, size = 0x1000, scoped, tag = 'scoped mem for input reshape']
    %s3 = ssub.s32 4, 1
    %v4 = vld [vmem:[%s0] sm:%s3]
    %5 = vst [vmem:[#allocation1] sm:%s3] %v4
    %v6 = vld [vmem:[#allocation1] sm:$0x1]
    %vm7 = vcmask 531456
    %8 = vst.msk [vmem:[#allocation0] sm:$0x1] %vm7, %v6
    %s9 = scalar_lea.vmem [#allocation1], 1
    %v10 = vld [vmem:[%s9] sm:$0x1]
    %s11 = scalar_lea.vmem [#allocation1], 1
    %v12 = vld [vmem:[%s11] sm:$0x1]
    %vm13 = vcmask 515072
    %v14 = vsel %vm13, %v12, %v10
    %15 = vrot.lane.b32.xlu0 %v14, 65
    %v16 = vpop.permute.xlu0 %15
    %vm17 = vcmask 15360
    %s18 = scalar_lea.vmem [#allocation0], 1
    %19 = vst.msk [vmem:[%s18] sm:$0x1] %vm17, %v16
    %vm20 = vcmask 1048072
    %21 = vst.msk [vmem:[#allocation0] sm:$0x1] %vm20, %v16
    %s23 = ssub.s32 4, 1
    %v24 = vld [vmem:[#allocation0] sm:%s23]
    %s26 = ssub.s32 4, 1
    %27 = vst [vmem:[%s1] sm:%s26] %v24

// kernel: open_unmix_forward.20
$region0: #{open_unmix_forward.20}
  #allocation0 [shape = 'u32[]', space=smem, size = 0x4, offset = 0x4, fixed_abs, tag = 'smem constant byte address 0x4 - core index']
  #allocation1 [shape = 'u32[72,128]{1,0:T(1,128)}', space=vmem, size = 0x9000, scoped, tag = 'internal scratch']
  #allocation2 [shape = 'f32[96,128]{1,0:T(8,128)}', space=vmem, size = 0xc000, scoped, tag = 'scratch operand']
  %s0 = inlined_call_operand.vmem [shape: bf16[96,128], index: 0, kind: input, shape index: {}]
  %s1 = inlined_call_operand.vmem [shape: bf16[128,128], index: 1, kind: input, shape index: {}]
  %s2 = inlined_call_operand.vmem [shape: f32[1,128], index: 2, kind: input, shape index: {}]
  %s3 = inlined_call_operand.vmem [shape: f32[1,128], index: 3, kind: input, shape index: {}]
  %s4 = inlined_call_operand.vmem [shape: f32[96,128], index: 4, kind: output, shape index: {}]
  %s5 = sld [smem:[#allocation0]]
  $region34: #{open_unmix_forward.20} parent=0
    _
  %s7 = ssub.s32 1, %s5
  %s8 = scalar_select 0, %s7, %s5
  // Predicated region
  $region2: #{open_unmix_forward.20} parent=0 // pred_check
    _
  $region3: #{open_unmix_forward.20} parent=0 // pred_check_branch
    %10 = sbr.rel (0) target = $region5
  $region4: #{open_unmix_forward.20} parent=0 // pred_region
    _
  $region5: #{open_unmix_forward.20} parent=0 // pred_fallthru
    _
  // Predicated region
  $region6: #{open_unmix_forward.20} parent=0 // pred_check
    _
  $region7: #{open_unmix_forward.20} parent=0 // pred_check_branch
    %12 = sbr.rel (0) target = $region9
  $region8: #{open_unmix_forward.20} parent=0 // pred_region
    _
  $region9: #{open_unmix_forward.20} parent=0 // pred_fallthru
    _
  // Predicated region
  $region10: #{open_unmix_forward.20} parent=0 // pred_check
    _
  $region11: #{open_unmix_forward.20} parent=0 // pred_check_branch
    %14 = sbr.rel (0) target = $region13
  $region12: #{open_unmix_forward.20} parent=0 // pred_region
    _
  $region13: #{open_unmix_forward.20} parent=0 // pred_fallthru
    _
  // Predicated region
  $region14: #{open_unmix_forward.20} parent=0 // pred_check
    _
  $region15: #{open_unmix_forward.20} parent=0 // pred_check_branch
    %16 = sbr.rel (0) target = $region17
  $region16: #{open_unmix_forward.20} parent=0 // pred_region
    _
  $region17: #{open_unmix_forward.20} parent=0 // pred_fallthru
    _
  %p17 = scmp.eq.s32.totalorder 0, 0
  // Predicated region
  $region18: #{open_unmix_forward.20} parent=0 // pred_check
    %p18 = pneg %p17
  $region19: #{open_unmix_forward.20} parent=0 // pred_check_branch
    %20 = sbr.rel (%p18) target = $region21
  $region20: #{open_unmix_forward.20} parent=0 // pred_region
    %21 = vst [vmem:[#allocation2] sm:$0xff] 0.0
    %22 = vst [vmem:[#allocation2 + $0x8] sm:$0xff] 0.0
    %23 = vst [vmem:[#allocation2 + $0x10] sm:$0xff] 0.0
    %24 = vst [vmem:[#allocation2 + $0x18] sm:$0xff] 0.0
    %25 = vst [vmem:[#allocation2 + $0x20] sm:$0xff] 0.0
    %26 = vst [vmem:[#allocation2 + $0x28] sm:$0xff] 0.0
    %27 = vst [vmem:[#allocation2 + $0x30] sm:$0xff] 0.0
    %28 = vst [vmem:[#allocation2 + $0x38] sm:$0xff] 0.0
    %29 = vst [vmem:[#allocation2 + $0x40] sm:$0xff] 0.0
    %30 = vst [vmem:[#allocation2 + $0x48] sm:$0xff] 0.0
    %31 = vst [vmem:[#allocation2 + $0x50] sm:$0xff] 0.0
    %32 = vst [vmem:[#allocation2 + $0x58] sm:$0xff] 0.0
  $region21: #{open_unmix_forward.20} parent=0 // pred_fallthru
    _
  %v33 = vld [vmem:[#allocation2] sm:$0xff]
  %v34 = vld [vmem:[#allocation2 + $0x8] sm:$0xff]
  %v35 = vld [vmem:[#allocation2 + $0x10] sm:$0xff]
  %v36 = vld [vmem:[#allocation2 + $0x18] sm:$0xff]
  %v37 = vld [vmem:[#allocation2 + $0x20] sm:$0xff]
  %v38 = vld [vmem:[#allocation2 + $0x28] sm:$0xff]
  %v39 = vld [vmem:[#allocation2 + $0x30] sm:$0xff]
  %v40 = vld [vmem:[#allocation2 + $0x38] sm:$0xff]
  %v41 = vld [vmem:[#allocation2 + $0x40] sm:$0xff]
  %v42 = vld [vmem:[#allocation2 + $0x48] sm:$0xff]
  %v43 = vld [vmem:[#allocation2 + $0x50] sm:$0xff]
  %v44 = vld [vmem:[#allocation2 + $0x58] sm:$0xff]
  %v45 = vld [vmem:[%s0] sm:$0xf]
  %v46 = vld [vmem:[%s0 + $0x4] sm:$0xf]
  %v47 = vld [vmem:[%s0 + $0x8] sm:$0xf]
  %v48 = vld [vmem:[%s0 + $0xc] sm:$0xf]
  %v49 = vld [vmem:[%s0 + $0x10] sm:$0xf]
  %v50 = vld [vmem:[%s0 + $0x14] sm:$0xf]
  %v51 = vld [vmem:[%s0 + $0x18] sm:$0xf]
  %v52 = vld [vmem:[%s0 + $0x1c] sm:$0xf]
  %v53 = vld [vmem:[%s0 + $0x20] sm:$0xf]
  %v54 = vld [vmem:[%s0 + $0x24] sm:$0xf]
  %v55 = vld [vmem:[%s0 + $0x28] sm:$0xf]
  %v56 = vld [vmem:[%s0 + $0x2c] sm:$0xf]
  %v57 = vld [vmem:[%s1] sm:$0xf]
  %v58 = vld [vmem:[%s1 + $0x4] sm:$0xf]
  %v59 = vld [vmem:[%s1 + $0x8] sm:$0xf]
  %v60 = vld [vmem:[%s1 + $0xc] sm:$0xf]
  %v61 = vld [vmem:[%s1 + $0x10] sm:$0xf]
  %v62 = vld [vmem:[%s1 + $0x14] sm:$0xf]
  %v63 = vld [vmem:[%s1 + $0x18] sm:$0xf]
  %v64 = vld [vmem:[%s1 + $0x1c] sm:$0xf]
  %v65 = vld [vmem:[%s1 + $0x20] sm:$0xf]
  %v66 = vld [vmem:[%s1 + $0x24] sm:$0xf]
  %v67 = vld [vmem:[%s1 + $0x28] sm:$0xf]
  %v68 = vld [vmem:[%s1 + $0x2c] sm:$0xf]
  %v69 = vld [vmem:[%s1 + $0x30] sm:$0xf]
  %v70 = vld [vmem:[%s1 + $0x34] sm:$0xf]
  %v71 = vld [vmem:[%s1 + $0x38] sm:$0xf]
  %v72 = vld [vmem:[%s1 + $0x3c] sm:$0xf]
  %v85 = vunpack.c.l.b16 %v45
  %v86 = vunpack.c.l.b16 %v46
  %v87 = vunpack.c.l.b16 %v47
  %v88 = vunpack.c.l.b16 %v48
  %v89 = vunpack.c.l.b16 %v49
  %v90 = vunpack.c.l.b16 %v50
  %v91 = vunpack.c.l.b16 %v51
  %v92 = vunpack.c.l.b16 %v52
  %v93 = vunpack.c.l.b16 %v53
  %v94 = vunpack.c.l.b16 %v54
  %v95 = vunpack.c.l.b16 %v55
  %v96 = vunpack.c.l.b16 %v56
  %v97 = vpack.c.b16 %v86, %v85
  %v98 = vpack.c.b16 %v88, %v87
  %v99 = vpack.c.b16 %v90, %v89
  %v100 = vpack.c.b16 %v92, %v91
  %v101 = vpack.c.b16 %v94, %v93
  %v102 = vpack.c.b16 %v96, %v95
  %v125 = vunpack.c.l.b16 %v57
  %v126 = vunpack.c.l.b16 %v58
  %v127 = vunpack.c.l.b16 %v59
  %v128 = vunpack.c.l.b16 %v60
  %v129 = vunpack.c.l.b16 %v61
  %v130 = vunpack.c.l.b16 %v62
  %v131 = vunpack.c.l.b16 %v63
  %v132 = vunpack.c.l.b16 %v64
  %v133 = vunpack.c.l.b16 %v65
  %v134 = vunpack.c.l.b16 %v66
  %v135 = vunpack.c.l.b16 %v67
  %v136 = vunpack.c.l.b16 %v68
  %v137 = vunpack.c.l.b16 %v69
  %v138 = vunpack.c.l.b16 %v70
  %v139 = vunpack.c.l.b16 %v71
  %v140 = vunpack.c.l.b16 %v72
  %v141 = vpack.c.b16 %v126, %v125
  %v142 = vpack.c.b16 %v128, %v127
  %v143 = vpack.c.b16 %v130, %v129
  %v144 = vpack.c.b16 %v132, %v131
  %v145 = vpack.c.b16 %v134, %v133
  %v146 = vpack.c.b16 %v136, %v135
  %v147 = vpack.c.b16 %v138, %v137
  %v148 = vpack.c.b16 %v140, %v139
  %157 = vmatpush.bf16.msra.mxu0 %v148
  %158 = vmatpush.bf16.msra.mxu0 %v147
  %159 = vmatpush.bf16.msra.mxu0 %v146
  %160 = vmatpush.bf16.msra.mxu0 %v145
  %161 = vmatpush.bf16.msra.mxu0 %v144
  %162 = vmatpush.bf16.msra.mxu0 %v143
  %163 = vmatpush.bf16.msra.mxu0 %v142
  %164 = vmatpush.bf16.msra.mxu0 %v141
  %165 = vmatmul.bf16.gmra.mxu0 %v97
  %v166 = vpop.f32.mrf.mxu0
  %v167 = vadd.f32 0.0, %v166
  %v168 = vpop.f32.mrf.mxu0
  %v169 = vadd.f32 0.0, %v168
  %170 = vmatmul.bf16.gmra.mxu0 %v98
  %v171 = vpop.f32.mrf.mxu0
  %v172 = vadd.f32 0.0, %v171
  %v173 = vpop.f32.mrf.mxu0
  %v174 = vadd.f32 0.0, %v173
  %175 = vmatmul.bf16.gmra.mxu0 %v99
  %v176 = vpop.f32.mrf.mxu0
  %v177 = vadd.f32 0.0, %v176
  %v178 = vpop.f32.mrf.mxu0
  %v179 = vadd.f32 0.0, %v178
  %180 = vmatmul.bf16.gmra.mxu0 %v100
  %v181 = vpop.f32.mrf.mxu0
  %v182 = vadd.f32 0.0, %v181
  %v183 = vpop.f32.mrf.mxu0
  %v184 = vadd.f32 0.0, %v183
  %185 = vmatmul.bf16.gmra.mxu0 %v101
  %v186 = vpop.f32.mrf.mxu0
  %v187 = vadd.f32 0.0, %v186
  %v188 = vpop.f32.mrf.mxu0
  %v189 = vadd.f32 0.0, %v188
  %190 = vmatmul.bf16.gmra.mxu0 %v102
  %v191 = vpop.f32.mrf.mxu0
  %v192 = vadd.f32 0.0, %v191
  %v193 = vpop.f32.mrf.mxu0
  %v194 = vadd.f32 0.0, %v193
  %195 = vdwg.mxu0
  %v196 = vadd.f32 %v33, %v167
  %v197 = vadd.f32 %v34, %v169
  %v198 = vadd.f32 %v35, %v172
  %v199 = vadd.f32 %v36, %v174
  %v200 = vadd.f32 %v37, %v177
  %v201 = vadd.f32 %v38, %v179
  %v202 = vadd.f32 %v39, %v182
  %v203 = vadd.f32 %v40, %v184
  %v204 = vadd.f32 %v41, %v187
  %v205 = vadd.f32 %v42, %v189
  %v206 = vadd.f32 %v43, %v192
  %v207 = vadd.f32 %v44, %v194
  %208 = vst [vmem:[#allocation2] sm:$0xff] %v196
  %209 = vst [vmem:[#allocation2 + $0x8] sm:$0xff] %v197
  %210 = vst [vmem:[#allocation2 + $0x10] sm:$0xff] %v198
  %211 = vst [vmem:[#allocation2 + $0x18] sm:$0xff] %v199
  %212 = vst [vmem:[#allocation2 + $0x20] sm:$0xff] %v200
  %213 = vst [vmem:[#allocation2 + $0x28] sm:$0xff] %v201
  %214 = vst [vmem:[#allocation2 + $0x30] sm:$0xff] %v202
  %215 = vst [vmem:[#allocation2 + $0x38] sm:$0xff] %v203
  %216 = vst [vmem:[#allocation2 + $0x40] sm:$0xff] %v204
  %217 = vst [vmem:[#allocation2 + $0x48] sm:$0xff] %v205
  %218 = vst [vmem:[#allocation2 + $0x50] sm:$0xff] %v206
  %219 = vst [vmem:[#allocation2 + $0x58] sm:$0xff] %v207
  // Predicated region
  $region22: #{open_unmix_forward.20} parent=0 // pred_check
    %p220 = pneg %p17
  $region23: #{open_unmix_forward.20} parent=0 // pred_check_branch
    %222 = sbr.rel (%p220) target = $region25
  $region24: #{open_unmix_forward.20} parent=0 // pred_region
    %v223 = vld [vmem:[#allocation2] sm:$0xff]
    %v224 = vld [vmem:[#allocation2 + $0x8] sm:$0xff]
    %v225 = vld [vmem:[#allocation2 + $0x10] sm:$0xff]
    %v226 = vld [vmem:[#allocation2 + $0x18] sm:$0xff]
    %v227 = vld [vmem:[#allocation2 + $0x20] sm:$0xff]
    %v228 = vld [vmem:[#allocation2 + $0x28] sm:$0xff]
    %v229 = vld [vmem:[#allocation2 + $0x30] sm:$0xff]
    %v230 = vld [vmem:[#allocation2 + $0x38] sm:$0xff]
    %v231 = vld [vmem:[#allocation2 + $0x40] sm:$0xff]
    %v232 = vld [vmem:[#allocation2 + $0x48] sm:$0xff]
    %v233 = vld [vmem:[#allocation2 + $0x50] sm:$0xff]
    %v234 = vld [vmem:[#allocation2 + $0x58] sm:$0xff]
    %v235 = vld [vmem:[%s2] sm:$0x1]
    %v237 = vperm.slane %v235, 0
    %v239 = vmul.f32 %v223, %v237
    %v240 = vmul.f32 %v224, %v237
    %v241 = vmul.f32 %v225, %v237
    %v242 = vmul.f32 %v226, %v237
    %v243 = vmul.f32 %v227, %v237
    %v244 = vmul.f32 %v228, %v237
    %v245 = vmul.f32 %v229, %v237
    %v246 = vmul.f32 %v230, %v237
    %v247 = vmul.f32 %v231, %v237
    %v248 = vmul.f32 %v232, %v237
    %v249 = vmul.f32 %v233, %v237
    %v250 = vmul.f32 %v234, %v237
    %v251 = vld [vmem:[%s3] sm:$0x1]
    %v253 = vperm.slane %v251, 0
    %v255 = vadd.f32 %v239, %v253
    %v256 = vadd.f32 %v240, %v253
    %v257 = vadd.f32 %v241, %v253
    %v258 = vadd.f32 %v242, %v253
    %v259 = vadd.f32 %v243, %v253
    %v260 = vadd.f32 %v244, %v253
    %v261 = vadd.f32 %v245, %v253
    %v262 = vadd.f32 %v246, %v253
    %v263 = vadd.f32 %v247, %v253
    %v264 = vadd.f32 %v248, %v253
    %v265 = vadd.f32 %v249, %v253
    %v266 = vadd.f32 %v250, %v253
    %v267 = vmax.f32 %v255, 0.0
    %v268 = vmax.f32 %v256, 0.0
    %v269 = vmax.f32 %v257, 0.0
    %v270 = vmax.f32 %v258, 0.0
    %v271 = vmax.f32 %v259, 0.0
    %v272 = vmax.f32 %v260, 0.0
    %v273 = vmax.f32 %v261, 0.0
    %v274 = vmax.f32 %v262, 0.0
    %v275 = vmax.f32 %v263, 0.0
    %v276 = vmax.f32 %v264, 0.0
    %v277 = vmax.f32 %v265, 0.0
    %v278 = vmax.f32 %v266, 0.0
    %279 = vst [vmem:[%s4] sm:$0xff] %v267
    %280 = vst [vmem:[%s4 + $0x8] sm:$0xff] %v268
    %281 = vst [vmem:[%s4 + $0x10] sm:$0xff] %v269
    %282 = vst [vmem:[%s4 + $0x18] sm:$0xff] %v270
    %283 = vst [vmem:[%s4 + $0x20] sm:$0xff] %v271
    %284 = vst [vmem:[%s4 + $0x28] sm:$0xff] %v272
    %285 = vst [vmem:[%s4 + $0x30] sm:$0xff] %v273
    %286 = vst [vmem:[%s4 + $0x38] sm:$0xff] %v274
    %287 = vst [vmem:[%s4 + $0x40] sm:$0xff] %v275
    %288 = vst [vmem:[%s4 + $0x48] sm:$0xff] %v276
    %289 = vst [vmem:[%s4 + $0x50] sm:$0xff] %v277
    %290 = vst [vmem:[%s4 + $0x58] sm:$0xff] %v278
  $region25: #{open_unmix_forward.20} parent=0 // pred_fallthru
    _
  // Predicated region
  $region26: #{open_unmix_forward.20} parent=0 // pred_check
    _
  $region27: #{open_unmix_forward.20} parent=0 // pred_check_branch
    %292 = sbr.rel (0) target = $region29
  $region28: #{open_unmix_forward.20} parent=0 // pred_region
    _
  $region29: #{open_unmix_forward.20} parent=0 // pred_fallthru
    _
  // Predicated region
  $region30: #{open_unmix_forward.20} parent=0 // pred_check
    _
  $region31: #{open_unmix_forward.20} parent=0 // pred_check_branch
    %294 = sbr.rel (0) target = $region33
  $region32: #{open_unmix_forward.20} parent=0 // pred_region
    _
  $region33: #{open_unmix_forward.20} parent=0 // pred_fallthru
    _

// kernel: open_unmix_forward.15
$region0: #{open_unmix_forward.15}
  #allocation0 [shape = 'u32[]', space=smem, size = 0x4, offset = 0x4, fixed_abs, tag = 'smem constant byte address 0x4 - core index']
  #allocation1 [shape = 'u32[72,128]{1,0:T(1,128)}', space=vmem, size = 0x9000, scoped, tag = 'internal scratch']
  #allocation2 [shape = 'f32[2,4,16]{2,1,0:T(4,128)}', space=vmem, size = 0x1000, scoped, tag = 'scratch operand']
  #allocation3 [shape = 'f32[2,4,16]{2,1,0:T(4,128)}', space=vmem, size = 0x1000, scoped, tag = 'scratch operand']
  %s0 = inlined_call_operand.vmem [shape: f32[2,48,4,64], index: 0, kind: input, shape index: {}]
  %s1 = inlined_call_operand.vmem [shape: bf16[2,16,64], index: 1, kind: input, shape index: {}]
  %s2 = inlined_call_operand.vmem [shape: f32[2,48,4,16], index: 2, kind: output, shape index: {}]
  %s3 = sld [smem:[#allocation0]]
  $region45: #{open_unmix_forward.15} parent=0
    _
  %s5 = ssub.s32 1, %s3
  %s6 = scalar_select 0, %s5, %s3
  loop: start=0, step=1, limit=8
  $region2: #{open_unmix_forward.15} parent=0 // loop_pre_header
    _
  $region3: #{open_unmix_forward.15} parent=0 // loop_header
    %s8 = sphi 0, %s12
    %p9 = scmp.ge.s32.totalorder %s8, 8
    %s15 = sphi 0, %s27
    %s16 = sphi 0, %s23
    %s17 = sphi 0, %s15
    %s18 = sphi 0, %s16
    %s19 = sphi 0, %s17
    %s20 = sphi 0, %s18
    %s32 = sphi 0, %s34
    %s35 = sphi 0, %s32
    %s36 = sphi 0, %s35
    %s52 = sphi 0, %s36
    %s58 = sphi 0, %s60
    %s61 = sphi 0, %s58
    %s62 = sphi 0, %s61
    %s78 = sphi 0, %s62
    %s86 = sphi 0, %s88
    %s89 = sphi 0, %s86
    %s90 = sphi 0, %s89
    %s106 = sphi 0, %s90
  $region4: #{open_unmix_forward.15} parent=0 // loop_header_branch
    %11 = sbr.rel (%p9) target = $region8
  $region5: #{open_unmix_forward.15} parent=0 // loop_body
    %s13 = ssub.s32 %s8, 1
    %s14 = ssub.s32 %s8, 2
    %s21 = sadd.s32 1, %s16
    %p22 = scmp.ge.s32.totalorder %s21, 3
    %s23 = scalar_select %p22, 0, %s21
    %s24 = sadd.s32 1, %s15
    %s25 = scalar_select %p22, %s24, %s15
    %p26 = scmp.ge.s32.totalorder %s25, 2
    %s27 = scalar_select %p26, 0, %s25
    %s28 = ssub.s32 %s15, %s27
    %s29 = ssub.s32 %s16, %s23
    %s30 = sor.u32 %s28, %s29
    %p31 = scmp.eq.s32.totalorder %s30, 0
    %s33 = sadd.s32 %s32, 1
    %s34 = scalar_select %p31, %s32, %s33
    %p37 = pneg %p31
    %p38 = scmp.eq.s32.totalorder %s8, 5
    %p39 = por %p37, %p38
    %p40 = scmp.ne.s32.totalorder %s32, %s35
    %p41 = scmp.eq.s32.totalorder %s8, 0
    %p42 = por %p40, %p41
    %p43 = scmp.ne.s32.totalorder %s32, %s35
    %p44 = scmp.eq.s32.totalorder %s13, 5
    %p45 = por %p43, %p44
    %p46 = scmp.ne.s32.totalorder %s35, %s36
    %p47 = scmp.eq.s32.totalorder %s13, 0
    %p48 = por %p46, %p47
    %p49 = scmp.ne.s32.totalorder %s35, %s36
    %p50 = scmp.eq.s32.totalorder %s14, 5
    %p51 = por %p49, %p50
    %p53 = scmp.ne.s32.totalorder %s36, %s52
    %p54 = scmp.eq.s32.totalorder %s14, 0
    %p55 = por %p53, %p54
    %s56 = ssub.s32 %s15, %s27
    %p57 = scmp.eq.s32.totalorder %s56, 0
    %s59 = sadd.s32 %s58, 1
    %s60 = scalar_select %p57, %s58, %s59
    %p63 = pneg %p57
    %p64 = scmp.eq.s32.totalorder %s8, 5
    %p65 = por %p63, %p64
    %p66 = scmp.ne.s32.totalorder %s58, %s61
    %p67 = scmp.eq.s32.totalorder %s8, 0
    %p68 = por %p66, %p67
    %p69 = scmp.ne.s32.totalorder %s58, %s61
    %p70 = scmp.eq.s32.totalorder %s13, 5
    %p71 = por %p69, %p70
    %p72 = scmp.ne.s32.totalorder %s61, %s62
    %p73 = scmp.eq.s32.totalorder %s13, 0
    %p74 = por %p72, %p73
    %p75 = scmp.ne.s32.totalorder %s61, %s62
    %p76 = scmp.eq.s32.totalorder %s14, 5
    %p77 = por %p75, %p76
    %p79 = scmp.ne.s32.totalorder %s62, %s78
    %p80 = scmp.eq.s32.totalorder %s14, 0
    %p81 = por %p79, %p80
    %s82 = ssub.s32 %s15, %s27
    %s83 = ssub.s32 %s16, %s23
    %s84 = sor.u32 %s82, %s83
    %p85 = scmp.eq.s32.totalorder %s84, 0
    %s87 = sadd.s32 %s86, 1
    %s88 = scalar_select %p85, %s86, %s87
    %p91 = pneg %p85
    %p92 = scmp.eq.s32.totalorder %s8, 5
    %p93 = por %p91, %p92
    %p94 = scmp.ne.s32.totalorder %s86, %s89
    %p95 = scmp.eq.s32.totalorder %s8, 0
    %p96 = por %p94, %p95
    %p97 = scmp.ne.s32.totalorder %s86, %s89
    %p98 = scmp.eq.s32.totalorder %s13, 5
    %p99 = por %p97, %p98
    %p100 = scmp.ne.s32.totalorder %s89, %s90
    %p101 = scmp.eq.s32.totalorder %s13, 0
    %p102 = por %p100, %p101
    %p103 = scmp.ne.s32.totalorder %s89, %s90
    %p104 = scmp.eq.s32.totalorder %s14, 5
    %p105 = por %p103, %p104
    %p107 = scmp.ne.s32.totalorder %s90, %s106
    %p108 = scmp.eq.s32.totalorder %s14, 0
    %p109 = por %p107, %p108
    %p110 = scmp.le.s32.totalorder 1, %s8
    %p111 = scmp.lt.s32.totalorder %s8, 7
    %p112 = pnand %p110, %p111
    %p113 = pneg %p112
    // Predicated region
    $region9: #{open_unmix_forward.15} parent=5 // pred_check
      _
    $region10: #{open_unmix_forward.15} parent=5 // pred_check_branch
      %115 = sbr.rel (%p112) target = $region12
    $region11: #{open_unmix_forward.15} parent=5 // pred_region
      %s116 = ssub.s32 %s8, 1
    $region12: #{open_unmix_forward.15} parent=5 // pred_fallthru
      _
    %p117 = scmp.lt.s32.totalorder %s8, 6
    // Predicated region
    $region13: #{open_unmix_forward.15} parent=5 // pred_check
      %p118 = pneg %p117
    $region14: #{open_unmix_forward.15} parent=5 // pred_check_branch
      %120 = sbr.rel (%p118) target = $region16
    $region15: #{open_unmix_forward.15} parent=5 // pred_region
      // Predicated region
      $region17: #{open_unmix_forward.15} parent=15 // pred_check
        %p121 = pneg %p42
      $region18: #{open_unmix_forward.15} parent=15 // pred_check_branch
        %123 = sbr.rel (%p121) target = $region20
      $region19: #{open_unmix_forward.15} parent=15 // pred_region
        %s124 = smul.u32 16, %s16
        %p125 = scmp.lt.s32.totalorder %s15, 1
        %s126 = scalar_select %p125, %s15, 1
        %p127 = scmp.lt.s32.totalorder %s124, 47
        %s128 = scalar_select %p127, %s124, 47
        %s129 = smul.addr %s126, 48
        %s130 = sadd.s32 %s128, %s129
        %s131 = smul.addr %s130, 4
        %s132 = scalar_lea.vmem %s0, %s131
        %s133 = smul.u32 16, %s16
      $region20: #{open_unmix_forward.15} parent=15 // pred_fallthru
        _
      // Predicated region
      $region21: #{open_unmix_forward.15} parent=15 // pred_check
        %p134 = pneg %p68
      $region22: #{open_unmix_forward.15} parent=15 // pred_check_branch
        %136 = sbr.rel (%p134) target = $region24
      $region23: #{open_unmix_forward.15} parent=15 // pred_region
        %p137 = scmp.lt.s32.totalorder %s15, 1
        %s138 = scalar_select %p137, %s15, 1
        %s139 = smul.addr %s138, 2
        %s140 = smul.addr %s139, 4
        %s141 = scalar_lea.vmem %s1, %s140
      $region24: #{open_unmix_forward.15} parent=15 // pred_fallthru
        _
    $region16: #{open_unmix_forward.15} parent=5 // pred_fallthru
      _
    %p142 = scmp.le.s32.totalorder 1, %s8
    %p143 = scmp.lt.s32.totalorder %s8, 7
    %p144 = pnand %p142, %p143
    %p145 = pneg %p144
    // Predicated region
    $region25: #{open_unmix_forward.15} parent=5 // pred_check
      _
    $region26: #{open_unmix_forward.15} parent=5 // pred_check_branch
      %147 = sbr.rel (%p144) target = $region28
    $region27: #{open_unmix_forward.15} parent=5 // pred_region
      %s148 = ssub.s32 %s8, 1
      %s149 = smul.u32 16, %s18
      %p150 = scmp.lt.s32.totalorder %s17, 1
      %s151 = scalar_select %p150, %s17, 1
      %p152 = scmp.lt.s32.totalorder %s149, 47
      %s153 = scalar_select %p152, %s149, 47
      %s154 = smul.addr %s151, 48
      %s155 = sadd.s32 %s153, %s154
      %s156 = smul.addr %s155, 4
      %s157 = scalar_lea.vmem %s0, %s156
      %p158 = pneg %p48
      %p159 = pneg %p45
      %p160 = scmp.lt.s32.totalorder %s17, 1
      %s161 = scalar_select %p160, %s17, 1
      %s162 = smul.addr %s161, 2
      %s163 = smul.addr %s162, 4
      %s164 = scalar_lea.vmem %s1, %s163
      %p165 = pneg %p74
      %p166 = pneg %p71
      %p167 = pneg %p102
      %p168 = pneg %p99
      %s169 = smul.u32 16, %s18
      %p170 = scmp.lt.s32.totalorder %s17, 1
      %s171 = scalar_select %p170, %s17, 1
      %p172 = scmp.lt.s32.totalorder %s169, 47
      %s173 = scalar_select %p172, %s169, 47
      %s174 = smul.addr %s171, 48
      %s175 = sadd.s32 %s173, %s174
      %s176 = smul.addr %s175, 4
      %s177 = scalar_lea.vmem %s2, %s176
      %s178 = smul.u32 16, %s18
      %p179 = scmp.lt.s32.totalorder %s17, 1
      %s180 = scalar_select %p179, %s17, 1
      %p181 = scmp.lt.s32.totalorder %s178, 47
      %s182 = scalar_select %p181, %s178, 47
      %s183 = smul.addr %s180, 48
      %s184 = sadd.s32 %s182, %s183
      %s185 = smul.addr %s184, 4
      %s186 = scalar_lea.vmem %s0, %s185
      %s187 = smul.u32 16, %s18
      %p188 = scmp.lt.s32.totalorder %s17, 1
      %s189 = scalar_select %p188, %s17, 1
      %s190 = smul.addr %s189, 2
      %s191 = smul.addr %s190, 4
      %s192 = scalar_lea.vmem %s1, %s191
      %s193 = smul.u32 16, %s18
      %p194 = scmp.lt.s32.totalorder %s17, 1
      %s195 = scalar_select %p194, %s17, 1
      %p196 = scmp.lt.s32.totalorder %s193, 47
      %s197 = scalar_select %p196, %s193, 47
      %s198 = smul.addr %s195, 48
      %s199 = sadd.s32 %s197, %s198
      %s200 = smul.addr %s199, 4
      %s201 = scalar_lea.vmem %s2, %s200
      %s202 = smul.u32 16, %s18
      %p204 = scmp.eq.s32.totalorder %s18, 0
      // Predicated region
      $region29: #{open_unmix_forward.15} parent=27 // pred_check
        %p205 = pneg %p204
      $region30: #{open_unmix_forward.15} parent=27 // pred_check_branch
        %207 = sbr.rel (%p205) target = $region32
      $region31: #{open_unmix_forward.15} parent=27 // pred_region
        %s208 = smul.u32 %s17, 4
        %s209 = scalar_lea.vmem [#allocation2], %s208
        %vm210 = vcmask 125952
        %211 = vst.msk [vmem:[%s209] sm:$0xf] %vm210, 0.0
        %s212 = scalar_lea.vmem [#allocation3], %s208
        %213 = vst.msk [vmem:[%s212] sm:$0xf] %vm210, 0.0
      $region32: #{open_unmix_forward.15} parent=27 // pred_fallthru
        _
      %v214 = vld [vmem:[%s192] sm:$0xf]
      %v215 = vld [vmem:[%s192 + $0x4] sm:$0xf]
      %s216 = smul.u32 %s17, 4
      %s217 = scalar_lea.vmem [#allocation2], %s216
      %v218 = vld [vmem:[%s217] sm:$0xf]
      %s219 = scalar_lea.vmem [#allocation3], %s216
      %v220 = vld [vmem:[%s219] sm:$0xf]
      %v221 = vld [vmem:[%s186] sm:$0xf]
      %v222 = vpack.c.bf16 %v218, %v218
      %v225 = vunpack.c.l.b16 %v214
      %v226 = vunpack.c.l.b16 %v215
      %v227 = vpack.c.b16 %v226, %v225
      %vm229 = vcmask 130048
      %v231 = vsel %vm229, %v222, 0
      %233 = vmatpush.bf16.msra.mxu0 0
      %234 = vmatpush.bf16.msra.mxu0 0
      %235 = vmatpush.bf16.msra.mxu0 0
      %236 = vmatpush.bf16.msra.mxu0 0
      %237 = vmatpush.bf16.msra.mxu0 0
      %238 = vmatpush.bf16.msra.mxu0 0
      %239 = vmatpush.bf16.msra.mxu0 0
      %240 = vmatpush.bf16.msra.mxu0 %v227
      %241 = vmatmul.bf16.gmra.mxu0 %v231
      %v242 = vpop.f32.mrf.mxu0
      %v243 = vadd.f32 0.0, %v242
      %v244 = vpop.f32.mrf.mxu0
      %245 = vdwg.mxu0
      %v246 = vadd.f32 %v221, %v243
      %v247 = vsub.f32 0.0, %v246
      %v248 = vmul.f32 %v247, 1.442695
      %v249 = vpow.pop %v248
      %v250 = vadd.f32 %v249, 1.0
      %v251 = vrcp.pop %v250
      %v252 = vmul.f32 %v250, %v251
      %v253 = vsub.f32 1.0, %v252
      %v254 = vmul.f32 %v251, %v253
      %v255 = vadd.f32 %v251, %v254
      %vm256 = vweird.f32 %v250
      %vm257 = vweird.f32 %v251
      %vm258 = vmor %vm256, %vm257
      %v259 = vsel %vm258, %v251, %v255
      %v260 = vand.u32 2147483647, %v250
      %vm261 = vcmp.eq.f32.partialorder %v260, 8.507059e+37
      %v262 = vand.u32 %v250, 2147483648
      %v263 = vor.u32 1.1754944e-38, %v262
      %v264 = vsel %vm261, %v263, %v259
      %v265 = vmul.f32 1.0, %v264
      %v266 = vtanh.pop %v246
      %268 = vrot.lane.b32.xlu0 %v220, 16
      %v269 = vpop.permute.xlu0 %268
      %v271 = vmul.f32 %v265, %v269
      %273 = vrot.lane.b32.xlu0 %v266, 96
      %v274 = vpop.permute.xlu0 %273
      %v276 = vmul.f32 %v265, %v274
      %278 = vrot.lane.b32.xlu0 %v276, 16
      %v279 = vpop.permute.xlu0 %278
      %v281 = vadd.f32 %v271, %v279
      %v282 = vtanh.pop %v281
      %284 = vrot.lane.b32.xlu0 %v282, 32
      %v285 = vpop.permute.xlu0 %284
      %v287 = vmul.f32 %v265, %v285
      %289 = vrot.lane.b32.xlu0 %v287, 80
      %v290 = vpop.permute.xlu0 %289
      %vm292 = vcmask 125952
      %293 = vst.msk [vmem:[%s201] sm:$0xf] %vm292, %v290
      %s294 = scalar_lea.vmem %s186, 4
      %v295 = vld [vmem:[%s294] sm:$0xf]
      %v296 = vpack.c.bf16 %v287, %v287
      %298 = vrot.lane.b32.xlu0 %v296, 80
      %v299 = vpop.permute.xlu0 %298
      %v301 = vsel %vm229, %v299, 0
      %303 = vmatpush.bf16.msra.mxu0 0
      %304 = vmatpush.bf16.msra.mxu0 0
      %305 = vmatpush.bf16.msra.mxu0 0
      %306 = vmatpush.bf16.msra.mxu0 0
      %307 = vmatpush.bf16.msra.mxu0 0
      %308 = vmatpush.bf16.msra.mxu0 0
      %309 = vmatpush.bf16.msra.mxu0 0
      %310 = vmatpush.bf16.msra.mxu0 %v227
      %311 = vmatmul.bf16.gmra.mxu0 %v301
      %v312 = vpop.f32.mrf.mxu0
      %v313 = vadd.f32 0.0, %v312
      %v314 = vpop.f32.mrf.mxu0
      %315 = vdwg.mxu0
      %v316 = vadd.f32 %v295, %v313
      %v317 = vsub.f32 0.0, %v316
      %v318 = vmul.f32 %v317, 1.442695
      %v319 = vpow.pop %v318
      %v320 = vadd.f32 %v319, 1.0
      %v321 = vrcp.pop %v320
      %v322 = vmul.f32 %v320, %v321
      %v323 = vsub.f32 1.0, %v322
      %v324 = vmul.f32 %v321, %v323
      %v325 = vadd.f32 %v321, %v324
      %vm326 = vweird.f32 %v320
      %vm327 = vweird.f32 %v321
      %vm328 = vmor %vm326, %vm327
      %v329 = vsel %vm328, %v321, %v325
      %v330 = vand.u32 2147483647, %v320
      %vm331 = vcmp.eq.f32.partialorder %v330, 8.507059e+37
      %v332 = vand.u32 %v320, 2147483648
      %v333 = vor.u32 1.1754944e-38, %v332
      %v334 = vsel %vm331, %v333, %v329
      %v335 = vmul.f32 1.0, %v334
      %v336 = vtanh.pop %v316
      %v337 = vmul.f32 %v335, %v281
      %339 = vrot.lane.b32.xlu0 %v336, 96
      %v340 = vpop.permute.xlu0 %339
      %v342 = vmul.f32 %v335, %v340
      %344 = vrot.lane.b32.xlu0 %v342, 16
      %v345 = vpop.permute.xlu0 %344
      %v347 = vadd.f32 %v337, %v345
      %v348 = vtanh.pop %v347
      %350 = vrot.lane.b32.xlu0 %v348, 32
      %v351 = vpop.permute.xlu0 %350
      %v353 = vmul.f32 %v335, %v351
      %355 = vrot.lane.b32.xlu0 %v353, 80
      %v356 = vpop.permute.xlu0 %355
      %s358 = scalar_lea.vmem %s201, 4
      %359 = vst.msk [vmem:[%s358] sm:$0xf] %vm292, %v356
      %s360 = scalar_lea.vmem %s186, 8
      %v361 = vld [vmem:[%s360] sm:$0xf]
      %v362 = vpack.c.bf16 %v353, %v353
      %364 = vrot.lane.b32.xlu0 %v362, 80
      %v365 = vpop.permute.xlu0 %364
      %v367 = vsel %vm229, %v365, 0
      %369 = vmatpush.bf16.msra.mxu0 0
      %370 = vmatpush.bf16.msra.mxu0 0
      %371 = vmatpush.bf16.msra.mxu0 0
      %372 = vmatpush.bf16.msra.mxu0 0
      %373 = vmatpush.bf16.msra.mxu0 0
      %374 = vmatpush.bf16.msra.mxu0 0
      %375 = vmatpush.bf16.msra.mxu0 0
      %376 = vmatpush.bf16.msra.mxu0 %v227
      %377 = vmatmul.bf16.gmra.mxu0 %v367
      %v378 = vpop.f32.mrf.mxu0
      %v379 = vadd.f32 0.0, %v378
      %v380 = vpop.f32.mrf.mxu0
      %381 = vdwg.mxu0
      %v382 = vadd.f32 %v361, %v379
      %v383 = vsub.f32 0.0, %v382
      %v384 = vmul.f32 %v383, 1.442695
      %v385 = vpow.pop %v384
      %v386 = vadd.f32 %v385, 1.0
      %v387 = vrcp.pop %v386
      %v388 = vmul.f32 %v386, %v387
      %v389 = vsub.f32 1.0, %v388
      %v390 = vmul.f32 %v387, %v389
      %v391 = vadd.f32 %v387, %v390
      %vm392 = vweird.f32 %v386
      %vm393 = vweird.f32 %v387
      %vm394 = vmor %vm392, %vm393
      %v395 = vsel %vm394, %v387, %v391
      %v396 = vand.u32 2147483647, %v386
      %vm397 = vcmp.eq.f32.partialorder %v396, 8.507059e+37
      %v398 = vand.u32 %v386, 2147483648
      %v399 = vor.u32 1.1754944e-38, %v398
      %v400 = vsel %vm397, %v399, %v395
      %v401 = vmul.f32 1.0, %v400
      %v402 = vtanh.pop %v382
      %v403 = vmul.f32 %v401, %v347
      %405 = vrot.lane.b32.xlu0 %v402, 96
      %v406 = vpop.permute.xlu0 %405
      %v408 = vmul.f32 %v401, %v406
      %410 = vrot.lane.b32.xlu0 %v408, 16
      %v411 = vpop.permute.xlu0 %410
      %v413 = vadd.f32 %v403, %v411
      %v414 = vtanh.pop %v413
      %416 = vrot.lane.b32.xlu0 %v414, 32
      %v417 = vpop.permute.xlu0 %416
      %v419 = vmul.f32 %v401, %v417
      %421 = vrot.lane.b32.xlu0 %v419, 80
      %v422 = vpop.permute.xlu0 %421
      %s424 = scalar_lea.vmem %s201, 8
      %425 = vst.msk [vmem:[%s424] sm:$0xf] %vm292, %v422
      %s426 = scalar_lea.vmem %s186, 12
      %v427 = vld [vmem:[%s426] sm:$0xf]
      %v428 = vpack.c.bf16 %v419, %v419
      %430 = vrot.lane.b32.xlu0 %v428, 80
      %v431 = vpop.permute.xlu0 %430
      %v433 = vsel %vm229, %v431, 0
      %435 = vmatpush.bf16.msra.mxu0 0
      %436 = vmatpush.bf16.msra.mxu0 0
      %437 = vmatpush.bf16.msra.mxu0 0
      %438 = vmatpush.bf16.msra.mxu0 0
      %439 = vmatpush.bf16.msra.mxu0 0
      %440 = vmatpush.bf16.msra.mxu0 0
      %441 = vmatpush.bf16.msra.mxu0 0
      %442 = vmatpush.bf16.msra.mxu0 %v227
      %443 = vmatmul.bf16.gmra.mxu0 %v433
      %v444 = vpop.f32.mrf.mxu0
      %v445 = vadd.f32 0.0, %v444
      %v446 = vpop.f32.mrf.mxu0
      %447 = vdwg.mxu0
      %v448 = vadd.f32 %v427, %v445
      %v449 = vsub.f32 0.0, %v448
      %v450 = vmul.f32 %v449, 1.442695
      %v451 = vpow.pop %v450
      %v452 = vadd.f32 %v451, 1.0
      %v453 = vrcp.pop %v452
      %v454 = vmul.f32 %v452, %v453
      %v455 = vsub.f32 1.0, %v454
      %v456 = vmul.f32 %v453, %v455
      %v457 = vadd.f32 %v453, %v456
      %vm458 = vweird.f32 %v452
      %vm459 = vweird.f32 %v453
      %vm460 = vmor %vm458, %vm459
      %v461 = vsel %vm460, %v453, %v457
      %v462 = vand.u32 2147483647, %v452
      %vm463 = vcmp.eq.f32.partialorder %v462, 8.507059e+37
      %v464 = vand.u32 %v452, 2147483648
      %v465 = vor.u32 1.1754944e-38, %v464
      %v466 = vsel %vm463, %v465, %v461
      %v467 = vmul.f32 1.0, %v466
      %v468 = vtanh.pop %v448
      %v469 = vmul.f32 %v467, %v413
      %471 = vrot.lane.b32.xlu0 %v468, 96
      %v472 = vpop.permute.xlu0 %471
      %v474 = vmul.f32 %v467, %v472
      %476 = vrot.lane.b32.xlu0 %v474, 16
      %v477 = vpop.permute.xlu0 %476
      %v479 = vadd.f32 %v469, %v477
      %v480 = vtanh.pop %v479
      %482 = vrot.lane.b32.xlu0 %v480, 32
      %v483 = vpop.permute.xlu0 %482
      %v485 = vmul.f32 %v467, %v483
      %487 = vrot.lane.b32.xlu0 %v485, 80
      %v488 = vpop.permute.xlu0 %487
      %s490 = scalar_lea.vmem %s201, 12
      %491 = vst.msk [vmem:[%s490] sm:$0xf] %vm292, %v488
      %s492 = scalar_lea.vmem %s186, 16
      %v493 = vld [vmem:[%s492] sm:$0xf]
      %v494 = vpack.c.bf16 %v485, %v485
      %496 = vrot.lane.b32.xlu0 %v494, 80
      %v497 = vpop.permute.xlu0 %496
      %v499 = vsel %vm229, %v497, 0
      %501 = vmatpush.bf16.msra.mxu0 0
      %502 = vmatpush.bf16.msra.mxu0 0
      %503 = vmatpush.bf16.msra.mxu0 0
      %504 = vmatpush.bf16.msra.mxu0 0
      %505 = vmatpush.bf16.msra.mxu0 0
      %506 = vmatpush.bf16.msra.mxu0 0
      %507 = vmatpush.bf16.msra.mxu0 0
      %508 = vmatpush.bf16.msra.mxu0 %v227
      %509 = vmatmul.bf16.gmra.mxu0 %v499
      %v510 = vpop.f32.mrf.mxu0
      %v511 = vadd.f32 0.0, %v510
      %v512 = vpop.f32.mrf.mxu0
      %513 = vdwg.mxu0
      %v514 = vadd.f32 %v493, %v511
      %v515 = vsub.f32 0.0, %v514
      %v516 = vmul.f32 %v515, 1.442695
      %v517 = vpow.pop %v516
      %v518 = vadd.f32 %v517, 1.0
      %v519 = vrcp.pop %v518
      %v520 = vmul.f32 %v518, %v519
      %v521 = vsub.f32 1.0, %v520
      %v522 = vmul.f32 %v519, %v521
      %v523 = vadd.f32 %v519, %v522
      %vm524 = vweird.f32 %v518
      %vm525 = vweird.f32 %v519
      %vm526 = vmor %vm524, %vm525
      %v527 = vsel %vm526, %v519, %v523
      %v528 = vand.u32 2147483647, %v518
      %vm529 = vcmp.eq.f32.partialorder %v528, 8.507059e+37
      %v530 = vand.u32 %v518, 2147483648
      %v531 = vor.u32 1.1754944e-38, %v530
      %v532 = vsel %vm529, %v531, %v527
      %v533 = vmul.f32 1.0, %v532
      %v534 = vtanh.pop %v514
      %v535 = vmul.f32 %v533, %v479
      %537 = vrot.lane.b32.xlu0 %v534, 96
      %v538 = vpop.permute.xlu0 %537
      %v540 = vmul.f32 %v533, %v538
      %542 = vrot.lane.b32.xlu0 %v540, 16
      %v543 = vpop.permute.xlu0 %542
      %v545 = vadd.f32 %v535, %v543
      %v546 = vtanh.pop %v545
      %548 = vrot.lane.b32.xlu0 %v546, 32
      %v549 = vpop.permute.xlu0 %548
      %v551 = vmul.f32 %v533, %v549
      %553 = vrot.lane.b32.xlu0 %v551, 80
      %v554 = vpop.permute.xlu0 %553
      %s556 = scalar_lea.vmem %s201, 16
      %557 = vst.msk [vmem:[%s556] sm:$0xf] %vm292, %v554
      %s558 = scalar_lea.vmem %s186, 20
      %v559 = vld [vmem:[%s558] sm:$0xf]
      %v560 = vpack.c.bf16 %v551, %v551
      %562 = vrot.lane.b32.xlu0 %v560, 80
      %v563 = vpop.permute.xlu0 %562
      %v565 = vsel %vm229, %v563, 0
      %567 = vmatpush.bf16.msra.mxu0 0
      %568 = vmatpush.bf16.msra.mxu0 0
      %569 = vmatpush.bf16.msra.mxu0 0
      %570 = vmatpush.bf16.msra.mxu0 0
      %571 = vmatpush.bf16.msra.mxu0 0
      %572 = vmatpush.bf16.msra.mxu0 0
      %573 = vmatpush.bf16.msra.mxu0 0
      %574 = vmatpush.bf16.msra.mxu0 %v227
      %575 = vmatmul.bf16.gmra.mxu0 %v565
      %v576 = vpop.f32.mrf.mxu0
      %v577 = vadd.f32 0.0, %v576
      %v578 = vpop.f32.mrf.mxu0
      %579 = vdwg.mxu0
      %v580 = vadd.f32 %v559, %v577
      %v581 = vsub.f32 0.0, %v580
      %v582 = vmul.f32 %v581, 1.442695
      %v583 = vpow.pop %v582
      %v584 = vadd.f32 %v583, 1.0
      %v585 = vrcp.pop %v584
      %v586 = vmul.f32 %v584, %v585
      %v587 = vsub.f32 1.0, %v586
      %v588 = vmul.f32 %v585, %v587
      %v589 = vadd.f32 %v585, %v588
      %vm590 = vweird.f32 %v584
      %vm591 = vweird.f32 %v585
      %vm592 = vmor %vm590, %vm591
      %v593 = vsel %vm592, %v585, %v589
      %v594 = vand.u32 2147483647, %v584
      %vm595 = vcmp.eq.f32.partialorder %v594, 8.507059e+37
      %v596 = vand.u32 %v584, 2147483648
      %v597 = vor.u32 1.1754944e-38, %v596
      %v598 = vsel %vm595, %v597, %v593
      %v599 = vmul.f32 1.0, %v598
      %v600 = vtanh.pop %v580
      %v601 = vmul.f32 %v599, %v545
      %603 = vrot.lane.b32.xlu0 %v600, 96
      %v604 = vpop.permute.xlu0 %603
      %v606 = vmul.f32 %v599, %v604
      %608 = vrot.lane.b32.xlu0 %v606, 16
      %v609 = vpop.permute.xlu0 %608
      %v611 = vadd.f32 %v601, %v609
      %v612 = vtanh.pop %v611
      %614 = vrot.lane.b32.xlu0 %v612, 32
      %v615 = vpop.permute.xlu0 %614
      %v617 = vmul.f32 %v599, %v615
      %619 = vrot.lane.b32.xlu0 %v617, 80
      %v620 = vpop.permute.xlu0 %619
      %s622 = scalar_lea.vmem %s201, 20
      %623 = vst.msk [vmem:[%s622] sm:$0xf] %vm292, %v620
      %s624 = scalar_lea.vmem %s186, 24
      %v625 = vld [vmem:[%s624] sm:$0xf]
      %v626 = vpack.c.bf16 %v617, %v617
      %628 = vrot.lane.b32.xlu0 %v626, 80
      %v629 = vpop.permute.xlu0 %628
      %v631 = vsel %vm229, %v629, 0
      %633 = vmatpush.bf16.msra.mxu0 0
      %634 = vmatpush.bf16.msra.mxu0 0
      %635 = vmatpush.bf16.msra.mxu0 0
      %636 = vmatpush.bf16.msra.mxu0 0
      %637 = vmatpush.bf16.msra.mxu0 0
      %638 = vmatpush.bf16.msra.mxu0 0
      %639 = vmatpush.bf16.msra.mxu0 0
      %640 = vmatpush.bf16.msra.mxu0 %v227
      %641 = vmatmul.bf16.gmra.mxu0 %v631
      %v642 = vpop.f32.mrf.mxu0
      %v643 = vadd.f32 0.0, %v642
      %v644 = vpop.f32.mrf.mxu0
      %645 = vdwg.mxu0
      %v646 = vadd.f32 %v625, %v643
      %v647 = vsub.f32 0.0, %v646
      %v648 = vmul.f32 %v647, 1.442695
      %v649 = vpow.pop %v648
      %v650 = vadd.f32 %v649, 1.0
      %v651 = vrcp.pop %v650
      %v652 = vmul.f32 %v650, %v651
      %v653 = vsub.f32 1.0, %v652
      %v654 = vmul.f32 %v651, %v653
      %v655 = vadd.f32 %v651, %v654
      %vm656 = vweird.f32 %v650
      %vm657 = vweird.f32 %v651
      %vm658 = vmor %vm656, %vm657
      %v659 = vsel %vm658, %v651, %v655
      %v660 = vand.u32 2147483647, %v650
      %vm661 = vcmp.eq.f32.partialorder %v660, 8.507059e+37
      %v662 = vand.u32 %v650, 2147483648
      %v663 = vor.u32 1.1754944e-38, %v662
      %v664 = vsel %vm661, %v663, %v659
      %v665 = vmul.f32 1.0, %v664
      %v666 = vtanh.pop %v646
      %v667 = vmul.f32 %v665, %v611
      %669 = vrot.lane.b32.xlu0 %v666, 96
      %v670 = vpop.permute.xlu0 %669
      %v672 = vmul.f32 %v665, %v670
      %674 = vrot.lane.b32.xlu0 %v672, 16
      %v675 = vpop.permute.xlu0 %674
      %v677 = vadd.f32 %v667, %v675
      %v678 = vtanh.pop %v677
      %680 = vrot.lane.b32.xlu0 %v678, 32
      %v681 = vpop.permute.xlu0 %680
      %v683 = vmul.f32 %v665, %v681
      %685 = vrot.lane.b32.xlu0 %v683, 80
      %v686 = vpop.permute.xlu0 %685
      %s688 = scalar_lea.vmem %s201, 24
      %689 = vst.msk [vmem:[%s688] sm:$0xf] %vm292, %v686
      %s690 = scalar_lea.vmem %s186, 28
      %v691 = vld [vmem:[%s690] sm:$0xf]
      %v692 = vpack.c.bf16 %v683, %v683
      %694 = vrot.lane.b32.xlu0 %v692, 80
      %v695 = vpop.permute.xlu0 %694
      %v697 = vsel %vm229, %v695, 0
      %699 = vmatpush.bf16.msra.mxu0 0
      %700 = vmatpush.bf16.msra.mxu0 0
      %701 = vmatpush.bf16.msra.mxu0 0
      %702 = vmatpush.bf16.msra.mxu0 0
      %703 = vmatpush.bf16.msra.mxu0 0
      %704 = vmatpush.bf16.msra.mxu0 0
      %705 = vmatpush.bf16.msra.mxu0 0
      %706 = vmatpush.bf16.msra.mxu0 %v227
      %707 = vmatmul.bf16.gmra.mxu0 %v697
      %v708 = vpop.f32.mrf.mxu0
      %v709 = vadd.f32 0.0, %v708
      %v710 = vpop.f32.mrf.mxu0
      %711 = vdwg.mxu0
      %v712 = vadd.f32 %v691, %v709
      %v713 = vsub.f32 0.0, %v712
      %v714 = vmul.f32 %v713, 1.442695
      %v715 = vpow.pop %v714
      %v716 = vadd.f32 %v715, 1.0
      %v717 = vrcp.pop %v716
      %v718 = vmul.f32 %v716, %v717
      %v719 = vsub.f32 1.0, %v718
      %v720 = vmul.f32 %v717, %v719
      %v721 = vadd.f32 %v717, %v720
      %vm722 = vweird.f32 %v716
      %vm723 = vweird.f32 %v717
      %vm724 = vmor %vm722, %vm723
      %v725 = vsel %vm724, %v717, %v721
      %v726 = vand.u32 2147483647, %v716
      %vm727 = vcmp.eq.f32.partialorder %v726, 8.507059e+37
      %v728 = vand.u32 %v716, 2147483648
      %v729 = vor.u32 1.1754944e-38, %v728
      %v730 = vsel %vm727, %v729, %v725
      %v731 = vmul.f32 1.0, %v730
      %v732 = vtanh.pop %v712
      %v733 = vmul.f32 %v731, %v677
      %735 = vrot.lane.b32.xlu0 %v732, 96
      %v736 = vpop.permute.xlu0 %735
      %v738 = vmul.f32 %v731, %v736
      %740 = vrot.lane.b32.xlu0 %v738, 16
      %v741 = vpop.permute.xlu0 %740
      %v743 = vadd.f32 %v733, %v741
      %v744 = vtanh.pop %v743
      %746 = vrot.lane.b32.xlu0 %v744, 32
      %v747 = vpop.permute.xlu0 %746
      %v749 = vmul.f32 %v731, %v747
      %751 = vrot.lane.b32.xlu0 %v749, 80
      %v752 = vpop.permute.xlu0 %751
      %s754 = scalar_lea.vmem %s201, 28
      %755 = vst.msk [vmem:[%s754] sm:$0xf] %vm292, %v752
      %s756 = scalar_lea.vmem %s186, 32
      %v757 = vld [vmem:[%s756] sm:$0xf]
      %v758 = vpack.c.bf16 %v749, %v749
      %760 = vrot.lane.b32.xlu0 %v758, 80
      %v761 = vpop.permute.xlu0 %760
      %v763 = vsel %vm229, %v761, 0
      %765 = vmatpush.bf16.msra.mxu0 0
      %766 = vmatpush.bf16.msra.mxu0 0
      %767 = vmatpush.bf16.msra.mxu0 0
      %768 = vmatpush.bf16.msra.mxu0 0
      %769 = vmatpush.bf16.msra.mxu0 0
      %770 = vmatpush.bf16.msra.mxu0 0
      %771 = vmatpush.bf16.msra.mxu0 0
      %772 = vmatpush.bf16.msra.mxu0 %v227
      %773 = vmatmul.bf16.gmra.mxu0 %v763
      %v774 = vpop.f32.mrf.mxu0
      %v775 = vadd.f32 0.0, %v774
      %v776 = vpop.f32.mrf.mxu0
      %777 = vdwg.mxu0
      %v778 = vadd.f32 %v757, %v775
      %v779 = vsub.f32 0.0, %v778
      %v780 = vmul.f32 %v779, 1.442695
      %v781 = vpow.pop %v780
      %v782 = vadd.f32 %v781, 1.0
      %v783 = vrcp.pop %v782
      %v784 = vmul.f32 %v782, %v783
      %v785 = vsub.f32 1.0, %v784
      %v786 = vmul.f32 %v783, %v785
      %v787 = vadd.f32 %v783, %v786
      %vm788 = vweird.f32 %v782
      %vm789 = vweird.f32 %v783
      %vm790 = vmor %vm788, %vm789
      %v791 = vsel %vm790, %v783, %v787
      %v792 = vand.u32 2147483647, %v782
      %vm793 = vcmp.eq.f32.partialorder %v792, 8.507059e+37
      %v794 = vand.u32 %v782, 2147483648
      %v795 = vor.u32 1.1754944e-38, %v794
      %v796 = vsel %vm793, %v795, %v791
      %v797 = vmul.f32 1.0, %v796
      %v798 = vtanh.pop %v778
      %v799 = vmul.f32 %v797, %v743
      %801 = vrot.lane.b32.xlu0 %v798, 96
      %v802 = vpop.permute.xlu0 %801
      %v804 = vmul.f32 %v797, %v802
      %806 = vrot.lane.b32.xlu0 %v804, 16
      %v807 = vpop.permute.xlu0 %806
      %v809 = vadd.f32 %v799, %v807
      %v810 = vtanh.pop %v809
      %812 = vrot.lane.b32.xlu0 %v810, 32
      %v813 = vpop.permute.xlu0 %812
      %v815 = vmul.f32 %v797, %v813
      %817 = vrot.lane.b32.xlu0 %v815, 80
      %v818 = vpop.permute.xlu0 %817
      %s820 = scalar_lea.vmem %s201, 32
      %821 = vst.msk [vmem:[%s820] sm:$0xf] %vm292, %v818
      %s822 = scalar_lea.vmem %s186, 36
      %v823 = vld [vmem:[%s822] sm:$0xf]
      %v824 = vpack.c.bf16 %v815, %v815
      %826 = vrot.lane.b32.xlu0 %v824, 80
      %v827 = vpop.permute.xlu0 %826
      %v829 = vsel %vm229, %v827, 0
      %831 = vmatpush.bf16.msra.mxu0 0
      %832 = vmatpush.bf16.msra.mxu0 0
      %833 = vmatpush.bf16.msra.mxu0 0
      %834 = vmatpush.bf16.msra.mxu0 0
      %835 = vmatpush.bf16.msra.mxu0 0
      %836 = vmatpush.bf16.msra.mxu0 0
      %837 = vmatpush.bf16.msra.mxu0 0
      %838 = vmatpush.bf16.msra.mxu0 %v227
      %839 = vmatmul.bf16.gmra.mxu0 %v829
      %v840 = vpop.f32.mrf.mxu0
      %v841 = vadd.f32 0.0, %v840
      %v842 = vpop.f32.mrf.mxu0
      %843 = vdwg.mxu0
      %v844 = vadd.f32 %v823, %v841
      %v845 = vsub.f32 0.0, %v844
      %v846 = vmul.f32 %v845, 1.442695
      %v847 = vpow.pop %v846
      %v848 = vadd.f32 %v847, 1.0
      %v849 = vrcp.pop %v848
      %v850 = vmul.f32 %v848, %v849
      %v851 = vsub.f32 1.0, %v850
      %v852 = vmul.f32 %v849, %v851
      %v853 = vadd.f32 %v849, %v852
      %vm854 = vweird.f32 %v848
      %vm855 = vweird.f32 %v849
      %vm856 = vmor %vm854, %vm855
      %v857 = vsel %vm856, %v849, %v853
      %v858 = vand.u32 2147483647, %v848
      %vm859 = vcmp.eq.f32.partialorder %v858, 8.507059e+37
      %v860 = vand.u32 %v848, 2147483648
      %v861 = vor.u32 1.1754944e-38, %v860
      %v862 = vsel %vm859, %v861, %v857
      %v863 = vmul.f32 1.0, %v862
      %v864 = vtanh.pop %v844
      %v865 = vmul.f32 %v863, %v809
      %867 = vrot.lane.b32.xlu0 %v864, 96
      %v868 = vpop.permute.xlu0 %867
      %v870 = vmul.f32 %v863, %v868
      %872 = vrot.lane.b32.xlu0 %v870, 16
      %v873 = vpop.permute.xlu0 %872
      %v875 = vadd.f32 %v865, %v873
      %v876 = vtanh.pop %v875
      %878 = vrot.lane.b32.xlu0 %v876, 32
      %v879 = vpop.permute.xlu0 %878
      %v881 = vmul.f32 %v863, %v879
      %883 = vrot.lane.b32.xlu0 %v881, 80
      %v884 = vpop.permute.xlu0 %883
      %s886 = scalar_lea.vmem %s201, 36
      %887 = vst.msk [vmem:[%s886] sm:$0xf] %vm292, %v884
      %s888 = scalar_lea.vmem %s186, 40
      %v889 = vld [vmem:[%s888] sm:$0xf]
      %v890 = vpack.c.bf16 %v881, %v881
      %892 = vrot.lane.b32.xlu0 %v890, 80
      %v893 = vpop.permute.xlu0 %892
      %v895 = vsel %vm229, %v893, 0
      %897 = vmatpush.bf16.msra.mxu0 0
      %898 = vmatpush.bf16.msra.mxu0 0
      %899 = vmatpush.bf16.msra.mxu0 0
      %900 = vmatpush.bf16.msra.mxu0 0
      %901 = vmatpush.bf16.msra.mxu0 0
      %902 = vmatpush.bf16.msra.mxu0 0
      %903 = vmatpush.bf16.msra.mxu0 0
      %904 = vmatpush.bf16.msra.mxu0 %v227
      %905 = vmatmul.bf16.gmra.mxu0 %v895
      %v906 = vpop.f32.mrf.mxu0
      %v907 = vadd.f32 0.0, %v906
      %v908 = vpop.f32.mrf.mxu0
      %909 = vdwg.mxu0
      %v910 = vadd.f32 %v889, %v907
      %v911 = vsub.f32 0.0, %v910
      %v912 = vmul.f32 %v911, 1.442695
      %v913 = vpow.pop %v912
      %v914 = vadd.f32 %v913, 1.0
      %v915 = vrcp.pop %v914
      %v916 = vmul.f32 %v914, %v915
      %v917 = vsub.f32 1.0, %v916
      %v918 = vmul.f32 %v915, %v917
      %v919 = vadd.f32 %v915, %v918
      %vm920 = vweird.f32 %v914
      %vm921 = vweird.f32 %v915
      %vm922 = vmor %vm920, %vm921
      %v923 = vsel %vm922, %v915, %v919
      %v924 = vand.u32 2147483647, %v914
      %vm925 = vcmp.eq.f32.partialorder %v924, 8.507059e+37
      %v926 = vand.u32 %v914, 2147483648
      %v927 = vor.u32 1.1754944e-38, %v926
      %v928 = vsel %vm925, %v927, %v923
      %v929 = vmul.f32 1.0, %v928
      %v930 = vtanh.pop %v910
      %v931 = vmul.f32 %v929, %v875
      %933 = vrot.lane.b32.xlu0 %v930, 96
      %v934 = vpop.permute.xlu0 %933
      %v936 = vmul.f32 %v929, %v934
      %938 = vrot.lane.b32.xlu0 %v936, 16
      %v939 = vpop.permute.xlu0 %938
      %v941 = vadd.f32 %v931, %v939
      %v942 = vtanh.pop %v941
      %944 = vrot.lane.b32.xlu0 %v942, 32
      %v945 = vpop.permute.xlu0 %944
      %v947 = vmul.f32 %v929, %v945
      %949 = vrot.lane.b32.xlu0 %v947, 80
      %v950 = vpop.permute.xlu0 %949
      %s952 = scalar_lea.vmem %s201, 40
      %953 = vst.msk [vmem:[%s952] sm:$0xf] %vm292, %v950
      %s954 = scalar_lea.vmem %s186, 44
      %v955 = vld [vmem:[%s954] sm:$0xf]
      %v956 = vpack.c.bf16 %v947, %v947
      %958 = vrot.lane.b32.xlu0 %v956, 80
      %v959 = vpop.permute.xlu0 %958
      %v961 = vsel %vm229, %v959, 0
      %963 = vmatpush.bf16.msra.mxu0 0
      %964 = vmatpush.bf16.msra.mxu0 0
      %965 = vmatpush.bf16.msra.mxu0 0
      %966 = vmatpush.bf16.msra.mxu0 0
      %967 = vmatpush.bf16.msra.mxu0 0
      %968 = vmatpush.bf16.msra.mxu0 0
      %969 = vmatpush.bf16.msra.mxu0 0
      %970 = vmatpush.bf16.msra.mxu0 %v227
      %971 = vmatmul.bf16.gmra.mxu0 %v961
      %v972 = vpop.f32.mrf.mxu0
      %v973 = vadd.f32 0.0, %v972
      %v974 = vpop.f32.mrf.mxu0
      %975 = vdwg.mxu0
      %v976 = vadd.f32 %v955, %v973
      %v977 = vsub.f32 0.0, %v976
      %v978 = vmul.f32 %v977, 1.442695
      %v979 = vpow.pop %v978
      %v980 = vadd.f32 %v979, 1.0
      %v981 = vrcp.pop %v980
      %v982 = vmul.f32 %v980, %v981
      %v983 = vsub.f32 1.0, %v982
      %v984 = vmul.f32 %v981, %v983
      %v985 = vadd.f32 %v981, %v984
      %vm986 = vweird.f32 %v980
      %vm987 = vweird.f32 %v981
      %vm988 = vmor %vm986, %vm987
      %v989 = vsel %vm988, %v981, %v985
      %v990 = vand.u32 2147483647, %v980
      %vm991 = vcmp.eq.f32.partialorder %v990, 8.507059e+37
      %v992 = vand.u32 %v980, 2147483648
      %v993 = vor.u32 1.1754944e-38, %v992
      %v994 = vsel %vm991, %v993, %v989
      %v995 = vmul.f32 1.0, %v994
      %v996 = vtanh.pop %v976
      %v997 = vmul.f32 %v995, %v941
      %999 = vrot.lane.b32.xlu0 %v996, 96
      %v1000 = vpop.permute.xlu0 %999
      %v1002 = vmul.f32 %v995, %v1000
      %1004 = vrot.lane.b32.xlu0 %v1002, 16
      %v1005 = vpop.permute.xlu0 %1004
      %v1007 = vadd.f32 %v997, %v1005
      %v1008 = vtanh.pop %v1007
      %1010 = vrot.lane.b32.xlu0 %v1008, 32
      %v1011 = vpop.permute.xlu0 %1010
      %v1013 = vmul.f32 %v995, %v1011
      %1015 = vrot.lane.b32.xlu0 %v1013, 80
      %v1016 = vpop.permute.xlu0 %1015
      %s1018 = scalar_lea.vmem %s201, 44
      %1019 = vst.msk [vmem:[%s1018] sm:$0xf] %vm292, %v1016
      %s1020 = scalar_lea.vmem %s186, 48
      %v1021 = vld [vmem:[%s1020] sm:$0xf]
      %v1022 = vpack.c.bf16 %v1013, %v1013
      %1024 = vrot.lane.b32.xlu0 %v1022, 80
      %v1025 = vpop.permute.xlu0 %1024
      %v1027 = vsel %vm229, %v1025, 0
      %1029 = vmatpush.bf16.msra.mxu0 0
      %1030 = vmatpush.bf16.msra.mxu0 0
      %1031 = vmatpush.bf16.msra.mxu0 0
      %1032 = vmatpush.bf16.msra.mxu0 0
      %1033 = vmatpush.bf16.msra.mxu0 0
      %1034 = vmatpush.bf16.msra.mxu0 0
      %1035 = vmatpush.bf16.msra.mxu0 0
      %1036 = vmatpush.bf16.msra.mxu0 %v227
      %1037 = vmatmul.bf16.gmra.mxu0 %v1027
      %v1038 = vpop.f32.mrf.mxu0
      %v1039 = vadd.f32 0.0, %v1038
      %v1040 = vpop.f32.mrf.mxu0
      %1041 = vdwg.mxu0
      %v1042 = vadd.f32 %v1021, %v1039
      %v1043 = vsub.f32 0.0, %v1042
      %v1044 = vmul.f32 %v1043, 1.442695
      %v1045 = vpow.pop %v1044
      %v1046 = vadd.f32 %v1045, 1.0
      %v1047 = vrcp.pop %v1046
      %v1048 = vmul.f32 %v1046, %v1047
      %v1049 = vsub.f32 1.0, %v1048
      %v1050 = vmul.f32 %v1047, %v1049
      %v1051 = vadd.f32 %v1047, %v1050
      %vm1052 = vweird.f32 %v1046
      %vm1053 = vweird.f32 %v1047
      %vm1054 = vmor %vm1052, %vm1053
      %v1055 = vsel %vm1054, %v1047, %v1051
      %v1056 = vand.u32 2147483647, %v1046
      %vm1057 = vcmp.eq.f32.partialorder %v1056, 8.507059e+37
      %v1058 = vand.u32 %v1046, 2147483648
      %v1059 = vor.u32 1.1754944e-38, %v1058
      %v1060 = vsel %vm1057, %v1059, %v1055
      %v1061 = vmul.f32 1.0, %v1060
      %v1062 = vtanh.pop %v1042
      %v1063 = vmul.f32 %v1061, %v1007
      %1065 = vrot.lane.b32.xlu0 %v1062, 96
      %v1066 = vpop.permute.xlu0 %1065
      %v1068 = vmul.f32 %v1061, %v1066
      %1070 = vrot.lane.b32.xlu0 %v1068, 16
      %v1071 = vpop.permute.xlu0 %1070
      %v1073 = vadd.f32 %v1063, %v1071
      %v1074 = vtanh.pop %v1073
      %1076 = vrot.lane.b32.xlu0 %v1074, 32
      %v1077 = vpop.permute.xlu0 %1076
      %v1079 = vmul.f32 %v1061, %v1077
      %1081 = vrot.lane.b32.xlu0 %v1079, 80
      %v1082 = vpop.permute.xlu0 %1081
      %s1084 = scalar_lea.vmem %s201, 48
      %1085 = vst.msk [vmem:[%s1084] sm:$0xf] %vm292, %v1082
      %s1086 = scalar_lea.vmem %s186, 52
      %v1087 = vld [vmem:[%s1086] sm:$0xf]
      %v1088 = vpack.c.bf16 %v1079, %v1079
      %1090 = vrot.lane.b32.xlu0 %v1088, 80
      %v1091 = vpop.permute.xlu0 %1090
      %v1093 = vsel %vm229, %v1091, 0
      %1095 = vmatpush.bf16.msra.mxu0 0
      %1096 = vmatpush.bf16.msra.mxu0 0
      %1097 = vmatpush.bf16.msra.mxu0 0
      %1098 = vmatpush.bf16.msra.mxu0 0
      %1099 = vmatpush.bf16.msra.mxu0 0
      %1100 = vmatpush.bf16.msra.mxu0 0
      %1101 = vmatpush.bf16.msra.mxu0 0
      %1102 = vmatpush.bf16.msra.mxu0 %v227
      %1103 = vmatmul.bf16.gmra.mxu0 %v1093
      %v1104 = vpop.f32.mrf.mxu0
      %v1105 = vadd.f32 0.0, %v1104
      %v1106 = vpop.f32.mrf.mxu0
      %1107 = vdwg.mxu0
      %v1108 = vadd.f32 %v1087, %v1105
      %v1109 = vsub.f32 0.0, %v1108
      %v1110 = vmul.f32 %v1109, 1.442695
      %v1111 = vpow.pop %v1110
      %v1112 = vadd.f32 %v1111, 1.0
      %v1113 = vrcp.pop %v1112
      %v1114 = vmul.f32 %v1112, %v1113
      %v1115 = vsub.f32 1.0, %v1114
      %v1116 = vmul.f32 %v1113, %v1115
      %v1117 = vadd.f32 %v1113, %v1116
      %vm1118 = vweird.f32 %v1112
      %vm1119 = vweird.f32 %v1113
      %vm1120 = vmor %vm1118, %vm1119
      %v1121 = vsel %vm1120, %v1113, %v1117
      %v1122 = vand.u32 2147483647, %v1112
      %vm1123 = vcmp.eq.f32.partialorder %v1122, 8.507059e+37
      %v1124 = vand.u32 %v1112, 2147483648
      %v1125 = vor.u32 1.1754944e-38, %v1124
      %v1126 = vsel %vm1123, %v1125, %v1121
      %v1127 = vmul.f32 1.0, %v1126
      %v1128 = vtanh.pop %v1108
      %v1129 = vmul.f32 %v1127, %v1073
      %1131 = vrot.lane.b32.xlu0 %v1128, 96
      %v1132 = vpop.permute.xlu0 %1131
      %v1134 = vmul.f32 %v1127, %v1132
      %1136 = vrot.lane.b32.xlu0 %v1134, 16
      %v1137 = vpop.permute.xlu0 %1136
      %v1139 = vadd.f32 %v1129, %v1137
      %v1140 = vtanh.pop %v1139
      %1142 = vrot.lane.b32.xlu0 %v1140, 32
      %v1143 = vpop.permute.xlu0 %1142
      %v1145 = vmul.f32 %v1127, %v1143
      %1147 = vrot.lane.b32.xlu0 %v1145, 80
      %v1148 = vpop.permute.xlu0 %1147
      %s1150 = scalar_lea.vmem %s201, 52
      %1151 = vst.msk [vmem:[%s1150] sm:$0xf] %vm292, %v1148
      %s1152 = scalar_lea.vmem %s186, 56
      %v1153 = vld [vmem:[%s1152] sm:$0xf]
      %v1154 = vpack.c.bf16 %v1145, %v1145
      %1156 = vrot.lane.b32.xlu0 %v1154, 80
      %v1157 = vpop.permute.xlu0 %1156
      %v1159 = vsel %vm229, %v1157, 0
      %1161 = vmatpush.bf16.msra.mxu0 0
      %1162 = vmatpush.bf16.msra.mxu0 0
      %1163 = vmatpush.bf16.msra.mxu0 0
      %1164 = vmatpush.bf16.msra.mxu0 0
      %1165 = vmatpush.bf16.msra.mxu0 0
      %1166 = vmatpush.bf16.msra.mxu0 0
      %1167 = vmatpush.bf16.msra.mxu0 0
      %1168 = vmatpush.bf16.msra.mxu0 %v227
      %1169 = vmatmul.bf16.gmra.mxu0 %v1159
      %v1170 = vpop.f32.mrf.mxu0
      %v1171 = vadd.f32 0.0, %v1170
      %v1172 = vpop.f32.mrf.mxu0
      %1173 = vdwg.mxu0
      %v1174 = vadd.f32 %v1153, %v1171
      %v1175 = vsub.f32 0.0, %v1174
      %v1176 = vmul.f32 %v1175, 1.442695
      %v1177 = vpow.pop %v1176
      %v1178 = vadd.f32 %v1177, 1.0
      %v1179 = vrcp.pop %v1178
      %v1180 = vmul.f32 %v1178, %v1179
      %v1181 = vsub.f32 1.0, %v1180
      %v1182 = vmul.f32 %v1179, %v1181
      %v1183 = vadd.f32 %v1179, %v1182
      %vm1184 = vweird.f32 %v1178
      %vm1185 = vweird.f32 %v1179
      %vm1186 = vmor %vm1184, %vm1185
      %v1187 = vsel %vm1186, %v1179, %v1183
      %v1188 = vand.u32 2147483647, %v1178
      %vm1189 = vcmp.eq.f32.partialorder %v1188, 8.507059e+37
      %v1190 = vand.u32 %v1178, 2147483648
      %v1191 = vor.u32 1.1754944e-38, %v1190
      %v1192 = vsel %vm1189, %v1191, %v1187
      %v1193 = vmul.f32 1.0, %v1192
      %v1194 = vtanh.pop %v1174
      %v1195 = vmul.f32 %v1193, %v1139
      %1197 = vrot.lane.b32.xlu0 %v1194, 96
      %v1198 = vpop.permute.xlu0 %1197
      %v1200 = vmul.f32 %v1193, %v1198
      %1202 = vrot.lane.b32.xlu0 %v1200, 16
      %v1203 = vpop.permute.xlu0 %1202
      %v1205 = vadd.f32 %v1195, %v1203
      %v1206 = vtanh.pop %v1205
      %1208 = vrot.lane.b32.xlu0 %v1206, 32
      %v1209 = vpop.permute.xlu0 %1208
      %v1211 = vmul.f32 %v1193, %v1209
      %1213 = vrot.lane.b32.xlu0 %v1211, 80
      %v1214 = vpop.permute.xlu0 %1213
      %s1216 = scalar_lea.vmem %s201, 56
      %1217 = vst.msk [vmem:[%s1216] sm:$0xf] %vm292, %v1214
      %s1218 = scalar_lea.vmem %s186, 60
      %v1219 = vld [vmem:[%s1218] sm:$0xf]
      %v1220 = vpack.c.bf16 %v1211, %v1211
      %1222 = vrot.lane.b32.xlu0 %v1220, 80
      %v1223 = vpop.permute.xlu0 %1222
      %v1225 = vsel %vm229, %v1223, 0
      %1227 = vmatpush.bf16.msra.mxu0 0
      %1228 = vmatpush.bf16.msra.mxu0 0
      %1229 = vmatpush.bf16.msra.mxu0 0
      %1230 = vmatpush.bf16.msra.mxu0 0
      %1231 = vmatpush.bf16.msra.mxu0 0
      %1232 = vmatpush.bf16.msra.mxu0 0
      %1233 = vmatpush.bf16.msra.mxu0 0
      %1234 = vmatpush.bf16.msra.mxu0 %v227
      %1235 = vmatmul.bf16.gmra.mxu0 %v1225
      %v1236 = vpop.f32.mrf.mxu0
      %v1237 = vadd.f32 0.0, %v1236
      %v1238 = vpop.f32.mrf.mxu0
      %1239 = vdwg.mxu0
      %v1240 = vadd.f32 %v1219, %v1237
      %v1241 = vsub.f32 0.0, %v1240
      %v1242 = vmul.f32 %v1241, 1.442695
      %v1243 = vpow.pop %v1242
      %v1244 = vadd.f32 %v1243, 1.0
      %v1245 = vrcp.pop %v1244
      %v1246 = vmul.f32 %v1244, %v1245
      %v1247 = vsub.f32 1.0, %v1246
      %v1248 = vmul.f32 %v1245, %v1247
      %v1249 = vadd.f32 %v1245, %v1248
      %vm1250 = vweird.f32 %v1244
      %vm1251 = vweird.f32 %v1245
      %vm1252 = vmor %vm1250, %vm1251
      %v1253 = vsel %vm1252, %v1245, %v1249
      %v1254 = vand.u32 2147483647, %v1244
      %vm1255 = vcmp.eq.f32.partialorder %v1254, 8.507059e+37
      %v1256 = vand.u32 %v1244, 2147483648
      %v1257 = vor.u32 1.1754944e-38, %v1256
      %v1258 = vsel %vm1255, %v1257, %v1253
      %v1259 = vmul.f32 1.0, %v1258
      %v1260 = vtanh.pop %v1240
      %v1261 = vmul.f32 %v1259, %v1205
      %1263 = vrot.lane.b32.xlu0 %v1260, 96
      %v1264 = vpop.permute.xlu0 %1263
      %v1266 = vmul.f32 %v1259, %v1264
      %1268 = vrot.lane.b32.xlu0 %v1266, 16
      %v1269 = vpop.permute.xlu0 %1268
      %v1271 = vadd.f32 %v1261, %v1269
      %v1272 = vtanh.pop %v1271
      %1274 = vrot.lane.b32.xlu0 %v1272, 32
      %v1275 = vpop.permute.xlu0 %1274
      %v1277 = vmul.f32 %v1259, %v1275
      %1279 = vrot.lane.b32.xlu0 %v1277, 80
      %v1280 = vpop.permute.xlu0 %1279
      %s1282 = scalar_lea.vmem %s201, 60
      %1283 = vst.msk [vmem:[%s1282] sm:$0xf] %vm292, %v1280
      %1284 = vst.msk [vmem:[%s217] sm:$0xf] %vm292, %v1280
      %1286 = vrot.lane.b32.xlu0 %v1271, 112
      %v1287 = vpop.permute.xlu0 %1286
      %1289 = vst.msk [vmem:[%s219] sm:$0xf] %vm292, %v1287
      %s1290 = smul.u32 16, %s18
      %p1291 = scmp.lt.s32.totalorder %s17, 1
      %s1292 = scalar_select %p1291, %s17, 1
      %p1293 = scmp.lt.s32.totalorder %s1290, 47
      %s1294 = scalar_select %p1293, %s1290, 47
      %s1295 = smul.addr %s1292, 48
      %s1296 = sadd.s32 %s1294, %s1295
      %s1297 = smul.addr %s1296, 4
      %s1298 = scalar_lea.vmem %s2, %s1297
      // Predicated region
      $region33: #{open_unmix_forward.15} parent=27 // pred_check
        %p1299 = pneg %p99
      $region34: #{open_unmix_forward.15} parent=27 // pred_check_branch
        %1301 = sbr.rel (%p1299) target = $region36
      $region35: #{open_unmix_forward.15} parent=27 // pred_region
        %s1302 = smul.u32 16, %s18
      $region36: #{open_unmix_forward.15} parent=27 // pred_fallthru
        _
    $region28: #{open_unmix_forward.15} parent=5 // pred_fallthru
      _
    %p1303 = scmp.le.s32.totalorder 2, %s8
    // Predicated region
    $region37: #{open_unmix_forward.15} parent=5 // pred_check
      %p1304 = pneg %p1303
    $region38: #{open_unmix_forward.15} parent=5 // pred_check_branch
      %1306 = sbr.rel (%p1304) target = $region40
    $region39: #{open_unmix_forward.15} parent=5 // pred_region
      %s1307 = ssub.s32 %s8, 2
      // Predicated region
      $region41: #{open_unmix_forward.15} parent=39 // pred_check
        %p1308 = pneg %p105
      $region42: #{open_unmix_forward.15} parent=39 // pred_check_branch
        %1310 = sbr.rel (%p1308) target = $region44
      $region43: #{open_unmix_forward.15} parent=39 // pred_region
        %s1311 = smul.u32 16, %s20
        %p1312 = scmp.lt.s32.totalorder %s19, 1
        %s1313 = scalar_select %p1312, %s19, 1
        %p1314 = scmp.lt.s32.totalorder %s1311, 47
        %s1315 = scalar_select %p1314, %s1311, 47
        %s1316 = smul.addr %s1313, 48
        %s1317 = sadd.s32 %s1315, %s1316
        %s1318 = smul.addr %s1317, 4
        %s1319 = scalar_lea.vmem %s2, %s1318
      $region44: #{open_unmix_forward.15} parent=39 // pred_fallthru
        _
    $region40: #{open_unmix_forward.15} parent=5 // pred_fallthru
      _
  $region6: #{open_unmix_forward.15} parent=0 // loop_footer
    %s12 = sadd.s32 1, %s8
  $region7: #{open_unmix_forward.15} parent=0 // loop_footer_branch
    %7 = sbr.rel target = $region3
  $region8: #{open_unmix_forward.15} parent=0 // loop_exit
    _

// kernel: open_unmix_forward.21
$region0: #{open_unmix_forward.21}
  #allocation0 [shape = 'u32[]', space=smem, size = 0x4, offset = 0x4, fixed_abs, tag = 'smem constant byte address 0x4 - core index']
  #allocation1 [shape = 'u32[72,128]{1,0:T(1,128)}', space=vmem, size = 0x9000, scoped, tag = 'internal scratch']
  #allocation2 [shape = 'f32[96,256]{1,0:T(8,128)}', space=vmem, size = 0x18000, scoped, tag = 'scratch operand']
  %s0 = inlined_call_operand.vmem [shape: bf16[96,128], index: 0, kind: input, shape index: {}]
  %s1 = inlined_call_operand.vmem [shape: bf16[128,256], index: 1, kind: input, shape index: {}]
  %s2 = inlined_call_operand.vmem [shape: f32[1,256], index: 2, kind: input, shape index: {}]
  %s3 = inlined_call_operand.vmem [shape: f32[1,256], index: 3, kind: input, shape index: {}]
  %s4 = inlined_call_operand.vmem [shape: bf16[96,256], index: 4, kind: input, shape index: {}]
  %s5 = inlined_call_operand.vmem [shape: f32[96,256], index: 5, kind: output, shape index: {}]
  %s6 = sld [smem:[#allocation0]]
  $region38: #{open_unmix_forward.21} parent=0
    _
  %s8 = ssub.s32 1, %s6
  %s9 = scalar_select 0, %s8, %s6
  // Predicated region
  $region2: #{open_unmix_forward.21} parent=0 // pred_check
    _
  $region3: #{open_unmix_forward.21} parent=0 // pred_check_branch
    %11 = sbr.rel (0) target = $region5
  $region4: #{open_unmix_forward.21} parent=0 // pred_region
    _
  $region5: #{open_unmix_forward.21} parent=0 // pred_fallthru
    _
  // Predicated region
  $region6: #{open_unmix_forward.21} parent=0 // pred_check
    _
  $region7: #{open_unmix_forward.21} parent=0 // pred_check_branch
    %13 = sbr.rel (0) target = $region9
  $region8: #{open_unmix_forward.21} parent=0 // pred_region
    _
  $region9: #{open_unmix_forward.21} parent=0 // pred_fallthru
    _
  // Predicated region
  $region10: #{open_unmix_forward.21} parent=0 // pred_check
    _
  $region11: #{open_unmix_forward.21} parent=0 // pred_check_branch
    %15 = sbr.rel (0) target = $region13
  $region12: #{open_unmix_forward.21} parent=0 // pred_region
    _
  $region13: #{open_unmix_forward.21} parent=0 // pred_fallthru
    _
  // Predicated region
  $region14: #{open_unmix_forward.21} parent=0 // pred_check
    _
  $region15: #{open_unmix_forward.21} parent=0 // pred_check_branch
    %17 = sbr.rel (0) target = $region17
  $region16: #{open_unmix_forward.21} parent=0 // pred_region
    _
  $region17: #{open_unmix_forward.21} parent=0 // pred_fallthru
    _
  // Predicated region
  $region18: #{open_unmix_forward.21} parent=0 // pred_check
    _
  $region19: #{open_unmix_forward.21} parent=0 // pred_check_branch
    %19 = sbr.rel (0) target = $region21
  $region20: #{open_unmix_forward.21} parent=0 // pred_region
    _
  $region21: #{open_unmix_forward.21} parent=0 // pred_fallthru
    _
  %p20 = scmp.eq.s32.totalorder 0, 0
  // Predicated region
  $region22: #{open_unmix_forward.21} parent=0 // pred_check
    %p21 = pneg %p20
  $region23: #{open_unmix_forward.21} parent=0 // pred_check_branch
    %23 = sbr.rel (%p21) target = $region25
  $region24: #{open_unmix_forward.21} parent=0 // pred_region
    %24 = vst [vmem:[#allocation2] sm:$0xff] 0.0
    %25 = vst [vmem:[#allocation2 + $0x8] sm:$0xff] 0.0
    %26 = vst [vmem:[#allocation2 + $0x10] sm:$0xff] 0.0
    %27 = vst [vmem:[#allocation2 + $0x18] sm:$0xff] 0.0
    %28 = vst [vmem:[#allocation2 + $0x20] sm:$0xff] 0.0
    %29 = vst [vmem:[#allocation2 + $0x28] sm:$0xff] 0.0
    %30 = vst [vmem:[#allocation2 + $0x30] sm:$0xff] 0.0
    %31 = vst [vmem:[#allocation2 + $0x38] sm:$0xff] 0.0
    %32 = vst [vmem:[#allocation2 + $0x40] sm:$0xff] 0.0
    %33 = vst [vmem:[#allocation2 + $0x48] sm:$0xff] 0.0
    %34 = vst [vmem:[#allocation2 + $0x50] sm:$0xff] 0.0
    %35 = vst [vmem:[#allocation2 + $0x58] sm:$0xff] 0.0
    %36 = vst [vmem:[#allocation2 + $0x60] sm:$0xff] 0.0
    %37 = vst [vmem:[#allocation2 + $0x68] sm:$0xff] 0.0
    %38 = vst [vmem:[#allocation2 + $0x70] sm:$0xff] 0.0
    %39 = vst [vmem:[#allocation2 + $0x78] sm:$0xff] 0.0
    %40 = vst [vmem:[#allocation2 + $0x80] sm:$0xff] 0.0
    %41 = vst [vmem:[#allocation2 + $0x88] sm:$0xff] 0.0
    %42 = vst [vmem:[#allocation2 + $0x90] sm:$0xff] 0.0
    %43 = vst [vmem:[#allocation2 + $0x98] sm:$0xff] 0.0
    %44 = vst [vmem:[#allocation2 + $0xa0] sm:$0xff] 0.0
    %45 = vst [vmem:[#allocation2 + $0xa8] sm:$0xff] 0.0
    %46 = vst [vmem:[#allocation2 + $0xb0] sm:$0xff] 0.0
    %47 = vst [vmem:[#allocation2 + $0xb8] sm:$0xff] 0.0
  $region25: #{open_unmix_forward.21} parent=0 // pred_fallthru
    _
  %v48 = vld [vmem:[#allocation2] sm:$0xff]
  %v49 = vld [vmem:[#allocation2 + $0x8] sm:$0xff]
  %v50 = vld [vmem:[#allocation2 + $0x10] sm:$0xff]
  %v51 = vld [vmem:[#allocation2 + $0x18] sm:$0xff]
  %v52 = vld [vmem:[#allocation2 + $0x20] sm:$0xff]
  %v53 = vld [vmem:[#allocation2 + $0x28] sm:$0xff]
  %v54 = vld [vmem:[#allocation2 + $0x30] sm:$0xff]
  %v55 = vld [vmem:[#allocation2 + $0x38] sm:$0xff]
  %v56 = vld [vmem:[#allocation2 + $0x40] sm:$0xff]
  %v57 = vld [vmem:[#allocation2 + $0x48] sm:$0xff]
  %v58 = vld [vmem:[#allocation2 + $0x50] sm:$0xff]
  %v59 = vld [vmem:[#allocation2 + $0x58] sm:$0xff]
  %v60 = vld [vmem:[#allocation2 + $0x60] sm:$0xff]
  %v61 = vld [vmem:[#allocation2 + $0x68] sm:$0xff]
  %v62 = vld [vmem:[#allocation2 + $0x70] sm:$0xff]
  %v63 = vld [vmem:[#allocation2 + $0x78] sm:$0xff]
  %v64 = vld [vmem:[#allocation2 + $0x80] sm:$0xff]
  %v65 = vld [vmem:[#allocation2 + $0x88] sm:$0xff]
  %v66 = vld [vmem:[#allocation2 + $0x90] sm:$0xff]
  %v67 = vld [vmem:[#allocation2 + $0x98] sm:$0xff]
  %v68 = vld [vmem:[#allocation2 + $0xa0] sm:$0xff]
  %v69 = vld [vmem:[#allocation2 + $0xa8] sm:$0xff]
  %v70 = vld [vmem:[#allocation2 + $0xb0] sm:$0xff]
  %v71 = vld [vmem:[#allocation2 + $0xb8] sm:$0xff]
  %v72 = vld [vmem:[%s0] sm:$0xf]
  %v73 = vld [vmem:[%s0 + $0x4] sm:$0xf]
  %v74 = vld [vmem:[%s0 + $0x8] sm:$0xf]
  %v75 = vld [vmem:[%s0 + $0xc] sm:$0xf]
  %v76 = vld [vmem:[%s0 + $0x10] sm:$0xf]
  %v77 = vld [vmem:[%s0 + $0x14] sm:$0xf]
  %v78 = vld [vmem:[%s0 + $0x18] sm:$0xf]
  %v79 = vld [vmem:[%s0 + $0x1c] sm:$0xf]
  %v80 = vld [vmem:[%s0 + $0x20] sm:$0xf]
  %v81 = vld [vmem:[%s0 + $0x24] sm:$0xf]
  %v82 = vld [vmem:[%s0 + $0x28] sm:$0xf]
  %v83 = vld [vmem:[%s0 + $0x2c] sm:$0xf]
  %v84 = vld [vmem:[%s1] sm:$0xff]
  %v85 = vld [vmem:[%s1 + $0x8] sm:$0xff]
  %v86 = vld [vmem:[%s1 + $0x10] sm:$0xff]
  %v87 = vld [vmem:[%s1 + $0x18] sm:$0xff]
  %v88 = vld [vmem:[%s1 + $0x20] sm:$0xff]
  %v89 = vld [vmem:[%s1 + $0x28] sm:$0xff]
  %v90 = vld [vmem:[%s1 + $0x30] sm:$0xff]
  %v91 = vld [vmem:[%s1 + $0x38] sm:$0xff]
  %v92 = vld [vmem:[%s1 + $0x40] sm:$0xff]
  %v93 = vld [vmem:[%s1 + $0x48] sm:$0xff]
  %v94 = vld [vmem:[%s1 + $0x50] sm:$0xff]
  %v95 = vld [vmem:[%s1 + $0x58] sm:$0xff]
  %v96 = vld [vmem:[%s1 + $0x60] sm:$0xff]
  %v97 = vld [vmem:[%s1 + $0x68] sm:$0xff]
  %v98 = vld [vmem:[%s1 + $0x70] sm:$0xff]
  %v99 = vld [vmem:[%s1 + $0x78] sm:$0xff]
  %v112 = vunpack.c.l.b16 %v72
  %v113 = vunpack.c.l.b16 %v73
  %v114 = vunpack.c.l.b16 %v74
  %v115 = vunpack.c.l.b16 %v75
  %v116 = vunpack.c.l.b16 %v76
  %v117 = vunpack.c.l.b16 %v77
  %v118 = vunpack.c.l.b16 %v78
  %v119 = vunpack.c.l.b16 %v79
  %v120 = vunpack.c.l.b16 %v80
  %v121 = vunpack.c.l.b16 %v81
  %v122 = vunpack.c.l.b16 %v82
  %v123 = vunpack.c.l.b16 %v83
  %v124 = vpack.c.b16 %v113, %v112
  %v125 = vpack.c.b16 %v115, %v114
  %v126 = vpack.c.b16 %v117, %v116
  %v127 = vpack.c.b16 %v119, %v118
  %v128 = vpack.c.b16 %v121, %v120
  %v129 = vpack.c.b16 %v123, %v122
  %v152 = vunpack.c.l.b16 %v84
  %v153 = vunpack.c.h.b16 %v84
  %v154 = vunpack.c.l.b16 %v85
  %v155 = vunpack.c.h.b16 %v85
  %v156 = vunpack.c.l.b16 %v86
  %v157 = vunpack.c.h.b16 %v86
  %v158 = vunpack.c.l.b16 %v87
  %v159 = vunpack.c.h.b16 %v87
  %v160 = vunpack.c.l.b16 %v88
  %v161 = vunpack.c.h.b16 %v88
  %v162 = vunpack.c.l.b16 %v89
  %v163 = vunpack.c.h.b16 %v89
  %v164 = vunpack.c.l.b16 %v90
  %v165 = vunpack.c.h.b16 %v90
  %v166 = vunpack.c.l.b16 %v91
  %v167 = vunpack.c.h.b16 %v91
  %v168 = vunpack.c.l.b16 %v92
  %v169 = vunpack.c.h.b16 %v92
  %v170 = vunpack.c.l.b16 %v93
  %v171 = vunpack.c.h.b16 %v93
  %v172 = vunpack.c.l.b16 %v94
  %v173 = vunpack.c.h.b16 %v94
  %v174 = vunpack.c.l.b16 %v95
  %v175 = vunpack.c.h.b16 %v95
  %v176 = vunpack.c.l.b16 %v96
  %v177 = vunpack.c.h.b16 %v96
  %v178 = vunpack.c.l.b16 %v97
  %v179 = vunpack.c.h.b16 %v97
  %v180 = vunpack.c.l.b16 %v98
  %v181 = vunpack.c.h.b16 %v98
  %v182 = vunpack.c.l.b16 %v99
  %v183 = vunpack.c.h.b16 %v99
  %v184 = vpack.c.b16 %v154, %v152
  %v185 = vpack.c.b16 %v155, %v153
  %v186 = vpack.c.b16 %v158, %v156
  %v187 = vpack.c.b16 %v159, %v157
  %v188 = vpack.c.b16 %v162, %v160
  %v189 = vpack.c.b16 %v163, %v161
  %v190 = vpack.c.b16 %v166, %v164
  %v191 = vpack.c.b16 %v167, %v165
  %v192 = vpack.c.b16 %v170, %v168
  %v193 = vpack.c.b16 %v171, %v169
  %v194 = vpack.c.b16 %v174, %v172
  %v195 = vpack.c.b16 %v175, %v173
  %v196 = vpack.c.b16 %v178, %v176
  %v197 = vpack.c.b16 %v179, %v177
  %v198 = vpack.c.b16 %v182, %v180
  %v199 = vpack.c.b16 %v183, %v181
  %216 = vmatpush.bf16.msra.mxu0 %v198
  %217 = vmatpush.bf16.msra.mxu0 %v196
  %218 = vmatpush.bf16.msra.mxu0 %v194
  %219 = vmatpush.bf16.msra.mxu0 %v192
  %220 = vmatpush.bf16.msra.mxu0 %v190
  %221 = vmatpush.bf16.msra.mxu0 %v188
  %222 = vmatpush.bf16.msra.mxu0 %v186
  %223 = vmatpush.bf16.msra.mxu0 %v184
  %224 = vmatmul.bf16.gmra.mxu0 %v124
  %v225 = vpop.f32.mrf.mxu0
  %v226 = vadd.f32 0.0, %v225
  %v227 = vpop.f32.mrf.mxu0
  %v228 = vadd.f32 0.0, %v227
  %229 = vmatmul.bf16.gmra.mxu0 %v125
  %v230 = vpop.f32.mrf.mxu0
  %v231 = vadd.f32 0.0, %v230
  %v232 = vpop.f32.mrf.mxu0
  %v233 = vadd.f32 0.0, %v232
  %234 = vmatmul.bf16.gmra.mxu0 %v126
  %v235 = vpop.f32.mrf.mxu0
  %v236 = vadd.f32 0.0, %v235
  %v237 = vpop.f32.mrf.mxu0
  %v238 = vadd.f32 0.0, %v237
  %239 = vmatmul.bf16.gmra.mxu0 %v127
  %v240 = vpop.f32.mrf.mxu0
  %v241 = vadd.f32 0.0, %v240
  %v242 = vpop.f32.mrf.mxu0
  %v243 = vadd.f32 0.0, %v242
  %244 = vmatmul.bf16.gmra.mxu0 %v128
  %v245 = vpop.f32.mrf.mxu0
  %v246 = vadd.f32 0.0, %v245
  %v247 = vpop.f32.mrf.mxu0
  %v248 = vadd.f32 0.0, %v247
  %249 = vmatmul.bf16.gmra.mxu0 %v129
  %v250 = vpop.f32.mrf.mxu0
  %v251 = vadd.f32 0.0, %v250
  %v252 = vpop.f32.mrf.mxu0
  %v253 = vadd.f32 0.0, %v252
  %254 = vdwg.mxu0
  %255 = vmatpush.bf16.msra.mxu0 %v199
  %256 = vmatpush.bf16.msra.mxu0 %v197
  %257 = vmatpush.bf16.msra.mxu0 %v195
  %258 = vmatpush.bf16.msra.mxu0 %v193
  %259 = vmatpush.bf16.msra.mxu0 %v191
  %260 = vmatpush.bf16.msra.mxu0 %v189
  %261 = vmatpush.bf16.msra.mxu0 %v187
  %262 = vmatpush.bf16.msra.mxu0 %v185
  %263 = vmatmul.bf16.gmra.mxu0 %v124
  %v264 = vpop.f32.mrf.mxu0
  %v265 = vadd.f32 0.0, %v264
  %v266 = vpop.f32.mrf.mxu0
  %v267 = vadd.f32 0.0, %v266
  %268 = vmatmul.bf16.gmra.mxu0 %v125
  %v269 = vpop.f32.mrf.mxu0
  %v270 = vadd.f32 0.0, %v269
  %v271 = vpop.f32.mrf.mxu0
  %v272 = vadd.f32 0.0, %v271
  %273 = vmatmul.bf16.gmra.mxu0 %v126
  %v274 = vpop.f32.mrf.mxu0
  %v275 = vadd.f32 0.0, %v274
  %v276 = vpop.f32.mrf.mxu0
  %v277 = vadd.f32 0.0, %v276
  %278 = vmatmul.bf16.gmra.mxu0 %v127
  %v279 = vpop.f32.mrf.mxu0
  %v280 = vadd.f32 0.0, %v279
  %v281 = vpop.f32.mrf.mxu0
  %v282 = vadd.f32 0.0, %v281
  %283 = vmatmul.bf16.gmra.mxu0 %v128
  %v284 = vpop.f32.mrf.mxu0
  %v285 = vadd.f32 0.0, %v284
  %v286 = vpop.f32.mrf.mxu0
  %v287 = vadd.f32 0.0, %v286
  %288 = vmatmul.bf16.gmra.mxu0 %v129
  %v289 = vpop.f32.mrf.mxu0
  %v290 = vadd.f32 0.0, %v289
  %v291 = vpop.f32.mrf.mxu0
  %v292 = vadd.f32 0.0, %v291
  %293 = vdwg.mxu0
  %v294 = vadd.f32 %v48, %v226
  %v295 = vadd.f32 %v49, %v265
  %v296 = vadd.f32 %v50, %v228
  %v297 = vadd.f32 %v51, %v267
  %v298 = vadd.f32 %v52, %v231
  %v299 = vadd.f32 %v53, %v270
  %v300 = vadd.f32 %v54, %v233
  %v301 = vadd.f32 %v55, %v272
  %v302 = vadd.f32 %v56, %v236
  %v303 = vadd.f32 %v57, %v275
  %v304 = vadd.f32 %v58, %v238
  %v305 = vadd.f32 %v59, %v277
  %v306 = vadd.f32 %v60, %v241
  %v307 = vadd.f32 %v61, %v280
  %v308 = vadd.f32 %v62, %v243
  %v309 = vadd.f32 %v63, %v282
  %v310 = vadd.f32 %v64, %v246
  %v311 = vadd.f32 %v65, %v285
  %v312 = vadd.f32 %v66, %v248
  %v313 = vadd.f32 %v67, %v287
  %v314 = vadd.f32 %v68, %v251
  %v315 = vadd.f32 %v69, %v290
  %v316 = vadd.f32 %v70, %v253
  %v317 = vadd.f32 %v71, %v292
  %318 = vst [vmem:[#allocation2] sm:$0xff] %v294
  %319 = vst [vmem:[#allocation2 + $0x8] sm:$0xff] %v295
  %320 = vst [vmem:[#allocation2 + $0x10] sm:$0xff] %v296
  %321 = vst [vmem:[#allocation2 + $0x18] sm:$0xff] %v297
  %322 = vst [vmem:[#allocation2 + $0x20] sm:$0xff] %v298
  %323 = vst [vmem:[#allocation2 + $0x28] sm:$0xff] %v299
  %324 = vst [vmem:[#allocation2 + $0x30] sm:$0xff] %v300
  %325 = vst [vmem:[#allocation2 + $0x38] sm:$0xff] %v301
  %326 = vst [vmem:[#allocation2 + $0x40] sm:$0xff] %v302
  %327 = vst [vmem:[#allocation2 + $0x48] sm:$0xff] %v303
  %328 = vst [vmem:[#allocation2 + $0x50] sm:$0xff] %v304
  %329 = vst [vmem:[#allocation2 + $0x58] sm:$0xff] %v305
  %330 = vst [vmem:[#allocation2 + $0x60] sm:$0xff] %v306
  %331 = vst [vmem:[#allocation2 + $0x68] sm:$0xff] %v307
  %332 = vst [vmem:[#allocation2 + $0x70] sm:$0xff] %v308
  %333 = vst [vmem:[#allocation2 + $0x78] sm:$0xff] %v309
  %334 = vst [vmem:[#allocation2 + $0x80] sm:$0xff] %v310
  %335 = vst [vmem:[#allocation2 + $0x88] sm:$0xff] %v311
  %336 = vst [vmem:[#allocation2 + $0x90] sm:$0xff] %v312
  %337 = vst [vmem:[#allocation2 + $0x98] sm:$0xff] %v313
  %338 = vst [vmem:[#allocation2 + $0xa0] sm:$0xff] %v314
  %339 = vst [vmem:[#allocation2 + $0xa8] sm:$0xff] %v315
  %340 = vst [vmem:[#allocation2 + $0xb0] sm:$0xff] %v316
  %341 = vst [vmem:[#allocation2 + $0xb8] sm:$0xff] %v317
  // Predicated region
  $region26: #{open_unmix_forward.21} parent=0 // pred_check
    %p342 = pneg %p20
  $region27: #{open_unmix_forward.21} parent=0 // pred_check_branch
    %344 = sbr.rel (%p342) target = $region29
  $region28: #{open_unmix_forward.21} parent=0 // pred_region
    %v345 = vld [vmem:[#allocation2] sm:$0xff]
    %v346 = vld [vmem:[#allocation2 + $0x8] sm:$0xff]
    %v347 = vld [vmem:[#allocation2 + $0x10] sm:$0xff]
    %v348 = vld [vmem:[#allocation2 + $0x18] sm:$0xff]
    %v349 = vld [vmem:[#allocation2 + $0x20] sm:$0xff]
    %v350 = vld [vmem:[#allocation2 + $0x28] sm:$0xff]
    %v351 = vld [vmem:[#allocation2 + $0x30] sm:$0xff]
    %v352 = vld [vmem:[#allocation2 + $0x38] sm:$0xff]
    %v353 = vld [vmem:[#allocation2 + $0x40] sm:$0xff]
    %v354 = vld [vmem:[#allocation2 + $0x48] sm:$0xff]
    %v355 = vld [vmem:[#allocation2 + $0x50] sm:$0xff]
    %v356 = vld [vmem:[#allocation2 + $0x58] sm:$0xff]
    %v357 = vld [vmem:[#allocation2 + $0x60] sm:$0xff]
    %v358 = vld [vmem:[#allocation2 + $0x68] sm:$0xff]
    %v359 = vld [vmem:[#allocation2 + $0x70] sm:$0xff]
    %v360 = vld [vmem:[#allocation2 + $0x78] sm:$0xff]
    %v361 = vld [vmem:[#allocation2 + $0x80] sm:$0xff]
    %v362 = vld [vmem:[#allocation2 + $0x88] sm:$0xff]
    %v363 = vld [vmem:[#allocation2 + $0x90] sm:$0xff]
    %v364 = vld [vmem:[#allocation2 + $0x98] sm:$0xff]
    %v365 = vld [vmem:[#allocation2 + $0xa0] sm:$0xff]
    %v366 = vld [vmem:[#allocation2 + $0xa8] sm:$0xff]
    %v367 = vld [vmem:[#allocation2 + $0xb0] sm:$0xff]
    %v368 = vld [vmem:[#allocation2 + $0xb8] sm:$0xff]
    %v369 = vld [vmem:[%s2] sm:$0x3]
    %v371 = vperm.slane %v369, 0
    %v372 = vperm.slane %v369, 1
    %v375 = vmul.f32 %v345, %v371
    %v376 = vmul.f32 %v346, %v372
    %v377 = vmul.f32 %v347, %v371
    %v378 = vmul.f32 %v348, %v372
    %v379 = vmul.f32 %v349, %v371
    %v380 = vmul.f32 %v350, %v372
    %v381 = vmul.f32 %v351, %v371
    %v382 = vmul.f32 %v352, %v372
    %v383 = vmul.f32 %v353, %v371
    %v384 = vmul.f32 %v354, %v372
    %v385 = vmul.f32 %v355, %v371
    %v386 = vmul.f32 %v356, %v372
    %v387 = vmul.f32 %v357, %v371
    %v388 = vmul.f32 %v358, %v372
    %v389 = vmul.f32 %v359, %v371
    %v390 = vmul.f32 %v360, %v372
    %v391 = vmul.f32 %v361, %v371
    %v392 = vmul.f32 %v362, %v372
    %v393 = vmul.f32 %v363, %v371
    %v394 = vmul.f32 %v364, %v372
    %v395 = vmul.f32 %v365, %v371
    %v396 = vmul.f32 %v366, %v372
    %v397 = vmul.f32 %v367, %v371
    %v398 = vmul.f32 %v368, %v372
    %v399 = vld [vmem:[%s3] sm:$0x3]
    %v401 = vperm.slane %v399, 0
    %v402 = vperm.slane %v399, 1
    %v405 = vadd.f32 %v375, %v401
    %v406 = vadd.f32 %v376, %v402
    %v407 = vadd.f32 %v377, %v401
    %v408 = vadd.f32 %v378, %v402
    %v409 = vadd.f32 %v379, %v401
    %v410 = vadd.f32 %v380, %v402
    %v411 = vadd.f32 %v381, %v401
    %v412 = vadd.f32 %v382, %v402
    %v413 = vadd.f32 %v383, %v401
    %v414 = vadd.f32 %v384, %v402
    %v415 = vadd.f32 %v385, %v401
    %v416 = vadd.f32 %v386, %v402
    %v417 = vadd.f32 %v387, %v401
    %v418 = vadd.f32 %v388, %v402
    %v419 = vadd.f32 %v389, %v401
    %v420 = vadd.f32 %v390, %v402
    %v421 = vadd.f32 %v391, %v401
    %v422 = vadd.f32 %v392, %v402
    %v423 = vadd.f32 %v393, %v401
    %v424 = vadd.f32 %v394, %v402
    %v425 = vadd.f32 %v395, %v401
    %v426 = vadd.f32 %v396, %v402
    %v427 = vadd.f32 %v397, %v401
    %v428 = vadd.f32 %v398, %v402
    %v429 = vmax.f32 %v405, 0.0
    %v430 = vmax.f32 %v406, 0.0
    %v431 = vmax.f32 %v407, 0.0
    %v432 = vmax.f32 %v408, 0.0
    %v433 = vmax.f32 %v409, 0.0
    %v434 = vmax.f32 %v410, 0.0
    %v435 = vmax.f32 %v411, 0.0
    %v436 = vmax.f32 %v412, 0.0
    %v437 = vmax.f32 %v413, 0.0
    %v438 = vmax.f32 %v414, 0.0
    %v439 = vmax.f32 %v415, 0.0
    %v440 = vmax.f32 %v416, 0.0
    %v441 = vmax.f32 %v417, 0.0
    %v442 = vmax.f32 %v418, 0.0
    %v443 = vmax.f32 %v419, 0.0
    %v444 = vmax.f32 %v420, 0.0
    %v445 = vmax.f32 %v421, 0.0
    %v446 = vmax.f32 %v422, 0.0
    %v447 = vmax.f32 %v423, 0.0
    %v448 = vmax.f32 %v424, 0.0
    %v449 = vmax.f32 %v425, 0.0
    %v450 = vmax.f32 %v426, 0.0
    %v451 = vmax.f32 %v427, 0.0
    %v452 = vmax.f32 %v428, 0.0
    %v453 = vld [vmem:[%s4] sm:$0xff]
    %v454 = vld [vmem:[%s4 + $0x8] sm:$0xff]
    %v455 = vld [vmem:[%s4 + $0x10] sm:$0xff]
    %v456 = vld [vmem:[%s4 + $0x18] sm:$0xff]
    %v457 = vld [vmem:[%s4 + $0x20] sm:$0xff]
    %v458 = vld [vmem:[%s4 + $0x28] sm:$0xff]
    %v459 = vld [vmem:[%s4 + $0x30] sm:$0xff]
    %v460 = vld [vmem:[%s4 + $0x38] sm:$0xff]
    %v461 = vld [vmem:[%s4 + $0x40] sm:$0xff]
    %v462 = vld [vmem:[%s4 + $0x48] sm:$0xff]
    %v463 = vld [vmem:[%s4 + $0x50] sm:$0xff]
    %v464 = vld [vmem:[%s4 + $0x58] sm:$0xff]
    %v465 = vunpack.c.l.bf16 %v453
    %v466 = vunpack.c.h.bf16 %v453
    %v467 = vunpack.c.l.bf16 %v454
    %v468 = vunpack.c.h.bf16 %v454
    %v469 = vunpack.c.l.bf16 %v455
    %v470 = vunpack.c.h.bf16 %v455
    %v471 = vunpack.c.l.bf16 %v456
    %v472 = vunpack.c.h.bf16 %v456
    %v473 = vunpack.c.l.bf16 %v457
    %v474 = vunpack.c.h.bf16 %v457
    %v475 = vunpack.c.l.bf16 %v458
    %v476 = vunpack.c.h.bf16 %v458
    %v477 = vunpack.c.l.bf16 %v459
    %v478 = vunpack.c.h.bf16 %v459
    %v479 = vunpack.c.l.bf16 %v460
    %v480 = vunpack.c.h.bf16 %v460
    %v481 = vunpack.c.l.bf16 %v461
    %v482 = vunpack.c.h.bf16 %v461
    %v483 = vunpack.c.l.bf16 %v462
    %v484 = vunpack.c.h.bf16 %v462
    %v485 = vunpack.c.l.bf16 %v463
    %v486 = vunpack.c.h.bf16 %v463
    %v487 = vunpack.c.l.bf16 %v464
    %v488 = vunpack.c.h.bf16 %v464
    %v489 = vmul.f32 %v429, %v465
    %v490 = vmul.f32 %v430, %v466
    %v491 = vmul.f32 %v431, %v467
    %v492 = vmul.f32 %v432, %v468
    %v493 = vmul.f32 %v433, %v469
    %v494 = vmul.f32 %v434, %v470
    %v495 = vmul.f32 %v435, %v471
    %v496 = vmul.f32 %v436, %v472
    %v497 = vmul.f32 %v437, %v473
    %v498 = vmul.f32 %v438, %v474
    %v499 = vmul.f32 %v439, %v475
    %v500 = vmul.f32 %v440, %v476
    %v501 = vmul.f32 %v441, %v477
    %v502 = vmul.f32 %v442, %v478
    %v503 = vmul.f32 %v443, %v479
    %v504 = vmul.f32 %v444, %v480
    %v505 = vmul.f32 %v445, %v481
    %v506 = vmul.f32 %v446, %v482
    %v507 = vmul.f32 %v447, %v483
    %v508 = vmul.f32 %v448, %v484
    %v509 = vmul.f32 %v449, %v485
    %v510 = vmul.f32 %v450, %v486
    %v511 = vmul.f32 %v451, %v487
    %v512 = vmul.f32 %v452, %v488
    %513 = vst [vmem:[%s5] sm:$0xff] %v489
    %514 = vst [vmem:[%s5 + $0x8] sm:$0xff] %v490
    %515 = vst [vmem:[%s5 + $0x10] sm:$0xff] %v491
    %516 = vst [vmem:[%s5 + $0x18] sm:$0xff] %v492
    %517 = vst [vmem:[%s5 + $0x20] sm:$0xff] %v493
    %518 = vst [vmem:[%s5 + $0x28] sm:$0xff] %v494
    %519 = vst [vmem:[%s5 + $0x30] sm:$0xff] %v495
    %520 = vst [vmem:[%s5 + $0x38] sm:$0xff] %v496
    %521 = vst [vmem:[%s5 + $0x40] sm:$0xff] %v497
    %522 = vst [vmem:[%s5 + $0x48] sm:$0xff] %v498
    %523 = vst [vmem:[%s5 + $0x50] sm:$0xff] %v499
    %524 = vst [vmem:[%s5 + $0x58] sm:$0xff] %v500
    %525 = vst [vmem:[%s5 + $0x60] sm:$0xff] %v501
    %526 = vst [vmem:[%s5 + $0x68] sm:$0xff] %v502
    %527 = vst [vmem:[%s5 + $0x70] sm:$0xff] %v503
    %528 = vst [vmem:[%s5 + $0x78] sm:$0xff] %v504
    %529 = vst [vmem:[%s5 + $0x80] sm:$0xff] %v505
    %530 = vst [vmem:[%s5 + $0x88] sm:$0xff] %v506
    %531 = vst [vmem:[%s5 + $0x90] sm:$0xff] %v507
    %532 = vst [vmem:[%s5 + $0x98] sm:$0xff] %v508
    %533 = vst [vmem:[%s5 + $0xa0] sm:$0xff] %v509
    %534 = vst [vmem:[%s5 + $0xa8] sm:$0xff] %v510
    %535 = vst [vmem:[%s5 + $0xb0] sm:$0xff] %v511
    %536 = vst [vmem:[%s5 + $0xb8] sm:$0xff] %v512
  $region29: #{open_unmix_forward.21} parent=0 // pred_fallthru
    _
  // Predicated region
  $region30: #{open_unmix_forward.21} parent=0 // pred_check
    _
  $region31: #{open_unmix_forward.21} parent=0 // pred_check_branch
    %538 = sbr.rel (0) target = $region33
  $region32: #{open_unmix_forward.21} parent=0 // pred_region
    _
  $region33: #{open_unmix_forward.21} parent=0 // pred_fallthru
    _
  // Predicated region
  $region34: #{open_unmix_forward.21} parent=0 // pred_check
    _
  $region35: #{open_unmix_forward.21} parent=0 // pred_check_branch
    %540 = sbr.rel (0) target = $region37
  $region36: #{open_unmix_forward.21} parent=0 // pred_region
    _
  $region37: #{open_unmix_forward.21} parent=0 // pred_fallthru
    _

</llo_original>
